<compile_context>
chip_gen: v7x
topology: tpu7x:2x2x1
jax: 0.10.0
libtpu: 0.0.40
codegen_flags: <defaults>
</compile_context>

<pallas_src>
import numpy as np
import jax
import jax.numpy as jnp
from jax.experimental import pallas as pl
from jax.experimental.pallas import tpu as pltpu


# ----------------------------- host-side packing -----------------------------

def _pack_convT_weight(w_np, W):
    """Pack ConvTranspose2d(k=4,s=2,p=1) weight (4,4,Cin,Cout) into 3 block
    matrices, one per padded-input-row offset r in {0,1,2} (padded rows h..h+2
    feed output-row pair (2h, 2h+1)).

    Returns (3, W*Cin, 4*W*Cout) with output lane index
        py * (2*W*Cout) + ox * Cout + co        (py = output-row parity).
    """
    kh, kw, Cin, Cout = w_np.shape
    assert kh == 4 and kw == 4
    packs = np.zeros((3, W * Cin, 2, 2 * W, Cout), np.float32)
    for r in range(3):
        for py in range(2):
            ky = py + 3 - 2 * r                    # row-tap for this (py, r)
            if not (0 <= ky <= 3):
                continue
            for ix in range(W):
                for kx in range(4):
                    ox = 2 * ix + kx - 1           # output column (stride 2, pad 1)
                    if 0 <= ox < 2 * W:
                        packs[r, ix * Cin:(ix + 1) * Cin, py, ox, :] = w_np[ky, kx]
    return packs.reshape(3, W * Cin, 4 * W * Cout)


def init_decoder_params(key, c_bottleneck=32, dec_channels=(16, 8, 4, 2),
                        n_out=2, eps=1e-5):
    layers = []
    in_ch = c_bottleneck
    out_chs = list(dec_channels) + [n_out]
    for li, out_ch in enumerate(out_chs):
        key, kw, kg, kb, km, kv = jax.random.split(key, 6)
        w = 0.05 * jax.random.normal(kw, (4, 4, in_ch, out_ch), jnp.float32)
        if li < len(out_chs) - 1:
            gamma = 1.0 + 0.1 * jax.random.normal(kg, (out_ch,), jnp.float32)
            beta = 0.1 * jax.random.normal(kb, (out_ch,), jnp.float32)
            rmean = 0.1 * jax.random.normal(km, (out_ch,), jnp.float32)
            rvar = 1.0 + 0.1 * jax.random.uniform(kv, (out_ch,), jnp.float32)
            scale = gamma / jnp.sqrt(rvar + eps)
            bias = beta - rmean * scale
            act = "relu"
        else:
            scale = jnp.ones((out_ch,), jnp.float32)
            bias = jnp.zeros((out_ch,), jnp.float32)
            act = "sigmoid"
        layers.append(dict(w=w, scale=scale, bias=bias, act=act))
        if li < len(out_chs) - 1:
            in_ch = 2 * out_ch   # next input = concat(upconv output, same-size skip)
    return layers


def prepare_packed(layers, bottleneck_shape):
    """Fold everything foldable on the host.

    Per layer the kernel gets:
      wp[li]: (3, W*Cin_total, 4*W*Cout)  packed ConvT weight, main|skip
              K-concatenated, BatchNorm scale folded into the columns.
      bi[li]: (1, 4*W*Cout)               lane-expanded (folded) BN bias.
    """
    _, C0, H0, W0 = bottleneck_shape
    wp, bi = [], []
    W = W0
    prev_out = None
    for li, layer in enumerate(layers):
        w = np.asarray(layer["w"], np.float32)                  # (4,4,Cin,Cout)
        Cout = w.shape[3]
        if li == 0:
            packs = _pack_convT_weight(w, W)
        else:
            pm = _pack_convT_weight(w[:, :, :prev_out, :], W)   # previous output
            ps = _pack_convT_weight(w[:, :, prev_out:, :], W)   # skip features
            packs = np.concatenate([pm, ps], axis=1)            # K = [main | skip]
        scale = np.asarray(layer["scale"], np.float32).reshape(-1)
        bias = np.asarray(layer["bias"], np.float32).reshape(-1)
        packs = packs * np.tile(scale, 4 * W)[None, None, :]    # fold BN scale
        wp.append(jnp.asarray(packs))
        bi.append(jnp.asarray(np.tile(bias, 4 * W).reshape(1, -1)))
        prev_out = Cout
        W *= 2
    return dict(wp=wp, bi=bi)


# --------------------------------- kernel ------------------------------------

def _make_decoder_kernel(cfgs):
    n = len(cfgs)

    def kernel(*refs):
        c = 0
        bott = refs[c]; c += 1
        skips = refs[c:c + (n - 1)]; c += (n - 1)
        wp = refs[c:c + n]; c += n
        bi = refs[c:c + n]; c += n
        out_ref = refs[c]; c += 1
        xbufs = refs[c:c + n]                 # row-padded layer-input buffers

        # --- stage A: fill padded buffers (skip feats -> upper lane range) ---
        for li in range(n):
            cfg = cfgs[li]
            H = cfg["H"]
            xb = xbufs[li]
            zrow = jnp.zeros((1, xb.shape[1]), jnp.float32)
            xb[0:1, :] = zrow                         # top zero-pad row
            xb[H + 1:H + 2, :] = zrow                 # bottom zero-pad row
            if li == 0:
                xb[1:H + 1, :] = bott[0]
            else:
                Wm = cfg["W"] * cfg["Cin_m"]          # lane offset of skip part
                xb[1:H + 1, Wm:xb.shape[1]] = skips[li - 1][0]

        # --- stage B: 5 fused ConvTranspose(+BN)+act layers, VMEM-resident ---
        for li in range(n):
            cfg = cfgs[li]
            H, W, Cout, act = cfg["H"], cfg["W"], cfg["Cout"], cfg["act"]
            N = 4 * W * Cout          # lanes: [row-parity(2), out-col(2W), out-chan]
            Nh = 2 * W * Cout
            xb = xbufs[li]

            # 3 MXU matmuls (one per vertical tap); main+skip fused in K.
            acc = jnp.dot(xb[0:H, :], wp[li][0],
                          preferred_element_type=jnp.float32)
            acc = acc + jnp.dot(xb[1:1 + H, :], wp[li][1],
                                preferred_element_type=jnp.float32)
            acc = acc + jnp.dot(xb[2:2 + H, :], wp[li][2],
                                preferred_element_type=jnp.float32)

            y = acc + bi[li][...]                     # folded BN affine
            y = jnp.maximum(y, 0.0) if act == "relu" else jax.nn.sigmoid(y)

            if li == n - 1:
                out_ref[0] = y                        # lane-dense (H, 4*W*Cout) slab
            else:
                # interleave output-row pairs into the next buffer's main lanes
                nxt = xbufs[li + 1]
                for h in range(H):
                    nxt[1 + 2 * h:2 + 2 * h, 0:Nh] = y[h:h + 1, 0:Nh]
                    nxt[2 + 2 * h:3 + 2 * h, 0:Nh] = y[h:h + 1, Nh:N]

    return kernel


# --------------------------------- wrapper ------------------------------------

def passive_sep_dec_forward(packed, bottleneck_nchw, lst_skip_feats_nchw):
    """Forward pass of PassiveSepDec.  Inputs/outputs are NCHW (PyTorch convention)."""
    wp, bi = packed["wp"], packed["bi"]
    n = len(wp)
    assert len(lst_skip_feats_nchw) == n - 1
    B, C0, H0, W0 = bottleneck_nchw.shape

    def to2d(x):                      # NCHW -> (B, H, W*C), channels fastest in lanes
        x = jnp.transpose(x, (0, 2, 3, 1))
        b, h, w, c = x.shape
        return x.reshape(b, h, w * c)

    bott2d = to2d(bottleneck_nchw)
    skips2d = [to2d(s) for s in lst_skip_feats_nchw]

    cfgs = []
    H, W = H0, W0
    prev_cout = None
    for li in range(n):
        cin_tot = wp[li].shape[1] // W
        cout = bi[li].shape[1] // (4 * W)
        cin_m = cin_tot if li == 0 else prev_cout
        cfgs.append(dict(H=H, W=W, Cin_m=cin_m, Cin_tot=cin_tot, Cout=cout,
                         act="sigmoid" if li == n - 1 else "relu"))
        prev_cout = cout
        H, W = 2 * H, 2 * W

    Hl, Wl, Col = cfgs[-1]["H"], cfgs[-1]["W"], cfgs[-1]["Cout"]
    N_last = 4 * Wl * Col

    in_specs = [pl.BlockSpec((1, H0, W0 * C0), lambda b: (b, 0, 0))]
    for s in skips2d:
        in_specs.append(pl.BlockSpec((1,) + s.shape[1:], lambda b: (b, 0, 0)))
    for w in wp:
        in_specs.append(pl.BlockSpec(w.shape, lambda b: (0, 0, 0)))
    for v in bi:
        in_specs.append(pl.BlockSpec(v.shape, lambda b: (0, 0)))

    scratch = [pltpu.VMEM((cfg["H"] + 2, cfg["W"] * cfg["Cin_tot"]), jnp.float32)
               for cfg in cfgs]

    out = pl.pallas_call(
        _make_decoder_kernel(cfgs),
        out_shape=jax.ShapeDtypeStruct((B, Hl, N_last), jnp.float32),
        grid=(B,),
        in_specs=in_specs,
        out_specs=pl.BlockSpec((1, Hl, N_last), lambda b: (b, 0, 0)),
        scratch_shapes=scratch,
        compiler_params=pltpu.CompilerParams(
            dimension_semantics=("parallel",),
            vmem_limit_bytes=32 * 1024 * 1024),
    )(bott2d, *skips2d, *wp, *bi)

    # (b, h, py*2W*Co + ox*Co + co) -> NCHW (b, co, 2h+py, ox)
    out = out.reshape(B, Hl, 2, 2 * Wl, Col)
    out = jnp.transpose(out, (0, 4, 1, 2, 3)).reshape(B, Col, 2 * Hl, 2 * Wl)
    return out


# ------------------------- numpy reference (for checking) ---------------------

def _np_upconv(x, w, scale, bias, act):
    x = np.asarray(x, np.float32)
    w = np.asarray(w, np.float32)
    B, H, W, Ci = x.shape
    Co = w.shape[-1]
    yfull = np.zeros((B, 2 * H + 2, 2 * W + 2, Co), np.float32)
    for ky in range(4):
        for kx in range(4):
            contrib = np.einsum("bhwi,io->bhwo", x, w[ky, kx])
            yfull[:, ky:ky + 2 * H:2, kx:kx + 2 * W:2, :] += contrib
    y = yfull[:, 1:2 * H + 1, 1:2 * W + 1, :]
    y = y * np.asarray(scale).reshape(1, 1, 1, -1) + np.asarray(bias).reshape(1, 1, 1, -1)
    if act == "relu":
        return np.maximum(y, 0.0)
    return 1.0 / (1.0 + np.exp(-y))


def _np_forward(layers, bottleneck, skips):
    x = np.transpose(np.asarray(bottleneck), (0, 2, 3, 1))
    sk = [np.transpose(np.asarray(s), (0, 2, 3, 1)) for s in skips]
    x = _np_upconv(x, layers[0]["w"], layers[0]["scale"], layers[0]["bias"], layers[0]["act"])
    for i in range(1, len(layers)):
        x = np.concatenate([x, sk[i - 1]], axis=-1)
        x = _np_upconv(x, layers[i]["w"], layers[i]["scale"], layers[i]["bias"], layers[i]["act"])
    return np.transpose(x, (0, 3, 1, 2))


if __name__ == "__main__":
    key = jax.random.PRNGKey(0)
    kparam, kb, k0, k1, k2, k3 = jax.random.split(key, 6)
    layers = init_decoder_params(kparam)

    B = 2
    bottleneck = jax.random.normal(kb, (B, 32, 4, 4), jnp.float32)        # NCHW
    skip_shapes = [(B, 16, 8, 8), (B, 8, 16, 16), (B, 4, 32, 32), (B, 2, 64, 64)]
    skips = [jax.random.normal(k, s, jnp.float32)
             for k, s in zip((k0, k1, k2, k3), skip_shapes)]

    packed = prepare_packed(layers, bottleneck.shape)

    fwd = jax.jit(passive_sep_dec_forward)
    out = fwd(packed, bottleneck, skips)
    out = jax.block_until_ready(out)
    assert out.shape == (B, 2, 128, 128), out.shape

    ref = _np_forward(layers, bottleneck, skips)
    np.testing.assert_allclose(np.asarray(out), ref, rtol=2e-3, atol=2e-3)

    print("KERNEL_OK")
</pallas_src>

<mosaic_0001>
module attributes {stable_mosaic.version = 11 : i64} {
  func.func @kernel(%arg0: i32, %arg1: memref<1x4x128xf32, #tpu.memory_space<vmem>>, %arg2: memref<1x8x128xf32, #tpu.memory_space<vmem>>, %arg3: memref<1x16x128xf32, #tpu.memory_space<vmem>>, %arg4: memref<1x32x128xf32, #tpu.memory_space<vmem>>, %arg5: memref<1x64x128xf32, #tpu.memory_space<vmem>>, %arg6: memref<3x128x256xf32, #tpu.memory_space<vmem>>, %arg7: memref<3x256x256xf32, #tpu.memory_space<vmem>>, %arg8: memref<3x256x256xf32, #tpu.memory_space<vmem>>, %arg9: memref<3x256x256xf32, #tpu.memory_space<vmem>>, %arg10: memref<3x256x512xf32, #tpu.memory_space<vmem>>, %arg11: memref<1x256xf32, #tpu.memory_space<vmem>>, %arg12: memref<1x256xf32, #tpu.memory_space<vmem>>, %arg13: memref<1x256xf32, #tpu.memory_space<vmem>>, %arg14: memref<1x256xf32, #tpu.memory_space<vmem>>, %arg15: memref<1x512xf32, #tpu.memory_space<vmem>>, %arg16: memref<1x64x512xf32, #tpu.memory_space<vmem>>, %arg17: memref<6x128xf32, #tpu.memory_space<vmem>>, %arg18: memref<10x256xf32, #tpu.memory_space<vmem>>, %arg19: memref<18x256xf32, #tpu.memory_space<vmem>>, %arg20: memref<34x256xf32, #tpu.memory_space<vmem>>, %arg21: memref<66x256xf32, #tpu.memory_space<vmem>>) attributes {dimension_semantics = [#tpu.dimension_semantics<parallel>], iteration_bounds = array<i64: 2>, scalar_prefetch = 0 : i64, scratch_operands = 5 : i64, tpu.core_type = #tpu.core_type<tc>, window_params = [{transform_indices = @transform_0, window_bounds = array<i64: 1, 4, 128>}, {transform_indices = @transform_1, window_bounds = array<i64: 1, 8, 128>}, {transform_indices = @transform_2, window_bounds = array<i64: 1, 16, 128>}, {transform_indices = @transform_3, window_bounds = array<i64: 1, 32, 128>}, {transform_indices = @transform_4, window_bounds = array<i64: 1, 64, 128>}, {pipeline_mode = #tpu.pipeline_mode<synchronous>, transform_indices = @transform_5, window_bounds = array<i64: 3, 128, 256>}, {pipeline_mode = #tpu.pipeline_mode<synchronous>, transform_indices = @transform_6, window_bounds = array<i64: 3, 256, 256>}, {pipeline_mode = #tpu.pipeline_mode<synchronous>, transform_indices = @transform_7, window_bounds = array<i64: 3, 256, 256>}, {pipeline_mode = #tpu.pipeline_mode<synchronous>, transform_indices = @transform_8, window_bounds = array<i64: 3, 256, 256>}, {pipeline_mode = #tpu.pipeline_mode<synchronous>, transform_indices = @transform_9, window_bounds = array<i64: 3, 256, 512>}, {pipeline_mode = #tpu.pipeline_mode<synchronous>, transform_indices = @transform_10, window_bounds = array<i64: 1, 256>}, {pipeline_mode = #tpu.pipeline_mode<synchronous>, transform_indices = @transform_11, window_bounds = array<i64: 1, 256>}, {pipeline_mode = #tpu.pipeline_mode<synchronous>, transform_indices = @transform_12, window_bounds = array<i64: 1, 256>}, {pipeline_mode = #tpu.pipeline_mode<synchronous>, transform_indices = @transform_13, window_bounds = array<i64: 1, 256>}, {pipeline_mode = #tpu.pipeline_mode<synchronous>, transform_indices = @transform_14, window_bounds = array<i64: 1, 512>}, {transform_indices = @transform_15, window_bounds = array<i64: 1, 64, 512>}]} {
    %cst = arith.constant 0.000000e+00 : f32
    %0 = vector.broadcast %cst : f32 to vector<1x128xf32>
    %c0 = arith.constant 0 : index
    %c0_0 = arith.constant 0 : index
    %1 = vector.load %arg17[%c0, %c0_0] : memref<6x128xf32, #tpu.memory_space<vmem>>, vector<1x128xf32>
    tpu.vector_store %arg17[%c0, %c0_0], %0 {strides = array<i32>} : memref<6x128xf32, #tpu.memory_space<vmem>>, vector<1x128xf32>,
    %c5 = arith.constant 5 : index
    %c0_1 = arith.constant 0 : index
    %2 = vector.load %arg17[%c5, %c0_1] : memref<6x128xf32, #tpu.memory_space<vmem>>, vector<1x128xf32>
    tpu.vector_store %arg17[%c5, %c0_1], %0 {strides = array<i32>} : memref<6x128xf32, #tpu.memory_space<vmem>>, vector<1x128xf32>,
    %c0_2 = arith.constant 0 : index
    %c0_3 = arith.constant 0 : index
    %c0_4 = arith.constant 0 : index
    %3 = vector.load %arg1[%c0_2, %c0_3, %c0_4] : memref<1x4x128xf32, #tpu.memory_space<vmem>>, vector<1x4x128xf32>
    %4 = vector.shape_cast %3 : vector<1x4x128xf32> to vector<4x128xf32>
    %c1 = arith.constant 1 : index
    %c0_5 = arith.constant 0 : index
    %5 = vector.load %arg17[%c1, %c0_5] : memref<6x128xf32, #tpu.memory_space<vmem>>, vector<4x128xf32>
    tpu.vector_store %arg17[%c1, %c0_5], %4 {strides = array<i32>} : memref<6x128xf32, #tpu.memory_space<vmem>>, vector<4x128xf32>,
    %cst_6 = arith.constant 0.000000e+00 : f32
    %6 = vector.broadcast %cst_6 : f32 to vector<1x256xf32>
    %c0_7 = arith.constant 0 : index
    %c0_8 = arith.constant 0 : index
    %7 = vector.load %arg18[%c0_7, %c0_8] : memref<10x256xf32, #tpu.memory_space<vmem>>, vector<1x256xf32>
    tpu.vector_store %arg18[%c0_7, %c0_8], %6 {strides = array<i32>} : memref<10x256xf32, #tpu.memory_space<vmem>>, vector<1x256xf32>,
    %c9 = arith.constant 9 : index
    %c0_9 = arith.constant 0 : index
    %8 = vector.load %arg18[%c9, %c0_9] : memref<10x256xf32, #tpu.memory_space<vmem>>, vector<1x256xf32>
    tpu.vector_store %arg18[%c9, %c0_9], %6 {strides = array<i32>} : memref<10x256xf32, #tpu.memory_space<vmem>>, vector<1x256xf32>,
    %c0_10 = arith.constant 0 : index
    %c0_11 = arith.constant 0 : index
    %c0_12 = arith.constant 0 : index
    %9 = vector.load %arg2[%c0_10, %c0_11, %c0_12] : memref<1x8x128xf32, #tpu.memory_space<vmem>>, vector<1x8x128xf32>
    %10 = vector.shape_cast %9 : vector<1x8x128xf32> to vector<8x128xf32>
    %c1_13 = arith.constant 1 : index
    %c128 = arith.constant 128 : index
    %11 = vector.load %arg18[%c1_13, %c128] : memref<10x256xf32, #tpu.memory_space<vmem>>, vector<8x128xf32>
    tpu.vector_store %arg18[%c1_13, %c128], %10 {strides = array<i32>} : memref<10x256xf32, #tpu.memory_space<vmem>>, vector<8x128xf32>,
    %cst_14 = arith.constant 0.000000e+00 : f32
    %12 = vector.broadcast %cst_14 : f32 to vector<1x256xf32>
    %c0_15 = arith.constant 0 : index
    %c0_16 = arith.constant 0 : index
    %13 = vector.load %arg19[%c0_15, %c0_16] : memref<18x256xf32, #tpu.memory_space<vmem>>, vector<1x256xf32>
    tpu.vector_store %arg19[%c0_15, %c0_16], %12 {strides = array<i32>} : memref<18x256xf32, #tpu.memory_space<vmem>>, vector<1x256xf32>,
    %c17 = arith.constant 17 : index
    %c0_17 = arith.constant 0 : index
    %14 = vector.load %arg19[%c17, %c0_17] : memref<18x256xf32, #tpu.memory_space<vmem>>, vector<1x256xf32>
    tpu.vector_store %arg19[%c17, %c0_17], %12 {strides = array<i32>} : memref<18x256xf32, #tpu.memory_space<vmem>>, vector<1x256xf32>,
    %c0_18 = arith.constant 0 : index
    %c0_19 = arith.constant 0 : index
    %c0_20 = arith.constant 0 : index
    %15 = vector.load %arg3[%c0_18, %c0_19, %c0_20] : memref<1x16x128xf32, #tpu.memory_space<vmem>>, vector<1x16x128xf32>
    %16 = vector.shape_cast %15 : vector<1x16x128xf32> to vector<16x128xf32>
    %c1_21 = arith.constant 1 : index
    %c128_22 = arith.constant 128 : index
    %17 = vector.load %arg19[%c1_21, %c128_22] : memref<18x256xf32, #tpu.memory_space<vmem>>, vector<16x128xf32>
    tpu.vector_store %arg19[%c1_21, %c128_22], %16 {strides = array<i32>} : memref<18x256xf32, #tpu.memory_space<vmem>>, vector<16x128xf32>,
    %cst_23 = arith.constant 0.000000e+00 : f32
    %18 = vector.broadcast %cst_23 : f32 to vector<1x256xf32>
    %c0_24 = arith.constant 0 : index
    %c0_25 = arith.constant 0 : index
    %19 = vector.load %arg20[%c0_24, %c0_25] : memref<34x256xf32, #tpu.memory_space<vmem>>, vector<1x256xf32>
    tpu.vector_store %arg20[%c0_24, %c0_25], %18 {strides = array<i32>} : memref<34x256xf32, #tpu.memory_space<vmem>>, vector<1x256xf32>,
    %c33 = arith.constant 33 : index
    %c0_26 = arith.constant 0 : index
    %20 = vector.load %arg20[%c33, %c0_26] : memref<34x256xf32, #tpu.memory_space<vmem>>, vector<1x256xf32>
    tpu.vector_store %arg20[%c33, %c0_26], %18 {strides = array<i32>} : memref<34x256xf32, #tpu.memory_space<vmem>>, vector<1x256xf32>,
    %c0_27 = arith.constant 0 : index
    %c0_28 = arith.constant 0 : index
    %c0_29 = arith.constant 0 : index
    %21 = vector.load %arg4[%c0_27, %c0_28, %c0_29] : memref<1x32x128xf32, #tpu.memory_space<vmem>>, vector<1x32x128xf32>
    %22 = vector.shape_cast %21 : vector<1x32x128xf32> to vector<32x128xf32>
    %c1_30 = arith.constant 1 : index
    %c128_31 = arith.constant 128 : index
    %23 = vector.load %arg20[%c1_30, %c128_31] : memref<34x256xf32, #tpu.memory_space<vmem>>, vector<32x128xf32>
    tpu.vector_store %arg20[%c1_30, %c128_31], %22 {strides = array<i32>} : memref<34x256xf32, #tpu.memory_space<vmem>>, vector<32x128xf32>,
    %cst_32 = arith.constant 0.000000e+00 : f32
    %24 = vector.broadcast %cst_32 : f32 to vector<1x256xf32>
    %c0_33 = arith.constant 0 : index
    %c0_34 = arith.constant 0 : index
    %25 = vector.load %arg21[%c0_33, %c0_34] : memref<66x256xf32, #tpu.memory_space<vmem>>, vector<1x256xf32>
    tpu.vector_store %arg21[%c0_33, %c0_34], %24 {strides = array<i32>} : memref<66x256xf32, #tpu.memory_space<vmem>>, vector<1x256xf32>,
    %c65 = arith.constant 65 : index
    %c0_35 = arith.constant 0 : index
    %26 = vector.load %arg21[%c65, %c0_35] : memref<66x256xf32, #tpu.memory_space<vmem>>, vector<1x256xf32>
    tpu.vector_store %arg21[%c65, %c0_35], %24 {strides = array<i32>} : memref<66x256xf32, #tpu.memory_space<vmem>>, vector<1x256xf32>,
    %c0_36 = arith.constant 0 : index
    %c0_37 = arith.constant 0 : index
    %c0_38 = arith.constant 0 : index
    %27 = vector.load %arg5[%c0_36, %c0_37, %c0_38] : memref<1x64x128xf32, #tpu.memory_space<vmem>>, vector<1x64x128xf32>
    %28 = vector.shape_cast %27 : vector<1x64x128xf32> to vector<64x128xf32>
    %c1_39 = arith.constant 1 : index
    %c128_40 = arith.constant 128 : index
    %29 = vector.load %arg21[%c1_39, %c128_40] : memref<66x256xf32, #tpu.memory_space<vmem>>, vector<64x128xf32>
    tpu.vector_store %arg21[%c1_39, %c128_40], %28 {strides = array<i32>} : memref<66x256xf32, #tpu.memory_space<vmem>>, vector<64x128xf32>,
    %c0_41 = arith.constant 0 : index
    %c0_42 = arith.constant 0 : index
    %30 = vector.load %arg17[%c0_41, %c0_42] : memref<6x128xf32, #tpu.memory_space<vmem>>, vector<4x128xf32>
    %c0_43 = arith.constant 0 : index
    %c0_44 = arith.constant 0 : index
    %c0_45 = arith.constant 0 : index
    %31 = vector.load %arg6[%c0_43, %c0_44, %c0_45] : memref<3x128x256xf32, #tpu.memory_space<vmem>>, vector<1x128x256xf32>
    %32 = vector.shape_cast %31 : vector<1x128x256xf32> to vector<128x256xf32>
    %cst_46 = arith.constant dense<0.000000e+00> : vector<4x256xf32>
    %33 = tpu.matmul %30, %32, %cst_46 {dimension_numbers = #tpu.dot_dimension_numbers<[1], [0], [0], [1], [0, 0, 1, 1], [], []>} : vector<4x128xf32>, vector<128x256xf32>, vector<4x256xf32> -> vector<4x256xf32>
    %c1_47 = arith.constant 1 : index
    %c0_48 = arith.constant 0 : index
    %34 = vector.load %arg17[%c1_47, %c0_48] : memref<6x128xf32, #tpu.memory_space<vmem>>, vector<4x128xf32>
    %c1_49 = arith.constant 1 : index
    %c0_50 = arith.constant 0 : index
    %c0_51 = arith.constant 0 : index
    %35 = vector.load %arg6[%c1_49, %c0_50, %c0_51] : memref<3x128x256xf32, #tpu.memory_space<vmem>>, vector<1x128x256xf32>
    %36 = vector.shape_cast %35 : vector<1x128x256xf32> to vector<128x256xf32>
    %cst_52 = arith.constant dense<0.000000e+00> : vector<4x256xf32>
    %37 = tpu.matmul %34, %36, %cst_52 {dimension_numbers = #tpu.dot_dimension_numbers<[1], [0], [0], [1], [0, 0, 1, 1], [], []>} : vector<4x128xf32>, vector<128x256xf32>, vector<4x256xf32> -> vector<4x256xf32>
    %38 = arith.addf %33, %37 : vector<4x256xf32>
    %c2 = arith.constant 2 : index
    %c0_53 = arith.constant 0 : index
    %39 = vector.load %arg17[%c2, %c0_53] : memref<6x128xf32, #tpu.memory_space<vmem>>, vector<4x128xf32>
    %c2_54 = arith.constant 2 : index
    %c0_55 = arith.constant 0 : index
    %c0_56 = arith.constant 0 : index
    %40 = vector.load %arg6[%c2_54, %c0_55, %c0_56] : memref<3x128x256xf32, #tpu.memory_space<vmem>>, vector<1x128x256xf32>
    %41 = vector.shape_cast %40 : vector<1x128x256xf32> to vector<128x256xf32>
    %cst_57 = arith.constant dense<0.000000e+00> : vector<4x256xf32>
    %42 = tpu.matmul %39, %41, %cst_57 {dimension_numbers = #tpu.dot_dimension_numbers<[1], [0], [0], [1], [0, 0, 1, 1], [], []>} : vector<4x128xf32>, vector<128x256xf32>, vector<4x256xf32> -> vector<4x256xf32>
    %43 = arith.addf %38, %42 : vector<4x256xf32>
    %c0_58 = arith.constant 0 : index
    %c0_59 = arith.constant 0 : index
    %44 = vector.load %arg11[%c0_58, %c0_59] : memref<1x256xf32, #tpu.memory_space<vmem>>, vector<1x256xf32>
    %45 = vector.broadcast %44 : vector<1x256xf32> to vector<4x256xf32>
    %46 = arith.addf %43, %45 : vector<4x256xf32>
    %cst_60 = arith.constant 0.000000e+00 : f32
    %47 = vector.broadcast %cst_60 : f32 to vector<4x256xf32>
    %48 = arith.maximumf %46, %47 : vector<4x256xf32>
    %49 = vector.extract_strided_slice %48 {offsets = [0, 0], sizes = [1, 128], strides = [1, 1]} : vector<4x256xf32> to vector<1x128xf32>
    %c1_61 = arith.constant 1 : index
    %c0_62 = arith.constant 0 : index
    %50 = vector.load %arg18[%c1_61, %c0_62] : memref<10x256xf32, #tpu.memory_space<vmem>>, vector<1x128xf32>
    tpu.vector_store %arg18[%c1_61, %c0_62], %49 {strides = array<i32>} : memref<10x256xf32, #tpu.memory_space<vmem>>, vector<1x128xf32>,
    %51 = vector.extract_strided_slice %48 {offsets = [0, 128], sizes = [1, 128], strides = [1, 1]} : vector<4x256xf32> to vector<1x128xf32>
    %c2_63 = arith.constant 2 : index
    %c0_64 = arith.constant 0 : index
    %52 = vector.load %arg18[%c2_63, %c0_64] : memref<10x256xf32, #tpu.memory_space<vmem>>, vector<1x128xf32>
    tpu.vector_store %arg18[%c2_63, %c0_64], %51 {strides = array<i32>} : memref<10x256xf32, #tpu.memory_space<vmem>>, vector<1x128xf32>,
    %53 = vector.extract_strided_slice %48 {offsets = [1, 0], sizes = [1, 128], strides = [1, 1]} : vector<4x256xf32> to vector<1x128xf32>
    %c3 = arith.constant 3 : index
    %c0_65 = arith.constant 0 : index
    %54 = vector.load %arg18[%c3, %c0_65] : memref<10x256xf32, #tpu.memory_space<vmem>>, vector<1x128xf32>
    tpu.vector_store %arg18[%c3, %c0_65], %53 {strides = array<i32>} : memref<10x256xf32, #tpu.memory_space<vmem>>, vector<1x128xf32>,
    %55 = vector.extract_strided_slice %48 {offsets = [1, 128], sizes = [1, 128], strides = [1, 1]} : vector<4x256xf32> to vector<1x128xf32>
    %c4 = arith.constant 4 : index
    %c0_66 = arith.constant 0 : index
    %56 = vector.load %arg18[%c4, %c0_66] : memref<10x256xf32, #tpu.memory_space<vmem>>, vector<1x128xf32>
    tpu.vector_store %arg18[%c4, %c0_66], %55 {strides = array<i32>} : memref<10x256xf32, #tpu.memory_space<vmem>>, vector<1x128xf32>,
    %57 = vector.extract_strided_slice %48 {offsets = [2, 0], sizes = [1, 128], strides = [1, 1]} : vector<4x256xf32> to vector<1x128xf32>
    %c5_67 = arith.constant 5 : index
    %c0_68 = arith.constant 0 : index
    %58 = vector.load %arg18[%c5_67, %c0_68] : memref<10x256xf32, #tpu.memory_space<vmem>>, vector<1x128xf32>
    tpu.vector_store %arg18[%c5_67, %c0_68], %57 {strides = array<i32>} : memref<10x256xf32, #tpu.memory_space<vmem>>, vector<1x128xf32>,
    %59 = vector.extract_strided_slice %48 {offsets = [2, 128], sizes = [1, 128], strides = [1, 1]} : vector<4x256xf32> to vector<1x128xf32>
    %c6 = arith.constant 6 : index
    %c0_69 = arith.constant 0 : index
    %60 = vector.load %arg18[%c6, %c0_69] : memref<10x256xf32, #tpu.memory_space<vmem>>, vector<1x128xf32>
    tpu.vector_store %arg18[%c6, %c0_69], %59 {strides = array<i32>} : memref<10x256xf32, #tpu.memory_space<vmem>>, vector<1x128xf32>,
    %61 = vector.extract_strided_slice %48 {offsets = [3, 0], sizes = [1, 128], strides = [1, 1]} : vector<4x256xf32> to vector<1x128xf32>
    %c7 = arith.constant 7 : index
    %c0_70 = arith.constant 0 : index
    %62 = vector.load %arg18[%c7, %c0_70] : memref<10x256xf32, #tpu.memory_space<vmem>>, vector<1x128xf32>
    tpu.vector_store %arg18[%c7, %c0_70], %61 {strides = array<i32>} : memref<10x256xf32, #tpu.memory_space<vmem>>, vector<1x128xf32>,
    %63 = vector.extract_strided_slice %48 {offsets = [3, 128], sizes = [1, 128], strides = [1, 1]} : vector<4x256xf32> to vector<1x128xf32>
    %c8 = arith.constant 8 : index
    %c0_71 = arith.constant 0 : index
    %64 = vector.load %arg18[%c8, %c0_71] : memref<10x256xf32, #tpu.memory_space<vmem>>, vector<1x128xf32>
    tpu.vector_store %arg18[%c8, %c0_71], %63 {strides = array<i32>} : memref<10x256xf32, #tpu.memory_space<vmem>>, vector<1x128xf32>,
    %c0_72 = arith.constant 0 : index
    %c0_73 = arith.constant 0 : index
    %65 = vector.load %arg18[%c0_72, %c0_73] : memref<10x256xf32, #tpu.memory_space<vmem>>, vector<8x256xf32>
    %c0_74 = arith.constant 0 : index
    %c0_75 = arith.constant 0 : index
    %c0_76 = arith.constant 0 : index
    %66 = vector.load %arg7[%c0_74, %c0_75, %c0_76] : memref<3x256x256xf32, #tpu.memory_space<vmem>>, vector<1x256x256xf32>
    %67 = vector.shape_cast %66 : vector<1x256x256xf32> to vector<256x256xf32>
    %cst_77 = arith.constant dense<0.000000e+00> : vector<8x256xf32>
    %68 = tpu.matmul %65, %67, %cst_77 {dimension_numbers = #tpu.dot_dimension_numbers<[1], [0], [0], [1], [0, 0, 1, 1], [], []>} : vector<8x256xf32>, vector<256x256xf32>, vector<8x256xf32> -> vector<8x256xf32>
    %c1_78 = arith.constant 1 : index
    %c0_79 = arith.constant 0 : index
    %69 = vector.load %arg18[%c1_78, %c0_79] : memref<10x256xf32, #tpu.memory_space<vmem>>, vector<8x256xf32>
    %c1_80 = arith.constant 1 : index
    %c0_81 = arith.constant 0 : index
    %c0_82 = arith.constant 0 : index
    %70 = vector.load %arg7[%c1_80, %c0_81, %c0_82] : memref<3x256x256xf32, #tpu.memory_space<vmem>>, vector<1x256x256xf32>
    %71 = vector.shape_cast %70 : vector<1x256x256xf32> to vector<256x256xf32>
    %cst_83 = arith.constant dense<0.000000e+00> : vector<8x256xf32>
    %72 = tpu.matmul %69, %71, %cst_83 {dimension_numbers = #tpu.dot_dimension_numbers<[1], [0], [0], [1], [0, 0, 1, 1], [], []>} : vector<8x256xf32>, vector<256x256xf32>, vector<8x256xf32> -> vector<8x256xf32>
    %73 = arith.addf %68, %72 : vector<8x256xf32>
    %c2_84 = arith.constant 2 : index
    %c0_85 = arith.constant 0 : index
    %74 = vector.load %arg18[%c2_84, %c0_85] : memref<10x256xf32, #tpu.memory_space<vmem>>, vector<8x256xf32>
    %c2_86 = arith.constant 2 : index
    %c0_87 = arith.constant 0 : index
    %c0_88 = arith.constant 0 : index
    %75 = vector.load %arg7[%c2_86, %c0_87, %c0_88] : memref<3x256x256xf32, #tpu.memory_space<vmem>>, vector<1x256x256xf32>
    %76 = vector.shape_cast %75 : vector<1x256x256xf32> to vector<256x256xf32>
    %cst_89 = arith.constant dense<0.000000e+00> : vector<8x256xf32>
    %77 = tpu.matmul %74, %76, %cst_89 {dimension_numbers = #tpu.dot_dimension_numbers<[1], [0], [0], [1], [0, 0, 1, 1], [], []>} : vector<8x256xf32>, vector<256x256xf32>, vector<8x256xf32> -> vector<8x256xf32>
    %78 = arith.addf %73, %77 : vector<8x256xf32>
    %c0_90 = arith.constant 0 : index
    %c0_91 = arith.constant 0 : index
    %79 = vector.load %arg12[%c0_90, %c0_91] : memref<1x256xf32, #tpu.memory_space<vmem>>, vector<1x256xf32>
    %80 = vector.broadcast %79 : vector<1x256xf32> to vector<8x256xf32>
    %81 = arith.addf %78, %80 : vector<8x256xf32>
    %cst_92 = arith.constant 0.000000e+00 : f32
    %82 = vector.broadcast %cst_92 : f32 to vector<8x256xf32>
    %83 = arith.maximumf %81, %82 : vector<8x256xf32>
    %84 = vector.extract_strided_slice %83 {offsets = [0, 0], sizes = [1, 128], strides = [1, 1]} : vector<8x256xf32> to vector<1x128xf32>
    %c1_93 = arith.constant 1 : index
    %c0_94 = arith.constant 0 : index
    %85 = vector.load %arg19[%c1_93, %c0_94] : memref<18x256xf32, #tpu.memory_space<vmem>>, vector<1x128xf32>
    tpu.vector_store %arg19[%c1_93, %c0_94], %84 {strides = array<i32>} : memref<18x256xf32, #tpu.memory_space<vmem>>, vector<1x128xf32>,
    %86 = vector.extract_strided_slice %83 {offsets = [0, 128], sizes = [1, 128], strides = [1, 1]} : vector<8x256xf32> to vector<1x128xf32>
    %c2_95 = arith.constant 2 : index
    %c0_96 = arith.constant 0 : index
    %87 = vector.load %arg19[%c2_95, %c0_96] : memref<18x256xf32, #tpu.memory_space<vmem>>, vector<1x128xf32>
    tpu.vector_store %arg19[%c2_95, %c0_96], %86 {strides = array<i32>} : memref<18x256xf32, #tpu.memory_space<vmem>>, vector<1x128xf32>,
    %88 = vector.extract_strided_slice %83 {offsets = [1, 0], sizes = [1, 128], strides = [1, 1]} : vector<8x256xf32> to vector<1x128xf32>
    %c3_97 = arith.constant 3 : index
    %c0_98 = arith.constant 0 : index
    %89 = vector.load %arg19[%c3_97, %c0_98] : memref<18x256xf32, #tpu.memory_space<vmem>>, vector<1x128xf32>
    tpu.vector_store %arg19[%c3_97, %c0_98], %88 {strides = array<i32>} : memref<18x256xf32, #tpu.memory_space<vmem>>, vector<1x128xf32>,
    %90 = vector.extract_strided_slice %83 {offsets = [1, 128], sizes = [1, 128], strides = [1, 1]} : vector<8x256xf32> to vector<1x128xf32>
    %c4_99 = arith.constant 4 : index
    %c0_100 = arith.constant 0 : index
    %91 = vector.load %arg19[%c4_99, %c0_100] : memref<18x256xf32, #tpu.memory_space<vmem>>, vector<1x128xf32>
    tpu.vector_store %arg19[%c4_99, %c0_100], %90 {strides = array<i32>} : memref<18x256xf32, #tpu.memory_space<vmem>>, vector<1x128xf32>,
    %92 = vector.extract_strided_slice %83 {offsets = [2, 0], sizes = [1, 128], strides = [1, 1]} : vector<8x256xf32> to vector<1x128xf32>
    %c5_101 = arith.constant 5 : index
    %c0_102 = arith.constant 0 : index
    %93 = vector.load %arg19[%c5_101, %c0_102] : memref<18x256xf32, #tpu.memory_space<vmem>>, vector<1x128xf32>
    tpu.vector_store %arg19[%c5_101, %c0_102], %92 {strides = array<i32>} : memref<18x256xf32, #tpu.memory_space<vmem>>, vector<1x128xf32>,
    %94 = vector.extract_strided_slice %83 {offsets = [2, 128], sizes = [1, 128], strides = [1, 1]} : vector<8x256xf32> to vector<1x128xf32>
    %c6_103 = arith.constant 6 : index
    %c0_104 = arith.constant 0 : index
    %95 = vector.load %arg19[%c6_103, %c0_104] : memref<18x256xf32, #tpu.memory_space<vmem>>, vector<1x128xf32>
    tpu.vector_store %arg19[%c6_103, %c0_104], %94 {strides = array<i32>} : memref<18x256xf32, #tpu.memory_space<vmem>>, vector<1x128xf32>,
    %96 = vector.extract_strided_slice %83 {offsets = [3, 0], sizes = [1, 128], strides = [1, 1]} : vector<8x256xf32> to vector<1x128xf32>
    %c7_105 = arith.constant 7 : index
    %c0_106 = arith.constant 0 : index
    %97 = vector.load %arg19[%c7_105, %c0_106] : memref<18x256xf32, #tpu.memory_space<vmem>>, vector<1x128xf32>
    tpu.vector_store %arg19[%c7_105, %c0_106], %96 {strides = array<i32>} : memref<18x256xf32, #tpu.memory_space<vmem>>, vector<1x128xf32>,
    %98 = vector.extract_strided_slice %83 {offsets = [3, 128], sizes = [1, 128], strides = [1, 1]} : vector<8x256xf32> to vector<1x128xf32>
    %c8_107 = arith.constant 8 : index
    %c0_108 = arith.constant 0 : index
    %99 = vector.load %arg19[%c8_107, %c0_108] : memref<18x256xf32, #tpu.memory_space<vmem>>, vector<1x128xf32>
    tpu.vector_store %arg19[%c8_107, %c0_108], %98 {strides = array<i32>} : memref<18x256xf32, #tpu.memory_space<vmem>>, vector<1x128xf32>,
    %100 = vector.extract_strided_slice %83 {offsets = [4, 0], sizes = [1, 128], strides = [1, 1]} : vector<8x256xf32> to vector<1x128xf32>
    %c9_109 = arith.constant 9 : index
    %c0_110 = arith.constant 0 : index
    %101 = vector.load %arg19[%c9_109, %c0_110] : memref<18x256xf32, #tpu.memory_space<vmem>>, vector<1x128xf32>
    tpu.vector_store %arg19[%c9_109, %c0_110], %100 {strides = array<i32>} : memref<18x256xf32, #tpu.memory_space<vmem>>, vector<1x128xf32>,
    %102 = vector.extract_strided_slice %83 {offsets = [4, 128], sizes = [1, 128], strides = [1, 1]} : vector<8x256xf32> to vector<1x128xf32>
    %c10 = arith.constant 10 : index
    %c0_111 = arith.constant 0 : index
    %103 = vector.load %arg19[%c10, %c0_111] : memref<18x256xf32, #tpu.memory_space<vmem>>, vector<1x128xf32>
    tpu.vector_store %arg19[%c10, %c0_111], %102 {strides = array<i32>} : memref<18x256xf32, #tpu.memory_space<vmem>>, vector<1x128xf32>,
    %104 = vector.extract_strided_slice %83 {offsets = [5, 0], sizes = [1, 128], strides = [1, 1]} : vector<8x256xf32> to vector<1x128xf32>
    %c11 = arith.constant 11 : index
    %c0_112 = arith.constant 0 : index
    %105 = vector.load %arg19[%c11, %c0_112] : memref<18x256xf32, #tpu.memory_space<vmem>>, vector<1x128xf32>
    tpu.vector_store %arg19[%c11, %c0_112], %104 {strides = array<i32>} : memref<18x256xf32, #tpu.memory_space<vmem>>, vector<1x128xf32>,
    %106 = vector.extract_strided_slice %83 {offsets = [5, 128], sizes = [1, 128], strides = [1, 1]} : vector<8x256xf32> to vector<1x128xf32>
    %c12 = arith.constant 12 : index
    %c0_113 = arith.constant 0 : index
    %107 = vector.load %arg19[%c12, %c0_113] : memref<18x256xf32, #tpu.memory_space<vmem>>, vector<1x128xf32>
    tpu.vector_store %arg19[%c12, %c0_113], %106 {strides = array<i32>} : memref<18x256xf32, #tpu.memory_space<vmem>>, vector<1x128xf32>,
    %108 = vector.extract_strided_slice %83 {offsets = [6, 0], sizes = [1, 128], strides = [1, 1]} : vector<8x256xf32> to vector<1x128xf32>
    %c13 = arith.constant 13 : index
    %c0_114 = arith.constant 0 : index
    %109 = vector.load %arg19[%c13, %c0_114] : memref<18x256xf32, #tpu.memory_space<vmem>>, vector<1x128xf32>
    tpu.vector_store %arg19[%c13, %c0_114], %108 {strides = array<i32>} : memref<18x256xf32, #tpu.memory_space<vmem>>, vector<1x128xf32>,
    %110 = vector.extract_strided_slice %83 {offsets = [6, 128], sizes = [1, 128], strides = [1, 1]} : vector<8x256xf32> to vector<1x128xf32>
    %c14 = arith.constant 14 : index
    %c0_115 = arith.constant 0 : index
    %111 = vector.load %arg19[%c14, %c0_115] : memref<18x256xf32, #tpu.memory_space<vmem>>, vector<1x128xf32>
    tpu.vector_store %arg19[%c14, %c0_115], %110 {strides = array<i32>} : memref<18x256xf32, #tpu.memory_space<vmem>>, vector<1x128xf32>,
    %112 = vector.extract_strided_slice %83 {offsets = [7, 0], sizes = [1, 128], strides = [1, 1]} : vector<8x256xf32> to vector<1x128xf32>
    %c15 = arith.constant 15 : index
    %c0_116 = arith.constant 0 : index
    %113 = vector.load %arg19[%c15, %c0_116] : memref<18x256xf32, #tpu.memory_space<vmem>>, vector<1x128xf32>
    tpu.vector_store %arg19[%c15, %c0_116], %112 {strides = array<i32>} : memref<18x256xf32, #tpu.memory_space<vmem>>, vector<1x128xf32>,
    %114 = vector.extract_strided_slice %83 {offsets = [7, 128], sizes = [1, 128], strides = [1, 1]} : vector<8x256xf32> to vector<1x128xf32>
    %c16 = arith.constant 16 : index
    %c0_117 = arith.constant 0 : index
    %115 = vector.load %arg19[%c16, %c0_117] : memref<18x256xf32, #tpu.memory_space<vmem>>, vector<1x128xf32>
    tpu.vector_store %arg19[%c16, %c0_117], %114 {strides = array<i32>} : memref<18x256xf32, #tpu.memory_space<vmem>>, vector<1x128xf32>,
    %c0_118 = arith.constant 0 : index
    %c0_119 = arith.constant 0 : index
    %116 = vector.load %arg19[%c0_118, %c0_119] : memref<18x256xf32, #tpu.memory_space<vmem>>, vector<16x256xf32>
    %c0_120 = arith.constant 0 : index
    %c0_121 = arith.constant 0 : index
    %c0_122 = arith.constant 0 : index
    %117 = vector.load %arg8[%c0_120, %c0_121, %c0_122] : memref<3x256x256xf32, #tpu.memory_space<vmem>>, vector<1x256x256xf32>
    %118 = vector.shape_cast %117 : vector<1x256x256xf32> to vector<256x256xf32>
    %cst_123 = arith.constant dense<0.000000e+00> : vector<16x256xf32>
    %119 = tpu.matmul %116, %118, %cst_123 {dimension_numbers = #tpu.dot_dimension_numbers<[1], [0], [0], [1], [0, 0, 1, 1], [], []>} : vector<16x256xf32>, vector<256x256xf32>, vector<16x256xf32> -> vector<16x256xf32>
    %c1_124 = arith.constant 1 : index
    %c0_125 = arith.constant 0 : index
    %120 = vector.load %arg19[%c1_124, %c0_125] : memref<18x256xf32, #tpu.memory_space<vmem>>, vector<16x256xf32>
    %c1_126 = arith.constant 1 : index
    %c0_127 = arith.constant 0 : index
    %c0_128 = arith.constant 0 : index
    %121 = vector.load %arg8[%c1_126, %c0_127, %c0_128] : memref<3x256x256xf32, #tpu.memory_space<vmem>>, vector<1x256x256xf32>
    %122 = vector.shape_cast %121 : vector<1x256x256xf32> to vector<256x256xf32>
    %cst_129 = arith.constant dense<0.000000e+00> : vector<16x256xf32>
    %123 = tpu.matmul %120, %122, %cst_129 {dimension_numbers = #tpu.dot_dimension_numbers<[1], [0], [0], [1], [0, 0, 1, 1], [], []>} : vector<16x256xf32>, vector<256x256xf32>, vector<16x256xf32> -> vector<16x256xf32>
    %124 = arith.addf %119, %123 : vector<16x256xf32>
    %c2_130 = arith.constant 2 : index
    %c0_131 = arith.constant 0 : index
    %125 = vector.load %arg19[%c2_130, %c0_131] : memref<18x256xf32, #tpu.memory_space<vmem>>, vector<16x256xf32>
    %c2_132 = arith.constant 2 : index
    %c0_133 = arith.constant 0 : index
    %c0_134 = arith.constant 0 : index
    %126 = vector.load %arg8[%c2_132, %c0_133, %c0_134] : memref<3x256x256xf32, #tpu.memory_space<vmem>>, vector<1x256x256xf32>
    %127 = vector.shape_cast %126 : vector<1x256x256xf32> to vector<256x256xf32>
    %cst_135 = arith.constant dense<0.000000e+00> : vector<16x256xf32>
    %128 = tpu.matmul %125, %127, %cst_135 {dimension_numbers = #tpu.dot_dimension_numbers<[1], [0], [0], [1], [0, 0, 1, 1], [], []>} : vector<16x256xf32>, vector<256x256xf32>, vector<16x256xf32> -> vector<16x256xf32>
    %129 = arith.addf %124, %128 : vector<16x256xf32>
    %c0_136 = arith.constant 0 : index
    %c0_137 = arith.constant 0 : index
    %130 = vector.load %arg13[%c0_136, %c0_137] : memref<1x256xf32, #tpu.memory_space<vmem>>, vector<1x256xf32>
    %131 = vector.broadcast %130 : vector<1x256xf32> to vector<16x256xf32>
    %132 = arith.addf %129, %131 : vector<16x256xf32>
    %cst_138 = arith.constant 0.000000e+00 : f32
    %133 = vector.broadcast %cst_138 : f32 to vector<16x256xf32>
    %134 = arith.maximumf %132, %133 : vector<16x256xf32>
    %135 = vector.extract_strided_slice %134 {offsets = [0, 0], sizes = [1, 128], strides = [1, 1]} : vector<16x256xf32> to vector<1x128xf32>
    %c1_139 = arith.constant 1 : index
    %c0_140 = arith.constant 0 : index
    %136 = vector.load %arg20[%c1_139, %c0_140] : memref<34x256xf32, #tpu.memory_space<vmem>>, vector<1x128xf32>
    tpu.vector_store %arg20[%c1_139, %c0_140], %135 {strides = array<i32>} : memref<34x256xf32, #tpu.memory_space<vmem>>, vector<1x128xf32>,
    %137 = vector.extract_strided_slice %134 {offsets = [0, 128], sizes = [1, 128], strides = [1, 1]} : vector<16x256xf32> to vector<1x128xf32>
    %c2_141 = arith.constant 2 : index
    %c0_142 = arith.constant 0 : index
    %138 = vector.load %arg20[%c2_141, %c0_142] : memref<34x256xf32, #tpu.memory_space<vmem>>, vector<1x128xf32>
    tpu.vector_store %arg20[%c2_141, %c0_142], %137 {strides = array<i32>} : memref<34x256xf32, #tpu.memory_space<vmem>>, vector<1x128xf32>,
    %139 = vector.extract_strided_slice %134 {offsets = [1, 0], sizes = [1, 128], strides = [1, 1]} : vector<16x256xf32> to vector<1x128xf32>
    %c3_143 = arith.constant 3 : index
    %c0_144 = arith.constant 0 : index
    %140 = vector.load %arg20[%c3_143, %c0_144] : memref<34x256xf32, #tpu.memory_space<vmem>>, vector<1x128xf32>
    tpu.vector_store %arg20[%c3_143, %c0_144], %139 {strides = array<i32>} : memref<34x256xf32, #tpu.memory_space<vmem>>, vector<1x128xf32>,
    %141 = vector.extract_strided_slice %134 {offsets = [1, 128], sizes = [1, 128], strides = [1, 1]} : vector<16x256xf32> to vector<1x128xf32>
    %c4_145 = arith.constant 4 : index
    %c0_146 = arith.constant 0 : index
    %142 = vector.load %arg20[%c4_145, %c0_146] : memref<34x256xf32, #tpu.memory_space<vmem>>, vector<1x128xf32>
    tpu.vector_store %arg20[%c4_145, %c0_146], %141 {strides = array<i32>} : memref<34x256xf32, #tpu.memory_space<vmem>>, vector<1x128xf32>,
    %143 = vector.extract_strided_slice %134 {offsets = [2, 0], sizes = [1, 128], strides = [1, 1]} : vector<16x256xf32> to vector<1x128xf32>
    %c5_147 = arith.constant 5 : index
    %c0_148 = arith.constant 0 : index
    %144 = vector.load %arg20[%c5_147, %c0_148] : memref<34x256xf32, #tpu.memory_space<vmem>>, vector<1x128xf32>
    tpu.vector_store %arg20[%c5_147, %c0_148], %143 {strides = array<i32>} : memref<34x256xf32, #tpu.memory_space<vmem>>, vector<1x128xf32>,
    %145 = vector.extract_strided_slice %134 {offsets = [2, 128], sizes = [1, 128], strides = [1, 1]} : vector<16x256xf32> to vector<1x128xf32>
    %c6_149 = arith.constant 6 : index
    %c0_150 = arith.constant 0 : index
    %146 = vector.load %arg20[%c6_149, %c0_150] : memref<34x256xf32, #tpu.memory_space<vmem>>, vector<1x128xf32>
    tpu.vector_store %arg20[%c6_149, %c0_150], %145 {strides = array<i32>} : memref<34x256xf32, #tpu.memory_space<vmem>>, vector<1x128xf32>,
    %147 = vector.extract_strided_slice %134 {offsets = [3, 0], sizes = [1, 128], strides = [1, 1]} : vector<16x256xf32> to vector<1x128xf32>
    %c7_151 = arith.constant 7 : index
    %c0_152 = arith.constant 0 : index
    %148 = vector.load %arg20[%c7_151, %c0_152] : memref<34x256xf32, #tpu.memory_space<vmem>>, vector<1x128xf32>
    tpu.vector_store %arg20[%c7_151, %c0_152], %147 {strides = array<i32>} : memref<34x256xf32, #tpu.memory_space<vmem>>, vector<1x128xf32>,
    %149 = vector.extract_strided_slice %134 {offsets = [3, 128], sizes = [1, 128], strides = [1, 1]} : vector<16x256xf32> to vector<1x128xf32>
    %c8_153 = arith.constant 8 : index
    %c0_154 = arith.constant 0 : index
    %150 = vector.load %arg20[%c8_153, %c0_154] : memref<34x256xf32, #tpu.memory_space<vmem>>, vector<1x128xf32>
    tpu.vector_store %arg20[%c8_153, %c0_154], %149 {strides = array<i32>} : memref<34x256xf32, #tpu.memory_space<vmem>>, vector<1x128xf32>,
    %151 = vector.extract_strided_slice %134 {offsets = [4, 0], sizes = [1, 128], strides = [1, 1]} : vector<16x256xf32> to vector<1x128xf32>
    %c9_155 = arith.constant 9 : index
    %c0_156 = arith.constant 0 : index
    %152 = vector.load %arg20[%c9_155, %c0_156] : memref<34x256xf32, #tpu.memory_space<vmem>>, vector<1x128xf32>
    tpu.vector_store %arg20[%c9_155, %c0_156], %151 {strides = array<i32>} : memref<34x256xf32, #tpu.memory_space<vmem>>, vector<1x128xf32>,
    %153 = vector.extract_strided_slice %134 {offsets = [4, 128], sizes = [1, 128], strides = [1, 1]} : vector<16x256xf32> to vector<1x128xf32>
    %c10_157 = arith.constant 10 : index
    %c0_158 = arith.constant 0 : index
    %154 = vector.load %arg20[%c10_157, %c0_158] : memref<34x256xf32, #tpu.memory_space<vmem>>, vector<1x128xf32>
    tpu.vector_store %arg20[%c10_157, %c0_158], %153 {strides = array<i32>} : memref<34x256xf32, #tpu.memory_space<vmem>>, vector<1x128xf32>,
    %155 = vector.extract_strided_slice %134 {offsets = [5, 0], sizes = [1, 128], strides = [1, 1]} : vector<16x256xf32> to vector<1x128xf32>
    %c11_159 = arith.constant 11 : index
    %c0_160 = arith.constant 0 : index
    %156 = vector.load %arg20[%c11_159, %c0_160] : memref<34x256xf32, #tpu.memory_space<vmem>>, vector<1x128xf32>
    tpu.vector_store %arg20[%c11_159, %c0_160], %155 {strides = array<i32>} : memref<34x256xf32, #tpu.memory_space<vmem>>, vector<1x128xf32>,
    %157 = vector.extract_strided_slice %134 {offsets = [5, 128], sizes = [1, 128], strides = [1, 1]} : vector<16x256xf32> to vector<1x128xf32>
    %c12_161 = arith.constant 12 : index
    %c0_162 = arith.constant 0 : index
    %158 = vector.load %arg20[%c12_161, %c0_162] : memref<34x256xf32, #tpu.memory_space<vmem>>, vector<1x128xf32>
    tpu.vector_store %arg20[%c12_161, %c0_162], %157 {strides = array<i32>} : memref<34x256xf32, #tpu.memory_space<vmem>>, vector<1x128xf32>,
    %159 = vector.extract_strided_slice %134 {offsets = [6, 0], sizes = [1, 128], strides = [1, 1]} : vector<16x256xf32> to vector<1x128xf32>
    %c13_163 = arith.constant 13 : index
    %c0_164 = arith.constant 0 : index
    %160 = vector.load %arg20[%c13_163, %c0_164] : memref<34x256xf32, #tpu.memory_space<vmem>>, vector<1x128xf32>
    tpu.vector_store %arg20[%c13_163, %c0_164], %159 {strides = array<i32>} : memref<34x256xf32, #tpu.memory_space<vmem>>, vector<1x128xf32>,
    %161 = vector.extract_strided_slice %134 {offsets = [6, 128], sizes = [1, 128], strides = [1, 1]} : vector<16x256xf32> to vector<1x128xf32>
    %c14_165 = arith.constant 14 : index
    %c0_166 = arith.constant 0 : index
    %162 = vector.load %arg20[%c14_165, %c0_166] : memref<34x256xf32, #tpu.memory_space<vmem>>, vector<1x128xf32>
    tpu.vector_store %arg20[%c14_165, %c0_166], %161 {strides = array<i32>} : memref<34x256xf32, #tpu.memory_space<vmem>>, vector<1x128xf32>,
    %163 = vector.extract_strided_slice %134 {offsets = [7, 0], sizes = [1, 128], strides = [1, 1]} : vector<16x256xf32> to vector<1x128xf32>
    %c15_167 = arith.constant 15 : index
    %c0_168 = arith.constant 0 : index
    %164 = vector.load %arg20[%c15_167, %c0_168] : memref<34x256xf32, #tpu.memory_space<vmem>>, vector<1x128xf32>
    tpu.vector_store %arg20[%c15_167, %c0_168], %163 {strides = array<i32>} : memref<34x256xf32, #tpu.memory_space<vmem>>, vector<1x128xf32>,
    %165 = vector.extract_strided_slice %134 {offsets = [7, 128], sizes = [1, 128], strides = [1, 1]} : vector<16x256xf32> to vector<1x128xf32>
    %c16_169 = arith.constant 16 : index
    %c0_170 = arith.constant 0 : index
    %166 = vector.load %arg20[%c16_169, %c0_170] : memref<34x256xf32, #tpu.memory_space<vmem>>, vector<1x128xf32>
    tpu.vector_store %arg20[%c16_169, %c0_170], %165 {strides = array<i32>} : memref<34x256xf32, #tpu.memory_space<vmem>>, vector<1x128xf32>,
    %167 = vector.extract_strided_slice %134 {offsets = [8, 0], sizes = [1, 128], strides = [1, 1]} : vector<16x256xf32> to vector<1x128xf32>
    %c17_171 = arith.constant 17 : index
    %c0_172 = arith.constant 0 : index
    %168 = vector.load %arg20[%c17_171, %c0_172] : memref<34x256xf32, #tpu.memory_space<vmem>>, vector<1x128xf32>
    tpu.vector_store %arg20[%c17_171, %c0_172], %167 {strides = array<i32>} : memref<34x256xf32, #tpu.memory_space<vmem>>, vector<1x128xf32>,
    %169 = vector.extract_strided_slice %134 {offsets = [8, 128], sizes = [1, 128], strides = [1, 1]} : vector<16x256xf32> to vector<1x128xf32>
    %c18 = arith.constant 18 : index
    %c0_173 = arith.constant 0 : index
    %170 = vector.load %arg20[%c18, %c0_173] : memref<34x256xf32, #tpu.memory_space<vmem>>, vector<1x128xf32>
    tpu.vector_store %arg20[%c18, %c0_173], %169 {strides = array<i32>} : memref<34x256xf32, #tpu.memory_space<vmem>>, vector<1x128xf32>,
    %171 = vector.extract_strided_slice %134 {offsets = [9, 0], sizes = [1, 128], strides = [1, 1]} : vector<16x256xf32> to vector<1x128xf32>
    %c19 = arith.constant 19 : index
    %c0_174 = arith.constant 0 : index
    %172 = vector.load %arg20[%c19, %c0_174] : memref<34x256xf32, #tpu.memory_space<vmem>>, vector<1x128xf32>
    tpu.vector_store %arg20[%c19, %c0_174], %171 {strides = array<i32>} : memref<34x256xf32, #tpu.memory_space<vmem>>, vector<1x128xf32>,
    %173 = vector.extract_strided_slice %134 {offsets = [9, 128], sizes = [1, 128], strides = [1, 1]} : vector<16x256xf32> to vector<1x128xf32>
    %c20 = arith.constant 20 : index
    %c0_175 = arith.constant 0 : index
    %174 = vector.load %arg20[%c20, %c0_175] : memref<34x256xf32, #tpu.memory_space<vmem>>, vector<1x128xf32>
    tpu.vector_store %arg20[%c20, %c0_175], %173 {strides = array<i32>} : memref<34x256xf32, #tpu.memory_space<vmem>>, vector<1x128xf32>,
    %175 = vector.extract_strided_slice %134 {offsets = [10, 0], sizes = [1, 128], strides = [1, 1]} : vector<16x256xf32> to vector<1x128xf32>
    %c21 = arith.constant 21 : index
    %c0_176 = arith.constant 0 : index
    %176 = vector.load %arg20[%c21, %c0_176] : memref<34x256xf32, #tpu.memory_space<vmem>>, vector<1x128xf32>
    tpu.vector_store %arg20[%c21, %c0_176], %175 {strides = array<i32>} : memref<34x256xf32, #tpu.memory_space<vmem>>, vector<1x128xf32>,
    %177 = vector.extract_strided_slice %134 {offsets = [10, 128], sizes = [1, 128], strides = [1, 1]} : vector<16x256xf32> to vector<1x128xf32>
    %c22 = arith.constant 22 : index
    %c0_177 = arith.constant 0 : index
    %178 = vector.load %arg20[%c22, %c0_177] : memref<34x256xf32, #tpu.memory_space<vmem>>, vector<1x128xf32>
    tpu.vector_store %arg20[%c22, %c0_177], %177 {strides = array<i32>} : memref<34x256xf32, #tpu.memory_space<vmem>>, vector<1x128xf32>,
    %179 = vector.extract_strided_slice %134 {offsets = [11, 0], sizes = [1, 128], strides = [1, 1]} : vector<16x256xf32> to vector<1x128xf32>
    %c23 = arith.constant 23 : index
    %c0_178 = arith.constant 0 : index
    %180 = vector.load %arg20[%c23, %c0_178] : memref<34x256xf32, #tpu.memory_space<vmem>>, vector<1x128xf32>
    tpu.vector_store %arg20[%c23, %c0_178], %179 {strides = array<i32>} : memref<34x256xf32, #tpu.memory_space<vmem>>, vector<1x128xf32>,
    %181 = vector.extract_strided_slice %134 {offsets = [11, 128], sizes = [1, 128], strides = [1, 1]} : vector<16x256xf32> to vector<1x128xf32>
    %c24 = arith.constant 24 : index
    %c0_179 = arith.constant 0 : index
    %182 = vector.load %arg20[%c24, %c0_179] : memref<34x256xf32, #tpu.memory_space<vmem>>, vector<1x128xf32>
    tpu.vector_store %arg20[%c24, %c0_179], %181 {strides = array<i32>} : memref<34x256xf32, #tpu.memory_space<vmem>>, vector<1x128xf32>,
    %183 = vector.extract_strided_slice %134 {offsets = [12, 0], sizes = [1, 128], strides = [1, 1]} : vector<16x256xf32> to vector<1x128xf32>
    %c25 = arith.constant 25 : index
    %c0_180 = arith.constant 0 : index
    %184 = vector.load %arg20[%c25, %c0_180] : memref<34x256xf32, #tpu.memory_space<vmem>>, vector<1x128xf32>
    tpu.vector_store %arg20[%c25, %c0_180], %183 {strides = array<i32>} : memref<34x256xf32, #tpu.memory_space<vmem>>, vector<1x128xf32>,
    %185 = vector.extract_strided_slice %134 {offsets = [12, 128], sizes = [1, 128], strides = [1, 1]} : vector<16x256xf32> to vector<1x128xf32>
    %c26 = arith.constant 26 : index
    %c0_181 = arith.constant 0 : index
    %186 = vector.load %arg20[%c26, %c0_181] : memref<34x256xf32, #tpu.memory_space<vmem>>, vector<1x128xf32>
    tpu.vector_store %arg20[%c26, %c0_181], %185 {strides = array<i32>} : memref<34x256xf32, #tpu.memory_space<vmem>>, vector<1x128xf32>,
    %187 = vector.extract_strided_slice %134 {offsets = [13, 0], sizes = [1, 128], strides = [1, 1]} : vector<16x256xf32> to vector<1x128xf32>
    %c27 = arith.constant 27 : index
    %c0_182 = arith.constant 0 : index
    %188 = vector.load %arg20[%c27, %c0_182] : memref<34x256xf32, #tpu.memory_space<vmem>>, vector<1x128xf32>
    tpu.vector_store %arg20[%c27, %c0_182], %187 {strides = array<i32>} : memref<34x256xf32, #tpu.memory_space<vmem>>, vector<1x128xf32>,
    %189 = vector.extract_strided_slice %134 {offsets = [13, 128], sizes = [1, 128], strides = [1, 1]} : vector<16x256xf32> to vector<1x128xf32>
    %c28 = arith.constant 28 : index
    %c0_183 = arith.constant 0 : index
    %190 = vector.load %arg20[%c28, %c0_183] : memref<34x256xf32, #tpu.memory_space<vmem>>, vector<1x128xf32>
    tpu.vector_store %arg20[%c28, %c0_183], %189 {strides = array<i32>} : memref<34x256xf32, #tpu.memory_space<vmem>>, vector<1x128xf32>,
    %191 = vector.extract_strided_slice %134 {offsets = [14, 0], sizes = [1, 128], strides = [1, 1]} : vector<16x256xf32> to vector<1x128xf32>
    %c29 = arith.constant 29 : index
    %c0_184 = arith.constant 0 : index
    %192 = vector.load %arg20[%c29, %c0_184] : memref<34x256xf32, #tpu.memory_space<vmem>>, vector<1x128xf32>
    tpu.vector_store %arg20[%c29, %c0_184], %191 {strides = array<i32>} : memref<34x256xf32, #tpu.memory_space<vmem>>, vector<1x128xf32>,
    %193 = vector.extract_strided_slice %134 {offsets = [14, 128], sizes = [1, 128], strides = [1, 1]} : vector<16x256xf32> to vector<1x128xf32>
    %c30 = arith.constant 30 : index
    %c0_185 = arith.constant 0 : index
    %194 = vector.load %arg20[%c30, %c0_185] : memref<34x256xf32, #tpu.memory_space<vmem>>, vector<1x128xf32>
    tpu.vector_store %arg20[%c30, %c0_185], %193 {strides = array<i32>} : memref<34x256xf32, #tpu.memory_space<vmem>>, vector<1x128xf32>,
    %195 = vector.extract_strided_slice %134 {offsets = [15, 0], sizes = [1, 128], strides = [1, 1]} : vector<16x256xf32> to vector<1x128xf32>
    %c31 = arith.constant 31 : index
    %c0_186 = arith.constant 0 : index
    %196 = vector.load %arg20[%c31, %c0_186] : memref<34x256xf32, #tpu.memory_space<vmem>>, vector<1x128xf32>
    tpu.vector_store %arg20[%c31, %c0_186], %195 {strides = array<i32>} : memref<34x256xf32, #tpu.memory_space<vmem>>, vector<1x128xf32>,
    %197 = vector.extract_strided_slice %134 {offsets = [15, 128], sizes = [1, 128], strides = [1, 1]} : vector<16x256xf32> to vector<1x128xf32>
    %c32 = arith.constant 32 : index
    %c0_187 = arith.constant 0 : index
    %198 = vector.load %arg20[%c32, %c0_187] : memref<34x256xf32, #tpu.memory_space<vmem>>, vector<1x128xf32>
    tpu.vector_store %arg20[%c32, %c0_187], %197 {strides = array<i32>} : memref<34x256xf32, #tpu.memory_space<vmem>>, vector<1x128xf32>,
    %c0_188 = arith.constant 0 : index
    %c0_189 = arith.constant 0 : index
    %199 = vector.load %arg20[%c0_188, %c0_189] : memref<34x256xf32, #tpu.memory_space<vmem>>, vector<32x256xf32>
    %c0_190 = arith.constant 0 : index
    %c0_191 = arith.constant 0 : index
    %c0_192 = arith.constant 0 : index
    %200 = vector.load %arg9[%c0_190, %c0_191, %c0_192] : memref<3x256x256xf32, #tpu.memory_space<vmem>>, vector<1x256x256xf32>
    %201 = vector.shape_cast %200 : vector<1x256x256xf32> to vector<256x256xf32>
    %cst_193 = arith.constant dense<0.000000e+00> : vector<32x256xf32>
    %202 = tpu.matmul %199, %201, %cst_193 {dimension_numbers = #tpu.dot_dimension_numbers<[1], [0], [0], [1], [0, 0, 1, 1], [], []>} : vector<32x256xf32>, vector<256x256xf32>, vector<32x256xf32> -> vector<32x256xf32>
    %c1_194 = arith.constant 1 : index
    %c0_195 = arith.constant 0 : index
    %203 = vector.load %arg20[%c1_194, %c0_195] : memref<34x256xf32, #tpu.memory_space<vmem>>, vector<32x256xf32>
    %c1_196 = arith.constant 1 : index
    %c0_197 = arith.constant 0 : index
    %c0_198 = arith.constant 0 : index
    %204 = vector.load %arg9[%c1_196, %c0_197, %c0_198] : memref<3x256x256xf32, #tpu.memory_space<vmem>>, vector<1x256x256xf32>
    %205 = vector.shape_cast %204 : vector<1x256x256xf32> to vector<256x256xf32>
    %cst_199 = arith.constant dense<0.000000e+00> : vector<32x256xf32>
    %206 = tpu.matmul %203, %205, %cst_199 {dimension_numbers = #tpu.dot_dimension_numbers<[1], [0], [0], [1], [0, 0, 1, 1], [], []>} : vector<32x256xf32>, vector<256x256xf32>, vector<32x256xf32> -> vector<32x256xf32>
    %207 = arith.addf %202, %206 : vector<32x256xf32>
    %c2_200 = arith.constant 2 : index
    %c0_201 = arith.constant 0 : index
    %208 = vector.load %arg20[%c2_200, %c0_201] : memref<34x256xf32, #tpu.memory_space<vmem>>, vector<32x256xf32>
    %c2_202 = arith.constant 2 : index
    %c0_203 = arith.constant 0 : index
    %c0_204 = arith.constant 0 : index
    %209 = vector.load %arg9[%c2_202, %c0_203, %c0_204] : memref<3x256x256xf32, #tpu.memory_space<vmem>>, vector<1x256x256xf32>
    %210 = vector.shape_cast %209 : vector<1x256x256xf32> to vector<256x256xf32>
    %cst_205 = arith.constant dense<0.000000e+00> : vector<32x256xf32>
    %211 = tpu.matmul %208, %210, %cst_205 {dimension_numbers = #tpu.dot_dimension_numbers<[1], [0], [0], [1], [0, 0, 1, 1], [], []>} : vector<32x256xf32>, vector<256x256xf32>, vector<32x256xf32> -> vector<32x256xf32>
    %212 = arith.addf %207, %211 : vector<32x256xf32>
    %c0_206 = arith.constant 0 : index
    %c0_207 = arith.constant 0 : index
    %213 = vector.load %arg14[%c0_206, %c0_207] : memref<1x256xf32, #tpu.memory_space<vmem>>, vector<1x256xf32>
    %214 = vector.broadcast %213 : vector<1x256xf32> to vector<32x256xf32>
    %215 = arith.addf %212, %214 : vector<32x256xf32>
    %cst_208 = arith.constant 0.000000e+00 : f32
    %216 = vector.broadcast %cst_208 : f32 to vector<32x256xf32>
    %217 = arith.maximumf %215, %216 : vector<32x256xf32>
    %218 = vector.extract_strided_slice %217 {offsets = [0, 0], sizes = [1, 128], strides = [1, 1]} : vector<32x256xf32> to vector<1x128xf32>
    %c1_209 = arith.constant 1 : index
    %c0_210 = arith.constant 0 : index
    %219 = vector.load %arg21[%c1_209, %c0_210] : memref<66x256xf32, #tpu.memory_space<vmem>>, vector<1x128xf32>
    tpu.vector_store %arg21[%c1_209, %c0_210], %218 {strides = array<i32>} : memref<66x256xf32, #tpu.memory_space<vmem>>, vector<1x128xf32>,
    %220 = vector.extract_strided_slice %217 {offsets = [0, 128], sizes = [1, 128], strides = [1, 1]} : vector<32x256xf32> to vector<1x128xf32>
    %c2_211 = arith.constant 2 : index
    %c0_212 = arith.constant 0 : index
    %221 = vector.load %arg21[%c2_211, %c0_212] : memref<66x256xf32, #tpu.memory_space<vmem>>, vector<1x128xf32>
    tpu.vector_store %arg21[%c2_211, %c0_212], %220 {strides = array<i32>} : memref<66x256xf32, #tpu.memory_space<vmem>>, vector<1x128xf32>,
    %222 = vector.extract_strided_slice %217 {offsets = [1, 0], sizes = [1, 128], strides = [1, 1]} : vector<32x256xf32> to vector<1x128xf32>
    %c3_213 = arith.constant 3 : index
    %c0_214 = arith.constant 0 : index
    %223 = vector.load %arg21[%c3_213, %c0_214] : memref<66x256xf32, #tpu.memory_space<vmem>>, vector<1x128xf32>
    tpu.vector_store %arg21[%c3_213, %c0_214], %222 {strides = array<i32>} : memref<66x256xf32, #tpu.memory_space<vmem>>, vector<1x128xf32>,
    %224 = vector.extract_strided_slice %217 {offsets = [1, 128], sizes = [1, 128], strides = [1, 1]} : vector<32x256xf32> to vector<1x128xf32>
    %c4_215 = arith.constant 4 : index
    %c0_216 = arith.constant 0 : index
    %225 = vector.load %arg21[%c4_215, %c0_216] : memref<66x256xf32, #tpu.memory_space<vmem>>, vector<1x128xf32>
    tpu.vector_store %arg21[%c4_215, %c0_216], %224 {strides = array<i32>} : memref<66x256xf32, #tpu.memory_space<vmem>>, vector<1x128xf32>,
    %226 = vector.extract_strided_slice %217 {offsets = [2, 0], sizes = [1, 128], strides = [1, 1]} : vector<32x256xf32> to vector<1x128xf32>
    %c5_217 = arith.constant 5 : index
    %c0_218 = arith.constant 0 : index
    %227 = vector.load %arg21[%c5_217, %c0_218] : memref<66x256xf32, #tpu.memory_space<vmem>>, vector<1x128xf32>
    tpu.vector_store %arg21[%c5_217, %c0_218], %226 {strides = array<i32>} : memref<66x256xf32, #tpu.memory_space<vmem>>, vector<1x128xf32>,
    %228 = vector.extract_strided_slice %217 {offsets = [2, 128], sizes = [1, 128], strides = [1, 1]} : vector<32x256xf32> to vector<1x128xf32>
    %c6_219 = arith.constant 6 : index
    %c0_220 = arith.constant 0 : index
    %229 = vector.load %arg21[%c6_219, %c0_220] : memref<66x256xf32, #tpu.memory_space<vmem>>, vector<1x128xf32>
    tpu.vector_store %arg21[%c6_219, %c0_220], %228 {strides = array<i32>} : memref<66x256xf32, #tpu.memory_space<vmem>>, vector<1x128xf32>,
    %230 = vector.extract_strided_slice %217 {offsets = [3, 0], sizes = [1, 128], strides = [1, 1]} : vector<32x256xf32> to vector<1x128xf32>
    %c7_221 = arith.constant 7 : index
    %c0_222 = arith.constant 0 : index
    %231 = vector.load %arg21[%c7_221, %c0_222] : memref<66x256xf32, #tpu.memory_space<vmem>>, vector<1x128xf32>
    tpu.vector_store %arg21[%c7_221, %c0_222], %230 {strides = array<i32>} : memref<66x256xf32, #tpu.memory_space<vmem>>, vector<1x128xf32>,
    %232 = vector.extract_strided_slice %217 {offsets = [3, 128], sizes = [1, 128], strides = [1, 1]} : vector<32x256xf32> to vector<1x128xf32>
    %c8_223 = arith.constant 8 : index
    %c0_224 = arith.constant 0 : index
    %233 = vector.load %arg21[%c8_223, %c0_224] : memref<66x256xf32, #tpu.memory_space<vmem>>, vector<1x128xf32>
    tpu.vector_store %arg21[%c8_223, %c0_224], %232 {strides = array<i32>} : memref<66x256xf32, #tpu.memory_space<vmem>>, vector<1x128xf32>,
    %234 = vector.extract_strided_slice %217 {offsets = [4, 0], sizes = [1, 128], strides = [1, 1]} : vector<32x256xf32> to vector<1x128xf32>
    %c9_225 = arith.constant 9 : index
    %c0_226 = arith.constant 0 : index
    %235 = vector.load %arg21[%c9_225, %c0_226] : memref<66x256xf32, #tpu.memory_space<vmem>>, vector<1x128xf32>
    tpu.vector_store %arg21[%c9_225, %c0_226], %234 {strides = array<i32>} : memref<66x256xf32, #tpu.memory_space<vmem>>, vector<1x128xf32>,
    %236 = vector.extract_strided_slice %217 {offsets = [4, 128], sizes = [1, 128], strides = [1, 1]} : vector<32x256xf32> to vector<1x128xf32>
    %c10_227 = arith.constant 10 : index
    %c0_228 = arith.constant 0 : index
    %237 = vector.load %arg21[%c10_227, %c0_228] : memref<66x256xf32, #tpu.memory_space<vmem>>, vector<1x128xf32>
    tpu.vector_store %arg21[%c10_227, %c0_228], %236 {strides = array<i32>} : memref<66x256xf32, #tpu.memory_space<vmem>>, vector<1x128xf32>,
    %238 = vector.extract_strided_slice %217 {offsets = [5, 0], sizes = [1, 128], strides = [1, 1]} : vector<32x256xf32> to vector<1x128xf32>
    %c11_229 = arith.constant 11 : index
    %c0_230 = arith.constant 0 : index
    %239 = vector.load %arg21[%c11_229, %c0_230] : memref<66x256xf32, #tpu.memory_space<vmem>>, vector<1x128xf32>
    tpu.vector_store %arg21[%c11_229, %c0_230], %238 {strides = array<i32>} : memref<66x256xf32, #tpu.memory_space<vmem>>, vector<1x128xf32>,
    %240 = vector.extract_strided_slice %217 {offsets = [5, 128], sizes = [1, 128], strides = [1, 1]} : vector<32x256xf32> to vector<1x128xf32>
    %c12_231 = arith.constant 12 : index
    %c0_232 = arith.constant 0 : index
    %241 = vector.load %arg21[%c12_231, %c0_232] : memref<66x256xf32, #tpu.memory_space<vmem>>, vector<1x128xf32>
    tpu.vector_store %arg21[%c12_231, %c0_232], %240 {strides = array<i32>} : memref<66x256xf32, #tpu.memory_space<vmem>>, vector<1x128xf32>,
    %242 = vector.extract_strided_slice %217 {offsets = [6, 0], sizes = [1, 128], strides = [1, 1]} : vector<32x256xf32> to vector<1x128xf32>
    %c13_233 = arith.constant 13 : index
    %c0_234 = arith.constant 0 : index
    %243 = vector.load %arg21[%c13_233, %c0_234] : memref<66x256xf32, #tpu.memory_space<vmem>>, vector<1x128xf32>
    tpu.vector_store %arg21[%c13_233, %c0_234], %242 {strides = array<i32>} : memref<66x256xf32, #tpu.memory_space<vmem>>, vector<1x128xf32>,
    %244 = vector.extract_strided_slice %217 {offsets = [6, 128], sizes = [1, 128], strides = [1, 1]} : vector<32x256xf32> to vector<1x128xf32>
    %c14_235 = arith.constant 14 : index
    %c0_236 = arith.constant 0 : index
    %245 = vector.load %arg21[%c14_235, %c0_236] : memref<66x256xf32, #tpu.memory_space<vmem>>, vector<1x128xf32>
    tpu.vector_store %arg21[%c14_235, %c0_236], %244 {strides = array<i32>} : memref<66x256xf32, #tpu.memory_space<vmem>>, vector<1x128xf32>,
    %246 = vector.extract_strided_slice %217 {offsets = [7, 0], sizes = [1, 128], strides = [1, 1]} : vector<32x256xf32> to vector<1x128xf32>
    %c15_237 = arith.constant 15 : index
    %c0_238 = arith.constant 0 : index
    %247 = vector.load %arg21[%c15_237, %c0_238] : memref<66x256xf32, #tpu.memory_space<vmem>>, vector<1x128xf32>
    tpu.vector_store %arg21[%c15_237, %c0_238], %246 {strides = array<i32>} : memref<66x256xf32, #tpu.memory_space<vmem>>, vector<1x128xf32>,
    %248 = vector.extract_strided_slice %217 {offsets = [7, 128], sizes = [1, 128], strides = [1, 1]} : vector<32x256xf32> to vector<1x128xf32>
    %c16_239 = arith.constant 16 : index
    %c0_240 = arith.constant 0 : index
    %249 = vector.load %arg21[%c16_239, %c0_240] : memref<66x256xf32, #tpu.memory_space<vmem>>, vector<1x128xf32>
    tpu.vector_store %arg21[%c16_239, %c0_240], %248 {strides = array<i32>} : memref<66x256xf32, #tpu.memory_space<vmem>>, vector<1x128xf32>,
    %250 = vector.extract_strided_slice %217 {offsets = [8, 0], sizes = [1, 128], strides = [1, 1]} : vector<32x256xf32> to vector<1x128xf32>
    %c17_241 = arith.constant 17 : index
    %c0_242 = arith.constant 0 : index
    %251 = vector.load %arg21[%c17_241, %c0_242] : memref<66x256xf32, #tpu.memory_space<vmem>>, vector<1x128xf32>
    tpu.vector_store %arg21[%c17_241, %c0_242], %250 {strides = array<i32>} : memref<66x256xf32, #tpu.memory_space<vmem>>, vector<1x128xf32>,
    %252 = vector.extract_strided_slice %217 {offsets = [8, 128], sizes = [1, 128], strides = [1, 1]} : vector<32x256xf32> to vector<1x128xf32>
    %c18_243 = arith.constant 18 : index
    %c0_244 = arith.constant 0 : index
    %253 = vector.load %arg21[%c18_243, %c0_244] : memref<66x256xf32, #tpu.memory_space<vmem>>, vector<1x128xf32>
    tpu.vector_store %arg21[%c18_243, %c0_244], %252 {strides = array<i32>} : memref<66x256xf32, #tpu.memory_space<vmem>>, vector<1x128xf32>,
    %254 = vector.extract_strided_slice %217 {offsets = [9, 0], sizes = [1, 128], strides = [1, 1]} : vector<32x256xf32> to vector<1x128xf32>
    %c19_245 = arith.constant 19 : index
    %c0_246 = arith.constant 0 : index
    %255 = vector.load %arg21[%c19_245, %c0_246] : memref<66x256xf32, #tpu.memory_space<vmem>>, vector<1x128xf32>
    tpu.vector_store %arg21[%c19_245, %c0_246], %254 {strides = array<i32>} : memref<66x256xf32, #tpu.memory_space<vmem>>, vector<1x128xf32>,
    %256 = vector.extract_strided_slice %217 {offsets = [9, 128], sizes = [1, 128], strides = [1, 1]} : vector<32x256xf32> to vector<1x128xf32>
    %c20_247 = arith.constant 20 : index
    %c0_248 = arith.constant 0 : index
    %257 = vector.load %arg21[%c20_247, %c0_248] : memref<66x256xf32, #tpu.memory_space<vmem>>, vector<1x128xf32>
    tpu.vector_store %arg21[%c20_247, %c0_248], %256 {strides = array<i32>} : memref<66x256xf32, #tpu.memory_space<vmem>>, vector<1x128xf32>,
    %258 = vector.extract_strided_slice %217 {offsets = [10, 0], sizes = [1, 128], strides = [1, 1]} : vector<32x256xf32> to vector<1x128xf32>
    %c21_249 = arith.constant 21 : index
    %c0_250 = arith.constant 0 : index
    %259 = vector.load %arg21[%c21_249, %c0_250] : memref<66x256xf32, #tpu.memory_space<vmem>>, vector<1x128xf32>
    tpu.vector_store %arg21[%c21_249, %c0_250], %258 {strides = array<i32>} : memref<66x256xf32, #tpu.memory_space<vmem>>, vector<1x128xf32>,
    %260 = vector.extract_strided_slice %217 {offsets = [10, 128], sizes = [1, 128], strides = [1, 1]} : vector<32x256xf32> to vector<1x128xf32>
    %c22_251 = arith.constant 22 : index
    %c0_252 = arith.constant 0 : index
    %261 = vector.load %arg21[%c22_251, %c0_252] : memref<66x256xf32, #tpu.memory_space<vmem>>, vector<1x128xf32>
    tpu.vector_store %arg21[%c22_251, %c0_252], %260 {strides = array<i32>} : memref<66x256xf32, #tpu.memory_space<vmem>>, vector<1x128xf32>,
    %262 = vector.extract_strided_slice %217 {offsets = [11, 0], sizes = [1, 128], strides = [1, 1]} : vector<32x256xf32> to vector<1x128xf32>
    %c23_253 = arith.constant 23 : index
    %c0_254 = arith.constant 0 : index
    %263 = vector.load %arg21[%c23_253, %c0_254] : memref<66x256xf32, #tpu.memory_space<vmem>>, vector<1x128xf32>
    tpu.vector_store %arg21[%c23_253, %c0_254], %262 {strides = array<i32>} : memref<66x256xf32, #tpu.memory_space<vmem>>, vector<1x128xf32>,
    %264 = vector.extract_strided_slice %217 {offsets = [11, 128], sizes = [1, 128], strides = [1, 1]} : vector<32x256xf32> to vector<1x128xf32>
    %c24_255 = arith.constant 24 : index
    %c0_256 = arith.constant 0 : index
    %265 = vector.load %arg21[%c24_255, %c0_256] : memref<66x256xf32, #tpu.memory_space<vmem>>, vector<1x128xf32>
    tpu.vector_store %arg21[%c24_255, %c0_256], %264 {strides = array<i32>} : memref<66x256xf32, #tpu.memory_space<vmem>>, vector<1x128xf32>,
    %266 = vector.extract_strided_slice %217 {offsets = [12, 0], sizes = [1, 128], strides = [1, 1]} : vector<32x256xf32> to vector<1x128xf32>
    %c25_257 = arith.constant 25 : index
    %c0_258 = arith.constant 0 : index
    %267 = vector.load %arg21[%c25_257, %c0_258] : memref<66x256xf32, #tpu.memory_space<vmem>>, vector<1x128xf32>
    tpu.vector_store %arg21[%c25_257, %c0_258], %266 {strides = array<i32>} : memref<66x256xf32, #tpu.memory_space<vmem>>, vector<1x128xf32>,
    %268 = vector.extract_strided_slice %217 {offsets = [12, 128], sizes = [1, 128], strides = [1, 1]} : vector<32x256xf32> to vector<1x128xf32>
    %c26_259 = arith.constant 26 : index
    %c0_260 = arith.constant 0 : index
    %269 = vector.load %arg21[%c26_259, %c0_260] : memref<66x256xf32, #tpu.memory_space<vmem>>, vector<1x128xf32>
    tpu.vector_store %arg21[%c26_259, %c0_260], %268 {strides = array<i32>} : memref<66x256xf32, #tpu.memory_space<vmem>>, vector<1x128xf32>,
    %270 = vector.extract_strided_slice %217 {offsets = [13, 0], sizes = [1, 128], strides = [1, 1]} : vector<32x256xf32> to vector<1x128xf32>
    %c27_261 = arith.constant 27 : index
    %c0_262 = arith.constant 0 : index
    %271 = vector.load %arg21[%c27_261, %c0_262] : memref<66x256xf32, #tpu.memory_space<vmem>>, vector<1x128xf32>
    tpu.vector_store %arg21[%c27_261, %c0_262], %270 {strides = array<i32>} : memref<66x256xf32, #tpu.memory_space<vmem>>, vector<1x128xf32>,
    %272 = vector.extract_strided_slice %217 {offsets = [13, 128], sizes = [1, 128], strides = [1, 1]} : vector<32x256xf32> to vector<1x128xf32>
    %c28_263 = arith.constant 28 : index
    %c0_264 = arith.constant 0 : index
    %273 = vector.load %arg21[%c28_263, %c0_264] : memref<66x256xf32, #tpu.memory_space<vmem>>, vector<1x128xf32>
    tpu.vector_store %arg21[%c28_263, %c0_264], %272 {strides = array<i32>} : memref<66x256xf32, #tpu.memory_space<vmem>>, vector<1x128xf32>,
    %274 = vector.extract_strided_slice %217 {offsets = [14, 0], sizes = [1, 128], strides = [1, 1]} : vector<32x256xf32> to vector<1x128xf32>
    %c29_265 = arith.constant 29 : index
    %c0_266 = arith.constant 0 : index
    %275 = vector.load %arg21[%c29_265, %c0_266] : memref<66x256xf32, #tpu.memory_space<vmem>>, vector<1x128xf32>
    tpu.vector_store %arg21[%c29_265, %c0_266], %274 {strides = array<i32>} : memref<66x256xf32, #tpu.memory_space<vmem>>, vector<1x128xf32>,
    %276 = vector.extract_strided_slice %217 {offsets = [14, 128], sizes = [1, 128], strides = [1, 1]} : vector<32x256xf32> to vector<1x128xf32>
    %c30_267 = arith.constant 30 : index
    %c0_268 = arith.constant 0 : index
    %277 = vector.load %arg21[%c30_267, %c0_268] : memref<66x256xf32, #tpu.memory_space<vmem>>, vector<1x128xf32>
    tpu.vector_store %arg21[%c30_267, %c0_268], %276 {strides = array<i32>} : memref<66x256xf32, #tpu.memory_space<vmem>>, vector<1x128xf32>,
    %278 = vector.extract_strided_slice %217 {offsets = [15, 0], sizes = [1, 128], strides = [1, 1]} : vector<32x256xf32> to vector<1x128xf32>
    %c31_269 = arith.constant 31 : index
    %c0_270 = arith.constant 0 : index
    %279 = vector.load %arg21[%c31_269, %c0_270] : memref<66x256xf32, #tpu.memory_space<vmem>>, vector<1x128xf32>
    tpu.vector_store %arg21[%c31_269, %c0_270], %278 {strides = array<i32>} : memref<66x256xf32, #tpu.memory_space<vmem>>, vector<1x128xf32>,
    %280 = vector.extract_strided_slice %217 {offsets = [15, 128], sizes = [1, 128], strides = [1, 1]} : vector<32x256xf32> to vector<1x128xf32>
    %c32_271 = arith.constant 32 : index
    %c0_272 = arith.constant 0 : index
    %281 = vector.load %arg21[%c32_271, %c0_272] : memref<66x256xf32, #tpu.memory_space<vmem>>, vector<1x128xf32>
    tpu.vector_store %arg21[%c32_271, %c0_272], %280 {strides = array<i32>} : memref<66x256xf32, #tpu.memory_space<vmem>>, vector<1x128xf32>,
    %282 = vector.extract_strided_slice %217 {offsets = [16, 0], sizes = [1, 128], strides = [1, 1]} : vector<32x256xf32> to vector<1x128xf32>
    %c33_273 = arith.constant 33 : index
    %c0_274 = arith.constant 0 : index
    %283 = vector.load %arg21[%c33_273, %c0_274] : memref<66x256xf32, #tpu.memory_space<vmem>>, vector<1x128xf32>
    tpu.vector_store %arg21[%c33_273, %c0_274], %282 {strides = array<i32>} : memref<66x256xf32, #tpu.memory_space<vmem>>, vector<1x128xf32>,
    %284 = vector.extract_strided_slice %217 {offsets = [16, 128], sizes = [1, 128], strides = [1, 1]} : vector<32x256xf32> to vector<1x128xf32>
    %c34 = arith.constant 34 : index
    %c0_275 = arith.constant 0 : index
    %285 = vector.load %arg21[%c34, %c0_275] : memref<66x256xf32, #tpu.memory_space<vmem>>, vector<1x128xf32>
    tpu.vector_store %arg21[%c34, %c0_275], %284 {strides = array<i32>} : memref<66x256xf32, #tpu.memory_space<vmem>>, vector<1x128xf32>,
    %286 = vector.extract_strided_slice %217 {offsets = [17, 0], sizes = [1, 128], strides = [1, 1]} : vector<32x256xf32> to vector<1x128xf32>
    %c35 = arith.constant 35 : index
    %c0_276 = arith.constant 0 : index
    %287 = vector.load %arg21[%c35, %c0_276] : memref<66x256xf32, #tpu.memory_space<vmem>>, vector<1x128xf32>
    tpu.vector_store %arg21[%c35, %c0_276], %286 {strides = array<i32>} : memref<66x256xf32, #tpu.memory_space<vmem>>, vector<1x128xf32>,
    %288 = vector.extract_strided_slice %217 {offsets = [17, 128], sizes = [1, 128], strides = [1, 1]} : vector<32x256xf32> to vector<1x128xf32>
    %c36 = arith.constant 36 : index
    %c0_277 = arith.constant 0 : index
    %289 = vector.load %arg21[%c36, %c0_277] : memref<66x256xf32, #tpu.memory_space<vmem>>, vector<1x128xf32>
    tpu.vector_store %arg21[%c36, %c0_277], %288 {strides = array<i32>} : memref<66x256xf32, #tpu.memory_space<vmem>>, vector<1x128xf32>,
    %290 = vector.extract_strided_slice %217 {offsets = [18, 0], sizes = [1, 128], strides = [1, 1]} : vector<32x256xf32> to vector<1x128xf32>
    %c37 = arith.constant 37 : index
    %c0_278 = arith.constant 0 : index
    %291 = vector.load %arg21[%c37, %c0_278] : memref<66x256xf32, #tpu.memory_space<vmem>>, vector<1x128xf32>
    tpu.vector_store %arg21[%c37, %c0_278], %290 {strides = array<i32>} : memref<66x256xf32, #tpu.memory_space<vmem>>, vector<1x128xf32>,
    %292 = vector.extract_strided_slice %217 {offsets = [18, 128], sizes = [1, 128], strides = [1, 1]} : vector<32x256xf32> to vector<1x128xf32>
    %c38 = arith.constant 38 : index
    %c0_279 = arith.constant 0 : index
    %293 = vector.load %arg21[%c38, %c0_279] : memref<66x256xf32, #tpu.memory_space<vmem>>, vector<1x128xf32>
    tpu.vector_store %arg21[%c38, %c0_279], %292 {strides = array<i32>} : memref<66x256xf32, #tpu.memory_space<vmem>>, vector<1x128xf32>,
    %294 = vector.extract_strided_slice %217 {offsets = [19, 0], sizes = [1, 128], strides = [1, 1]} : vector<32x256xf32> to vector<1x128xf32>
    %c39 = arith.constant 39 : index
    %c0_280 = arith.constant 0 : index
    %295 = vector.load %arg21[%c39, %c0_280] : memref<66x256xf32, #tpu.memory_space<vmem>>, vector<1x128xf32>
    tpu.vector_store %arg21[%c39, %c0_280], %294 {strides = array<i32>} : memref<66x256xf32, #tpu.memory_space<vmem>>, vector<1x128xf32>,
    %296 = vector.extract_strided_slice %217 {offsets = [19, 128], sizes = [1, 128], strides = [1, 1]} : vector<32x256xf32> to vector<1x128xf32>
    %c40 = arith.constant 40 : index
    %c0_281 = arith.constant 0 : index
    %297 = vector.load %arg21[%c40, %c0_281] : memref<66x256xf32, #tpu.memory_space<vmem>>, vector<1x128xf32>
    tpu.vector_store %arg21[%c40, %c0_281], %296 {strides = array<i32>} : memref<66x256xf32, #tpu.memory_space<vmem>>, vector<1x128xf32>,
    %298 = vector.extract_strided_slice %217 {offsets = [20, 0], sizes = [1, 128], strides = [1, 1]} : vector<32x256xf32> to vector<1x128xf32>
    %c41 = arith.constant 41 : index
    %c0_282 = arith.constant 0 : index
    %299 = vector.load %arg21[%c41, %c0_282] : memref<66x256xf32, #tpu.memory_space<vmem>>, vector<1x128xf32>
    tpu.vector_store %arg21[%c41, %c0_282], %298 {strides = array<i32>} : memref<66x256xf32, #tpu.memory_space<vmem>>, vector<1x128xf32>,
    %300 = vector.extract_strided_slice %217 {offsets = [20, 128], sizes = [1, 128], strides = [1, 1]} : vector<32x256xf32> to vector<1x128xf32>
    %c42 = arith.constant 42 : index
    %c0_283 = arith.constant 0 : index
    %301 = vector.load %arg21[%c42, %c0_283] : memref<66x256xf32, #tpu.memory_space<vmem>>, vector<1x128xf32>
    tpu.vector_store %arg21[%c42, %c0_283], %300 {strides = array<i32>} : memref<66x256xf32, #tpu.memory_space<vmem>>, vector<1x128xf32>,
    %302 = vector.extract_strided_slice %217 {offsets = [21, 0], sizes = [1, 128], strides = [1, 1]} : vector<32x256xf32> to vector<1x128xf32>
    %c43 = arith.constant 43 : index
    %c0_284 = arith.constant 0 : index
    %303 = vector.load %arg21[%c43, %c0_284] : memref<66x256xf32, #tpu.memory_space<vmem>>, vector<1x128xf32>
    tpu.vector_store %arg21[%c43, %c0_284], %302 {strides = array<i32>} : memref<66x256xf32, #tpu.memory_space<vmem>>, vector<1x128xf32>,
    %304 = vector.extract_strided_slice %217 {offsets = [21, 128], sizes = [1, 128], strides = [1, 1]} : vector<32x256xf32> to vector<1x128xf32>
    %c44 = arith.constant 44 : index
    %c0_285 = arith.constant 0 : index
    %305 = vector.load %arg21[%c44, %c0_285] : memref<66x256xf32, #tpu.memory_space<vmem>>, vector<1x128xf32>
    tpu.vector_store %arg21[%c44, %c0_285], %304 {strides = array<i32>} : memref<66x256xf32, #tpu.memory_space<vmem>>, vector<1x128xf32>,
    %306 = vector.extract_strided_slice %217 {offsets = [22, 0], sizes = [1, 128], strides = [1, 1]} : vector<32x256xf32> to vector<1x128xf32>
    %c45 = arith.constant 45 : index
    %c0_286 = arith.constant 0 : index
    %307 = vector.load %arg21[%c45, %c0_286] : memref<66x256xf32, #tpu.memory_space<vmem>>, vector<1x128xf32>
    tpu.vector_store %arg21[%c45, %c0_286], %306 {strides = array<i32>} : memref<66x256xf32, #tpu.memory_space<vmem>>, vector<1x128xf32>,
    %308 = vector.extract_strided_slice %217 {offsets = [22, 128], sizes = [1, 128], strides = [1, 1]} : vector<32x256xf32> to vector<1x128xf32>
    %c46 = arith.constant 46 : index
    %c0_287 = arith.constant 0 : index
    %309 = vector.load %arg21[%c46, %c0_287] : memref<66x256xf32, #tpu.memory_space<vmem>>, vector<1x128xf32>
    tpu.vector_store %arg21[%c46, %c0_287], %308 {strides = array<i32>} : memref<66x256xf32, #tpu.memory_space<vmem>>, vector<1x128xf32>,
    %310 = vector.extract_strided_slice %217 {offsets = [23, 0], sizes = [1, 128], strides = [1, 1]} : vector<32x256xf32> to vector<1x128xf32>
    %c47 = arith.constant 47 : index
    %c0_288 = arith.constant 0 : index
    %311 = vector.load %arg21[%c47, %c0_288] : memref<66x256xf32, #tpu.memory_space<vmem>>, vector<1x128xf32>
    tpu.vector_store %arg21[%c47, %c0_288], %310 {strides = array<i32>} : memref<66x256xf32, #tpu.memory_space<vmem>>, vector<1x128xf32>,
    %312 = vector.extract_strided_slice %217 {offsets = [23, 128], sizes = [1, 128], strides = [1, 1]} : vector<32x256xf32> to vector<1x128xf32>
    %c48 = arith.constant 48 : index
    %c0_289 = arith.constant 0 : index
    %313 = vector.load %arg21[%c48, %c0_289] : memref<66x256xf32, #tpu.memory_space<vmem>>, vector<1x128xf32>
    tpu.vector_store %arg21[%c48, %c0_289], %312 {strides = array<i32>} : memref<66x256xf32, #tpu.memory_space<vmem>>, vector<1x128xf32>,
    %314 = vector.extract_strided_slice %217 {offsets = [24, 0], sizes = [1, 128], strides = [1, 1]} : vector<32x256xf32> to vector<1x128xf32>
    %c49 = arith.constant 49 : index
    %c0_290 = arith.constant 0 : index
    %315 = vector.load %arg21[%c49, %c0_290] : memref<66x256xf32, #tpu.memory_space<vmem>>, vector<1x128xf32>
    tpu.vector_store %arg21[%c49, %c0_290], %314 {strides = array<i32>} : memref<66x256xf32, #tpu.memory_space<vmem>>, vector<1x128xf32>,
    %316 = vector.extract_strided_slice %217 {offsets = [24, 128], sizes = [1, 128], strides = [1, 1]} : vector<32x256xf32> to vector<1x128xf32>
    %c50 = arith.constant 50 : index
    %c0_291 = arith.constant 0 : index
    %317 = vector.load %arg21[%c50, %c0_291] : memref<66x256xf32, #tpu.memory_space<vmem>>, vector<1x128xf32>
    tpu.vector_store %arg21[%c50, %c0_291], %316 {strides = array<i32>} : memref<66x256xf32, #tpu.memory_space<vmem>>, vector<1x128xf32>,
    %318 = vector.extract_strided_slice %217 {offsets = [25, 0], sizes = [1, 128], strides = [1, 1]} : vector<32x256xf32> to vector<1x128xf32>
    %c51 = arith.constant 51 : index
    %c0_292 = arith.constant 0 : index
    %319 = vector.load %arg21[%c51, %c0_292] : memref<66x256xf32, #tpu.memory_space<vmem>>, vector<1x128xf32>
    tpu.vector_store %arg21[%c51, %c0_292], %318 {strides = array<i32>} : memref<66x256xf32, #tpu.memory_space<vmem>>, vector<1x128xf32>,
    %320 = vector.extract_strided_slice %217 {offsets = [25, 128], sizes = [1, 128], strides = [1, 1]} : vector<32x256xf32> to vector<1x128xf32>
    %c52 = arith.constant 52 : index
    %c0_293 = arith.constant 0 : index
    %321 = vector.load %arg21[%c52, %c0_293] : memref<66x256xf32, #tpu.memory_space<vmem>>, vector<1x128xf32>
    tpu.vector_store %arg21[%c52, %c0_293], %320 {strides = array<i32>} : memref<66x256xf32, #tpu.memory_space<vmem>>, vector<1x128xf32>,
    %322 = vector.extract_strided_slice %217 {offsets = [26, 0], sizes = [1, 128], strides = [1, 1]} : vector<32x256xf32> to vector<1x128xf32>
    %c53 = arith.constant 53 : index
    %c0_294 = arith.constant 0 : index
    %323 = vector.load %arg21[%c53, %c0_294] : memref<66x256xf32, #tpu.memory_space<vmem>>, vector<1x128xf32>
    tpu.vector_store %arg21[%c53, %c0_294], %322 {strides = array<i32>} : memref<66x256xf32, #tpu.memory_space<vmem>>, vector<1x128xf32>,
    %324 = vector.extract_strided_slice %217 {offsets = [26, 128], sizes = [1, 128], strides = [1, 1]} : vector<32x256xf32> to vector<1x128xf32>
    %c54 = arith.constant 54 : index
    %c0_295 = arith.constant 0 : index
    %325 = vector.load %arg21[%c54, %c0_295] : memref<66x256xf32, #tpu.memory_space<vmem>>, vector<1x128xf32>
    tpu.vector_store %arg21[%c54, %c0_295], %324 {strides = array<i32>} : memref<66x256xf32, #tpu.memory_space<vmem>>, vector<1x128xf32>,
    %326 = vector.extract_strided_slice %217 {offsets = [27, 0], sizes = [1, 128], strides = [1, 1]} : vector<32x256xf32> to vector<1x128xf32>
    %c55 = arith.constant 55 : index
    %c0_296 = arith.constant 0 : index
    %327 = vector.load %arg21[%c55, %c0_296] : memref<66x256xf32, #tpu.memory_space<vmem>>, vector<1x128xf32>
    tpu.vector_store %arg21[%c55, %c0_296], %326 {strides = array<i32>} : memref<66x256xf32, #tpu.memory_space<vmem>>, vector<1x128xf32>,
    %328 = vector.extract_strided_slice %217 {offsets = [27, 128], sizes = [1, 128], strides = [1, 1]} : vector<32x256xf32> to vector<1x128xf32>
    %c56 = arith.constant 56 : index
    %c0_297 = arith.constant 0 : index
    %329 = vector.load %arg21[%c56, %c0_297] : memref<66x256xf32, #tpu.memory_space<vmem>>, vector<1x128xf32>
    tpu.vector_store %arg21[%c56, %c0_297], %328 {strides = array<i32>} : memref<66x256xf32, #tpu.memory_space<vmem>>, vector<1x128xf32>,
    %330 = vector.extract_strided_slice %217 {offsets = [28, 0], sizes = [1, 128], strides = [1, 1]} : vector<32x256xf32> to vector<1x128xf32>
    %c57 = arith.constant 57 : index
    %c0_298 = arith.constant 0 : index
    %331 = vector.load %arg21[%c57, %c0_298] : memref<66x256xf32, #tpu.memory_space<vmem>>, vector<1x128xf32>
    tpu.vector_store %arg21[%c57, %c0_298], %330 {strides = array<i32>} : memref<66x256xf32, #tpu.memory_space<vmem>>, vector<1x128xf32>,
    %332 = vector.extract_strided_slice %217 {offsets = [28, 128], sizes = [1, 128], strides = [1, 1]} : vector<32x256xf32> to vector<1x128xf32>
    %c58 = arith.constant 58 : index
    %c0_299 = arith.constant 0 : index
    %333 = vector.load %arg21[%c58, %c0_299] : memref<66x256xf32, #tpu.memory_space<vmem>>, vector<1x128xf32>
    tpu.vector_store %arg21[%c58, %c0_299], %332 {strides = array<i32>} : memref<66x256xf32, #tpu.memory_space<vmem>>, vector<1x128xf32>,
    %334 = vector.extract_strided_slice %217 {offsets = [29, 0], sizes = [1, 128], strides = [1, 1]} : vector<32x256xf32> to vector<1x128xf32>
    %c59 = arith.constant 59 : index
    %c0_300 = arith.constant 0 : index
    %335 = vector.load %arg21[%c59, %c0_300] : memref<66x256xf32, #tpu.memory_space<vmem>>, vector<1x128xf32>
    tpu.vector_store %arg21[%c59, %c0_300], %334 {strides = array<i32>} : memref<66x256xf32, #tpu.memory_space<vmem>>, vector<1x128xf32>,
    %336 = vector.extract_strided_slice %217 {offsets = [29, 128], sizes = [1, 128], strides = [1, 1]} : vector<32x256xf32> to vector<1x128xf32>
    %c60 = arith.constant 60 : index
    %c0_301 = arith.constant 0 : index
    %337 = vector.load %arg21[%c60, %c0_301] : memref<66x256xf32, #tpu.memory_space<vmem>>, vector<1x128xf32>
    tpu.vector_store %arg21[%c60, %c0_301], %336 {strides = array<i32>} : memref<66x256xf32, #tpu.memory_space<vmem>>, vector<1x128xf32>,
    %338 = vector.extract_strided_slice %217 {offsets = [30, 0], sizes = [1, 128], strides = [1, 1]} : vector<32x256xf32> to vector<1x128xf32>
    %c61 = arith.constant 61 : index
    %c0_302 = arith.constant 0 : index
    %339 = vector.load %arg21[%c61, %c0_302] : memref<66x256xf32, #tpu.memory_space<vmem>>, vector<1x128xf32>
    tpu.vector_store %arg21[%c61, %c0_302], %338 {strides = array<i32>} : memref<66x256xf32, #tpu.memory_space<vmem>>, vector<1x128xf32>,
    %340 = vector.extract_strided_slice %217 {offsets = [30, 128], sizes = [1, 128], strides = [1, 1]} : vector<32x256xf32> to vector<1x128xf32>
    %c62 = arith.constant 62 : index
    %c0_303 = arith.constant 0 : index
    %341 = vector.load %arg21[%c62, %c0_303] : memref<66x256xf32, #tpu.memory_space<vmem>>, vector<1x128xf32>
    tpu.vector_store %arg21[%c62, %c0_303], %340 {strides = array<i32>} : memref<66x256xf32, #tpu.memory_space<vmem>>, vector<1x128xf32>,
    %342 = vector.extract_strided_slice %217 {offsets = [31, 0], sizes = [1, 128], strides = [1, 1]} : vector<32x256xf32> to vector<1x128xf32>
    %c63 = arith.constant 63 : index
    %c0_304 = arith.constant 0 : index
    %343 = vector.load %arg21[%c63, %c0_304] : memref<66x256xf32, #tpu.memory_space<vmem>>, vector<1x128xf32>
    tpu.vector_store %arg21[%c63, %c0_304], %342 {strides = array<i32>} : memref<66x256xf32, #tpu.memory_space<vmem>>, vector<1x128xf32>,
    %344 = vector.extract_strided_slice %217 {offsets = [31, 128], sizes = [1, 128], strides = [1, 1]} : vector<32x256xf32> to vector<1x128xf32>
    %c64 = arith.constant 64 : index
    %c0_305 = arith.constant 0 : index
    %345 = vector.load %arg21[%c64, %c0_305] : memref<66x256xf32, #tpu.memory_space<vmem>>, vector<1x128xf32>
    tpu.vector_store %arg21[%c64, %c0_305], %344 {strides = array<i32>} : memref<66x256xf32, #tpu.memory_space<vmem>>, vector<1x128xf32>,
    %c0_306 = arith.constant 0 : index
    %c0_307 = arith.constant 0 : index
    %346 = vector.load %arg21[%c0_306, %c0_307] : memref<66x256xf32, #tpu.memory_space<vmem>>, vector<64x256xf32>
    %c0_308 = arith.constant 0 : index
    %c0_309 = arith.constant 0 : index
    %c0_310 = arith.constant 0 : index
    %347 = vector.load %arg10[%c0_308, %c0_309, %c0_310] : memref<3x256x512xf32, #tpu.memory_space<vmem>>, vector<1x256x512xf32>
    %348 = vector.shape_cast %347 : vector<1x256x512xf32> to vector<256x512xf32>
    %cst_311 = arith.constant dense<0.000000e+00> : vector<64x512xf32>
    %349 = tpu.matmul %346, %348, %cst_311 {dimension_numbers = #tpu.dot_dimension_numbers<[1], [0], [0], [1], [0, 0, 1, 1], [], []>} : vector<64x256xf32>, vector<256x512xf32>, vector<64x512xf32> -> vector<64x512xf32>
    %c1_312 = arith.constant 1 : index
    %c0_313 = arith.constant 0 : index
    %350 = vector.load %arg21[%c1_312, %c0_313] : memref<66x256xf32, #tpu.memory_space<vmem>>, vector<64x256xf32>
    %c1_314 = arith.constant 1 : index
    %c0_315 = arith.constant 0 : index
    %c0_316 = arith.constant 0 : index
    %351 = vector.load %arg10[%c1_314, %c0_315, %c0_316] : memref<3x256x512xf32, #tpu.memory_space<vmem>>, vector<1x256x512xf32>
    %352 = vector.shape_cast %351 : vector<1x256x512xf32> to vector<256x512xf32>
    %cst_317 = arith.constant dense<0.000000e+00> : vector<64x512xf32>
    %353 = tpu.matmul %350, %352, %cst_317 {dimension_numbers = #tpu.dot_dimension_numbers<[1], [0], [0], [1], [0, 0, 1, 1], [], []>} : vector<64x256xf32>, vector<256x512xf32>, vector<64x512xf32> -> vector<64x512xf32>
    %354 = arith.addf %349, %353 : vector<64x512xf32>
    %c2_318 = arith.constant 2 : index
    %c0_319 = arith.constant 0 : index
    %355 = vector.load %arg21[%c2_318, %c0_319] : memref<66x256xf32, #tpu.memory_space<vmem>>, vector<64x256xf32>
    %c2_320 = arith.constant 2 : index
    %c0_321 = arith.constant 0 : index
    %c0_322 = arith.constant 0 : index
    %356 = vector.load %arg10[%c2_320, %c0_321, %c0_322] : memref<3x256x512xf32, #tpu.memory_space<vmem>>, vector<1x256x512xf32>
    %357 = vector.shape_cast %356 : vector<1x256x512xf32> to vector<256x512xf32>
    %cst_323 = arith.constant dense<0.000000e+00> : vector<64x512xf32>
    %358 = tpu.matmul %355, %357, %cst_323 {dimension_numbers = #tpu.dot_dimension_numbers<[1], [0], [0], [1], [0, 0, 1, 1], [], []>} : vector<64x256xf32>, vector<256x512xf32>, vector<64x512xf32> -> vector<64x512xf32>
    %359 = arith.addf %354, %358 : vector<64x512xf32>
    %c0_324 = arith.constant 0 : index
    %c0_325 = arith.constant 0 : index
    %360 = vector.load %arg15[%c0_324, %c0_325] : memref<1x512xf32, #tpu.memory_space<vmem>>, vector<1x512xf32>
    %361 = vector.broadcast %360 : vector<1x512xf32> to vector<64x512xf32>
    %362 = arith.addf %359, %361 : vector<64x512xf32>
    %363 = arith.negf %362 : vector<64x512xf32>
    %364 = math.exp %363 : vector<64x512xf32>
    %cst_326 = arith.constant 1.000000e+00 : f32
    %365 = vector.broadcast %cst_326 : f32 to vector<64x512xf32>
    %366 = arith.addf %365, %364 : vector<64x512xf32>
    %367 = arith.divf %365, %366 : vector<64x512xf32>
    %c0_327 = arith.constant 0 : index
    %c0_328 = arith.constant 0 : index
    %c0_329 = arith.constant 0 : index
    %368 = vector.load %arg16[%c0_327, %c0_328, %c0_329] : memref<1x64x512xf32, #tpu.memory_space<vmem>>, vector<1x64x512xf32>
    %369 = vector.shape_cast %368 : vector<1x64x512xf32> to vector<64x512xf32>
    %370 = vector.shape_cast %367 : vector<64x512xf32> to vector<1x64x512xf32>
    tpu.vector_store %arg16[%c0_327, %c0_328, %c0_329], %370 {strides = array<i32>} : memref<1x64x512xf32, #tpu.memory_space<vmem>>, vector<1x64x512xf32>,
    return
  }
  func.func @transform_0(%arg0: i32) -> (i32, i32, i32) {
    %c0_i32 = arith.constant 0 : i32
    %c0_i32_0 = arith.constant 0 : i32
    %c0_i32_1 = arith.constant 0 : i32
    return %arg0, %c0_i32, %c0_i32_0 : i32, i32, i32
  }
  func.func @transform_1(%arg0: i32) -> (i32, i32, i32) {
    %c0_i32 = arith.constant 0 : i32
    %c0_i32_0 = arith.constant 0 : i32
    %c0_i32_1 = arith.constant 0 : i32
    return %arg0, %c0_i32, %c0_i32_0 : i32, i32, i32
  }
  func.func @transform_2(%arg0: i32) -> (i32, i32, i32) {
    %c0_i32 = arith.constant 0 : i32
    %c0_i32_0 = arith.constant 0 : i32
    %c0_i32_1 = arith.constant 0 : i32
    return %arg0, %c0_i32, %c0_i32_0 : i32, i32, i32
  }
  func.func @transform_3(%arg0: i32) -> (i32, i32, i32) {
    %c0_i32 = arith.constant 0 : i32
    %c0_i32_0 = arith.constant 0 : i32
    %c0_i32_1 = arith.constant 0 : i32
    return %arg0, %c0_i32, %c0_i32_0 : i32, i32, i32
  }
  func.func @transform_4(%arg0: i32) -> (i32, i32, i32) {
    %c0_i32 = arith.constant 0 : i32
    %c0_i32_0 = arith.constant 0 : i32
    %c0_i32_1 = arith.constant 0 : i32
    return %arg0, %c0_i32, %c0_i32_0 : i32, i32, i32
  }
  func.func @transform_5(%arg0: i32) -> (i32, i32, i32) {
    %c0_i32 = arith.constant 0 : i32
    %c0_i32_0 = arith.constant 0 : i32
    %c0_i32_1 = arith.constant 0 : i32
    %c0_i32_2 = arith.constant 0 : i32
    return %c0_i32, %c0_i32_0, %c0_i32_1 : i32, i32, i32
  }
  func.func @transform_6(%arg0: i32) -> (i32, i32, i32) {
    %c0_i32 = arith.constant 0 : i32
    %c0_i32_0 = arith.constant 0 : i32
    %c0_i32_1 = arith.constant 0 : i32
    %c0_i32_2 = arith.constant 0 : i32
    return %c0_i32, %c0_i32_0, %c0_i32_1 : i32, i32, i32
  }
  func.func @transform_7(%arg0: i32) -> (i32, i32, i32) {
    %c0_i32 = arith.constant 0 : i32
    %c0_i32_0 = arith.constant 0 : i32
    %c0_i32_1 = arith.constant 0 : i32
    %c0_i32_2 = arith.constant 0 : i32
    return %c0_i32, %c0_i32_0, %c0_i32_1 : i32, i32, i32
  }
  func.func @transform_8(%arg0: i32) -> (i32, i32, i32) {
    %c0_i32 = arith.constant 0 : i32
    %c0_i32_0 = arith.constant 0 : i32
    %c0_i32_1 = arith.constant 0 : i32
    %c0_i32_2 = arith.constant 0 : i32
    return %c0_i32, %c0_i32_0, %c0_i32_1 : i32, i32, i32
  }
  func.func @transform_9(%arg0: i32) -> (i32, i32, i32) {
    %c0_i32 = arith.constant 0 : i32
    %c0_i32_0 = arith.constant 0 : i32
    %c0_i32_1 = arith.constant 0 : i32
    %c0_i32_2 = arith.constant 0 : i32
    return %c0_i32, %c0_i32_0, %c0_i32_1 : i32, i32, i32
  }
  func.func @transform_10(%arg0: i32) -> (i32, i32) {
    %c0_i32 = arith.constant 0 : i32
    %c0_i32_0 = arith.constant 0 : i32
    %c0_i32_1 = arith.constant 0 : i32
    return %c0_i32, %c0_i32_0 : i32, i32
  }
  func.func @transform_11(%arg0: i32) -> (i32, i32) {
    %c0_i32 = arith.constant 0 : i32
    %c0_i32_0 = arith.constant 0 : i32
    %c0_i32_1 = arith.constant 0 : i32
    return %c0_i32, %c0_i32_0 : i32, i32
  }
  func.func @transform_12(%arg0: i32) -> (i32, i32) {
    %c0_i32 = arith.constant 0 : i32
    %c0_i32_0 = arith.constant 0 : i32
    %c0_i32_1 = arith.constant 0 : i32
    return %c0_i32, %c0_i32_0 : i32, i32
  }
  func.func @transform_13(%arg0: i32) -> (i32, i32) {
    %c0_i32 = arith.constant 0 : i32
    %c0_i32_0 = arith.constant 0 : i32
    %c0_i32_1 = arith.constant 0 : i32
    return %c0_i32, %c0_i32_0 : i32, i32
  }
  func.func @transform_14(%arg0: i32) -> (i32, i32) {
    %c0_i32 = arith.constant 0 : i32
    %c0_i32_0 = arith.constant 0 : i32
    %c0_i32_1 = arith.constant 0 : i32
    return %c0_i32, %c0_i32_0 : i32, i32
  }
  func.func @transform_15(%arg0: i32) -> (i32, i32, i32) {
    %c0_i32 = arith.constant 0 : i32
    %c0_i32_0 = arith.constant 0 : i32
    %c0_i32_1 = arith.constant 0 : i32
    return %arg0, %c0_i32, %c0_i32_0 : i32, i32, i32
  }
}

</mosaic_0001>

<llo_original>
// kernel: passive_sep_dec_forward.1
$region0: #{passive_sep_dec_forward.1}
  #allocation0 [shape = 'u32[]', space=smem, size = 0x4, offset = 0x4, fixed_abs, tag = 'smem constant byte address 0x4 - core index']
  #allocation1 [shape = 'u32[144,128]{1,0:T(1,128)}', space=vmem, size = 0x12000, scoped, tag = 'internal scratch']
  #allocation2 [shape = 'f32[6,128]{1,0:T(8,128)}', space=vmem, size = 0x1000, scoped, tag = 'scratch operand']
  #allocation3 [shape = 'f32[10,256]{1,0:T(8,128)}', space=vmem, size = 0x4000, scoped, tag = 'scratch operand']
  #allocation4 [shape = 'f32[18,256]{1,0:T(8,128)}', space=vmem, size = 0x6000, scoped, tag = 'scratch operand']
  #allocation5 [shape = 'f32[34,256]{1,0:T(8,128)}', space=vmem, size = 0xa000, scoped, tag = 'scratch operand']
  #allocation6 [shape = 'f32[66,256]{1,0:T(8,128)}', space=vmem, size = 0x12000, scoped, tag = 'scratch operand']
  %s0 = inlined_call_operand.vmem [shape: f32[2,4,128], index: 0, kind: input, shape index: {}]
  %s1 = inlined_call_operand.vmem [shape: f32[2,8,128], index: 1, kind: input, shape index: {}]
  %s2 = inlined_call_operand.vmem [shape: f32[2,16,128], index: 2, kind: input, shape index: {}]
  %s3 = inlined_call_operand.vmem [shape: f32[2,32,128], index: 3, kind: input, shape index: {}]
  %s4 = inlined_call_operand.vmem [shape: f32[2,64,128], index: 4, kind: input, shape index: {}]
  %s5 = inlined_call_operand.vmem [shape: f32[3,128,256], index: 5, kind: input, shape index: {}]
  %s6 = inlined_call_operand.vmem [shape: f32[3,256,256], index: 6, kind: input, shape index: {}]
  %s7 = inlined_call_operand.hbm [shape: f32[3,256,256], index: 7, kind: input, shape index: {}]
  %s8 = inlined_call_operand.hbm [shape: f32[3,256,256], index: 8, kind: input, shape index: {}]
  %s9 = inlined_call_operand.hbm [shape: f32[3,256,512], index: 9, kind: input, shape index: {}]
  %s10 = inlined_call_operand.hbm [shape: f32[1,256], index: 10, kind: input, shape index: {}]
  %s11 = inlined_call_operand.hbm [shape: f32[1,256], index: 11, kind: input, shape index: {}]
  %s12 = inlined_call_operand.hbm [shape: f32[1,256], index: 12, kind: input, shape index: {}]
  %s13 = inlined_call_operand.hbm [shape: f32[1,256], index: 13, kind: input, shape index: {}]
  %s14 = inlined_call_operand.hbm [shape: f32[1,512], index: 14, kind: input, shape index: {}]
  %s15 = inlined_call_operand.vmem [shape: f32[2,64,512], index: 15, kind: output, shape index: {}]
  %s16 = sld [smem:[#allocation0]]
  $region125: #{passive_sep_dec_forward.1} parent=0
    _
  %s18 = ssub.s32 1, %s16
  %s19 = scalar_select 0, %s18, %s16
  $region1: #{passive_sep_dec_forward.1} parent=0
    #allocation7 [shape = 'u8[786432]{0}', space=vmem, size = 0xc0000, scoped, tag = 'input window, operand 7, single buffered']
    #allocation8 [shape = 's32[2]{0}', space=sflag, size = 0x8, scoped, tag = 'scoped memory for passive_sep_dec_forward.1']
    #allocation9 [shape = 'u8[786432]{0}', space=vmem, size = 0xc0000, scoped, tag = 'input window, operand 8, single buffered']
    #allocation10 [shape = 's32[1]{0}', space=sflag, size = 0x4, scoped, tag = 'scoped memory for passive_sep_dec_forward.1']
    #allocation11 [shape = 'u8[1572864]{0}', space=vmem, size = 0x180000, scoped, tag = 'input window, operand 9, single buffered']
    #allocation12 [shape = 'u8[1024]{0}', space=vmem, size = 0x400, scoped, tag = 'input window, operand 10, single buffered']
    #allocation13 [shape = 's32[1]{0}', space=sflag, size = 0x4, scoped, tag = 'scoped memory for passive_sep_dec_forward.1']
    #allocation14 [shape = 'u8[1024]{0}', space=vmem, size = 0x400, scoped, tag = 'input window, operand 11, single buffered']
    #allocation15 [shape = 'u8[1024]{0}', space=vmem, size = 0x400, scoped, tag = 'input window, operand 12, single buffered']
    #allocation16 [shape = 's32[1]{0}', space=sflag, size = 0x4, scoped, tag = 'scoped memory for passive_sep_dec_forward.1']
    #allocation17 [shape = 'u8[1024]{0}', space=vmem, size = 0x400, scoped, tag = 'input window, operand 13, single buffered']
    #allocation18 [shape = 'u8[2048]{0}', space=vmem, size = 0x800, scoped, tag = 'input window, operand 14, single buffered']
    #allocation19 [shape = 's32[1]{0}', space=sflag, size = 0x4, scoped, tag = 'scoped memory for passive_sep_dec_forward.1']
    %20 = vsyncpa [#allocation8], 0
    %21 = vsyncpa [#allocation10], 0
    %22 = vsyncpa [#allocation13], 0
    %23 = vsyncpa [#allocation16], 0
    %24 = vsyncpa [#allocation19], 0
    loop: start=0, step=1, limit=4
    $region2: #{passive_sep_dec_forward.1} parent=1 // loop_pre_header
      _
    $region3: #{passive_sep_dec_forward.1} parent=1 // loop_header
      %s26 = sphi 0, %s30
      %p27 = scmp.ge.s32.totalorder %s26, 4
      %s36 = sphi 0, %s38
      %s39 = sphi 0, %s36
      %s40 = sphi 0, %s39
      %s56 = sphi 0, %s40
      %s62 = sphi 0, %s64
      %s65 = sphi 0, %s62
      %s66 = sphi 0, %s65
      %s82 = sphi 0, %s66
      %s88 = sphi 0, %s90
      %s91 = sphi 0, %s88
      %s92 = sphi 0, %s91
      %s108 = sphi 0, %s92
      %s114 = sphi 0, %s116
      %s117 = sphi 0, %s114
      %s118 = sphi 0, %s117
      %s134 = sphi 0, %s118
      %s140 = sphi 0, %s142
      %s143 = sphi 0, %s140
      %s144 = sphi 0, %s143
      %s160 = sphi 0, %s144
      %s164 = sphi 0, %s164
      %s166 = sphi 0, %s164
      %s167 = sphi 0, %s166
      %s181 = sphi 0, %s167
      %s185 = sphi 0, %s185
      %s187 = sphi 0, %s185
      %s188 = sphi 0, %s187
      %s202 = sphi 0, %s188
      %s206 = sphi 0, %s206
      %s208 = sphi 0, %s206
      %s209 = sphi 0, %s208
      %s223 = sphi 0, %s209
      %s227 = sphi 0, %s227
      %s229 = sphi 0, %s227
      %s230 = sphi 0, %s229
      %s244 = sphi 0, %s230
      %s248 = sphi 0, %s248
      %s250 = sphi 0, %s248
      %s251 = sphi 0, %s250
      %s265 = sphi 0, %s251
      %s269 = sphi 0, %s269
      %s271 = sphi 0, %s269
      %s272 = sphi 0, %s271
      %s286 = sphi 0, %s272
      %s290 = sphi 0, %s290
      %s292 = sphi 0, %s290
      %s293 = sphi 0, %s292
      %s307 = sphi 0, %s293
      %s311 = sphi 0, %s311
      %s313 = sphi 0, %s311
      %s314 = sphi 0, %s313
      %s328 = sphi 0, %s314
      %s332 = sphi 0, %s332
      %s334 = sphi 0, %s332
      %s335 = sphi 0, %s334
      %s349 = sphi 0, %s335
      %s353 = sphi 0, %s353
      %s355 = sphi 0, %s353
      %s356 = sphi 0, %s355
      %s370 = sphi 0, %s356
      %s376 = sphi 0, %s378
      %s379 = sphi 0, %s376
      %s380 = sphi 0, %s379
      %s396 = sphi 0, %s380
    $region4: #{passive_sep_dec_forward.1} parent=1 // loop_header_branch
      %29 = sbr.rel (%p27) target = $region8
    $region5: #{passive_sep_dec_forward.1} parent=1 // loop_body
      %s31 = ssub.s32 %s26, 1
      %s32 = ssub.s32 %s26, 2
      %s33 = sadd.s32 %s26, 1
      %s34 = ssub.s32 %s26, %s33
      %p35 = scmp.eq.s32.totalorder %s34, 0
      %s37 = sadd.s32 %s36, 1
      %s38 = scalar_select %p35, %s36, %s37
      %p41 = pneg %p35
      %p42 = scmp.eq.s32.totalorder %s26, 1
      %p43 = por %p41, %p42
      %p44 = scmp.ne.s32.totalorder %s36, %s39
      %p45 = scmp.eq.s32.totalorder %s26, 0
      %p46 = por %p44, %p45
      %p47 = scmp.ne.s32.totalorder %s36, %s39
      %p48 = scmp.eq.s32.totalorder %s31, 1
      %p49 = por %p47, %p48
      %p50 = scmp.ne.s32.totalorder %s39, %s40
      %p51 = scmp.eq.s32.totalorder %s31, 0
      %p52 = por %p50, %p51
      %p53 = scmp.ne.s32.totalorder %s39, %s40
      %p54 = scmp.eq.s32.totalorder %s32, 1
      %p55 = por %p53, %p54
      %p57 = scmp.ne.s32.totalorder %s40, %s56
      %p58 = scmp.eq.s32.totalorder %s32, 0
      %p59 = por %p57, %p58
      %s60 = ssub.s32 %s26, %s33
      %p61 = scmp.eq.s32.totalorder %s60, 0
      %s63 = sadd.s32 %s62, 1
      %s64 = scalar_select %p61, %s62, %s63
      %p67 = pneg %p61
      %p68 = scmp.eq.s32.totalorder %s26, 1
      %p69 = por %p67, %p68
      %p70 = scmp.ne.s32.totalorder %s62, %s65
      %p71 = scmp.eq.s32.totalorder %s26, 0
      %p72 = por %p70, %p71
      %p73 = scmp.ne.s32.totalorder %s62, %s65
      %p74 = scmp.eq.s32.totalorder %s31, 1
      %p75 = por %p73, %p74
      %p76 = scmp.ne.s32.totalorder %s65, %s66
      %p77 = scmp.eq.s32.totalorder %s31, 0
      %p78 = por %p76, %p77
      %p79 = scmp.ne.s32.totalorder %s65, %s66
      %p80 = scmp.eq.s32.totalorder %s32, 1
      %p81 = por %p79, %p80
      %p83 = scmp.ne.s32.totalorder %s66, %s82
      %p84 = scmp.eq.s32.totalorder %s32, 0
      %p85 = por %p83, %p84
      %s86 = ssub.s32 %s26, %s33
      %p87 = scmp.eq.s32.totalorder %s86, 0
      %s89 = sadd.s32 %s88, 1
      %s90 = scalar_select %p87, %s88, %s89
      %p93 = pneg %p87
      %p94 = scmp.eq.s32.totalorder %s26, 1
      %p95 = por %p93, %p94
      %p96 = scmp.ne.s32.totalorder %s88, %s91
      %p97 = scmp.eq.s32.totalorder %s26, 0
      %p98 = por %p96, %p97
      %p99 = scmp.ne.s32.totalorder %s88, %s91
      %p100 = scmp.eq.s32.totalorder %s31, 1
      %p101 = por %p99, %p100
      %p102 = scmp.ne.s32.totalorder %s91, %s92
      %p103 = scmp.eq.s32.totalorder %s31, 0
      %p104 = por %p102, %p103
      %p105 = scmp.ne.s32.totalorder %s91, %s92
      %p106 = scmp.eq.s32.totalorder %s32, 1
      %p107 = por %p105, %p106
      %p109 = scmp.ne.s32.totalorder %s92, %s108
      %p110 = scmp.eq.s32.totalorder %s32, 0
      %p111 = por %p109, %p110
      %s112 = ssub.s32 %s26, %s33
      %p113 = scmp.eq.s32.totalorder %s112, 0
      %s115 = sadd.s32 %s114, 1
      %s116 = scalar_select %p113, %s114, %s115
      %p119 = pneg %p113
      %p120 = scmp.eq.s32.totalorder %s26, 1
      %p121 = por %p119, %p120
      %p122 = scmp.ne.s32.totalorder %s114, %s117
      %p123 = scmp.eq.s32.totalorder %s26, 0
      %p124 = por %p122, %p123
      %p125 = scmp.ne.s32.totalorder %s114, %s117
      %p126 = scmp.eq.s32.totalorder %s31, 1
      %p127 = por %p125, %p126
      %p128 = scmp.ne.s32.totalorder %s117, %s118
      %p129 = scmp.eq.s32.totalorder %s31, 0
      %p130 = por %p128, %p129
      %p131 = scmp.ne.s32.totalorder %s117, %s118
      %p132 = scmp.eq.s32.totalorder %s32, 1
      %p133 = por %p131, %p132
      %p135 = scmp.ne.s32.totalorder %s118, %s134
      %p136 = scmp.eq.s32.totalorder %s32, 0
      %p137 = por %p135, %p136
      %s138 = ssub.s32 %s26, %s33
      %p139 = scmp.eq.s32.totalorder %s138, 0
      %s141 = sadd.s32 %s140, 1
      %s142 = scalar_select %p139, %s140, %s141
      %p145 = pneg %p139
      %p146 = scmp.eq.s32.totalorder %s26, 1
      %p147 = por %p145, %p146
      %p148 = scmp.ne.s32.totalorder %s140, %s143
      %p149 = scmp.eq.s32.totalorder %s26, 0
      %p150 = por %p148, %p149
      %p151 = scmp.ne.s32.totalorder %s140, %s143
      %p152 = scmp.eq.s32.totalorder %s31, 1
      %p153 = por %p151, %p152
      %p154 = scmp.ne.s32.totalorder %s143, %s144
      %p155 = scmp.eq.s32.totalorder %s31, 0
      %p156 = por %p154, %p155
      %p157 = scmp.ne.s32.totalorder %s143, %s144
      %p158 = scmp.eq.s32.totalorder %s32, 1
      %p159 = por %p157, %p158
      %p161 = scmp.ne.s32.totalorder %s144, %s160
      %p162 = scmp.eq.s32.totalorder %s32, 0
      %p163 = por %p161, %p162
      %s165 = sadd.s32 %s164, 1
      %p168 = scmp.eq.s32.totalorder %s26, 1
      %p169 = scmp.ne.s32.totalorder %s164, %s166
      %p170 = scmp.eq.s32.totalorder %s26, 0
      %p171 = por %p169, %p170
      %p172 = scmp.ne.s32.totalorder %s164, %s166
      %p173 = scmp.eq.s32.totalorder %s31, 1
      %p174 = por %p172, %p173
      %p175 = scmp.ne.s32.totalorder %s166, %s167
      %p176 = scmp.eq.s32.totalorder %s31, 0
      %p177 = por %p175, %p176
      %p178 = scmp.ne.s32.totalorder %s166, %s167
      %p179 = scmp.eq.s32.totalorder %s32, 1
      %p180 = por %p178, %p179
      %p182 = scmp.ne.s32.totalorder %s167, %s181
      %p183 = scmp.eq.s32.totalorder %s32, 0
      %p184 = por %p182, %p183
      %s186 = sadd.s32 %s185, 1
      %p189 = scmp.eq.s32.totalorder %s26, 1
      %p190 = scmp.ne.s32.totalorder %s185, %s187
      %p191 = scmp.eq.s32.totalorder %s26, 0
      %p192 = por %p190, %p191
      %p193 = scmp.ne.s32.totalorder %s185, %s187
      %p194 = scmp.eq.s32.totalorder %s31, 1
      %p195 = por %p193, %p194
      %p196 = scmp.ne.s32.totalorder %s187, %s188
      %p197 = scmp.eq.s32.totalorder %s31, 0
      %p198 = por %p196, %p197
      %p199 = scmp.ne.s32.totalorder %s187, %s188
      %p200 = scmp.eq.s32.totalorder %s32, 1
      %p201 = por %p199, %p200
      %p203 = scmp.ne.s32.totalorder %s188, %s202
      %p204 = scmp.eq.s32.totalorder %s32, 0
      %p205 = por %p203, %p204
      %s207 = sadd.s32 %s206, 1
      %p210 = scmp.eq.s32.totalorder %s26, 1
      %p211 = scmp.ne.s32.totalorder %s206, %s208
      %p212 = scmp.eq.s32.totalorder %s26, 0
      %p213 = por %p211, %p212
      %p214 = scmp.ne.s32.totalorder %s206, %s208
      %p215 = scmp.eq.s32.totalorder %s31, 1
      %p216 = por %p214, %p215
      %p217 = scmp.ne.s32.totalorder %s208, %s209
      %p218 = scmp.eq.s32.totalorder %s31, 0
      %p219 = por %p217, %p218
      %p220 = scmp.ne.s32.totalorder %s208, %s209
      %p221 = scmp.eq.s32.totalorder %s32, 1
      %p222 = por %p220, %p221
      %p224 = scmp.ne.s32.totalorder %s209, %s223
      %p225 = scmp.eq.s32.totalorder %s32, 0
      %p226 = por %p224, %p225
      %s228 = sadd.s32 %s227, 1
      %p231 = scmp.eq.s32.totalorder %s26, 1
      %p232 = scmp.ne.s32.totalorder %s227, %s229
      %p233 = scmp.eq.s32.totalorder %s26, 0
      %p234 = por %p232, %p233
      %p235 = scmp.ne.s32.totalorder %s227, %s229
      %p236 = scmp.eq.s32.totalorder %s31, 1
      %p237 = por %p235, %p236
      %p238 = scmp.ne.s32.totalorder %s229, %s230
      %p239 = scmp.eq.s32.totalorder %s31, 0
      %p240 = por %p238, %p239
      %p241 = scmp.ne.s32.totalorder %s229, %s230
      %p242 = scmp.eq.s32.totalorder %s32, 1
      %p243 = por %p241, %p242
      %p245 = scmp.ne.s32.totalorder %s230, %s244
      %p246 = scmp.eq.s32.totalorder %s32, 0
      %p247 = por %p245, %p246
      %s249 = sadd.s32 %s248, 1
      %p252 = scmp.eq.s32.totalorder %s26, 1
      %p253 = scmp.ne.s32.totalorder %s248, %s250
      %p254 = scmp.eq.s32.totalorder %s26, 0
      %p255 = por %p253, %p254
      %p256 = scmp.ne.s32.totalorder %s248, %s250
      %p257 = scmp.eq.s32.totalorder %s31, 1
      %p258 = por %p256, %p257
      %p259 = scmp.ne.s32.totalorder %s250, %s251
      %p260 = scmp.eq.s32.totalorder %s31, 0
      %p261 = por %p259, %p260
      %p262 = scmp.ne.s32.totalorder %s250, %s251
      %p263 = scmp.eq.s32.totalorder %s32, 1
      %p264 = por %p262, %p263
      %p266 = scmp.ne.s32.totalorder %s251, %s265
      %p267 = scmp.eq.s32.totalorder %s32, 0
      %p268 = por %p266, %p267
      %s270 = sadd.s32 %s269, 1
      %p273 = scmp.eq.s32.totalorder %s26, 1
      %p274 = scmp.ne.s32.totalorder %s269, %s271
      %p275 = scmp.eq.s32.totalorder %s26, 0
      %p276 = por %p274, %p275
      %p277 = scmp.ne.s32.totalorder %s269, %s271
      %p278 = scmp.eq.s32.totalorder %s31, 1
      %p279 = por %p277, %p278
      %p280 = scmp.ne.s32.totalorder %s271, %s272
      %p281 = scmp.eq.s32.totalorder %s31, 0
      %p282 = por %p280, %p281
      %p283 = scmp.ne.s32.totalorder %s271, %s272
      %p284 = scmp.eq.s32.totalorder %s32, 1
      %p285 = por %p283, %p284
      %p287 = scmp.ne.s32.totalorder %s272, %s286
      %p288 = scmp.eq.s32.totalorder %s32, 0
      %p289 = por %p287, %p288
      %s291 = sadd.s32 %s290, 1
      %p294 = scmp.eq.s32.totalorder %s26, 1
      %p295 = scmp.ne.s32.totalorder %s290, %s292
      %p296 = scmp.eq.s32.totalorder %s26, 0
      %p297 = por %p295, %p296
      %p298 = scmp.ne.s32.totalorder %s290, %s292
      %p299 = scmp.eq.s32.totalorder %s31, 1
      %p300 = por %p298, %p299
      %p301 = scmp.ne.s32.totalorder %s292, %s293
      %p302 = scmp.eq.s32.totalorder %s31, 0
      %p303 = por %p301, %p302
      %p304 = scmp.ne.s32.totalorder %s292, %s293
      %p305 = scmp.eq.s32.totalorder %s32, 1
      %p306 = por %p304, %p305
      %p308 = scmp.ne.s32.totalorder %s293, %s307
      %p309 = scmp.eq.s32.totalorder %s32, 0
      %p310 = por %p308, %p309
      %s312 = sadd.s32 %s311, 1
      %p315 = scmp.eq.s32.totalorder %s26, 1
      %p316 = scmp.ne.s32.totalorder %s311, %s313
      %p317 = scmp.eq.s32.totalorder %s26, 0
      %p318 = por %p316, %p317
      %p319 = scmp.ne.s32.totalorder %s311, %s313
      %p320 = scmp.eq.s32.totalorder %s31, 1
      %p321 = por %p319, %p320
      %p322 = scmp.ne.s32.totalorder %s313, %s314
      %p323 = scmp.eq.s32.totalorder %s31, 0
      %p324 = por %p322, %p323
      %p325 = scmp.ne.s32.totalorder %s313, %s314
      %p326 = scmp.eq.s32.totalorder %s32, 1
      %p327 = por %p325, %p326
      %p329 = scmp.ne.s32.totalorder %s314, %s328
      %p330 = scmp.eq.s32.totalorder %s32, 0
      %p331 = por %p329, %p330
      %s333 = sadd.s32 %s332, 1
      %p336 = scmp.eq.s32.totalorder %s26, 1
      %p337 = scmp.ne.s32.totalorder %s332, %s334
      %p338 = scmp.eq.s32.totalorder %s26, 0
      %p339 = por %p337, %p338
      %p340 = scmp.ne.s32.totalorder %s332, %s334
      %p341 = scmp.eq.s32.totalorder %s31, 1
      %p342 = por %p340, %p341
      %p343 = scmp.ne.s32.totalorder %s334, %s335
      %p344 = scmp.eq.s32.totalorder %s31, 0
      %p345 = por %p343, %p344
      %p346 = scmp.ne.s32.totalorder %s334, %s335
      %p347 = scmp.eq.s32.totalorder %s32, 1
      %p348 = por %p346, %p347
      %p350 = scmp.ne.s32.totalorder %s335, %s349
      %p351 = scmp.eq.s32.totalorder %s32, 0
      %p352 = por %p350, %p351
      %s354 = sadd.s32 %s353, 1
      %p357 = scmp.eq.s32.totalorder %s26, 1
      %p358 = scmp.ne.s32.totalorder %s353, %s355
      %p359 = scmp.eq.s32.totalorder %s26, 0
      %p360 = por %p358, %p359
      %p361 = scmp.ne.s32.totalorder %s353, %s355
      %p362 = scmp.eq.s32.totalorder %s31, 1
      %p363 = por %p361, %p362
      %p364 = scmp.ne.s32.totalorder %s355, %s356
      %p365 = scmp.eq.s32.totalorder %s31, 0
      %p366 = por %p364, %p365
      %p367 = scmp.ne.s32.totalorder %s355, %s356
      %p368 = scmp.eq.s32.totalorder %s32, 1
      %p369 = por %p367, %p368
      %p371 = scmp.ne.s32.totalorder %s356, %s370
      %p372 = scmp.eq.s32.totalorder %s32, 0
      %p373 = por %p371, %p372
      %s374 = ssub.s32 %s26, %s33
      %p375 = scmp.eq.s32.totalorder %s374, 0
      %s377 = sadd.s32 %s376, 1
      %s378 = scalar_select %p375, %s376, %s377
      %p381 = pneg %p375
      %p382 = scmp.eq.s32.totalorder %s26, 1
      %p383 = por %p381, %p382
      %p384 = scmp.ne.s32.totalorder %s376, %s379
      %p385 = scmp.eq.s32.totalorder %s26, 0
      %p386 = por %p384, %p385
      %p387 = scmp.ne.s32.totalorder %s376, %s379
      %p388 = scmp.eq.s32.totalorder %s31, 1
      %p389 = por %p387, %p388
      %p390 = scmp.ne.s32.totalorder %s379, %s380
      %p391 = scmp.eq.s32.totalorder %s31, 0
      %p392 = por %p390, %p391
      %p393 = scmp.ne.s32.totalorder %s379, %s380
      %p394 = scmp.eq.s32.totalorder %s32, 1
      %p395 = por %p393, %p394
      %p397 = scmp.ne.s32.totalorder %s380, %s396
      %p398 = scmp.eq.s32.totalorder %s32, 0
      %p399 = por %p397, %p398
      %p400 = scmp.le.s32.totalorder 1, %s26
      %p401 = scmp.lt.s32.totalorder %s26, 3
      %p402 = pnand %p400, %p401
      %p403 = pneg %p402
      // Predicated region
      $region9: #{passive_sep_dec_forward.1} parent=5 // pred_check
        _
      $region10: #{passive_sep_dec_forward.1} parent=5 // pred_check_branch
        %405 = sbr.rel (%p402) target = $region12
      $region11: #{passive_sep_dec_forward.1} parent=5 // pred_region
        %s406 = ssub.s32 %s26, 1
        // Predicated region
        $region13: #{passive_sep_dec_forward.1} parent=11 // pred_check
          %p407 = pneg %p177
        $region14: #{passive_sep_dec_forward.1} parent=11 // pred_check_branch
          %409 = sbr.rel (%p407) target = $region16
        $region15: #{passive_sep_dec_forward.1} parent=11 // pred_region
          _
        $region16: #{passive_sep_dec_forward.1} parent=11 // pred_fallthru
          _
        // Predicated region
        $region17: #{passive_sep_dec_forward.1} parent=11 // pred_check
          %p410 = pneg %p198
        $region18: #{passive_sep_dec_forward.1} parent=11 // pred_check_branch
          %412 = sbr.rel (%p410) target = $region20
        $region19: #{passive_sep_dec_forward.1} parent=11 // pred_region
          _
        $region20: #{passive_sep_dec_forward.1} parent=11 // pred_fallthru
          _
        // Predicated region
        $region21: #{passive_sep_dec_forward.1} parent=11 // pred_check
          %p413 = pneg %p219
        $region22: #{passive_sep_dec_forward.1} parent=11 // pred_check_branch
          %415 = sbr.rel (%p413) target = $region24
        $region23: #{passive_sep_dec_forward.1} parent=11 // pred_region
          %s417 = ssub.s32 24576, 24576
          %418 = vsyncadd [#allocation8], %s417
          %s419 = sshll.u32 [#allocation7], 4
          %s420 = int_to_ptr.vmem [resolvable:$true] %s419
          %425 = dma.hbm_to_vmem [thread:$0]  %s7, 24576, %s420, [#allocation8], 256, 256, 16
        $region24: #{passive_sep_dec_forward.1} parent=11 // pred_fallthru
          _
        // Predicated region
        $region25: #{passive_sep_dec_forward.1} parent=11 // pred_check
          %p426 = pneg %p240
        $region26: #{passive_sep_dec_forward.1} parent=11 // pred_check_branch
          %428 = sbr.rel (%p426) target = $region28
        $region27: #{passive_sep_dec_forward.1} parent=11 // pred_region
          %s430 = ssub.s32 24576, 24576
          %431 = vsyncadd [#allocation10], %s430
          %s432 = sshll.u32 [#allocation9], 4
          %s433 = int_to_ptr.vmem [resolvable:$true] %s432
          %438 = dma.hbm_to_vmem [thread:$0]  %s8, 24576, %s433, [#allocation10], 256, 256, 16
        $region28: #{passive_sep_dec_forward.1} parent=11 // pred_fallthru
          _
        // Predicated region
        $region29: #{passive_sep_dec_forward.1} parent=11 // pred_check
          %p439 = pneg %p261
        $region30: #{passive_sep_dec_forward.1} parent=11 // pred_check_branch
          %441 = sbr.rel (%p439) target = $region32
        $region31: #{passive_sep_dec_forward.1} parent=11 // pred_region
          %s443 = ssub.s32 49152, 49152
          %444 = vsyncadd [#allocation10], %s443
          %s445 = sshll.u32 [#allocation11], 4
          %s446 = int_to_ptr.vmem [resolvable:$true] %s445
          %451 = dma.hbm_to_vmem [thread:$0]  %s9, 49152, %s446, [#allocation10], 512, 512, 32
        $region32: #{passive_sep_dec_forward.1} parent=11 // pred_fallthru
          _
        // Predicated region
        $region33: #{passive_sep_dec_forward.1} parent=11 // pred_check
          %p452 = pneg %p282
        $region34: #{passive_sep_dec_forward.1} parent=11 // pred_check_branch
          %454 = sbr.rel (%p452) target = $region36
        $region35: #{passive_sep_dec_forward.1} parent=11 // pred_region
          %s456 = ssub.s32 32, 32
          %457 = vsyncadd [#allocation13], %s456
          %s459 = sshll.u32 [#allocation12], 4
          %s460 = int_to_ptr.vmem [resolvable:$true] %s459
          %462 = dma.hbm_to_vmem [thread:$0]  %s10, 32, %s460, [#allocation13]
        $region36: #{passive_sep_dec_forward.1} parent=11 // pred_fallthru
          _
        // Predicated region
        $region37: #{passive_sep_dec_forward.1} parent=11 // pred_check
          %p463 = pneg %p303
        $region38: #{passive_sep_dec_forward.1} parent=11 // pred_check_branch
          %465 = sbr.rel (%p463) target = $region40
        $region39: #{passive_sep_dec_forward.1} parent=11 // pred_region
          %s467 = ssub.s32 32, 32
          %468 = vsyncadd [#allocation13], %s467
          %s470 = sshll.u32 [#allocation14], 4
          %s471 = int_to_ptr.vmem [resolvable:$true] %s470
          %473 = dma.hbm_to_vmem [thread:$0]  %s11, 32, %s471, [#allocation13]
        $region40: #{passive_sep_dec_forward.1} parent=11 // pred_fallthru
          _
        // Predicated region
        $region41: #{passive_sep_dec_forward.1} parent=11 // pred_check
          %p474 = pneg %p324
        $region42: #{passive_sep_dec_forward.1} parent=11 // pred_check_branch
          %476 = sbr.rel (%p474) target = $region44
        $region43: #{passive_sep_dec_forward.1} parent=11 // pred_region
          %s478 = ssub.s32 32, 32
          %479 = vsyncadd [#allocation16], %s478
          %s481 = sshll.u32 [#allocation15], 4
          %s482 = int_to_ptr.vmem [resolvable:$true] %s481
          %484 = dma.hbm_to_vmem [thread:$0]  %s12, 32, %s482, [#allocation16]
        $region44: #{passive_sep_dec_forward.1} parent=11 // pred_fallthru
          _
        // Predicated region
        $region45: #{passive_sep_dec_forward.1} parent=11 // pred_check
          %p485 = pneg %p345
        $region46: #{passive_sep_dec_forward.1} parent=11 // pred_check_branch
          %487 = sbr.rel (%p485) target = $region48
        $region47: #{passive_sep_dec_forward.1} parent=11 // pred_region
          %s489 = ssub.s32 32, 32
          %490 = vsyncadd [#allocation16], %s489
          %s492 = sshll.u32 [#allocation17], 4
          %s493 = int_to_ptr.vmem [resolvable:$true] %s492
          %495 = dma.hbm_to_vmem [thread:$0]  %s13, 32, %s493, [#allocation16]
        $region48: #{passive_sep_dec_forward.1} parent=11 // pred_fallthru
          _
        // Predicated region
        $region49: #{passive_sep_dec_forward.1} parent=11 // pred_check
          %p496 = pneg %p366
        $region50: #{passive_sep_dec_forward.1} parent=11 // pred_check_branch
          %498 = sbr.rel (%p496) target = $region52
        $region51: #{passive_sep_dec_forward.1} parent=11 // pred_region
          %s500 = ssub.s32 64, 64
          %501 = vsyncadd [#allocation19], %s500
          %s503 = sshll.u32 [#allocation18], 4
          %s504 = int_to_ptr.vmem [resolvable:$true] %s503
          %506 = dma.hbm_to_vmem [thread:$0]  %s14, 64, %s504, [#allocation19]
        $region52: #{passive_sep_dec_forward.1} parent=11 // pred_fallthru
          _
      $region12: #{passive_sep_dec_forward.1} parent=5 // pred_fallthru
        _
      %p507 = scmp.lt.s32.totalorder %s26, 2
      // Predicated region
      $region53: #{passive_sep_dec_forward.1} parent=5 // pred_check
        %p508 = pneg %p507
      $region54: #{passive_sep_dec_forward.1} parent=5 // pred_check_branch
        %510 = sbr.rel (%p508) target = $region56
      $region55: #{passive_sep_dec_forward.1} parent=5 // pred_region
        // Predicated region
        $region57: #{passive_sep_dec_forward.1} parent=55 // pred_check
          %p511 = pneg %p46
        $region58: #{passive_sep_dec_forward.1} parent=55 // pred_check_branch
          %513 = sbr.rel (%p511) target = $region60
        $region59: #{passive_sep_dec_forward.1} parent=55 // pred_region
          %p514 = scmp.lt.s32.totalorder %s26, 1
          %s515 = scalar_select %p514, %s26, 1
          %s516 = smul.addr %s515, 4
          %s517 = scalar_lea.vmem %s0, %s516
        $region60: #{passive_sep_dec_forward.1} parent=55 // pred_fallthru
          _
        // Predicated region
        $region61: #{passive_sep_dec_forward.1} parent=55 // pred_check
          %p518 = pneg %p72
        $region62: #{passive_sep_dec_forward.1} parent=55 // pred_check_branch
          %520 = sbr.rel (%p518) target = $region64
        $region63: #{passive_sep_dec_forward.1} parent=55 // pred_region
          %p521 = scmp.lt.s32.totalorder %s26, 1
          %s522 = scalar_select %p521, %s26, 1
          %s523 = smul.addr %s522, 8
          %s524 = scalar_lea.vmem %s1, %s523
        $region64: #{passive_sep_dec_forward.1} parent=55 // pred_fallthru
          _
        // Predicated region
        $region65: #{passive_sep_dec_forward.1} parent=55 // pred_check
          %p525 = pneg %p98
        $region66: #{passive_sep_dec_forward.1} parent=55 // pred_check_branch
          %527 = sbr.rel (%p525) target = $region68
        $region67: #{passive_sep_dec_forward.1} parent=55 // pred_region
          %p528 = scmp.lt.s32.totalorder %s26, 1
          %s529 = scalar_select %p528, %s26, 1
          %s530 = smul.addr %s529, 2
          %s531 = smul.addr %s530, 8
          %s532 = scalar_lea.vmem %s2, %s531
        $region68: #{passive_sep_dec_forward.1} parent=55 // pred_fallthru
          _
        // Predicated region
        $region69: #{passive_sep_dec_forward.1} parent=55 // pred_check
          %p533 = pneg %p124
        $region70: #{passive_sep_dec_forward.1} parent=55 // pred_check_branch
          %535 = sbr.rel (%p533) target = $region72
        $region71: #{passive_sep_dec_forward.1} parent=55 // pred_region
          %p536 = scmp.lt.s32.totalorder %s26, 1
          %s537 = scalar_select %p536, %s26, 1
          %s538 = smul.addr %s537, 4
          %s539 = smul.addr %s538, 8
          %s540 = scalar_lea.vmem %s3, %s539
        $region72: #{passive_sep_dec_forward.1} parent=55 // pred_fallthru
          _
        // Predicated region
        $region73: #{passive_sep_dec_forward.1} parent=55 // pred_check
          %p541 = pneg %p150
        $region74: #{passive_sep_dec_forward.1} parent=55 // pred_check_branch
          %543 = sbr.rel (%p541) target = $region76
        $region75: #{passive_sep_dec_forward.1} parent=55 // pred_region
          %p544 = scmp.lt.s32.totalorder %s26, 1
          %s545 = scalar_select %p544, %s26, 1
          %s546 = smul.addr %s545, 8
          %s547 = smul.addr %s546, 8
          %s548 = scalar_lea.vmem %s4, %s547
        $region76: #{passive_sep_dec_forward.1} parent=55 // pred_fallthru
          _
      $region56: #{passive_sep_dec_forward.1} parent=5 // pred_fallthru
        _
      %p549 = scmp.le.s32.totalorder 1, %s26
      %p550 = scmp.lt.s32.totalorder %s26, 3
      %p551 = pnand %p549, %p550
      %p552 = pneg %p551
      // Predicated region
      $region77: #{passive_sep_dec_forward.1} parent=5 // pred_check
        _
      $region78: #{passive_sep_dec_forward.1} parent=5 // pred_check_branch
        %554 = sbr.rel (%p551) target = $region80
      $region79: #{passive_sep_dec_forward.1} parent=5 // pred_region
        %s555 = ssub.s32 %s26, 1
        // Predicated region
        $region81: #{passive_sep_dec_forward.1} parent=79 // pred_check
          %p556 = pneg %p219
        $region82: #{passive_sep_dec_forward.1} parent=79 // pred_check_branch
          %558 = sbr.rel (%p556) target = $region84
        $region83: #{passive_sep_dec_forward.1} parent=79 // pred_region
          %559 = dma.done [#allocation8], 24576
        $region84: #{passive_sep_dec_forward.1} parent=79 // pred_fallthru
          _
        // Predicated region
        $region85: #{passive_sep_dec_forward.1} parent=79 // pred_check
          %p560 = pneg %p240
        $region86: #{passive_sep_dec_forward.1} parent=79 // pred_check_branch
          %562 = sbr.rel (%p560) target = $region88
        $region87: #{passive_sep_dec_forward.1} parent=79 // pred_region
          %563 = dma.done [#allocation10], 24576
        $region88: #{passive_sep_dec_forward.1} parent=79 // pred_fallthru
          _
        // Predicated region
        $region89: #{passive_sep_dec_forward.1} parent=79 // pred_check
          %p564 = pneg %p261
        $region90: #{passive_sep_dec_forward.1} parent=79 // pred_check_branch
          %566 = sbr.rel (%p564) target = $region92
        $region91: #{passive_sep_dec_forward.1} parent=79 // pred_region
          %567 = dma.done [#allocation10], 49152
        $region92: #{passive_sep_dec_forward.1} parent=79 // pred_fallthru
          _
        // Predicated region
        $region93: #{passive_sep_dec_forward.1} parent=79 // pred_check
          %p568 = pneg %p282
        $region94: #{passive_sep_dec_forward.1} parent=79 // pred_check_branch
          %570 = sbr.rel (%p568) target = $region96
        $region95: #{passive_sep_dec_forward.1} parent=79 // pred_region
          %571 = dma.done [#allocation13], 32
        $region96: #{passive_sep_dec_forward.1} parent=79 // pred_fallthru
          _
        // Predicated region
        $region97: #{passive_sep_dec_forward.1} parent=79 // pred_check
          %p572 = pneg %p303
        $region98: #{passive_sep_dec_forward.1} parent=79 // pred_check_branch
          %574 = sbr.rel (%p572) target = $region100
        $region99: #{passive_sep_dec_forward.1} parent=79 // pred_region
          %575 = dma.done [#allocation13], 32
        $region100: #{passive_sep_dec_forward.1} parent=79 // pred_fallthru
          _
        // Predicated region
        $region101: #{passive_sep_dec_forward.1} parent=79 // pred_check
          %p576 = pneg %p324
        $region102: #{passive_sep_dec_forward.1} parent=79 // pred_check_branch
          %578 = sbr.rel (%p576) target = $region104
        $region103: #{passive_sep_dec_forward.1} parent=79 // pred_region
          %579 = dma.done [#allocation16], 32
        $region104: #{passive_sep_dec_forward.1} parent=79 // pred_fallthru
          _
        // Predicated region
        $region105: #{passive_sep_dec_forward.1} parent=79 // pred_check
          %p580 = pneg %p345
        $region106: #{passive_sep_dec_forward.1} parent=79 // pred_check_branch
          %582 = sbr.rel (%p580) target = $region108
        $region107: #{passive_sep_dec_forward.1} parent=79 // pred_region
          %583 = dma.done [#allocation16], 32
        $region108: #{passive_sep_dec_forward.1} parent=79 // pred_fallthru
          _
        // Predicated region
        $region109: #{passive_sep_dec_forward.1} parent=79 // pred_check
          %p584 = pneg %p366
        $region110: #{passive_sep_dec_forward.1} parent=79 // pred_check_branch
          %586 = sbr.rel (%p584) target = $region112
        $region111: #{passive_sep_dec_forward.1} parent=79 // pred_region
          %587 = dma.done [#allocation19], 64
        $region112: #{passive_sep_dec_forward.1} parent=79 // pred_fallthru
          _
        %p588 = scmp.lt.s32.totalorder %s31, 1
        %s589 = scalar_select %p588, %s31, 1
        %s590 = smul.addr %s589, 4
        %s591 = scalar_lea.vmem %s0, %s590
        %p592 = pneg %p52
        %p593 = pneg %p49
        %p594 = scmp.lt.s32.totalorder %s31, 1
        %s595 = scalar_select %p594, %s31, 1
        %s596 = smul.addr %s595, 8
        %s597 = scalar_lea.vmem %s1, %s596
        %p598 = pneg %p78
        %p599 = pneg %p75
        %p600 = scmp.lt.s32.totalorder %s31, 1
        %s601 = scalar_select %p600, %s31, 1
        %s602 = smul.addr %s601, 2
        %s603 = smul.addr %s602, 8
        %s604 = scalar_lea.vmem %s2, %s603
        %p605 = pneg %p104
        %p606 = pneg %p101
        %p607 = scmp.lt.s32.totalorder %s31, 1
        %s608 = scalar_select %p607, %s31, 1
        %s609 = smul.addr %s608, 4
        %s610 = smul.addr %s609, 8
        %s611 = scalar_lea.vmem %s3, %s610
        %p612 = pneg %p130
        %p613 = pneg %p127
        %p614 = scmp.lt.s32.totalorder %s31, 1
        %s615 = scalar_select %p614, %s31, 1
        %s616 = smul.addr %s615, 8
        %s617 = smul.addr %s616, 8
        %s618 = scalar_lea.vmem %s4, %s617
        %p619 = pneg %p156
        %p620 = pneg %p153
        %p621 = pneg %p177
        %p622 = pneg %p174
        %p623 = pneg %p198
        %p624 = pneg %p195
        %p625 = pneg %p219
        %p626 = pneg %p216
        %p627 = pneg %p240
        %p628 = pneg %p237
        %p629 = pneg %p261
        %p630 = pneg %p258
        %p631 = pneg %p282
        %p632 = pneg %p279
        %p633 = pneg %p303
        %p634 = pneg %p300
        %p635 = pneg %p324
        %p636 = pneg %p321
        %p637 = pneg %p345
        %p638 = pneg %p342
        %p639 = pneg %p366
        %p640 = pneg %p363
        %p641 = pneg %p392
        %p642 = pneg %p389
        %p643 = scmp.lt.s32.totalorder %s31, 1
        %s644 = scalar_select %p643, %s31, 1
        %s645 = smul.addr %s644, 32
        %s646 = smul.addr %s645, 8
        %s647 = scalar_lea.vmem %s15, %s646
        %p648 = scmp.lt.s32.totalorder %s31, 1
        %s649 = scalar_select %p648, %s31, 1
        %s650 = smul.addr %s649, 4
        %s651 = scalar_lea.vmem %s0, %s650
        %p652 = scmp.lt.s32.totalorder %s31, 1
        %s653 = scalar_select %p652, %s31, 1
        %s654 = smul.addr %s653, 8
        %s655 = scalar_lea.vmem %s1, %s654
        %p656 = scmp.lt.s32.totalorder %s31, 1
        %s657 = scalar_select %p656, %s31, 1
        %s658 = smul.addr %s657, 2
        %s659 = smul.addr %s658, 8
        %s660 = scalar_lea.vmem %s2, %s659
        %p661 = scmp.lt.s32.totalorder %s31, 1
        %s662 = scalar_select %p661, %s31, 1
        %s663 = smul.addr %s662, 4
        %s664 = smul.addr %s663, 8
        %s665 = scalar_lea.vmem %s3, %s664
        %p666 = scmp.lt.s32.totalorder %s31, 1
        %s667 = scalar_select %p666, %s31, 1
        %s668 = smul.addr %s667, 8
        %s669 = smul.addr %s668, 8
        %s670 = scalar_lea.vmem %s4, %s669
        %p671 = scmp.lt.s32.totalorder %s31, 1
        %s672 = scalar_select %p671, %s31, 1
        %s673 = smul.addr %s672, 32
        %s674 = smul.addr %s673, 8
        %s675 = scalar_lea.vmem %s15, %s674
        %676 = vst [vmem:[#allocation2] sm:$0x1] 0.0
        %677 = vst [vmem:[#allocation2 + $0x5] sm:$0x1] 0.0
        %v678 = vld [vmem:[%s651] sm:$0xf]
        %679 = vst [vmem:[#allocation2 + $0x1] sm:$0xf] %v678
        %v680 = vlaneseq
        %vm681 = vcmp.ge.s32.totalorder %v680, 0
        %vm682 = vcmp.lt.s32.totalorder %v680, 256
        %vm683 = vmand %vm681, %vm682
        %684 = vst.msk [vmem:[#allocation3] ss:$8 sm:$0x3] %vm683, 0.0
        %685 = vst.msk [vmem:[#allocation3] ss:$8 sm:$0x0] %vm683, 0.0
        %s686 = scalar_lea.vmem [#allocation3], 17
        %687 = vst.msk [vmem:[%s686] ss:$8 sm:$0x3] %vm683, 0.0
        %688 = vst.msk [vmem:[%s686] ss:$8 sm:$0x0] %vm683, 0.0
        %v689 = vld [vmem:[%s655] sm:$0xff]
        %v691 = vrot.slane %v689, 7
        %693 = vst [vmem:[#allocation3 + $0x8] sm:$0xfe] %v691
        %694 = vst [vmem:[#allocation3 + $0x18] sm:$0x1] %v691
        %695 = vst.msk [vmem:[#allocation4] ss:$8 sm:$0x3] %vm683, 0.0
        %696 = vst.msk [vmem:[#allocation4] ss:$8 sm:$0x0] %vm683, 0.0
        %s697 = scalar_lea.vmem [#allocation4], 33
        %698 = vst.msk [vmem:[%s697] ss:$8 sm:$0x3] %vm683, 0.0
        %699 = vst.msk [vmem:[%s697] ss:$8 sm:$0x0] %vm683, 0.0
        %v700 = vld [vmem:[%s660] sm:$0xff]
        %v701 = vld [vmem:[%s660 + $0x8] sm:$0xff]
        %vm704 = vcmask 1040384
        %v705 = vrot.slane %v700, 7
        %v706 = vrot.slane %v701, 7
        %v707 = vsel %vm704, %v705, %v706
        %711 = vst [vmem:[#allocation4 + $0x8] sm:$0xfe] %v705
        %712 = vst [vmem:[#allocation4 + $0x18] sm:$0xff] %v707
        %713 = vst [vmem:[#allocation4 + $0x28] sm:$0x1] %v706
        %714 = vst.msk [vmem:[#allocation5] ss:$8 sm:$0x3] %vm683, 0.0
        %715 = vst.msk [vmem:[#allocation5] ss:$8 sm:$0x0] %vm683, 0.0
        %s716 = scalar_lea.vmem [#allocation5], 65
        %717 = vst.msk [vmem:[%s716] ss:$8 sm:$0x3] %vm683, 0.0
        %718 = vst.msk [vmem:[%s716] ss:$8 sm:$0x0] %vm683, 0.0
        %v719 = vld [vmem:[%s665] sm:$0xff]
        %v720 = vld [vmem:[%s665 + $0x8] sm:$0xff]
        %v721 = vld [vmem:[%s665 + $0x10] sm:$0xff]
        %v722 = vld [vmem:[%s665 + $0x18] sm:$0xff]
        %v727 = vrot.slane %v719, 7
        %v728 = vrot.slane %v720, 7
        %v729 = vsel %vm704, %v727, %v728
        %v730 = vrot.slane %v721, 7
        %v731 = vsel %vm704, %v728, %v730
        %v732 = vrot.slane %v722, 7
        %v733 = vsel %vm704, %v730, %v732
        %739 = vst [vmem:[#allocation5 + $0x8] sm:$0xfe] %v727
        %740 = vst [vmem:[#allocation5 + $0x18] sm:$0xff] %v729
        %741 = vst [vmem:[#allocation5 + $0x28] sm:$0xff] %v731
        %742 = vst [vmem:[#allocation5 + $0x38] sm:$0xff] %v733
        %743 = vst [vmem:[#allocation5 + $0x48] sm:$0x1] %v732
        %744 = vst.msk [vmem:[#allocation6] ss:$8 sm:$0x3] %vm683, 0.0
        %745 = vst.msk [vmem:[#allocation6] ss:$8 sm:$0x0] %vm683, 0.0
        %s746 = scalar_lea.vmem [#allocation6], 129
        %747 = vst.msk [vmem:[%s746] ss:$8 sm:$0x3] %vm683, 0.0
        %748 = vst.msk [vmem:[%s746] ss:$8 sm:$0x0] %vm683, 0.0
        %v749 = vld [vmem:[%s670] sm:$0xff]
        %v750 = vld [vmem:[%s670 + $0x8] sm:$0xff]
        %v751 = vld [vmem:[%s670 + $0x10] sm:$0xff]
        %v752 = vld [vmem:[%s670 + $0x18] sm:$0xff]
        %v753 = vld [vmem:[%s670 + $0x20] sm:$0xff]
        %v754 = vld [vmem:[%s670 + $0x28] sm:$0xff]
        %v755 = vld [vmem:[%s670 + $0x30] sm:$0xff]
        %v756 = vld [vmem:[%s670 + $0x38] sm:$0xff]
        %v765 = vrot.slane %v749, 7
        %v766 = vrot.slane %v750, 7
        %v767 = vsel %vm704, %v765, %v766
        %v768 = vrot.slane %v751, 7
        %v769 = vsel %vm704, %v766, %v768
        %v770 = vrot.slane %v752, 7
        %v771 = vsel %vm704, %v768, %v770
        %v772 = vrot.slane %v753, 7
        %v773 = vsel %vm704, %v770, %v772
        %v774 = vrot.slane %v754, 7
        %v775 = vsel %vm704, %v772, %v774
        %v776 = vrot.slane %v755, 7
        %v777 = vsel %vm704, %v774, %v776
        %v778 = vrot.slane %v756, 7
        %v779 = vsel %vm704, %v776, %v778
        %789 = vst [vmem:[#allocation6 + $0x8] sm:$0xfe] %v765
        %790 = vst [vmem:[#allocation6 + $0x18] sm:$0xff] %v767
        %791 = vst [vmem:[#allocation6 + $0x28] sm:$0xff] %v769
        %792 = vst [vmem:[#allocation6 + $0x38] sm:$0xff] %v771
        %793 = vst [vmem:[#allocation6 + $0x48] sm:$0xff] %v773
        %794 = vst [vmem:[#allocation6 + $0x58] sm:$0xff] %v775
        %795 = vst [vmem:[#allocation6 + $0x68] sm:$0xff] %v777
        %796 = vst [vmem:[#allocation6 + $0x78] sm:$0xff] %v779
        %797 = vst [vmem:[#allocation6 + $0x88] sm:$0x1] %v778
        %v798 = vld [vmem:[#allocation2] sm:$0xf]
        %v799 = vld [vmem:[%s5] sm:$0xff]
        %v800 = vld [vmem:[%s5 + $0x8] sm:$0xff]
        %v801 = vld [vmem:[%s5 + $0x10] sm:$0xff]
        %v802 = vld [vmem:[%s5 + $0x18] sm:$0xff]
        %v803 = vld [vmem:[%s5 + $0x20] sm:$0xff]
        %v804 = vld [vmem:[%s5 + $0x28] sm:$0xff]
        %v805 = vld [vmem:[%s5 + $0x30] sm:$0xff]
        %v806 = vld [vmem:[%s5 + $0x38] sm:$0xff]
        %v807 = vld [vmem:[%s5 + $0x40] sm:$0xff]
        %v808 = vld [vmem:[%s5 + $0x48] sm:$0xff]
        %v809 = vld [vmem:[%s5 + $0x50] sm:$0xff]
        %v810 = vld [vmem:[%s5 + $0x58] sm:$0xff]
        %v811 = vld [vmem:[%s5 + $0x60] sm:$0xff]
        %v812 = vld [vmem:[%s5 + $0x68] sm:$0xff]
        %v813 = vld [vmem:[%s5 + $0x70] sm:$0xff]
        %v814 = vld [vmem:[%s5 + $0x78] sm:$0xff]
        %v815 = vld [vmem:[%s5 + $0x80] sm:$0xff]
        %v816 = vld [vmem:[%s5 + $0x88] sm:$0xff]
        %v817 = vld [vmem:[%s5 + $0x90] sm:$0xff]
        %v818 = vld [vmem:[%s5 + $0x98] sm:$0xff]
        %v819 = vld [vmem:[%s5 + $0xa0] sm:$0xff]
        %v820 = vld [vmem:[%s5 + $0xa8] sm:$0xff]
        %v821 = vld [vmem:[%s5 + $0xb0] sm:$0xff]
        %v822 = vld [vmem:[%s5 + $0xb8] sm:$0xff]
        %v823 = vld [vmem:[%s5 + $0xc0] sm:$0xff]
        %v824 = vld [vmem:[%s5 + $0xc8] sm:$0xff]
        %v825 = vld [vmem:[%s5 + $0xd0] sm:$0xff]
        %v826 = vld [vmem:[%s5 + $0xd8] sm:$0xff]
        %v827 = vld [vmem:[%s5 + $0xe0] sm:$0xff]
        %v828 = vld [vmem:[%s5 + $0xe8] sm:$0xff]
        %v829 = vld [vmem:[%s5 + $0xf0] sm:$0xff]
        %v830 = vld [vmem:[%s5 + $0xf8] sm:$0xff]
        %v831 = vld [vmem:[#allocation2 + $0x1] sm:$0xf]
        %s832 = scalar_lea.vmem %s5, 256
        %v833 = vld [vmem:[%s832] sm:$0xff]
        %v834 = vld [vmem:[%s832 + $0x8] sm:$0xff]
        %v835 = vld [vmem:[%s832 + $0x10] sm:$0xff]
        %v836 = vld [vmem:[%s832 + $0x18] sm:$0xff]
        %v837 = vld [vmem:[%s832 + $0x20] sm:$0xff]
        %v838 = vld [vmem:[%s832 + $0x28] sm:$0xff]
        %v839 = vld [vmem:[%s832 + $0x30] sm:$0xff]
        %v840 = vld [vmem:[%s832 + $0x38] sm:$0xff]
        %v841 = vld [vmem:[%s832 + $0x40] sm:$0xff]
        %v842 = vld [vmem:[%s832 + $0x48] sm:$0xff]
        %v843 = vld [vmem:[%s832 + $0x50] sm:$0xff]
        %v844 = vld [vmem:[%s832 + $0x58] sm:$0xff]
        %v845 = vld [vmem:[%s832 + $0x60] sm:$0xff]
        %v846 = vld [vmem:[%s832 + $0x68] sm:$0xff]
        %v847 = vld [vmem:[%s832 + $0x70] sm:$0xff]
        %v848 = vld [vmem:[%s832 + $0x78] sm:$0xff]
        %v849 = vld [vmem:[%s832 + $0x80] sm:$0xff]
        %v850 = vld [vmem:[%s832 + $0x88] sm:$0xff]
        %v851 = vld [vmem:[%s832 + $0x90] sm:$0xff]
        %v852 = vld [vmem:[%s832 + $0x98] sm:$0xff]
        %v853 = vld [vmem:[%s832 + $0xa0] sm:$0xff]
        %v854 = vld [vmem:[%s832 + $0xa8] sm:$0xff]
        %v855 = vld [vmem:[%s832 + $0xb0] sm:$0xff]
        %v856 = vld [vmem:[%s832 + $0xb8] sm:$0xff]
        %v857 = vld [vmem:[%s832 + $0xc0] sm:$0xff]
        %v858 = vld [vmem:[%s832 + $0xc8] sm:$0xff]
        %v859 = vld [vmem:[%s832 + $0xd0] sm:$0xff]
        %v860 = vld [vmem:[%s832 + $0xd8] sm:$0xff]
        %v861 = vld [vmem:[%s832 + $0xe0] sm:$0xff]
        %v862 = vld [vmem:[%s832 + $0xe8] sm:$0xff]
        %v863 = vld [vmem:[%s832 + $0xf0] sm:$0xff]
        %v864 = vld [vmem:[%s832 + $0xf8] sm:$0xff]
        %865 = vmatprep.subr.mxu0 %v834
        %866 = vmatpush1.msra.mxu0 %v833
        %867 = vmatprep.subr.mxu0 %v836
        %868 = vmatpush1.msra.mxu0 %v835
        %869 = vmatprep.subr.mxu0 %v838
        %870 = vmatpush1.msra.mxu0 %v837
        %871 = vmatprep.subr.mxu0 %v840
        %872 = vmatpush1.msra.mxu0 %v839
        %873 = vmatprep.subr.mxu0 %v842
        %874 = vmatpush1.msra.mxu0 %v841
        %875 = vmatprep.subr.mxu0 %v844
        %876 = vmatpush1.msra.mxu0 %v843
        %877 = vmatprep.subr.mxu0 %v846
        %878 = vmatpush1.msra.mxu0 %v845
        %879 = vmatprep.subr.mxu0 %v848
        %880 = vmatpush1.msra.mxu0 %v847
        %881 = vmatprep.subr.mxu0 %v850
        %882 = vmatpush1.msra.mxu0 %v849
        %883 = vmatprep.subr.mxu0 %v852
        %884 = vmatpush1.msra.mxu0 %v851
        %885 = vmatprep.subr.mxu0 %v854
        %886 = vmatpush1.msra.mxu0 %v853
        %887 = vmatprep.subr.mxu0 %v856
        %888 = vmatpush1.msra.mxu0 %v855
        %889 = vmatprep.subr.mxu0 %v858
        %890 = vmatpush1.msra.mxu0 %v857
        %891 = vmatprep.subr.mxu0 %v860
        %892 = vmatpush1.msra.mxu0 %v859
        %893 = vmatprep.subr.mxu0 %v862
        %894 = vmatpush1.msra.mxu0 %v861
        %895 = vmatprep.subr.mxu0 %v864
        %896 = vmatpush1.msra.mxu0 %v863
        %897 = vmatprep.subr.mxu0 0.0
        %898 = vmatpush1.msra.mxu0 0.0
        %899 = vmatprep.subr.mxu0 0.0
        %900 = vmatpush1.msra.mxu0 0.0
        %901 = vmatprep.subr.mxu0 0.0
        %902 = vmatpush1.msra.mxu0 0.0
        %903 = vmatprep.subr.mxu0 0.0
        %904 = vmatpush1.msra.mxu0 0.0
        %905 = vmatprep.subr.mxu0 0.0
        %906 = vmatpush1.msra.mxu0 0.0
        %907 = vmatprep.subr.mxu0 0.0
        %908 = vmatpush1.msra.mxu0 0.0
        %909 = vmatprep.subr.mxu0 0.0
        %910 = vmatpush1.msra.mxu0 0.0
        %911 = vmatprep.subr.mxu0 0.0
        %912 = vmatpush1.msra.mxu0 0.0
        %913 = vmatprep.subr.mxu0 0.0
        %914 = vmatpush1.msra.mxu0 0.0
        %915 = vmatprep.subr.mxu0 0.0
        %916 = vmatpush1.msra.mxu0 0.0
        %917 = vmatprep.subr.mxu0 0.0
        %918 = vmatpush1.msra.mxu0 0.0
        %919 = vmatprep.subr.mxu0 0.0
        %920 = vmatpush1.msra.mxu0 0.0
        %921 = vmatprep.subr.mxu0 0.0
        %922 = vmatpush1.msra.mxu0 0.0
        %923 = vmatprep.subr.mxu0 0.0
        %924 = vmatpush1.msra.mxu0 0.0
        %925 = vmatprep.subr.mxu0 0.0
        %926 = vmatpush1.msra.mxu0 0.0
        %927 = vmatprep.subr.mxu0 0.0
        %928 = vmatpush1.msra.mxu0 0.0
        %929 = vmatprep.mubr.f32.mxu0 0.0
        %930 = vmatmul.mubr.f32.gmra.mrb[0].mxu0 %v831
        %v931 = vpop.f32.mrb[0].mxu0
        %v932 = vadd.f32 0.0, %v931
        %v933 = vpop.f32.mrb[0].mxu0
        %v934 = vadd.f32 0.0, %v933
        %935 = vdwg.mxu0
        %936 = vmatprep.subr.mxu0 %v800
        %937 = vmatpush1.msra.mxu0 %v799
        %938 = vmatprep.subr.mxu0 %v802
        %939 = vmatpush1.msra.mxu0 %v801
        %940 = vmatprep.subr.mxu0 %v804
        %941 = vmatpush1.msra.mxu0 %v803
        %942 = vmatprep.subr.mxu0 %v806
        %943 = vmatpush1.msra.mxu0 %v805
        %944 = vmatprep.subr.mxu0 %v808
        %945 = vmatpush1.msra.mxu0 %v807
        %946 = vmatprep.subr.mxu0 %v810
        %947 = vmatpush1.msra.mxu0 %v809
        %948 = vmatprep.subr.mxu0 %v812
        %949 = vmatpush1.msra.mxu0 %v811
        %950 = vmatprep.subr.mxu0 %v814
        %951 = vmatpush1.msra.mxu0 %v813
        %952 = vmatprep.subr.mxu0 %v816
        %953 = vmatpush1.msra.mxu0 %v815
        %954 = vmatprep.subr.mxu0 %v818
        %955 = vmatpush1.msra.mxu0 %v817
        %956 = vmatprep.subr.mxu0 %v820
        %957 = vmatpush1.msra.mxu0 %v819
        %958 = vmatprep.subr.mxu0 %v822
        %959 = vmatpush1.msra.mxu0 %v821
        %960 = vmatprep.subr.mxu0 %v824
        %961 = vmatpush1.msra.mxu0 %v823
        %962 = vmatprep.subr.mxu0 %v826
        %963 = vmatpush1.msra.mxu0 %v825
        %964 = vmatprep.subr.mxu0 %v828
        %965 = vmatpush1.msra.mxu0 %v827
        %966 = vmatprep.subr.mxu0 %v830
        %967 = vmatpush1.msra.mxu0 %v829
        %968 = vmatprep.subr.mxu0 0.0
        %969 = vmatpush1.msra.mxu0 0.0
        %970 = vmatprep.subr.mxu0 0.0
        %971 = vmatpush1.msra.mxu0 0.0
        %972 = vmatprep.subr.mxu0 0.0
        %973 = vmatpush1.msra.mxu0 0.0
        %974 = vmatprep.subr.mxu0 0.0
        %975 = vmatpush1.msra.mxu0 0.0
        %976 = vmatprep.subr.mxu0 0.0
        %977 = vmatpush1.msra.mxu0 0.0
        %978 = vmatprep.subr.mxu0 0.0
        %979 = vmatpush1.msra.mxu0 0.0
        %980 = vmatprep.subr.mxu0 0.0
        %981 = vmatpush1.msra.mxu0 0.0
        %982 = vmatprep.subr.mxu0 0.0
        %983 = vmatpush1.msra.mxu0 0.0
        %984 = vmatprep.subr.mxu0 0.0
        %985 = vmatpush1.msra.mxu0 0.0
        %986 = vmatprep.subr.mxu0 0.0
        %987 = vmatpush1.msra.mxu0 0.0
        %988 = vmatprep.subr.mxu0 0.0
        %989 = vmatpush1.msra.mxu0 0.0
        %990 = vmatprep.subr.mxu0 0.0
        %991 = vmatpush1.msra.mxu0 0.0
        %992 = vmatprep.subr.mxu0 0.0
        %993 = vmatpush1.msra.mxu0 0.0
        %994 = vmatprep.subr.mxu0 0.0
        %995 = vmatpush1.msra.mxu0 0.0
        %996 = vmatprep.subr.mxu0 0.0
        %997 = vmatpush1.msra.mxu0 0.0
        %998 = vmatprep.subr.mxu0 0.0
        %999 = vmatpush1.msra.mxu0 0.0
        %1000 = vmatprep.mubr.f32.mxu0 0.0
        %1001 = vmatmul.mubr.f32.gmra.mrb[0].mxu0 %v798
        %v1002 = vpop.f32.mrb[0].mxu0
        %v1003 = vadd.f32 %v932, %v1002
        %v1004 = vpop.f32.mrb[0].mxu0
        %v1005 = vadd.f32 %v934, %v1004
        %1006 = vdwg.mxu0
        %v1007 = vld [vmem:[#allocation2 + $0x2] sm:$0xf]
        %s1008 = scalar_lea.vmem %s5, 512
        %v1009 = vld [vmem:[%s1008] sm:$0xff]
        %v1010 = vld [vmem:[%s1008 + $0x8] sm:$0xff]
        %v1011 = vld [vmem:[%s1008 + $0x10] sm:$0xff]
        %v1012 = vld [vmem:[%s1008 + $0x18] sm:$0xff]
        %v1013 = vld [vmem:[%s1008 + $0x20] sm:$0xff]
        %v1014 = vld [vmem:[%s1008 + $0x28] sm:$0xff]
        %v1015 = vld [vmem:[%s1008 + $0x30] sm:$0xff]
        %v1016 = vld [vmem:[%s1008 + $0x38] sm:$0xff]
        %v1017 = vld [vmem:[%s1008 + $0x40] sm:$0xff]
        %v1018 = vld [vmem:[%s1008 + $0x48] sm:$0xff]
        %v1019 = vld [vmem:[%s1008 + $0x50] sm:$0xff]
        %v1020 = vld [vmem:[%s1008 + $0x58] sm:$0xff]
        %v1021 = vld [vmem:[%s1008 + $0x60] sm:$0xff]
        %v1022 = vld [vmem:[%s1008 + $0x68] sm:$0xff]
        %v1023 = vld [vmem:[%s1008 + $0x70] sm:$0xff]
        %v1024 = vld [vmem:[%s1008 + $0x78] sm:$0xff]
        %v1025 = vld [vmem:[%s1008 + $0x80] sm:$0xff]
        %v1026 = vld [vmem:[%s1008 + $0x88] sm:$0xff]
        %v1027 = vld [vmem:[%s1008 + $0x90] sm:$0xff]
        %v1028 = vld [vmem:[%s1008 + $0x98] sm:$0xff]
        %v1029 = vld [vmem:[%s1008 + $0xa0] sm:$0xff]
        %v1030 = vld [vmem:[%s1008 + $0xa8] sm:$0xff]
        %v1031 = vld [vmem:[%s1008 + $0xb0] sm:$0xff]
        %v1032 = vld [vmem:[%s1008 + $0xb8] sm:$0xff]
        %v1033 = vld [vmem:[%s1008 + $0xc0] sm:$0xff]
        %v1034 = vld [vmem:[%s1008 + $0xc8] sm:$0xff]
        %v1035 = vld [vmem:[%s1008 + $0xd0] sm:$0xff]
        %v1036 = vld [vmem:[%s1008 + $0xd8] sm:$0xff]
        %v1037 = vld [vmem:[%s1008 + $0xe0] sm:$0xff]
        %v1038 = vld [vmem:[%s1008 + $0xe8] sm:$0xff]
        %v1039 = vld [vmem:[%s1008 + $0xf0] sm:$0xff]
        %v1040 = vld [vmem:[%s1008 + $0xf8] sm:$0xff]
        %1041 = vmatprep.subr.mxu0 %v1010
        %1042 = vmatpush1.msra.mxu0 %v1009
        %1043 = vmatprep.subr.mxu0 %v1012
        %1044 = vmatpush1.msra.mxu0 %v1011
        %1045 = vmatprep.subr.mxu0 %v1014
        %1046 = vmatpush1.msra.mxu0 %v1013
        %1047 = vmatprep.subr.mxu0 %v1016
        %1048 = vmatpush1.msra.mxu0 %v1015
        %1049 = vmatprep.subr.mxu0 %v1018
        %1050 = vmatpush1.msra.mxu0 %v1017
        %1051 = vmatprep.subr.mxu0 %v1020
        %1052 = vmatpush1.msra.mxu0 %v1019
        %1053 = vmatprep.subr.mxu0 %v1022
        %1054 = vmatpush1.msra.mxu0 %v1021
        %1055 = vmatprep.subr.mxu0 %v1024
        %1056 = vmatpush1.msra.mxu0 %v1023
        %1057 = vmatprep.subr.mxu0 %v1026
        %1058 = vmatpush1.msra.mxu0 %v1025
        %1059 = vmatprep.subr.mxu0 %v1028
        %1060 = vmatpush1.msra.mxu0 %v1027
        %1061 = vmatprep.subr.mxu0 %v1030
        %1062 = vmatpush1.msra.mxu0 %v1029
        %1063 = vmatprep.subr.mxu0 %v1032
        %1064 = vmatpush1.msra.mxu0 %v1031
        %1065 = vmatprep.subr.mxu0 %v1034
        %1066 = vmatpush1.msra.mxu0 %v1033
        %1067 = vmatprep.subr.mxu0 %v1036
        %1068 = vmatpush1.msra.mxu0 %v1035
        %1069 = vmatprep.subr.mxu0 %v1038
        %1070 = vmatpush1.msra.mxu0 %v1037
        %1071 = vmatprep.subr.mxu0 %v1040
        %1072 = vmatpush1.msra.mxu0 %v1039
        %1073 = vmatprep.subr.mxu0 0.0
        %1074 = vmatpush1.msra.mxu0 0.0
        %1075 = vmatprep.subr.mxu0 0.0
        %1076 = vmatpush1.msra.mxu0 0.0
        %1077 = vmatprep.subr.mxu0 0.0
        %1078 = vmatpush1.msra.mxu0 0.0
        %1079 = vmatprep.subr.mxu0 0.0
        %1080 = vmatpush1.msra.mxu0 0.0
        %1081 = vmatprep.subr.mxu0 0.0
        %1082 = vmatpush1.msra.mxu0 0.0
        %1083 = vmatprep.subr.mxu0 0.0
        %1084 = vmatpush1.msra.mxu0 0.0
        %1085 = vmatprep.subr.mxu0 0.0
        %1086 = vmatpush1.msra.mxu0 0.0
        %1087 = vmatprep.subr.mxu0 0.0
        %1088 = vmatpush1.msra.mxu0 0.0
        %1089 = vmatprep.subr.mxu0 0.0
        %1090 = vmatpush1.msra.mxu0 0.0
        %1091 = vmatprep.subr.mxu0 0.0
        %1092 = vmatpush1.msra.mxu0 0.0
        %1093 = vmatprep.subr.mxu0 0.0
        %1094 = vmatpush1.msra.mxu0 0.0
        %1095 = vmatprep.subr.mxu0 0.0
        %1096 = vmatpush1.msra.mxu0 0.0
        %1097 = vmatprep.subr.mxu0 0.0
        %1098 = vmatpush1.msra.mxu0 0.0
        %1099 = vmatprep.subr.mxu0 0.0
        %1100 = vmatpush1.msra.mxu0 0.0
        %1101 = vmatprep.subr.mxu0 0.0
        %1102 = vmatpush1.msra.mxu0 0.0
        %1103 = vmatprep.subr.mxu0 0.0
        %1104 = vmatpush1.msra.mxu0 0.0
        %1105 = vmatprep.mubr.f32.mxu0 0.0
        %1106 = vmatmul.mubr.f32.gmra.mrb[0].mxu0 %v1007
        %v1107 = vpop.f32.mrb[0].mxu0
        %v1108 = vadd.f32 0.0, %v1107
        %v1109 = vpop.f32.mrb[0].mxu0
        %v1110 = vadd.f32 0.0, %v1109
        %1111 = vdwg.mxu0
        %v1112 = vadd.f32 %v1003, %v1108
        %v1113 = vadd.f32 %v1005, %v1110
        %v1114 = vld [vmem:[#allocation12] sm:$0x3]
        %v1116 = vlaneseq
        %v1117 = vshrl.u32 %v1116, 7
        %v1118 = vsub.s32 0, %v1117
        %v1119 = vrot.slane %v1114, %v1118
        %v1120 = vlaneseq
        %v1121 = vshrl.u32 %v1120, 7
        %v1122 = vsub.s32 1, %v1121
        %v1123 = vrot.slane %v1114, %v1122
        %v1126 = vadd.f32 %v1112, %v1119
        %v1127 = vadd.f32 %v1113, %v1123
        %v1128 = vmax.f32 %v1126, 0.0
        %v1129 = vmax.f32 %v1127, 0.0
        %1130 = vst [vmem:[#allocation3 + $0x1] sm:$0x1] %v1128
        %1131 = vst [vmem:[#allocation3 + $0x2] sm:$0x1] %v1129
        %v1133 = vrot.slane %v1128, 1
        %1135 = vst [vmem:[#allocation3 + $0x3] sm:$0x1] %v1133
        %v1137 = vrot.slane %v1129, 1
        %1139 = vst [vmem:[#allocation3 + $0x4] sm:$0x1] %v1137
        %v1140 = vrot.slane %v1128, 2
        %1142 = vst [vmem:[#allocation3 + $0x5] sm:$0x1] %v1140
        %v1143 = vrot.slane %v1129, 2
        %1145 = vst [vmem:[#allocation3 + $0x6] sm:$0x1] %v1143
        %v1146 = vrot.slane %v1128, 3
        %1148 = vst [vmem:[#allocation3 + $0x7] sm:$0x1] %v1146
        %v1149 = vrot.slane %v1129, 3
        %1151 = vst [vmem:[#allocation3 + $0x10] sm:$0x1] %v1149
        %v1152 = vld [vmem:[#allocation3] sm:$0xff]
        %v1153 = vld [vmem:[#allocation3 + $0x8] sm:$0xff]
        %v1154 = vld [vmem:[%s6] sm:$0xff]
        %v1155 = vld [vmem:[%s6 + $0x8] sm:$0xff]
        %v1156 = vld [vmem:[%s6 + $0x10] sm:$0xff]
        %v1157 = vld [vmem:[%s6 + $0x18] sm:$0xff]
        %v1158 = vld [vmem:[%s6 + $0x20] sm:$0xff]
        %v1159 = vld [vmem:[%s6 + $0x28] sm:$0xff]
        %v1160 = vld [vmem:[%s6 + $0x30] sm:$0xff]
        %v1161 = vld [vmem:[%s6 + $0x38] sm:$0xff]
        %v1162 = vld [vmem:[%s6 + $0x40] sm:$0xff]
        %v1163 = vld [vmem:[%s6 + $0x48] sm:$0xff]
        %v1164 = vld [vmem:[%s6 + $0x50] sm:$0xff]
        %v1165 = vld [vmem:[%s6 + $0x58] sm:$0xff]
        %v1166 = vld [vmem:[%s6 + $0x60] sm:$0xff]
        %v1167 = vld [vmem:[%s6 + $0x68] sm:$0xff]
        %v1168 = vld [vmem:[%s6 + $0x70] sm:$0xff]
        %v1169 = vld [vmem:[%s6 + $0x78] sm:$0xff]
        %v1170 = vld [vmem:[%s6 + $0x80] sm:$0xff]
        %v1171 = vld [vmem:[%s6 + $0x88] sm:$0xff]
        %v1172 = vld [vmem:[%s6 + $0x90] sm:$0xff]
        %v1173 = vld [vmem:[%s6 + $0x98] sm:$0xff]
        %v1174 = vld [vmem:[%s6 + $0xa0] sm:$0xff]
        %v1175 = vld [vmem:[%s6 + $0xa8] sm:$0xff]
        %v1176 = vld [vmem:[%s6 + $0xb0] sm:$0xff]
        %v1177 = vld [vmem:[%s6 + $0xb8] sm:$0xff]
        %v1178 = vld [vmem:[%s6 + $0xc0] sm:$0xff]
        %v1179 = vld [vmem:[%s6 + $0xc8] sm:$0xff]
        %v1180 = vld [vmem:[%s6 + $0xd0] sm:$0xff]
        %v1181 = vld [vmem:[%s6 + $0xd8] sm:$0xff]
        %v1182 = vld [vmem:[%s6 + $0xe0] sm:$0xff]
        %v1183 = vld [vmem:[%s6 + $0xe8] sm:$0xff]
        %v1184 = vld [vmem:[%s6 + $0xf0] sm:$0xff]
        %v1185 = vld [vmem:[%s6 + $0xf8] sm:$0xff]
        %v1186 = vld [vmem:[%s6 + $0x100] sm:$0xff]
        %v1187 = vld [vmem:[%s6 + $0x108] sm:$0xff]
        %v1188 = vld [vmem:[%s6 + $0x110] sm:$0xff]
        %v1189 = vld [vmem:[%s6 + $0x118] sm:$0xff]
        %v1190 = vld [vmem:[%s6 + $0x120] sm:$0xff]
        %v1191 = vld [vmem:[%s6 + $0x128] sm:$0xff]
        %v1192 = vld [vmem:[%s6 + $0x130] sm:$0xff]
        %v1193 = vld [vmem:[%s6 + $0x138] sm:$0xff]
        %v1194 = vld [vmem:[%s6 + $0x140] sm:$0xff]
        %v1195 = vld [vmem:[%s6 + $0x148] sm:$0xff]
        %v1196 = vld [vmem:[%s6 + $0x150] sm:$0xff]
        %v1197 = vld [vmem:[%s6 + $0x158] sm:$0xff]
        %v1198 = vld [vmem:[%s6 + $0x160] sm:$0xff]
        %v1199 = vld [vmem:[%s6 + $0x168] sm:$0xff]
        %v1200 = vld [vmem:[%s6 + $0x170] sm:$0xff]
        %v1201 = vld [vmem:[%s6 + $0x178] sm:$0xff]
        %v1202 = vld [vmem:[%s6 + $0x180] sm:$0xff]
        %v1203 = vld [vmem:[%s6 + $0x188] sm:$0xff]
        %v1204 = vld [vmem:[%s6 + $0x190] sm:$0xff]
        %v1205 = vld [vmem:[%s6 + $0x198] sm:$0xff]
        %v1206 = vld [vmem:[%s6 + $0x1a0] sm:$0xff]
        %v1207 = vld [vmem:[%s6 + $0x1a8] sm:$0xff]
        %v1208 = vld [vmem:[%s6 + $0x1b0] sm:$0xff]
        %v1209 = vld [vmem:[%s6 + $0x1b8] sm:$0xff]
        %v1210 = vld [vmem:[%s6 + $0x1c0] sm:$0xff]
        %v1211 = vld [vmem:[%s6 + $0x1c8] sm:$0xff]
        %v1212 = vld [vmem:[%s6 + $0x1d0] sm:$0xff]
        %v1213 = vld [vmem:[%s6 + $0x1d8] sm:$0xff]
        %v1214 = vld [vmem:[%s6 + $0x1e0] sm:$0xff]
        %v1215 = vld [vmem:[%s6 + $0x1e8] sm:$0xff]
        %v1216 = vld [vmem:[%s6 + $0x1f0] sm:$0xff]
        %v1217 = vld [vmem:[%s6 + $0x1f8] sm:$0xff]
        %v1218 = vld [vmem:[#allocation3] sm:$0xfe]
        %v1219 = vld [vmem:[#allocation3 + $0x8] sm:$0xfe]
        %v1220 = vld [vmem:[#allocation3 + $0x10] sm:$0x1]
        %v1221 = vld [vmem:[#allocation3 + $0x18] sm:$0x1]
        %s1222 = scalar_lea.vmem %s6, 512
        %v1223 = vld [vmem:[%s1222] sm:$0xff]
        %v1224 = vld [vmem:[%s1222 + $0x8] sm:$0xff]
        %v1225 = vld [vmem:[%s1222 + $0x10] sm:$0xff]
        %v1226 = vld [vmem:[%s1222 + $0x18] sm:$0xff]
        %v1227 = vld [vmem:[%s1222 + $0x20] sm:$0xff]
        %v1228 = vld [vmem:[%s1222 + $0x28] sm:$0xff]
        %v1229 = vld [vmem:[%s1222 + $0x30] sm:$0xff]
        %v1230 = vld [vmem:[%s1222 + $0x38] sm:$0xff]
        %v1231 = vld [vmem:[%s1222 + $0x40] sm:$0xff]
        %v1232 = vld [vmem:[%s1222 + $0x48] sm:$0xff]
        %v1233 = vld [vmem:[%s1222 + $0x50] sm:$0xff]
        %v1234 = vld [vmem:[%s1222 + $0x58] sm:$0xff]
        %v1235 = vld [vmem:[%s1222 + $0x60] sm:$0xff]
        %v1236 = vld [vmem:[%s1222 + $0x68] sm:$0xff]
        %v1237 = vld [vmem:[%s1222 + $0x70] sm:$0xff]
        %v1238 = vld [vmem:[%s1222 + $0x78] sm:$0xff]
        %v1239 = vld [vmem:[%s1222 + $0x80] sm:$0xff]
        %v1240 = vld [vmem:[%s1222 + $0x88] sm:$0xff]
        %v1241 = vld [vmem:[%s1222 + $0x90] sm:$0xff]
        %v1242 = vld [vmem:[%s1222 + $0x98] sm:$0xff]
        %v1243 = vld [vmem:[%s1222 + $0xa0] sm:$0xff]
        %v1244 = vld [vmem:[%s1222 + $0xa8] sm:$0xff]
        %v1245 = vld [vmem:[%s1222 + $0xb0] sm:$0xff]
        %v1246 = vld [vmem:[%s1222 + $0xb8] sm:$0xff]
        %v1247 = vld [vmem:[%s1222 + $0xc0] sm:$0xff]
        %v1248 = vld [vmem:[%s1222 + $0xc8] sm:$0xff]
        %v1249 = vld [vmem:[%s1222 + $0xd0] sm:$0xff]
        %v1250 = vld [vmem:[%s1222 + $0xd8] sm:$0xff]
        %v1251 = vld [vmem:[%s1222 + $0xe0] sm:$0xff]
        %v1252 = vld [vmem:[%s1222 + $0xe8] sm:$0xff]
        %v1253 = vld [vmem:[%s1222 + $0xf0] sm:$0xff]
        %v1254 = vld [vmem:[%s1222 + $0xf8] sm:$0xff]
        %v1255 = vld [vmem:[%s1222 + $0x100] sm:$0xff]
        %v1256 = vld [vmem:[%s1222 + $0x108] sm:$0xff]
        %v1257 = vld [vmem:[%s1222 + $0x110] sm:$0xff]
        %v1258 = vld [vmem:[%s1222 + $0x118] sm:$0xff]
        %v1259 = vld [vmem:[%s1222 + $0x120] sm:$0xff]
        %v1260 = vld [vmem:[%s1222 + $0x128] sm:$0xff]
        %v1261 = vld [vmem:[%s1222 + $0x130] sm:$0xff]
        %v1262 = vld [vmem:[%s1222 + $0x138] sm:$0xff]
        %v1263 = vld [vmem:[%s1222 + $0x140] sm:$0xff]
        %v1264 = vld [vmem:[%s1222 + $0x148] sm:$0xff]
        %v1265 = vld [vmem:[%s1222 + $0x150] sm:$0xff]
        %v1266 = vld [vmem:[%s1222 + $0x158] sm:$0xff]
        %v1267 = vld [vmem:[%s1222 + $0x160] sm:$0xff]
        %v1268 = vld [vmem:[%s1222 + $0x168] sm:$0xff]
        %v1269 = vld [vmem:[%s1222 + $0x170] sm:$0xff]
        %v1270 = vld [vmem:[%s1222 + $0x178] sm:$0xff]
        %v1271 = vld [vmem:[%s1222 + $0x180] sm:$0xff]
        %v1272 = vld [vmem:[%s1222 + $0x188] sm:$0xff]
        %v1273 = vld [vmem:[%s1222 + $0x190] sm:$0xff]
        %v1274 = vld [vmem:[%s1222 + $0x198] sm:$0xff]
        %v1275 = vld [vmem:[%s1222 + $0x1a0] sm:$0xff]
        %v1276 = vld [vmem:[%s1222 + $0x1a8] sm:$0xff]
        %v1277 = vld [vmem:[%s1222 + $0x1b0] sm:$0xff]
        %v1278 = vld [vmem:[%s1222 + $0x1b8] sm:$0xff]
        %v1279 = vld [vmem:[%s1222 + $0x1c0] sm:$0xff]
        %v1280 = vld [vmem:[%s1222 + $0x1c8] sm:$0xff]
        %v1281 = vld [vmem:[%s1222 + $0x1d0] sm:$0xff]
        %v1282 = vld [vmem:[%s1222 + $0x1d8] sm:$0xff]
        %v1283 = vld [vmem:[%s1222 + $0x1e0] sm:$0xff]
        %v1284 = vld [vmem:[%s1222 + $0x1e8] sm:$0xff]
        %v1285 = vld [vmem:[%s1222 + $0x1f0] sm:$0xff]
        %v1286 = vld [vmem:[%s1222 + $0x1f8] sm:$0xff]
        %vm1291 = vcmask 1046528
        %v1292 = vrot.slane %v1218, 1
        %v1293 = vrot.slane %v1220, 1
        %v1294 = vsel %vm1291, %v1292, %v1293
        %v1295 = vrot.slane %v1219, 1
        %v1296 = vrot.slane %v1221, 1
        %v1297 = vsel %vm1291, %v1295, %v1296
        %1300 = vmatprep.subr.mxu0 %v1224
        %1301 = vmatpush1.msra.mxu0 %v1223
        %1302 = vmatprep.subr.mxu0 %v1226
        %1303 = vmatpush1.msra.mxu0 %v1225
        %1304 = vmatprep.subr.mxu0 %v1228
        %1305 = vmatpush1.msra.mxu0 %v1227
        %1306 = vmatprep.subr.mxu0 %v1230
        %1307 = vmatpush1.msra.mxu0 %v1229
        %1308 = vmatprep.subr.mxu0 %v1232
        %1309 = vmatpush1.msra.mxu0 %v1231
        %1310 = vmatprep.subr.mxu0 %v1234
        %1311 = vmatpush1.msra.mxu0 %v1233
        %1312 = vmatprep.subr.mxu0 %v1236
        %1313 = vmatpush1.msra.mxu0 %v1235
        %1314 = vmatprep.subr.mxu0 %v1238
        %1315 = vmatpush1.msra.mxu0 %v1237
        %1316 = vmatprep.subr.mxu0 %v1240
        %1317 = vmatpush1.msra.mxu0 %v1239
        %1318 = vmatprep.subr.mxu0 %v1242
        %1319 = vmatpush1.msra.mxu0 %v1241
        %1320 = vmatprep.subr.mxu0 %v1244
        %1321 = vmatpush1.msra.mxu0 %v1243
        %1322 = vmatprep.subr.mxu0 %v1246
        %1323 = vmatpush1.msra.mxu0 %v1245
        %1324 = vmatprep.subr.mxu0 %v1248
        %1325 = vmatpush1.msra.mxu0 %v1247
        %1326 = vmatprep.subr.mxu0 %v1250
        %1327 = vmatpush1.msra.mxu0 %v1249
        %1328 = vmatprep.subr.mxu0 %v1252
        %1329 = vmatpush1.msra.mxu0 %v1251
        %1330 = vmatprep.subr.mxu0 %v1254
        %1331 = vmatpush1.msra.mxu0 %v1253
        %1332 = vmatprep.subr.mxu0 %v1256
        %1333 = vmatpush1.msra.mxu0 %v1255
        %1334 = vmatprep.subr.mxu0 %v1258
        %1335 = vmatpush1.msra.mxu0 %v1257
        %1336 = vmatprep.subr.mxu0 %v1260
        %1337 = vmatpush1.msra.mxu0 %v1259
        %1338 = vmatprep.subr.mxu0 %v1262
        %1339 = vmatpush1.msra.mxu0 %v1261
        %1340 = vmatprep.subr.mxu0 %v1264
        %1341 = vmatpush1.msra.mxu0 %v1263
        %1342 = vmatprep.subr.mxu0 %v1266
        %1343 = vmatpush1.msra.mxu0 %v1265
        %1344 = vmatprep.subr.mxu0 %v1268
        %1345 = vmatpush1.msra.mxu0 %v1267
        %1346 = vmatprep.subr.mxu0 %v1270
        %1347 = vmatpush1.msra.mxu0 %v1269
        %1348 = vmatprep.subr.mxu0 %v1272
        %1349 = vmatpush1.msra.mxu0 %v1271
        %1350 = vmatprep.subr.mxu0 %v1274
        %1351 = vmatpush1.msra.mxu0 %v1273
        %1352 = vmatprep.subr.mxu0 %v1276
        %1353 = vmatpush1.msra.mxu0 %v1275
        %1354 = vmatprep.subr.mxu0 %v1278
        %1355 = vmatpush1.msra.mxu0 %v1277
        %1356 = vmatprep.subr.mxu0 %v1280
        %1357 = vmatpush1.msra.mxu0 %v1279
        %1358 = vmatprep.subr.mxu0 %v1282
        %1359 = vmatpush1.msra.mxu0 %v1281
        %1360 = vmatprep.subr.mxu0 %v1284
        %1361 = vmatpush1.msra.mxu0 %v1283
        %1362 = vmatprep.subr.mxu0 %v1286
        %1363 = vmatpush1.msra.mxu0 %v1285
        %1364 = vmatprep.mubr.f32.mxu0 %v1297
        %1365 = vmatmul.mubr.f32.gmra.mrb[0].mxu0 %v1294
        %v1366 = vpop.f32.mrb[0].mxu0
        %v1367 = vadd.f32 0.0, %v1366
        %v1368 = vpop.f32.mrb[0].mxu0
        %v1369 = vadd.f32 0.0, %v1368
        %1370 = vdwg.mxu0
        %1371 = vmatprep.subr.mxu0 %v1155
        %1372 = vmatpush1.msra.mxu0 %v1154
        %1373 = vmatprep.subr.mxu0 %v1157
        %1374 = vmatpush1.msra.mxu0 %v1156
        %1375 = vmatprep.subr.mxu0 %v1159
        %1376 = vmatpush1.msra.mxu0 %v1158
        %1377 = vmatprep.subr.mxu0 %v1161
        %1378 = vmatpush1.msra.mxu0 %v1160
        %1379 = vmatprep.subr.mxu0 %v1163
        %1380 = vmatpush1.msra.mxu0 %v1162
        %1381 = vmatprep.subr.mxu0 %v1165
        %1382 = vmatpush1.msra.mxu0 %v1164
        %1383 = vmatprep.subr.mxu0 %v1167
        %1384 = vmatpush1.msra.mxu0 %v1166
        %1385 = vmatprep.subr.mxu0 %v1169
        %1386 = vmatpush1.msra.mxu0 %v1168
        %1387 = vmatprep.subr.mxu0 %v1171
        %1388 = vmatpush1.msra.mxu0 %v1170
        %1389 = vmatprep.subr.mxu0 %v1173
        %1390 = vmatpush1.msra.mxu0 %v1172
        %1391 = vmatprep.subr.mxu0 %v1175
        %1392 = vmatpush1.msra.mxu0 %v1174
        %1393 = vmatprep.subr.mxu0 %v1177
        %1394 = vmatpush1.msra.mxu0 %v1176
        %1395 = vmatprep.subr.mxu0 %v1179
        %1396 = vmatpush1.msra.mxu0 %v1178
        %1397 = vmatprep.subr.mxu0 %v1181
        %1398 = vmatpush1.msra.mxu0 %v1180
        %1399 = vmatprep.subr.mxu0 %v1183
        %1400 = vmatpush1.msra.mxu0 %v1182
        %1401 = vmatprep.subr.mxu0 %v1185
        %1402 = vmatpush1.msra.mxu0 %v1184
        %1403 = vmatprep.subr.mxu0 %v1187
        %1404 = vmatpush1.msra.mxu0 %v1186
        %1405 = vmatprep.subr.mxu0 %v1189
        %1406 = vmatpush1.msra.mxu0 %v1188
        %1407 = vmatprep.subr.mxu0 %v1191
        %1408 = vmatpush1.msra.mxu0 %v1190
        %1409 = vmatprep.subr.mxu0 %v1193
        %1410 = vmatpush1.msra.mxu0 %v1192
        %1411 = vmatprep.subr.mxu0 %v1195
        %1412 = vmatpush1.msra.mxu0 %v1194
        %1413 = vmatprep.subr.mxu0 %v1197
        %1414 = vmatpush1.msra.mxu0 %v1196
        %1415 = vmatprep.subr.mxu0 %v1199
        %1416 = vmatpush1.msra.mxu0 %v1198
        %1417 = vmatprep.subr.mxu0 %v1201
        %1418 = vmatpush1.msra.mxu0 %v1200
        %1419 = vmatprep.subr.mxu0 %v1203
        %1420 = vmatpush1.msra.mxu0 %v1202
        %1421 = vmatprep.subr.mxu0 %v1205
        %1422 = vmatpush1.msra.mxu0 %v1204
        %1423 = vmatprep.subr.mxu0 %v1207
        %1424 = vmatpush1.msra.mxu0 %v1206
        %1425 = vmatprep.subr.mxu0 %v1209
        %1426 = vmatpush1.msra.mxu0 %v1208
        %1427 = vmatprep.subr.mxu0 %v1211
        %1428 = vmatpush1.msra.mxu0 %v1210
        %1429 = vmatprep.subr.mxu0 %v1213
        %1430 = vmatpush1.msra.mxu0 %v1212
        %1431 = vmatprep.subr.mxu0 %v1215
        %1432 = vmatpush1.msra.mxu0 %v1214
        %1433 = vmatprep.subr.mxu0 %v1217
        %1434 = vmatpush1.msra.mxu0 %v1216
        %1435 = vmatprep.mubr.f32.mxu0 %v1153
        %1436 = vmatmul.mubr.f32.gmra.mrb[0].mxu0 %v1152
        %v1437 = vpop.f32.mrb[0].mxu0
        %v1438 = vadd.f32 %v1367, %v1437
        %v1439 = vpop.f32.mrb[0].mxu0
        %v1440 = vadd.f32 %v1369, %v1439
        %1441 = vdwg.mxu0
        %v1442 = vld [vmem:[#allocation3] sm:$0xfc]
        %v1443 = vld [vmem:[#allocation3 + $0x8] sm:$0xfc]
        %v1444 = vld [vmem:[#allocation3 + $0x10] sm:$0x3]
        %v1445 = vld [vmem:[#allocation3 + $0x18] sm:$0x3]
        %s1446 = scalar_lea.vmem %s6, 1024
        %v1447 = vld [vmem:[%s1446] sm:$0xff]
        %v1448 = vld [vmem:[%s1446 + $0x8] sm:$0xff]
        %v1449 = vld [vmem:[%s1446 + $0x10] sm:$0xff]
        %v1450 = vld [vmem:[%s1446 + $0x18] sm:$0xff]
        %v1451 = vld [vmem:[%s1446 + $0x20] sm:$0xff]
        %v1452 = vld [vmem:[%s1446 + $0x28] sm:$0xff]
        %v1453 = vld [vmem:[%s1446 + $0x30] sm:$0xff]
        %v1454 = vld [vmem:[%s1446 + $0x38] sm:$0xff]
        %v1455 = vld [vmem:[%s1446 + $0x40] sm:$0xff]
        %v1456 = vld [vmem:[%s1446 + $0x48] sm:$0xff]
        %v1457 = vld [vmem:[%s1446 + $0x50] sm:$0xff]
        %v1458 = vld [vmem:[%s1446 + $0x58] sm:$0xff]
        %v1459 = vld [vmem:[%s1446 + $0x60] sm:$0xff]
        %v1460 = vld [vmem:[%s1446 + $0x68] sm:$0xff]
        %v1461 = vld [vmem:[%s1446 + $0x70] sm:$0xff]
        %v1462 = vld [vmem:[%s1446 + $0x78] sm:$0xff]
        %v1463 = vld [vmem:[%s1446 + $0x80] sm:$0xff]
        %v1464 = vld [vmem:[%s1446 + $0x88] sm:$0xff]
        %v1465 = vld [vmem:[%s1446 + $0x90] sm:$0xff]
        %v1466 = vld [vmem:[%s1446 + $0x98] sm:$0xff]
        %v1467 = vld [vmem:[%s1446 + $0xa0] sm:$0xff]
        %v1468 = vld [vmem:[%s1446 + $0xa8] sm:$0xff]
        %v1469 = vld [vmem:[%s1446 + $0xb0] sm:$0xff]
        %v1470 = vld [vmem:[%s1446 + $0xb8] sm:$0xff]
        %v1471 = vld [vmem:[%s1446 + $0xc0] sm:$0xff]
        %v1472 = vld [vmem:[%s1446 + $0xc8] sm:$0xff]
        %v1473 = vld [vmem:[%s1446 + $0xd0] sm:$0xff]
        %v1474 = vld [vmem:[%s1446 + $0xd8] sm:$0xff]
        %v1475 = vld [vmem:[%s1446 + $0xe0] sm:$0xff]
        %v1476 = vld [vmem:[%s1446 + $0xe8] sm:$0xff]
        %v1477 = vld [vmem:[%s1446 + $0xf0] sm:$0xff]
        %v1478 = vld [vmem:[%s1446 + $0xf8] sm:$0xff]
        %v1479 = vld [vmem:[%s1446 + $0x100] sm:$0xff]
        %v1480 = vld [vmem:[%s1446 + $0x108] sm:$0xff]
        %v1481 = vld [vmem:[%s1446 + $0x110] sm:$0xff]
        %v1482 = vld [vmem:[%s1446 + $0x118] sm:$0xff]
        %v1483 = vld [vmem:[%s1446 + $0x120] sm:$0xff]
        %v1484 = vld [vmem:[%s1446 + $0x128] sm:$0xff]
        %v1485 = vld [vmem:[%s1446 + $0x130] sm:$0xff]
        %v1486 = vld [vmem:[%s1446 + $0x138] sm:$0xff]
        %v1487 = vld [vmem:[%s1446 + $0x140] sm:$0xff]
        %v1488 = vld [vmem:[%s1446 + $0x148] sm:$0xff]
        %v1489 = vld [vmem:[%s1446 + $0x150] sm:$0xff]
        %v1490 = vld [vmem:[%s1446 + $0x158] sm:$0xff]
        %v1491 = vld [vmem:[%s1446 + $0x160] sm:$0xff]
        %v1492 = vld [vmem:[%s1446 + $0x168] sm:$0xff]
        %v1493 = vld [vmem:[%s1446 + $0x170] sm:$0xff]
        %v1494 = vld [vmem:[%s1446 + $0x178] sm:$0xff]
        %v1495 = vld [vmem:[%s1446 + $0x180] sm:$0xff]
        %v1496 = vld [vmem:[%s1446 + $0x188] sm:$0xff]
        %v1497 = vld [vmem:[%s1446 + $0x190] sm:$0xff]
        %v1498 = vld [vmem:[%s1446 + $0x198] sm:$0xff]
        %v1499 = vld [vmem:[%s1446 + $0x1a0] sm:$0xff]
        %v1500 = vld [vmem:[%s1446 + $0x1a8] sm:$0xff]
        %v1501 = vld [vmem:[%s1446 + $0x1b0] sm:$0xff]
        %v1502 = vld [vmem:[%s1446 + $0x1b8] sm:$0xff]
        %v1503 = vld [vmem:[%s1446 + $0x1c0] sm:$0xff]
        %v1504 = vld [vmem:[%s1446 + $0x1c8] sm:$0xff]
        %v1505 = vld [vmem:[%s1446 + $0x1d0] sm:$0xff]
        %v1506 = vld [vmem:[%s1446 + $0x1d8] sm:$0xff]
        %v1507 = vld [vmem:[%s1446 + $0x1e0] sm:$0xff]
        %v1508 = vld [vmem:[%s1446 + $0x1e8] sm:$0xff]
        %v1509 = vld [vmem:[%s1446 + $0x1f0] sm:$0xff]
        %v1510 = vld [vmem:[%s1446 + $0x1f8] sm:$0xff]
        %vm1515 = vcmask 1045504
        %v1516 = vrot.slane %v1442, 2
        %v1517 = vrot.slane %v1444, 2
        %v1518 = vsel %vm1515, %v1516, %v1517
        %v1519 = vrot.slane %v1443, 2
        %v1520 = vrot.slane %v1445, 2
        %v1521 = vsel %vm1515, %v1519, %v1520
        %1524 = vmatprep.subr.mxu0 %v1448
        %1525 = vmatpush1.msra.mxu0 %v1447
        %1526 = vmatprep.subr.mxu0 %v1450
        %1527 = vmatpush1.msra.mxu0 %v1449
        %1528 = vmatprep.subr.mxu0 %v1452
        %1529 = vmatpush1.msra.mxu0 %v1451
        %1530 = vmatprep.subr.mxu0 %v1454
        %1531 = vmatpush1.msra.mxu0 %v1453
        %1532 = vmatprep.subr.mxu0 %v1456
        %1533 = vmatpush1.msra.mxu0 %v1455
        %1534 = vmatprep.subr.mxu0 %v1458
        %1535 = vmatpush1.msra.mxu0 %v1457
        %1536 = vmatprep.subr.mxu0 %v1460
        %1537 = vmatpush1.msra.mxu0 %v1459
        %1538 = vmatprep.subr.mxu0 %v1462
        %1539 = vmatpush1.msra.mxu0 %v1461
        %1540 = vmatprep.subr.mxu0 %v1464
        %1541 = vmatpush1.msra.mxu0 %v1463
        %1542 = vmatprep.subr.mxu0 %v1466
        %1543 = vmatpush1.msra.mxu0 %v1465
        %1544 = vmatprep.subr.mxu0 %v1468
        %1545 = vmatpush1.msra.mxu0 %v1467
        %1546 = vmatprep.subr.mxu0 %v1470
        %1547 = vmatpush1.msra.mxu0 %v1469
        %1548 = vmatprep.subr.mxu0 %v1472
        %1549 = vmatpush1.msra.mxu0 %v1471
        %1550 = vmatprep.subr.mxu0 %v1474
        %1551 = vmatpush1.msra.mxu0 %v1473
        %1552 = vmatprep.subr.mxu0 %v1476
        %1553 = vmatpush1.msra.mxu0 %v1475
        %1554 = vmatprep.subr.mxu0 %v1478
        %1555 = vmatpush1.msra.mxu0 %v1477
        %1556 = vmatprep.subr.mxu0 %v1480
        %1557 = vmatpush1.msra.mxu0 %v1479
        %1558 = vmatprep.subr.mxu0 %v1482
        %1559 = vmatpush1.msra.mxu0 %v1481
        %1560 = vmatprep.subr.mxu0 %v1484
        %1561 = vmatpush1.msra.mxu0 %v1483
        %1562 = vmatprep.subr.mxu0 %v1486
        %1563 = vmatpush1.msra.mxu0 %v1485
        %1564 = vmatprep.subr.mxu0 %v1488
        %1565 = vmatpush1.msra.mxu0 %v1487
        %1566 = vmatprep.subr.mxu0 %v1490
        %1567 = vmatpush1.msra.mxu0 %v1489
        %1568 = vmatprep.subr.mxu0 %v1492
        %1569 = vmatpush1.msra.mxu0 %v1491
        %1570 = vmatprep.subr.mxu0 %v1494
        %1571 = vmatpush1.msra.mxu0 %v1493
        %1572 = vmatprep.subr.mxu0 %v1496
        %1573 = vmatpush1.msra.mxu0 %v1495
        %1574 = vmatprep.subr.mxu0 %v1498
        %1575 = vmatpush1.msra.mxu0 %v1497
        %1576 = vmatprep.subr.mxu0 %v1500
        %1577 = vmatpush1.msra.mxu0 %v1499
        %1578 = vmatprep.subr.mxu0 %v1502
        %1579 = vmatpush1.msra.mxu0 %v1501
        %1580 = vmatprep.subr.mxu0 %v1504
        %1581 = vmatpush1.msra.mxu0 %v1503
        %1582 = vmatprep.subr.mxu0 %v1506
        %1583 = vmatpush1.msra.mxu0 %v1505
        %1584 = vmatprep.subr.mxu0 %v1508
        %1585 = vmatpush1.msra.mxu0 %v1507
        %1586 = vmatprep.subr.mxu0 %v1510
        %1587 = vmatpush1.msra.mxu0 %v1509
        %1588 = vmatprep.mubr.f32.mxu0 %v1521
        %1589 = vmatmul.mubr.f32.gmra.mrb[0].mxu0 %v1518
        %v1590 = vpop.f32.mrb[0].mxu0
        %v1591 = vadd.f32 0.0, %v1590
        %v1592 = vpop.f32.mrb[0].mxu0
        %v1593 = vadd.f32 0.0, %v1592
        %1594 = vdwg.mxu0
        %v1595 = vadd.f32 %v1438, %v1591
        %v1596 = vadd.f32 %v1440, %v1593
        %v1597 = vld [vmem:[#allocation14] sm:$0x3]
        %v1599 = vlaneseq
        %v1600 = vshrl.u32 %v1599, 7
        %v1601 = vsub.s32 0, %v1600
        %v1602 = vrot.slane %v1597, %v1601
        %v1603 = vlaneseq
        %v1604 = vshrl.u32 %v1603, 7
        %v1605 = vsub.s32 1, %v1604
        %v1606 = vrot.slane %v1597, %v1605
        %v1609 = vadd.f32 %v1595, %v1602
        %v1610 = vadd.f32 %v1596, %v1606
        %v1611 = vmax.f32 %v1609, 0.0
        %v1612 = vmax.f32 %v1610, 0.0
        %1613 = vst [vmem:[#allocation4 + $0x1] sm:$0x1] %v1611
        %1614 = vst [vmem:[#allocation4 + $0x2] sm:$0x1] %v1612
        %v1616 = vrot.slane %v1611, 1
        %1618 = vst [vmem:[#allocation4 + $0x3] sm:$0x1] %v1616
        %v1620 = vrot.slane %v1612, 1
        %1622 = vst [vmem:[#allocation4 + $0x4] sm:$0x1] %v1620
        %v1623 = vrot.slane %v1611, 2
        %1625 = vst [vmem:[#allocation4 + $0x5] sm:$0x1] %v1623
        %v1626 = vrot.slane %v1612, 2
        %1628 = vst [vmem:[#allocation4 + $0x6] sm:$0x1] %v1626
        %v1629 = vrot.slane %v1611, 3
        %1631 = vst [vmem:[#allocation4 + $0x7] sm:$0x1] %v1629
        %v1632 = vrot.slane %v1612, 3
        %1634 = vst [vmem:[#allocation4 + $0x10] sm:$0x1] %v1632
        %v1635 = vrot.slane %v1611, 4
        %1637 = vst [vmem:[#allocation4 + $0x11] sm:$0x1] %v1635
        %v1638 = vrot.slane %v1612, 4
        %1640 = vst [vmem:[#allocation4 + $0x12] sm:$0x1] %v1638
        %v1641 = vrot.slane %v1611, 5
        %1643 = vst [vmem:[#allocation4 + $0x13] sm:$0x1] %v1641
        %v1644 = vrot.slane %v1612, 5
        %1646 = vst [vmem:[#allocation4 + $0x14] sm:$0x1] %v1644
        %v1647 = vrot.slane %v1611, 6
        %1649 = vst [vmem:[#allocation4 + $0x15] sm:$0x1] %v1647
        %v1650 = vrot.slane %v1612, 6
        %1652 = vst [vmem:[#allocation4 + $0x16] sm:$0x1] %v1650
        %v1653 = vrot.slane %v1611, 7
        %1655 = vst [vmem:[#allocation4 + $0x17] sm:$0x1] %v1653
        %v1656 = vrot.slane %v1612, 7
        %1658 = vst [vmem:[#allocation4 + $0x20] sm:$0x1] %v1656
        %v1659 = vld [vmem:[#allocation4] sm:$0xff]
        %v1660 = vld [vmem:[#allocation4 + $0x8] sm:$0xff]
        %v1661 = vld [vmem:[#allocation4 + $0x10] sm:$0xff]
        %v1662 = vld [vmem:[#allocation4 + $0x18] sm:$0xff]
        %v1663 = vld [vmem:[#allocation7] sm:$0xff]
        %v1664 = vld [vmem:[#allocation7 + $0x8] sm:$0xff]
        %v1665 = vld [vmem:[#allocation7 + $0x10] sm:$0xff]
        %v1666 = vld [vmem:[#allocation7 + $0x18] sm:$0xff]
        %v1667 = vld [vmem:[#allocation7 + $0x20] sm:$0xff]
        %v1668 = vld [vmem:[#allocation7 + $0x28] sm:$0xff]
        %v1669 = vld [vmem:[#allocation7 + $0x30] sm:$0xff]
        %v1670 = vld [vmem:[#allocation7 + $0x38] sm:$0xff]
        %v1671 = vld [vmem:[#allocation7 + $0x40] sm:$0xff]
        %v1672 = vld [vmem:[#allocation7 + $0x48] sm:$0xff]
        %v1673 = vld [vmem:[#allocation7 + $0x50] sm:$0xff]
        %v1674 = vld [vmem:[#allocation7 + $0x58] sm:$0xff]
        %v1675 = vld [vmem:[#allocation7 + $0x60] sm:$0xff]
        %v1676 = vld [vmem:[#allocation7 + $0x68] sm:$0xff]
        %v1677 = vld [vmem:[#allocation7 + $0x70] sm:$0xff]
        %v1678 = vld [vmem:[#allocation7 + $0x78] sm:$0xff]
        %v1679 = vld [vmem:[#allocation7 + $0x80] sm:$0xff]
        %v1680 = vld [vmem:[#allocation7 + $0x88] sm:$0xff]
        %v1681 = vld [vmem:[#allocation7 + $0x90] sm:$0xff]
        %v1682 = vld [vmem:[#allocation7 + $0x98] sm:$0xff]
        %v1683 = vld [vmem:[#allocation7 + $0xa0] sm:$0xff]
        %v1684 = vld [vmem:[#allocation7 + $0xa8] sm:$0xff]
        %v1685 = vld [vmem:[#allocation7 + $0xb0] sm:$0xff]
        %v1686 = vld [vmem:[#allocation7 + $0xb8] sm:$0xff]
        %v1687 = vld [vmem:[#allocation7 + $0xc0] sm:$0xff]
        %v1688 = vld [vmem:[#allocation7 + $0xc8] sm:$0xff]
        %v1689 = vld [vmem:[#allocation7 + $0xd0] sm:$0xff]
        %v1690 = vld [vmem:[#allocation7 + $0xd8] sm:$0xff]
        %v1691 = vld [vmem:[#allocation7 + $0xe0] sm:$0xff]
        %v1692 = vld [vmem:[#allocation7 + $0xe8] sm:$0xff]
        %v1693 = vld [vmem:[#allocation7 + $0xf0] sm:$0xff]
        %v1694 = vld [vmem:[#allocation7 + $0xf8] sm:$0xff]
        %v1695 = vld [vmem:[#allocation7 + $0x100] sm:$0xff]
        %v1696 = vld [vmem:[#allocation7 + $0x108] sm:$0xff]
        %v1697 = vld [vmem:[#allocation7 + $0x110] sm:$0xff]
        %v1698 = vld [vmem:[#allocation7 + $0x118] sm:$0xff]
        %v1699 = vld [vmem:[#allocation7 + $0x120] sm:$0xff]
        %v1700 = vld [vmem:[#allocation7 + $0x128] sm:$0xff]
        %v1701 = vld [vmem:[#allocation7 + $0x130] sm:$0xff]
        %v1702 = vld [vmem:[#allocation7 + $0x138] sm:$0xff]
        %v1703 = vld [vmem:[#allocation7 + $0x140] sm:$0xff]
        %v1704 = vld [vmem:[#allocation7 + $0x148] sm:$0xff]
        %v1705 = vld [vmem:[#allocation7 + $0x150] sm:$0xff]
        %v1706 = vld [vmem:[#allocation7 + $0x158] sm:$0xff]
        %v1707 = vld [vmem:[#allocation7 + $0x160] sm:$0xff]
        %v1708 = vld [vmem:[#allocation7 + $0x168] sm:$0xff]
        %v1709 = vld [vmem:[#allocation7 + $0x170] sm:$0xff]
        %v1710 = vld [vmem:[#allocation7 + $0x178] sm:$0xff]
        %v1711 = vld [vmem:[#allocation7 + $0x180] sm:$0xff]
        %v1712 = vld [vmem:[#allocation7 + $0x188] sm:$0xff]
        %v1713 = vld [vmem:[#allocation7 + $0x190] sm:$0xff]
        %v1714 = vld [vmem:[#allocation7 + $0x198] sm:$0xff]
        %v1715 = vld [vmem:[#allocation7 + $0x1a0] sm:$0xff]
        %v1716 = vld [vmem:[#allocation7 + $0x1a8] sm:$0xff]
        %v1717 = vld [vmem:[#allocation7 + $0x1b0] sm:$0xff]
        %v1718 = vld [vmem:[#allocation7 + $0x1b8] sm:$0xff]
        %v1719 = vld [vmem:[#allocation7 + $0x1c0] sm:$0xff]
        %v1720 = vld [vmem:[#allocation7 + $0x1c8] sm:$0xff]
        %v1721 = vld [vmem:[#allocation7 + $0x1d0] sm:$0xff]
        %v1722 = vld [vmem:[#allocation7 + $0x1d8] sm:$0xff]
        %v1723 = vld [vmem:[#allocation7 + $0x1e0] sm:$0xff]
        %v1724 = vld [vmem:[#allocation7 + $0x1e8] sm:$0xff]
        %v1725 = vld [vmem:[#allocation7 + $0x1f0] sm:$0xff]
        %v1726 = vld [vmem:[#allocation7 + $0x1f8] sm:$0xff]
        %v1727 = vld [vmem:[#allocation4] sm:$0xfe]
        %v1728 = vld [vmem:[#allocation4 + $0x8] sm:$0xfe]
        %v1729 = vld [vmem:[#allocation4 + $0x20] sm:$0x1]
        %v1730 = vld [vmem:[#allocation4 + $0x28] sm:$0x1]
        %s1731 = scalar_lea.vmem [#allocation7], 512
        %v1732 = vld [vmem:[%s1731] sm:$0xff]
        %v1733 = vld [vmem:[%s1731 + $0x8] sm:$0xff]
        %v1734 = vld [vmem:[%s1731 + $0x10] sm:$0xff]
        %v1735 = vld [vmem:[%s1731 + $0x18] sm:$0xff]
        %v1736 = vld [vmem:[%s1731 + $0x20] sm:$0xff]
        %v1737 = vld [vmem:[%s1731 + $0x28] sm:$0xff]
        %v1738 = vld [vmem:[%s1731 + $0x30] sm:$0xff]
        %v1739 = vld [vmem:[%s1731 + $0x38] sm:$0xff]
        %v1740 = vld [vmem:[%s1731 + $0x40] sm:$0xff]
        %v1741 = vld [vmem:[%s1731 + $0x48] sm:$0xff]
        %v1742 = vld [vmem:[%s1731 + $0x50] sm:$0xff]
        %v1743 = vld [vmem:[%s1731 + $0x58] sm:$0xff]
        %v1744 = vld [vmem:[%s1731 + $0x60] sm:$0xff]
        %v1745 = vld [vmem:[%s1731 + $0x68] sm:$0xff]
        %v1746 = vld [vmem:[%s1731 + $0x70] sm:$0xff]
        %v1747 = vld [vmem:[%s1731 + $0x78] sm:$0xff]
        %v1748 = vld [vmem:[%s1731 + $0x80] sm:$0xff]
        %v1749 = vld [vmem:[%s1731 + $0x88] sm:$0xff]
        %v1750 = vld [vmem:[%s1731 + $0x90] sm:$0xff]
        %v1751 = vld [vmem:[%s1731 + $0x98] sm:$0xff]
        %v1752 = vld [vmem:[%s1731 + $0xa0] sm:$0xff]
        %v1753 = vld [vmem:[%s1731 + $0xa8] sm:$0xff]
        %v1754 = vld [vmem:[%s1731 + $0xb0] sm:$0xff]
        %v1755 = vld [vmem:[%s1731 + $0xb8] sm:$0xff]
        %v1756 = vld [vmem:[%s1731 + $0xc0] sm:$0xff]
        %v1757 = vld [vmem:[%s1731 + $0xc8] sm:$0xff]
        %v1758 = vld [vmem:[%s1731 + $0xd0] sm:$0xff]
        %v1759 = vld [vmem:[%s1731 + $0xd8] sm:$0xff]
        %v1760 = vld [vmem:[%s1731 + $0xe0] sm:$0xff]
        %v1761 = vld [vmem:[%s1731 + $0xe8] sm:$0xff]
        %v1762 = vld [vmem:[%s1731 + $0xf0] sm:$0xff]
        %v1763 = vld [vmem:[%s1731 + $0xf8] sm:$0xff]
        %v1764 = vld [vmem:[%s1731 + $0x100] sm:$0xff]
        %v1765 = vld [vmem:[%s1731 + $0x108] sm:$0xff]
        %v1766 = vld [vmem:[%s1731 + $0x110] sm:$0xff]
        %v1767 = vld [vmem:[%s1731 + $0x118] sm:$0xff]
        %v1768 = vld [vmem:[%s1731 + $0x120] sm:$0xff]
        %v1769 = vld [vmem:[%s1731 + $0x128] sm:$0xff]
        %v1770 = vld [vmem:[%s1731 + $0x130] sm:$0xff]
        %v1771 = vld [vmem:[%s1731 + $0x138] sm:$0xff]
        %v1772 = vld [vmem:[%s1731 + $0x140] sm:$0xff]
        %v1773 = vld [vmem:[%s1731 + $0x148] sm:$0xff]
        %v1774 = vld [vmem:[%s1731 + $0x150] sm:$0xff]
        %v1775 = vld [vmem:[%s1731 + $0x158] sm:$0xff]
        %v1776 = vld [vmem:[%s1731 + $0x160] sm:$0xff]
        %v1777 = vld [vmem:[%s1731 + $0x168] sm:$0xff]
        %v1778 = vld [vmem:[%s1731 + $0x170] sm:$0xff]
        %v1779 = vld [vmem:[%s1731 + $0x178] sm:$0xff]
        %v1780 = vld [vmem:[%s1731 + $0x180] sm:$0xff]
        %v1781 = vld [vmem:[%s1731 + $0x188] sm:$0xff]
        %v1782 = vld [vmem:[%s1731 + $0x190] sm:$0xff]
        %v1783 = vld [vmem:[%s1731 + $0x198] sm:$0xff]
        %v1784 = vld [vmem:[%s1731 + $0x1a0] sm:$0xff]
        %v1785 = vld [vmem:[%s1731 + $0x1a8] sm:$0xff]
        %v1786 = vld [vmem:[%s1731 + $0x1b0] sm:$0xff]
        %v1787 = vld [vmem:[%s1731 + $0x1b8] sm:$0xff]
        %v1788 = vld [vmem:[%s1731 + $0x1c0] sm:$0xff]
        %v1789 = vld [vmem:[%s1731 + $0x1c8] sm:$0xff]
        %v1790 = vld [vmem:[%s1731 + $0x1d0] sm:$0xff]
        %v1791 = vld [vmem:[%s1731 + $0x1d8] sm:$0xff]
        %v1792 = vld [vmem:[%s1731 + $0x1e0] sm:$0xff]
        %v1793 = vld [vmem:[%s1731 + $0x1e8] sm:$0xff]
        %v1794 = vld [vmem:[%s1731 + $0x1f0] sm:$0xff]
        %v1795 = vld [vmem:[%s1731 + $0x1f8] sm:$0xff]
        %v1802 = vrot.slane %v1727, 1
        %v1803 = vrot.slane %v1661, 1
        %v1804 = vsel %vm1291, %v1802, %v1803
        %v1805 = vrot.slane %v1728, 1
        %v1806 = vrot.slane %v1662, 1
        %v1807 = vsel %vm1291, %v1805, %v1806
        %v1808 = vrot.slane %v1729, 1
        %v1809 = vsel %vm1291, %v1803, %v1808
        %v1810 = vrot.slane %v1730, 1
        %v1811 = vsel %vm1291, %v1806, %v1810
        %1816 = vmatprep.subr.mxu0 %v1733
        %1817 = vmatpush1.msra.mxu0 %v1732
        %1818 = vmatprep.subr.mxu0 %v1735
        %1819 = vmatpush1.msra.mxu0 %v1734
        %1820 = vmatprep.subr.mxu0 %v1737
        %1821 = vmatpush1.msra.mxu0 %v1736
        %1822 = vmatprep.subr.mxu0 %v1739
        %1823 = vmatpush1.msra.mxu0 %v1738
        %1824 = vmatprep.subr.mxu0 %v1741
        %1825 = vmatpush1.msra.mxu0 %v1740
        %1826 = vmatprep.subr.mxu0 %v1743
        %1827 = vmatpush1.msra.mxu0 %v1742
        %1828 = vmatprep.subr.mxu0 %v1745
        %1829 = vmatpush1.msra.mxu0 %v1744
        %1830 = vmatprep.subr.mxu0 %v1747
        %1831 = vmatpush1.msra.mxu0 %v1746
        %1832 = vmatprep.subr.mxu0 %v1749
        %1833 = vmatpush1.msra.mxu0 %v1748
        %1834 = vmatprep.subr.mxu0 %v1751
        %1835 = vmatpush1.msra.mxu0 %v1750
        %1836 = vmatprep.subr.mxu0 %v1753
        %1837 = vmatpush1.msra.mxu0 %v1752
        %1838 = vmatprep.subr.mxu0 %v1755
        %1839 = vmatpush1.msra.mxu0 %v1754
        %1840 = vmatprep.subr.mxu0 %v1757
        %1841 = vmatpush1.msra.mxu0 %v1756
        %1842 = vmatprep.subr.mxu0 %v1759
        %1843 = vmatpush1.msra.mxu0 %v1758
        %1844 = vmatprep.subr.mxu0 %v1761
        %1845 = vmatpush1.msra.mxu0 %v1760
        %1846 = vmatprep.subr.mxu0 %v1763
        %1847 = vmatpush1.msra.mxu0 %v1762
        %1848 = vmatprep.subr.mxu0 %v1765
        %1849 = vmatpush1.msra.mxu0 %v1764
        %1850 = vmatprep.subr.mxu0 %v1767
        %1851 = vmatpush1.msra.mxu0 %v1766
        %1852 = vmatprep.subr.mxu0 %v1769
        %1853 = vmatpush1.msra.mxu0 %v1768
        %1854 = vmatprep.subr.mxu0 %v1771
        %1855 = vmatpush1.msra.mxu0 %v1770
        %1856 = vmatprep.subr.mxu0 %v1773
        %1857 = vmatpush1.msra.mxu0 %v1772
        %1858 = vmatprep.subr.mxu0 %v1775
        %1859 = vmatpush1.msra.mxu0 %v1774
        %1860 = vmatprep.subr.mxu0 %v1777
        %1861 = vmatpush1.msra.mxu0 %v1776
        %1862 = vmatprep.subr.mxu0 %v1779
        %1863 = vmatpush1.msra.mxu0 %v1778
        %1864 = vmatprep.subr.mxu0 %v1781
        %1865 = vmatpush1.msra.mxu0 %v1780
        %1866 = vmatprep.subr.mxu0 %v1783
        %1867 = vmatpush1.msra.mxu0 %v1782
        %1868 = vmatprep.subr.mxu0 %v1785
        %1869 = vmatpush1.msra.mxu0 %v1784
        %1870 = vmatprep.subr.mxu0 %v1787
        %1871 = vmatpush1.msra.mxu0 %v1786
        %1872 = vmatprep.subr.mxu0 %v1789
        %1873 = vmatpush1.msra.mxu0 %v1788
        %1874 = vmatprep.subr.mxu0 %v1791
        %1875 = vmatpush1.msra.mxu0 %v1790
        %1876 = vmatprep.subr.mxu0 %v1793
        %1877 = vmatpush1.msra.mxu0 %v1792
        %1878 = vmatprep.subr.mxu0 %v1795
        %1879 = vmatpush1.msra.mxu0 %v1794
        %1880 = vmatprep.mubr.f32.mxu0 %v1807
        %1881 = vmatmul.mubr.f32.gmra.mrb[0].mxu0 %v1804
        %v1882 = vpop.f32.mrb[0].mxu0
        %v1883 = vadd.f32 0.0, %v1882
        %v1884 = vpop.f32.mrb[0].mxu0
        %v1885 = vadd.f32 0.0, %v1884
        %1886 = vmatprep.mubr.f32.mxu0 %v1811
        %1887 = vmatmul.mubr.f32.gmra.mrb[0].mxu0 %v1809
        %v1888 = vpop.f32.mrb[0].mxu0
        %v1889 = vadd.f32 0.0, %v1888
        %v1890 = vpop.f32.mrb[0].mxu0
        %v1891 = vadd.f32 0.0, %v1890
        %1892 = vdwg.mxu0
        %1893 = vmatprep.subr.mxu0 %v1664
        %1894 = vmatpush1.msra.mxu0 %v1663
        %1895 = vmatprep.subr.mxu0 %v1666
        %1896 = vmatpush1.msra.mxu0 %v1665
        %1897 = vmatprep.subr.mxu0 %v1668
        %1898 = vmatpush1.msra.mxu0 %v1667
        %1899 = vmatprep.subr.mxu0 %v1670
        %1900 = vmatpush1.msra.mxu0 %v1669
        %1901 = vmatprep.subr.mxu0 %v1672
        %1902 = vmatpush1.msra.mxu0 %v1671
        %1903 = vmatprep.subr.mxu0 %v1674
        %1904 = vmatpush1.msra.mxu0 %v1673
        %1905 = vmatprep.subr.mxu0 %v1676
        %1906 = vmatpush1.msra.mxu0 %v1675
        %1907 = vmatprep.subr.mxu0 %v1678
        %1908 = vmatpush1.msra.mxu0 %v1677
        %1909 = vmatprep.subr.mxu0 %v1680
        %1910 = vmatpush1.msra.mxu0 %v1679
        %1911 = vmatprep.subr.mxu0 %v1682
        %1912 = vmatpush1.msra.mxu0 %v1681
        %1913 = vmatprep.subr.mxu0 %v1684
        %1914 = vmatpush1.msra.mxu0 %v1683
        %1915 = vmatprep.subr.mxu0 %v1686
        %1916 = vmatpush1.msra.mxu0 %v1685
        %1917 = vmatprep.subr.mxu0 %v1688
        %1918 = vmatpush1.msra.mxu0 %v1687
        %1919 = vmatprep.subr.mxu0 %v1690
        %1920 = vmatpush1.msra.mxu0 %v1689
        %1921 = vmatprep.subr.mxu0 %v1692
        %1922 = vmatpush1.msra.mxu0 %v1691
        %1923 = vmatprep.subr.mxu0 %v1694
        %1924 = vmatpush1.msra.mxu0 %v1693
        %1925 = vmatprep.subr.mxu0 %v1696
        %1926 = vmatpush1.msra.mxu0 %v1695
        %1927 = vmatprep.subr.mxu0 %v1698
        %1928 = vmatpush1.msra.mxu0 %v1697
        %1929 = vmatprep.subr.mxu0 %v1700
        %1930 = vmatpush1.msra.mxu0 %v1699
        %1931 = vmatprep.subr.mxu0 %v1702
        %1932 = vmatpush1.msra.mxu0 %v1701
        %1933 = vmatprep.subr.mxu0 %v1704
        %1934 = vmatpush1.msra.mxu0 %v1703
        %1935 = vmatprep.subr.mxu0 %v1706
        %1936 = vmatpush1.msra.mxu0 %v1705
        %1937 = vmatprep.subr.mxu0 %v1708
        %1938 = vmatpush1.msra.mxu0 %v1707
        %1939 = vmatprep.subr.mxu0 %v1710
        %1940 = vmatpush1.msra.mxu0 %v1709
        %1941 = vmatprep.subr.mxu0 %v1712
        %1942 = vmatpush1.msra.mxu0 %v1711
        %1943 = vmatprep.subr.mxu0 %v1714
        %1944 = vmatpush1.msra.mxu0 %v1713
        %1945 = vmatprep.subr.mxu0 %v1716
        %1946 = vmatpush1.msra.mxu0 %v1715
        %1947 = vmatprep.subr.mxu0 %v1718
        %1948 = vmatpush1.msra.mxu0 %v1717
        %1949 = vmatprep.subr.mxu0 %v1720
        %1950 = vmatpush1.msra.mxu0 %v1719
        %1951 = vmatprep.subr.mxu0 %v1722
        %1952 = vmatpush1.msra.mxu0 %v1721
        %1953 = vmatprep.subr.mxu0 %v1724
        %1954 = vmatpush1.msra.mxu0 %v1723
        %1955 = vmatprep.subr.mxu0 %v1726
        %1956 = vmatpush1.msra.mxu0 %v1725
        %1957 = vmatprep.mubr.f32.mxu0 %v1660
        %1958 = vmatmul.mubr.f32.gmra.mrb[0].mxu0 %v1659
        %v1959 = vpop.f32.mrb[0].mxu0
        %v1960 = vadd.f32 %v1883, %v1959
        %v1961 = vpop.f32.mrb[0].mxu0
        %v1962 = vadd.f32 %v1885, %v1961
        %1963 = vmatprep.mubr.f32.mxu0 %v1662
        %1964 = vmatmul.mubr.f32.gmra.mrb[0].mxu0 %v1661
        %v1965 = vpop.f32.mrb[0].mxu0
        %v1966 = vadd.f32 %v1889, %v1965
        %v1967 = vpop.f32.mrb[0].mxu0
        %v1968 = vadd.f32 %v1891, %v1967
        %1969 = vdwg.mxu0
        %v1970 = vld [vmem:[#allocation4] sm:$0xfc]
        %v1971 = vld [vmem:[#allocation4 + $0x8] sm:$0xfc]
        %v1972 = vld [vmem:[#allocation4 + $0x20] sm:$0x3]
        %v1973 = vld [vmem:[#allocation4 + $0x28] sm:$0x3]
        %s1974 = scalar_lea.vmem [#allocation7], 1024
        %v1975 = vld [vmem:[%s1974] sm:$0xff]
        %v1976 = vld [vmem:[%s1974 + $0x8] sm:$0xff]
        %v1977 = vld [vmem:[%s1974 + $0x10] sm:$0xff]
        %v1978 = vld [vmem:[%s1974 + $0x18] sm:$0xff]
        %v1979 = vld [vmem:[%s1974 + $0x20] sm:$0xff]
        %v1980 = vld [vmem:[%s1974 + $0x28] sm:$0xff]
        %v1981 = vld [vmem:[%s1974 + $0x30] sm:$0xff]
        %v1982 = vld [vmem:[%s1974 + $0x38] sm:$0xff]
        %v1983 = vld [vmem:[%s1974 + $0x40] sm:$0xff]
        %v1984 = vld [vmem:[%s1974 + $0x48] sm:$0xff]
        %v1985 = vld [vmem:[%s1974 + $0x50] sm:$0xff]
        %v1986 = vld [vmem:[%s1974 + $0x58] sm:$0xff]
        %v1987 = vld [vmem:[%s1974 + $0x60] sm:$0xff]
        %v1988 = vld [vmem:[%s1974 + $0x68] sm:$0xff]
        %v1989 = vld [vmem:[%s1974 + $0x70] sm:$0xff]
        %v1990 = vld [vmem:[%s1974 + $0x78] sm:$0xff]
        %v1991 = vld [vmem:[%s1974 + $0x80] sm:$0xff]
        %v1992 = vld [vmem:[%s1974 + $0x88] sm:$0xff]
        %v1993 = vld [vmem:[%s1974 + $0x90] sm:$0xff]
        %v1994 = vld [vmem:[%s1974 + $0x98] sm:$0xff]
        %v1995 = vld [vmem:[%s1974 + $0xa0] sm:$0xff]
        %v1996 = vld [vmem:[%s1974 + $0xa8] sm:$0xff]
        %v1997 = vld [vmem:[%s1974 + $0xb0] sm:$0xff]
        %v1998 = vld [vmem:[%s1974 + $0xb8] sm:$0xff]
        %v1999 = vld [vmem:[%s1974 + $0xc0] sm:$0xff]
        %v2000 = vld [vmem:[%s1974 + $0xc8] sm:$0xff]
        %v2001 = vld [vmem:[%s1974 + $0xd0] sm:$0xff]
        %v2002 = vld [vmem:[%s1974 + $0xd8] sm:$0xff]
        %v2003 = vld [vmem:[%s1974 + $0xe0] sm:$0xff]
        %v2004 = vld [vmem:[%s1974 + $0xe8] sm:$0xff]
        %v2005 = vld [vmem:[%s1974 + $0xf0] sm:$0xff]
        %v2006 = vld [vmem:[%s1974 + $0xf8] sm:$0xff]
        %v2007 = vld [vmem:[%s1974 + $0x100] sm:$0xff]
        %v2008 = vld [vmem:[%s1974 + $0x108] sm:$0xff]
        %v2009 = vld [vmem:[%s1974 + $0x110] sm:$0xff]
        %v2010 = vld [vmem:[%s1974 + $0x118] sm:$0xff]
        %v2011 = vld [vmem:[%s1974 + $0x120] sm:$0xff]
        %v2012 = vld [vmem:[%s1974 + $0x128] sm:$0xff]
        %v2013 = vld [vmem:[%s1974 + $0x130] sm:$0xff]
        %v2014 = vld [vmem:[%s1974 + $0x138] sm:$0xff]
        %v2015 = vld [vmem:[%s1974 + $0x140] sm:$0xff]
        %v2016 = vld [vmem:[%s1974 + $0x148] sm:$0xff]
        %v2017 = vld [vmem:[%s1974 + $0x150] sm:$0xff]
        %v2018 = vld [vmem:[%s1974 + $0x158] sm:$0xff]
        %v2019 = vld [vmem:[%s1974 + $0x160] sm:$0xff]
        %v2020 = vld [vmem:[%s1974 + $0x168] sm:$0xff]
        %v2021 = vld [vmem:[%s1974 + $0x170] sm:$0xff]
        %v2022 = vld [vmem:[%s1974 + $0x178] sm:$0xff]
        %v2023 = vld [vmem:[%s1974 + $0x180] sm:$0xff]
        %v2024 = vld [vmem:[%s1974 + $0x188] sm:$0xff]
        %v2025 = vld [vmem:[%s1974 + $0x190] sm:$0xff]
        %v2026 = vld [vmem:[%s1974 + $0x198] sm:$0xff]
        %v2027 = vld [vmem:[%s1974 + $0x1a0] sm:$0xff]
        %v2028 = vld [vmem:[%s1974 + $0x1a8] sm:$0xff]
        %v2029 = vld [vmem:[%s1974 + $0x1b0] sm:$0xff]
        %v2030 = vld [vmem:[%s1974 + $0x1b8] sm:$0xff]
        %v2031 = vld [vmem:[%s1974 + $0x1c0] sm:$0xff]
        %v2032 = vld [vmem:[%s1974 + $0x1c8] sm:$0xff]
        %v2033 = vld [vmem:[%s1974 + $0x1d0] sm:$0xff]
        %v2034 = vld [vmem:[%s1974 + $0x1d8] sm:$0xff]
        %v2035 = vld [vmem:[%s1974 + $0x1e0] sm:$0xff]
        %v2036 = vld [vmem:[%s1974 + $0x1e8] sm:$0xff]
        %v2037 = vld [vmem:[%s1974 + $0x1f0] sm:$0xff]
        %v2038 = vld [vmem:[%s1974 + $0x1f8] sm:$0xff]
        %v2043 = vrot.slane %v1970, 2
        %v2044 = vrot.slane %v1661, 2
        %v2045 = vsel %vm1515, %v2043, %v2044
        %v2046 = vrot.slane %v1971, 2
        %v2047 = vrot.slane %v1662, 2
        %v2048 = vsel %vm1515, %v2046, %v2047
        %v2049 = vrot.slane %v1972, 2
        %v2050 = vsel %vm1515, %v2044, %v2049
        %v2051 = vrot.slane %v1973, 2
        %v2052 = vsel %vm1515, %v2047, %v2051
        %2057 = vmatprep.subr.mxu0 %v1976
        %2058 = vmatpush1.msra.mxu0 %v1975
        %2059 = vmatprep.subr.mxu0 %v1978
        %2060 = vmatpush1.msra.mxu0 %v1977
        %2061 = vmatprep.subr.mxu0 %v1980
        %2062 = vmatpush1.msra.mxu0 %v1979
        %2063 = vmatprep.subr.mxu0 %v1982
        %2064 = vmatpush1.msra.mxu0 %v1981
        %2065 = vmatprep.subr.mxu0 %v1984
        %2066 = vmatpush1.msra.mxu0 %v1983
        %2067 = vmatprep.subr.mxu0 %v1986
        %2068 = vmatpush1.msra.mxu0 %v1985
        %2069 = vmatprep.subr.mxu0 %v1988
        %2070 = vmatpush1.msra.mxu0 %v1987
        %2071 = vmatprep.subr.mxu0 %v1990
        %2072 = vmatpush1.msra.mxu0 %v1989
        %2073 = vmatprep.subr.mxu0 %v1992
        %2074 = vmatpush1.msra.mxu0 %v1991
        %2075 = vmatprep.subr.mxu0 %v1994
        %2076 = vmatpush1.msra.mxu0 %v1993
        %2077 = vmatprep.subr.mxu0 %v1996
        %2078 = vmatpush1.msra.mxu0 %v1995
        %2079 = vmatprep.subr.mxu0 %v1998
        %2080 = vmatpush1.msra.mxu0 %v1997
        %2081 = vmatprep.subr.mxu0 %v2000
        %2082 = vmatpush1.msra.mxu0 %v1999
        %2083 = vmatprep.subr.mxu0 %v2002
        %2084 = vmatpush1.msra.mxu0 %v2001
        %2085 = vmatprep.subr.mxu0 %v2004
        %2086 = vmatpush1.msra.mxu0 %v2003
        %2087 = vmatprep.subr.mxu0 %v2006
        %2088 = vmatpush1.msra.mxu0 %v2005
        %2089 = vmatprep.subr.mxu0 %v2008
        %2090 = vmatpush1.msra.mxu0 %v2007
        %2091 = vmatprep.subr.mxu0 %v2010
        %2092 = vmatpush1.msra.mxu0 %v2009
        %2093 = vmatprep.subr.mxu0 %v2012
        %2094 = vmatpush1.msra.mxu0 %v2011
        %2095 = vmatprep.subr.mxu0 %v2014
        %2096 = vmatpush1.msra.mxu0 %v2013
        %2097 = vmatprep.subr.mxu0 %v2016
        %2098 = vmatpush1.msra.mxu0 %v2015
        %2099 = vmatprep.subr.mxu0 %v2018
        %2100 = vmatpush1.msra.mxu0 %v2017
        %2101 = vmatprep.subr.mxu0 %v2020
        %2102 = vmatpush1.msra.mxu0 %v2019
        %2103 = vmatprep.subr.mxu0 %v2022
        %2104 = vmatpush1.msra.mxu0 %v2021
        %2105 = vmatprep.subr.mxu0 %v2024
        %2106 = vmatpush1.msra.mxu0 %v2023
        %2107 = vmatprep.subr.mxu0 %v2026
        %2108 = vmatpush1.msra.mxu0 %v2025
        %2109 = vmatprep.subr.mxu0 %v2028
        %2110 = vmatpush1.msra.mxu0 %v2027
        %2111 = vmatprep.subr.mxu0 %v2030
        %2112 = vmatpush1.msra.mxu0 %v2029
        %2113 = vmatprep.subr.mxu0 %v2032
        %2114 = vmatpush1.msra.mxu0 %v2031
        %2115 = vmatprep.subr.mxu0 %v2034
        %2116 = vmatpush1.msra.mxu0 %v2033
        %2117 = vmatprep.subr.mxu0 %v2036
        %2118 = vmatpush1.msra.mxu0 %v2035
        %2119 = vmatprep.subr.mxu0 %v2038
        %2120 = vmatpush1.msra.mxu0 %v2037
        %2121 = vmatprep.mubr.f32.mxu0 %v2048
        %2122 = vmatmul.mubr.f32.gmra.mrb[0].mxu0 %v2045
        %v2123 = vpop.f32.mrb[0].mxu0
        %v2124 = vadd.f32 0.0, %v2123
        %v2125 = vpop.f32.mrb[0].mxu0
        %v2126 = vadd.f32 0.0, %v2125
        %2127 = vmatprep.mubr.f32.mxu0 %v2052
        %2128 = vmatmul.mubr.f32.gmra.mrb[0].mxu0 %v2050
        %v2129 = vpop.f32.mrb[0].mxu0
        %v2130 = vadd.f32 0.0, %v2129
        %v2131 = vpop.f32.mrb[0].mxu0
        %v2132 = vadd.f32 0.0, %v2131
        %2133 = vdwg.mxu0
        %v2134 = vadd.f32 %v1960, %v2124
        %v2135 = vadd.f32 %v1962, %v2126
        %v2136 = vadd.f32 %v1966, %v2130
        %v2137 = vadd.f32 %v1968, %v2132
        %v2138 = vld [vmem:[#allocation15] sm:$0x3]
        %v2140 = vlaneseq
        %v2141 = vshrl.u32 %v2140, 7
        %v2142 = vsub.s32 0, %v2141
        %v2143 = vrot.slane %v2138, %v2142
        %v2144 = vlaneseq
        %v2145 = vshrl.u32 %v2144, 7
        %v2146 = vsub.s32 1, %v2145
        %v2147 = vrot.slane %v2138, %v2146
        %v2150 = vadd.f32 %v2134, %v2143
        %v2151 = vadd.f32 %v2135, %v2147
        %v2152 = vadd.f32 %v2136, %v2143
        %v2153 = vadd.f32 %v2137, %v2147
        %v2154 = vmax.f32 %v2150, 0.0
        %v2155 = vmax.f32 %v2151, 0.0
        %v2156 = vmax.f32 %v2152, 0.0
        %v2157 = vmax.f32 %v2153, 0.0
        %2158 = vst [vmem:[#allocation5 + $0x1] sm:$0x1] %v2154
        %2159 = vst [vmem:[#allocation5 + $0x2] sm:$0x1] %v2155
        %v2161 = vrot.slane %v2154, 1
        %2163 = vst [vmem:[#allocation5 + $0x3] sm:$0x1] %v2161
        %v2165 = vrot.slane %v2155, 1
        %2167 = vst [vmem:[#allocation5 + $0x4] sm:$0x1] %v2165
        %v2168 = vrot.slane %v2154, 2
        %2170 = vst [vmem:[#allocation5 + $0x5] sm:$0x1] %v2168
        %v2171 = vrot.slane %v2155, 2
        %2173 = vst [vmem:[#allocation5 + $0x6] sm:$0x1] %v2171
        %v2174 = vrot.slane %v2154, 3
        %2176 = vst [vmem:[#allocation5 + $0x7] sm:$0x1] %v2174
        %v2177 = vrot.slane %v2155, 3
        %2179 = vst [vmem:[#allocation5 + $0x10] sm:$0x1] %v2177
        %v2180 = vrot.slane %v2154, 4
        %2182 = vst [vmem:[#allocation5 + $0x11] sm:$0x1] %v2180
        %v2183 = vrot.slane %v2155, 4
        %2185 = vst [vmem:[#allocation5 + $0x12] sm:$0x1] %v2183
        %v2186 = vrot.slane %v2154, 5
        %2188 = vst [vmem:[#allocation5 + $0x13] sm:$0x1] %v2186
        %v2189 = vrot.slane %v2155, 5
        %2191 = vst [vmem:[#allocation5 + $0x14] sm:$0x1] %v2189
        %v2192 = vrot.slane %v2154, 6
        %2194 = vst [vmem:[#allocation5 + $0x15] sm:$0x1] %v2192
        %v2195 = vrot.slane %v2155, 6
        %2197 = vst [vmem:[#allocation5 + $0x16] sm:$0x1] %v2195
        %v2198 = vrot.slane %v2154, 7
        %2200 = vst [vmem:[#allocation5 + $0x17] sm:$0x1] %v2198
        %v2201 = vrot.slane %v2155, 7
        %2203 = vst [vmem:[#allocation5 + $0x20] sm:$0x1] %v2201
        %2204 = vst [vmem:[#allocation5 + $0x21] sm:$0x1] %v2156
        %2205 = vst [vmem:[#allocation5 + $0x22] sm:$0x1] %v2157
        %v2207 = vrot.slane %v2156, 1
        %2209 = vst [vmem:[#allocation5 + $0x23] sm:$0x1] %v2207
        %v2211 = vrot.slane %v2157, 1
        %2213 = vst [vmem:[#allocation5 + $0x24] sm:$0x1] %v2211
        %v2214 = vrot.slane %v2156, 2
        %2216 = vst [vmem:[#allocation5 + $0x25] sm:$0x1] %v2214
        %v2217 = vrot.slane %v2157, 2
        %2219 = vst [vmem:[#allocation5 + $0x26] sm:$0x1] %v2217
        %v2220 = vrot.slane %v2156, 3
        %2222 = vst [vmem:[#allocation5 + $0x27] sm:$0x1] %v2220
        %v2223 = vrot.slane %v2157, 3
        %2225 = vst [vmem:[#allocation5 + $0x30] sm:$0x1] %v2223
        %v2226 = vrot.slane %v2156, 4
        %2228 = vst [vmem:[#allocation5 + $0x31] sm:$0x1] %v2226
        %v2229 = vrot.slane %v2157, 4
        %2231 = vst [vmem:[#allocation5 + $0x32] sm:$0x1] %v2229
        %v2232 = vrot.slane %v2156, 5
        %2234 = vst [vmem:[#allocation5 + $0x33] sm:$0x1] %v2232
        %v2235 = vrot.slane %v2157, 5
        %2237 = vst [vmem:[#allocation5 + $0x34] sm:$0x1] %v2235
        %v2238 = vrot.slane %v2156, 6
        %2240 = vst [vmem:[#allocation5 + $0x35] sm:$0x1] %v2238
        %v2241 = vrot.slane %v2157, 6
        %2243 = vst [vmem:[#allocation5 + $0x36] sm:$0x1] %v2241
        %v2244 = vrot.slane %v2156, 7
        %2246 = vst [vmem:[#allocation5 + $0x37] sm:$0x1] %v2244
        %v2247 = vrot.slane %v2157, 7
        %2249 = vst [vmem:[#allocation5 + $0x40] sm:$0x1] %v2247
        %v2250 = vld [vmem:[#allocation5] sm:$0xff]
        %v2251 = vld [vmem:[#allocation5 + $0x8] sm:$0xff]
        %v2252 = vld [vmem:[#allocation5 + $0x10] sm:$0xff]
        %v2253 = vld [vmem:[#allocation5 + $0x18] sm:$0xff]
        %v2254 = vld [vmem:[#allocation5 + $0x20] sm:$0xff]
        %v2255 = vld [vmem:[#allocation5 + $0x28] sm:$0xff]
        %v2256 = vld [vmem:[#allocation5 + $0x30] sm:$0xff]
        %v2257 = vld [vmem:[#allocation5 + $0x38] sm:$0xff]
        %v2258 = vld [vmem:[#allocation9] sm:$0xff]
        %v2259 = vld [vmem:[#allocation9 + $0x8] sm:$0xff]
        %v2260 = vld [vmem:[#allocation9 + $0x10] sm:$0xff]
        %v2261 = vld [vmem:[#allocation9 + $0x18] sm:$0xff]
        %v2262 = vld [vmem:[#allocation9 + $0x20] sm:$0xff]
        %v2263 = vld [vmem:[#allocation9 + $0x28] sm:$0xff]
        %v2264 = vld [vmem:[#allocation9 + $0x30] sm:$0xff]
        %v2265 = vld [vmem:[#allocation9 + $0x38] sm:$0xff]
        %v2266 = vld [vmem:[#allocation9 + $0x40] sm:$0xff]
        %v2267 = vld [vmem:[#allocation9 + $0x48] sm:$0xff]
        %v2268 = vld [vmem:[#allocation9 + $0x50] sm:$0xff]
        %v2269 = vld [vmem:[#allocation9 + $0x58] sm:$0xff]
        %v2270 = vld [vmem:[#allocation9 + $0x60] sm:$0xff]
        %v2271 = vld [vmem:[#allocation9 + $0x68] sm:$0xff]
        %v2272 = vld [vmem:[#allocation9 + $0x70] sm:$0xff]
        %v2273 = vld [vmem:[#allocation9 + $0x78] sm:$0xff]
        %v2274 = vld [vmem:[#allocation9 + $0x80] sm:$0xff]
        %v2275 = vld [vmem:[#allocation9 + $0x88] sm:$0xff]
        %v2276 = vld [vmem:[#allocation9 + $0x90] sm:$0xff]
        %v2277 = vld [vmem:[#allocation9 + $0x98] sm:$0xff]
        %v2278 = vld [vmem:[#allocation9 + $0xa0] sm:$0xff]
        %v2279 = vld [vmem:[#allocation9 + $0xa8] sm:$0xff]
        %v2280 = vld [vmem:[#allocation9 + $0xb0] sm:$0xff]
        %v2281 = vld [vmem:[#allocation9 + $0xb8] sm:$0xff]
        %v2282 = vld [vmem:[#allocation9 + $0xc0] sm:$0xff]
        %v2283 = vld [vmem:[#allocation9 + $0xc8] sm:$0xff]
        %v2284 = vld [vmem:[#allocation9 + $0xd0] sm:$0xff]
        %v2285 = vld [vmem:[#allocation9 + $0xd8] sm:$0xff]
        %v2286 = vld [vmem:[#allocation9 + $0xe0] sm:$0xff]
        %v2287 = vld [vmem:[#allocation9 + $0xe8] sm:$0xff]
        %v2288 = vld [vmem:[#allocation9 + $0xf0] sm:$0xff]
        %v2289 = vld [vmem:[#allocation9 + $0xf8] sm:$0xff]
        %v2290 = vld [vmem:[#allocation9 + $0x100] sm:$0xff]
        %v2291 = vld [vmem:[#allocation9 + $0x108] sm:$0xff]
        %v2292 = vld [vmem:[#allocation9 + $0x110] sm:$0xff]
        %v2293 = vld [vmem:[#allocation9 + $0x118] sm:$0xff]
        %v2294 = vld [vmem:[#allocation9 + $0x120] sm:$0xff]
        %v2295 = vld [vmem:[#allocation9 + $0x128] sm:$0xff]
        %v2296 = vld [vmem:[#allocation9 + $0x130] sm:$0xff]
        %v2297 = vld [vmem:[#allocation9 + $0x138] sm:$0xff]
        %v2298 = vld [vmem:[#allocation9 + $0x140] sm:$0xff]
        %v2299 = vld [vmem:[#allocation9 + $0x148] sm:$0xff]
        %v2300 = vld [vmem:[#allocation9 + $0x150] sm:$0xff]
        %v2301 = vld [vmem:[#allocation9 + $0x158] sm:$0xff]
        %v2302 = vld [vmem:[#allocation9 + $0x160] sm:$0xff]
        %v2303 = vld [vmem:[#allocation9 + $0x168] sm:$0xff]
        %v2304 = vld [vmem:[#allocation9 + $0x170] sm:$0xff]
        %v2305 = vld [vmem:[#allocation9 + $0x178] sm:$0xff]
        %v2306 = vld [vmem:[#allocation9 + $0x180] sm:$0xff]
        %v2307 = vld [vmem:[#allocation9 + $0x188] sm:$0xff]
        %v2308 = vld [vmem:[#allocation9 + $0x190] sm:$0xff]
        %v2309 = vld [vmem:[#allocation9 + $0x198] sm:$0xff]
        %v2310 = vld [vmem:[#allocation9 + $0x1a0] sm:$0xff]
        %v2311 = vld [vmem:[#allocation9 + $0x1a8] sm:$0xff]
        %v2312 = vld [vmem:[#allocation9 + $0x1b0] sm:$0xff]
        %v2313 = vld [vmem:[#allocation9 + $0x1b8] sm:$0xff]
        %v2314 = vld [vmem:[#allocation9 + $0x1c0] sm:$0xff]
        %v2315 = vld [vmem:[#allocation9 + $0x1c8] sm:$0xff]
        %v2316 = vld [vmem:[#allocation9 + $0x1d0] sm:$0xff]
        %v2317 = vld [vmem:[#allocation9 + $0x1d8] sm:$0xff]
        %v2318 = vld [vmem:[#allocation9 + $0x1e0] sm:$0xff]
        %v2319 = vld [vmem:[#allocation9 + $0x1e8] sm:$0xff]
        %v2320 = vld [vmem:[#allocation9 + $0x1f0] sm:$0xff]
        %v2321 = vld [vmem:[#allocation9 + $0x1f8] sm:$0xff]
        %v2322 = vld [vmem:[#allocation5] sm:$0xfe]
        %v2323 = vld [vmem:[#allocation5 + $0x8] sm:$0xfe]
        %v2324 = vld [vmem:[#allocation5 + $0x40] sm:$0x1]
        %v2325 = vld [vmem:[#allocation5 + $0x48] sm:$0x1]
        %s2326 = scalar_lea.vmem [#allocation9], 512
        %v2327 = vld [vmem:[%s2326] sm:$0xff]
        %v2328 = vld [vmem:[%s2326 + $0x8] sm:$0xff]
        %v2329 = vld [vmem:[%s2326 + $0x10] sm:$0xff]
        %v2330 = vld [vmem:[%s2326 + $0x18] sm:$0xff]
        %v2331 = vld [vmem:[%s2326 + $0x20] sm:$0xff]
        %v2332 = vld [vmem:[%s2326 + $0x28] sm:$0xff]
        %v2333 = vld [vmem:[%s2326 + $0x30] sm:$0xff]
        %v2334 = vld [vmem:[%s2326 + $0x38] sm:$0xff]
        %v2335 = vld [vmem:[%s2326 + $0x40] sm:$0xff]
        %v2336 = vld [vmem:[%s2326 + $0x48] sm:$0xff]
        %v2337 = vld [vmem:[%s2326 + $0x50] sm:$0xff]
        %v2338 = vld [vmem:[%s2326 + $0x58] sm:$0xff]
        %v2339 = vld [vmem:[%s2326 + $0x60] sm:$0xff]
        %v2340 = vld [vmem:[%s2326 + $0x68] sm:$0xff]
        %v2341 = vld [vmem:[%s2326 + $0x70] sm:$0xff]
        %v2342 = vld [vmem:[%s2326 + $0x78] sm:$0xff]
        %v2343 = vld [vmem:[%s2326 + $0x80] sm:$0xff]
        %v2344 = vld [vmem:[%s2326 + $0x88] sm:$0xff]
        %v2345 = vld [vmem:[%s2326 + $0x90] sm:$0xff]
        %v2346 = vld [vmem:[%s2326 + $0x98] sm:$0xff]
        %v2347 = vld [vmem:[%s2326 + $0xa0] sm:$0xff]
        %v2348 = vld [vmem:[%s2326 + $0xa8] sm:$0xff]
        %v2349 = vld [vmem:[%s2326 + $0xb0] sm:$0xff]
        %v2350 = vld [vmem:[%s2326 + $0xb8] sm:$0xff]
        %v2351 = vld [vmem:[%s2326 + $0xc0] sm:$0xff]
        %v2352 = vld [vmem:[%s2326 + $0xc8] sm:$0xff]
        %v2353 = vld [vmem:[%s2326 + $0xd0] sm:$0xff]
        %v2354 = vld [vmem:[%s2326 + $0xd8] sm:$0xff]
        %v2355 = vld [vmem:[%s2326 + $0xe0] sm:$0xff]
        %v2356 = vld [vmem:[%s2326 + $0xe8] sm:$0xff]
        %v2357 = vld [vmem:[%s2326 + $0xf0] sm:$0xff]
        %v2358 = vld [vmem:[%s2326 + $0xf8] sm:$0xff]
        %v2359 = vld [vmem:[%s2326 + $0x100] sm:$0xff]
        %v2360 = vld [vmem:[%s2326 + $0x108] sm:$0xff]
        %v2361 = vld [vmem:[%s2326 + $0x110] sm:$0xff]
        %v2362 = vld [vmem:[%s2326 + $0x118] sm:$0xff]
        %v2363 = vld [vmem:[%s2326 + $0x120] sm:$0xff]
        %v2364 = vld [vmem:[%s2326 + $0x128] sm:$0xff]
        %v2365 = vld [vmem:[%s2326 + $0x130] sm:$0xff]
        %v2366 = vld [vmem:[%s2326 + $0x138] sm:$0xff]
        %v2367 = vld [vmem:[%s2326 + $0x140] sm:$0xff]
        %v2368 = vld [vmem:[%s2326 + $0x148] sm:$0xff]
        %v2369 = vld [vmem:[%s2326 + $0x150] sm:$0xff]
        %v2370 = vld [vmem:[%s2326 + $0x158] sm:$0xff]
        %v2371 = vld [vmem:[%s2326 + $0x160] sm:$0xff]
        %v2372 = vld [vmem:[%s2326 + $0x168] sm:$0xff]
        %v2373 = vld [vmem:[%s2326 + $0x170] sm:$0xff]
        %v2374 = vld [vmem:[%s2326 + $0x178] sm:$0xff]
        %v2375 = vld [vmem:[%s2326 + $0x180] sm:$0xff]
        %v2376 = vld [vmem:[%s2326 + $0x188] sm:$0xff]
        %v2377 = vld [vmem:[%s2326 + $0x190] sm:$0xff]
        %v2378 = vld [vmem:[%s2326 + $0x198] sm:$0xff]
        %v2379 = vld [vmem:[%s2326 + $0x1a0] sm:$0xff]
        %v2380 = vld [vmem:[%s2326 + $0x1a8] sm:$0xff]
        %v2381 = vld [vmem:[%s2326 + $0x1b0] sm:$0xff]
        %v2382 = vld [vmem:[%s2326 + $0x1b8] sm:$0xff]
        %v2383 = vld [vmem:[%s2326 + $0x1c0] sm:$0xff]
        %v2384 = vld [vmem:[%s2326 + $0x1c8] sm:$0xff]
        %v2385 = vld [vmem:[%s2326 + $0x1d0] sm:$0xff]
        %v2386 = vld [vmem:[%s2326 + $0x1d8] sm:$0xff]
        %v2387 = vld [vmem:[%s2326 + $0x1e0] sm:$0xff]
        %v2388 = vld [vmem:[%s2326 + $0x1e8] sm:$0xff]
        %v2389 = vld [vmem:[%s2326 + $0x1f0] sm:$0xff]
        %v2390 = vld [vmem:[%s2326 + $0x1f8] sm:$0xff]
        %v2401 = vrot.slane %v2322, 1
        %v2402 = vrot.slane %v2252, 1
        %v2403 = vsel %vm1291, %v2401, %v2402
        %v2404 = vrot.slane %v2323, 1
        %v2405 = vrot.slane %v2253, 1
        %v2406 = vsel %vm1291, %v2404, %v2405
        %v2407 = vrot.slane %v2254, 1
        %v2408 = vsel %vm1291, %v2402, %v2407
        %v2409 = vrot.slane %v2255, 1
        %v2410 = vsel %vm1291, %v2405, %v2409
        %v2411 = vrot.slane %v2256, 1
        %v2412 = vsel %vm1291, %v2407, %v2411
        %v2413 = vrot.slane %v2257, 1
        %v2414 = vsel %vm1291, %v2409, %v2413
        %v2415 = vrot.slane %v2324, 1
        %v2416 = vsel %vm1291, %v2411, %v2415
        %v2417 = vrot.slane %v2325, 1
        %v2418 = vsel %vm1291, %v2413, %v2417
        %2427 = vmatprep.subr.mxu0 %v2328
        %2428 = vmatpush1.msra.mxu0 %v2327
        %2429 = vmatprep.subr.mxu0 %v2330
        %2430 = vmatpush1.msra.mxu0 %v2329
        %2431 = vmatprep.subr.mxu0 %v2332
        %2432 = vmatpush1.msra.mxu0 %v2331
        %2433 = vmatprep.subr.mxu0 %v2334
        %2434 = vmatpush1.msra.mxu0 %v2333
        %2435 = vmatprep.subr.mxu0 %v2336
        %2436 = vmatpush1.msra.mxu0 %v2335
        %2437 = vmatprep.subr.mxu0 %v2338
        %2438 = vmatpush1.msra.mxu0 %v2337
        %2439 = vmatprep.subr.mxu0 %v2340
        %2440 = vmatpush1.msra.mxu0 %v2339
        %2441 = vmatprep.subr.mxu0 %v2342
        %2442 = vmatpush1.msra.mxu0 %v2341
        %2443 = vmatprep.subr.mxu0 %v2344
        %2444 = vmatpush1.msra.mxu0 %v2343
        %2445 = vmatprep.subr.mxu0 %v2346
        %2446 = vmatpush1.msra.mxu0 %v2345
        %2447 = vmatprep.subr.mxu0 %v2348
        %2448 = vmatpush1.msra.mxu0 %v2347
        %2449 = vmatprep.subr.mxu0 %v2350
        %2450 = vmatpush1.msra.mxu0 %v2349
        %2451 = vmatprep.subr.mxu0 %v2352
        %2452 = vmatpush1.msra.mxu0 %v2351
        %2453 = vmatprep.subr.mxu0 %v2354
        %2454 = vmatpush1.msra.mxu0 %v2353
        %2455 = vmatprep.subr.mxu0 %v2356
        %2456 = vmatpush1.msra.mxu0 %v2355
        %2457 = vmatprep.subr.mxu0 %v2358
        %2458 = vmatpush1.msra.mxu0 %v2357
        %2459 = vmatprep.subr.mxu0 %v2360
        %2460 = vmatpush1.msra.mxu0 %v2359
        %2461 = vmatprep.subr.mxu0 %v2362
        %2462 = vmatpush1.msra.mxu0 %v2361
        %2463 = vmatprep.subr.mxu0 %v2364
        %2464 = vmatpush1.msra.mxu0 %v2363
        %2465 = vmatprep.subr.mxu0 %v2366
        %2466 = vmatpush1.msra.mxu0 %v2365
        %2467 = vmatprep.subr.mxu0 %v2368
        %2468 = vmatpush1.msra.mxu0 %v2367
        %2469 = vmatprep.subr.mxu0 %v2370
        %2470 = vmatpush1.msra.mxu0 %v2369
        %2471 = vmatprep.subr.mxu0 %v2372
        %2472 = vmatpush1.msra.mxu0 %v2371
        %2473 = vmatprep.subr.mxu0 %v2374
        %2474 = vmatpush1.msra.mxu0 %v2373
        %2475 = vmatprep.subr.mxu0 %v2376
        %2476 = vmatpush1.msra.mxu0 %v2375
        %2477 = vmatprep.subr.mxu0 %v2378
        %2478 = vmatpush1.msra.mxu0 %v2377
        %2479 = vmatprep.subr.mxu0 %v2380
        %2480 = vmatpush1.msra.mxu0 %v2379
        %2481 = vmatprep.subr.mxu0 %v2382
        %2482 = vmatpush1.msra.mxu0 %v2381
        %2483 = vmatprep.subr.mxu0 %v2384
        %2484 = vmatpush1.msra.mxu0 %v2383
        %2485 = vmatprep.subr.mxu0 %v2386
        %2486 = vmatpush1.msra.mxu0 %v2385
        %2487 = vmatprep.subr.mxu0 %v2388
        %2488 = vmatpush1.msra.mxu0 %v2387
        %2489 = vmatprep.subr.mxu0 %v2390
        %2490 = vmatpush1.msra.mxu0 %v2389
        %2491 = vmatprep.mubr.f32.mxu0 %v2406
        %2492 = vmatmul.mubr.f32.gmra.mrb[0].mxu0 %v2403
        %v2493 = vpop.f32.mrb[0].mxu0
        %v2494 = vadd.f32 0.0, %v2493
        %v2495 = vpop.f32.mrb[0].mxu0
        %v2496 = vadd.f32 0.0, %v2495
        %2497 = vmatprep.mubr.f32.mxu0 %v2410
        %2498 = vmatmul.mubr.f32.gmra.mrb[0].mxu0 %v2408
        %v2499 = vpop.f32.mrb[0].mxu0
        %v2500 = vadd.f32 0.0, %v2499
        %v2501 = vpop.f32.mrb[0].mxu0
        %v2502 = vadd.f32 0.0, %v2501
        %2503 = vmatprep.mubr.f32.mxu0 %v2414
        %2504 = vmatmul.mubr.f32.gmra.mrb[0].mxu0 %v2412
        %v2505 = vpop.f32.mrb[0].mxu0
        %v2506 = vadd.f32 0.0, %v2505
        %v2507 = vpop.f32.mrb[0].mxu0
        %v2508 = vadd.f32 0.0, %v2507
        %2509 = vmatprep.mubr.f32.mxu0 %v2418
        %2510 = vmatmul.mubr.f32.gmra.mrb[0].mxu0 %v2416
        %v2511 = vpop.f32.mrb[0].mxu0
        %v2512 = vadd.f32 0.0, %v2511
        %v2513 = vpop.f32.mrb[0].mxu0
        %v2514 = vadd.f32 0.0, %v2513
        %2515 = vdwg.mxu0
        %2516 = vmatprep.subr.mxu0 %v2259
        %2517 = vmatpush1.msra.mxu0 %v2258
        %2518 = vmatprep.subr.mxu0 %v2261
        %2519 = vmatpush1.msra.mxu0 %v2260
        %2520 = vmatprep.subr.mxu0 %v2263
        %2521 = vmatpush1.msra.mxu0 %v2262
        %2522 = vmatprep.subr.mxu0 %v2265
        %2523 = vmatpush1.msra.mxu0 %v2264
        %2524 = vmatprep.subr.mxu0 %v2267
        %2525 = vmatpush1.msra.mxu0 %v2266
        %2526 = vmatprep.subr.mxu0 %v2269
        %2527 = vmatpush1.msra.mxu0 %v2268
        %2528 = vmatprep.subr.mxu0 %v2271
        %2529 = vmatpush1.msra.mxu0 %v2270
        %2530 = vmatprep.subr.mxu0 %v2273
        %2531 = vmatpush1.msra.mxu0 %v2272
        %2532 = vmatprep.subr.mxu0 %v2275
        %2533 = vmatpush1.msra.mxu0 %v2274
        %2534 = vmatprep.subr.mxu0 %v2277
        %2535 = vmatpush1.msra.mxu0 %v2276
        %2536 = vmatprep.subr.mxu0 %v2279
        %2537 = vmatpush1.msra.mxu0 %v2278
        %2538 = vmatprep.subr.mxu0 %v2281
        %2539 = vmatpush1.msra.mxu0 %v2280
        %2540 = vmatprep.subr.mxu0 %v2283
        %2541 = vmatpush1.msra.mxu0 %v2282
        %2542 = vmatprep.subr.mxu0 %v2285
        %2543 = vmatpush1.msra.mxu0 %v2284
        %2544 = vmatprep.subr.mxu0 %v2287
        %2545 = vmatpush1.msra.mxu0 %v2286
        %2546 = vmatprep.subr.mxu0 %v2289
        %2547 = vmatpush1.msra.mxu0 %v2288
        %2548 = vmatprep.subr.mxu0 %v2291
        %2549 = vmatpush1.msra.mxu0 %v2290
        %2550 = vmatprep.subr.mxu0 %v2293
        %2551 = vmatpush1.msra.mxu0 %v2292
        %2552 = vmatprep.subr.mxu0 %v2295
        %2553 = vmatpush1.msra.mxu0 %v2294
        %2554 = vmatprep.subr.mxu0 %v2297
        %2555 = vmatpush1.msra.mxu0 %v2296
        %2556 = vmatprep.subr.mxu0 %v2299
        %2557 = vmatpush1.msra.mxu0 %v2298
        %2558 = vmatprep.subr.mxu0 %v2301
        %2559 = vmatpush1.msra.mxu0 %v2300
        %2560 = vmatprep.subr.mxu0 %v2303
        %2561 = vmatpush1.msra.mxu0 %v2302
        %2562 = vmatprep.subr.mxu0 %v2305
        %2563 = vmatpush1.msra.mxu0 %v2304
        %2564 = vmatprep.subr.mxu0 %v2307
        %2565 = vmatpush1.msra.mxu0 %v2306
        %2566 = vmatprep.subr.mxu0 %v2309
        %2567 = vmatpush1.msra.mxu0 %v2308
        %2568 = vmatprep.subr.mxu0 %v2311
        %2569 = vmatpush1.msra.mxu0 %v2310
        %2570 = vmatprep.subr.mxu0 %v2313
        %2571 = vmatpush1.msra.mxu0 %v2312
        %2572 = vmatprep.subr.mxu0 %v2315
        %2573 = vmatpush1.msra.mxu0 %v2314
        %2574 = vmatprep.subr.mxu0 %v2317
        %2575 = vmatpush1.msra.mxu0 %v2316
        %2576 = vmatprep.subr.mxu0 %v2319
        %2577 = vmatpush1.msra.mxu0 %v2318
        %2578 = vmatprep.subr.mxu0 %v2321
        %2579 = vmatpush1.msra.mxu0 %v2320
        %2580 = vmatprep.mubr.f32.mxu0 %v2251
        %2581 = vmatmul.mubr.f32.gmra.mrb[0].mxu0 %v2250
        %v2582 = vpop.f32.mrb[0].mxu0
        %v2583 = vadd.f32 %v2494, %v2582
        %v2584 = vpop.f32.mrb[0].mxu0
        %v2585 = vadd.f32 %v2496, %v2584
        %2586 = vmatprep.mubr.f32.mxu0 %v2253
        %2587 = vmatmul.mubr.f32.gmra.mrb[0].mxu0 %v2252
        %v2588 = vpop.f32.mrb[0].mxu0
        %v2589 = vadd.f32 %v2500, %v2588
        %v2590 = vpop.f32.mrb[0].mxu0
        %v2591 = vadd.f32 %v2502, %v2590
        %2592 = vmatprep.mubr.f32.mxu0 %v2255
        %2593 = vmatmul.mubr.f32.gmra.mrb[0].mxu0 %v2254
        %v2594 = vpop.f32.mrb[0].mxu0
        %v2595 = vadd.f32 %v2506, %v2594
        %v2596 = vpop.f32.mrb[0].mxu0
        %v2597 = vadd.f32 %v2508, %v2596
        %2598 = vmatprep.mubr.f32.mxu0 %v2257
        %2599 = vmatmul.mubr.f32.gmra.mrb[0].mxu0 %v2256
        %v2600 = vpop.f32.mrb[0].mxu0
        %v2601 = vadd.f32 %v2512, %v2600
        %v2602 = vpop.f32.mrb[0].mxu0
        %v2603 = vadd.f32 %v2514, %v2602
        %2604 = vdwg.mxu0
        %v2605 = vld [vmem:[#allocation5] sm:$0xfc]
        %v2606 = vld [vmem:[#allocation5 + $0x8] sm:$0xfc]
        %v2607 = vld [vmem:[#allocation5 + $0x40] sm:$0x3]
        %v2608 = vld [vmem:[#allocation5 + $0x48] sm:$0x3]
        %s2609 = scalar_lea.vmem [#allocation9], 1024
        %v2610 = vld [vmem:[%s2609] sm:$0xff]
        %v2611 = vld [vmem:[%s2609 + $0x8] sm:$0xff]
        %v2612 = vld [vmem:[%s2609 + $0x10] sm:$0xff]
        %v2613 = vld [vmem:[%s2609 + $0x18] sm:$0xff]
        %v2614 = vld [vmem:[%s2609 + $0x20] sm:$0xff]
        %v2615 = vld [vmem:[%s2609 + $0x28] sm:$0xff]
        %v2616 = vld [vmem:[%s2609 + $0x30] sm:$0xff]
        %v2617 = vld [vmem:[%s2609 + $0x38] sm:$0xff]
        %v2618 = vld [vmem:[%s2609 + $0x40] sm:$0xff]
        %v2619 = vld [vmem:[%s2609 + $0x48] sm:$0xff]
        %v2620 = vld [vmem:[%s2609 + $0x50] sm:$0xff]
        %v2621 = vld [vmem:[%s2609 + $0x58] sm:$0xff]
        %v2622 = vld [vmem:[%s2609 + $0x60] sm:$0xff]
        %v2623 = vld [vmem:[%s2609 + $0x68] sm:$0xff]
        %v2624 = vld [vmem:[%s2609 + $0x70] sm:$0xff]
        %v2625 = vld [vmem:[%s2609 + $0x78] sm:$0xff]
        %v2626 = vld [vmem:[%s2609 + $0x80] sm:$0xff]
        %v2627 = vld [vmem:[%s2609 + $0x88] sm:$0xff]
        %v2628 = vld [vmem:[%s2609 + $0x90] sm:$0xff]
        %v2629 = vld [vmem:[%s2609 + $0x98] sm:$0xff]
        %v2630 = vld [vmem:[%s2609 + $0xa0] sm:$0xff]
        %v2631 = vld [vmem:[%s2609 + $0xa8] sm:$0xff]
        %v2632 = vld [vmem:[%s2609 + $0xb0] sm:$0xff]
        %v2633 = vld [vmem:[%s2609 + $0xb8] sm:$0xff]
        %v2634 = vld [vmem:[%s2609 + $0xc0] sm:$0xff]
        %v2635 = vld [vmem:[%s2609 + $0xc8] sm:$0xff]
        %v2636 = vld [vmem:[%s2609 + $0xd0] sm:$0xff]
        %v2637 = vld [vmem:[%s2609 + $0xd8] sm:$0xff]
        %v2638 = vld [vmem:[%s2609 + $0xe0] sm:$0xff]
        %v2639 = vld [vmem:[%s2609 + $0xe8] sm:$0xff]
        %v2640 = vld [vmem:[%s2609 + $0xf0] sm:$0xff]
        %v2641 = vld [vmem:[%s2609 + $0xf8] sm:$0xff]
        %v2642 = vld [vmem:[%s2609 + $0x100] sm:$0xff]
        %v2643 = vld [vmem:[%s2609 + $0x108] sm:$0xff]
        %v2644 = vld [vmem:[%s2609 + $0x110] sm:$0xff]
        %v2645 = vld [vmem:[%s2609 + $0x118] sm:$0xff]
        %v2646 = vld [vmem:[%s2609 + $0x120] sm:$0xff]
        %v2647 = vld [vmem:[%s2609 + $0x128] sm:$0xff]
        %v2648 = vld [vmem:[%s2609 + $0x130] sm:$0xff]
        %v2649 = vld [vmem:[%s2609 + $0x138] sm:$0xff]
        %v2650 = vld [vmem:[%s2609 + $0x140] sm:$0xff]
        %v2651 = vld [vmem:[%s2609 + $0x148] sm:$0xff]
        %v2652 = vld [vmem:[%s2609 + $0x150] sm:$0xff]
        %v2653 = vld [vmem:[%s2609 + $0x158] sm:$0xff]
        %v2654 = vld [vmem:[%s2609 + $0x160] sm:$0xff]
        %v2655 = vld [vmem:[%s2609 + $0x168] sm:$0xff]
        %v2656 = vld [vmem:[%s2609 + $0x170] sm:$0xff]
        %v2657 = vld [vmem:[%s2609 + $0x178] sm:$0xff]
        %v2658 = vld [vmem:[%s2609 + $0x180] sm:$0xff]
        %v2659 = vld [vmem:[%s2609 + $0x188] sm:$0xff]
        %v2660 = vld [vmem:[%s2609 + $0x190] sm:$0xff]
        %v2661 = vld [vmem:[%s2609 + $0x198] sm:$0xff]
        %v2662 = vld [vmem:[%s2609 + $0x1a0] sm:$0xff]
        %v2663 = vld [vmem:[%s2609 + $0x1a8] sm:$0xff]
        %v2664 = vld [vmem:[%s2609 + $0x1b0] sm:$0xff]
        %v2665 = vld [vmem:[%s2609 + $0x1b8] sm:$0xff]
        %v2666 = vld [vmem:[%s2609 + $0x1c0] sm:$0xff]
        %v2667 = vld [vmem:[%s2609 + $0x1c8] sm:$0xff]
        %v2668 = vld [vmem:[%s2609 + $0x1d0] sm:$0xff]
        %v2669 = vld [vmem:[%s2609 + $0x1d8] sm:$0xff]
        %v2670 = vld [vmem:[%s2609 + $0x1e0] sm:$0xff]
        %v2671 = vld [vmem:[%s2609 + $0x1e8] sm:$0xff]
        %v2672 = vld [vmem:[%s2609 + $0x1f0] sm:$0xff]
        %v2673 = vld [vmem:[%s2609 + $0x1f8] sm:$0xff]
        %v2678 = vrot.slane %v2605, 2
        %v2679 = vrot.slane %v2252, 2
        %v2680 = vsel %vm1515, %v2678, %v2679
        %v2681 = vrot.slane %v2606, 2
        %v2682 = vrot.slane %v2253, 2
        %v2683 = vsel %vm1515, %v2681, %v2682
        %v2684 = vrot.slane %v2254, 2
        %v2685 = vsel %vm1515, %v2679, %v2684
        %v2686 = vrot.slane %v2255, 2
        %v2687 = vsel %vm1515, %v2682, %v2686
        %v2688 = vrot.slane %v2256, 2
        %v2689 = vsel %vm1515, %v2684, %v2688
        %v2690 = vrot.slane %v2257, 2
        %v2691 = vsel %vm1515, %v2686, %v2690
        %v2692 = vrot.slane %v2607, 2
        %v2693 = vsel %vm1515, %v2688, %v2692
        %v2694 = vrot.slane %v2608, 2
        %v2695 = vsel %vm1515, %v2690, %v2694
        %2704 = vmatprep.subr.mxu0 %v2611
        %2705 = vmatpush1.msra.mxu0 %v2610
        %2706 = vmatprep.subr.mxu0 %v2613
        %2707 = vmatpush1.msra.mxu0 %v2612
        %2708 = vmatprep.subr.mxu0 %v2615
        %2709 = vmatpush1.msra.mxu0 %v2614
        %2710 = vmatprep.subr.mxu0 %v2617
        %2711 = vmatpush1.msra.mxu0 %v2616
        %2712 = vmatprep.subr.mxu0 %v2619
        %2713 = vmatpush1.msra.mxu0 %v2618
        %2714 = vmatprep.subr.mxu0 %v2621
        %2715 = vmatpush1.msra.mxu0 %v2620
        %2716 = vmatprep.subr.mxu0 %v2623
        %2717 = vmatpush1.msra.mxu0 %v2622
        %2718 = vmatprep.subr.mxu0 %v2625
        %2719 = vmatpush1.msra.mxu0 %v2624
        %2720 = vmatprep.subr.mxu0 %v2627
        %2721 = vmatpush1.msra.mxu0 %v2626
        %2722 = vmatprep.subr.mxu0 %v2629
        %2723 = vmatpush1.msra.mxu0 %v2628
        %2724 = vmatprep.subr.mxu0 %v2631
        %2725 = vmatpush1.msra.mxu0 %v2630
        %2726 = vmatprep.subr.mxu0 %v2633
        %2727 = vmatpush1.msra.mxu0 %v2632
        %2728 = vmatprep.subr.mxu0 %v2635
        %2729 = vmatpush1.msra.mxu0 %v2634
        %2730 = vmatprep.subr.mxu0 %v2637
        %2731 = vmatpush1.msra.mxu0 %v2636
        %2732 = vmatprep.subr.mxu0 %v2639
        %2733 = vmatpush1.msra.mxu0 %v2638
        %2734 = vmatprep.subr.mxu0 %v2641
        %2735 = vmatpush1.msra.mxu0 %v2640
        %2736 = vmatprep.subr.mxu0 %v2643
        %2737 = vmatpush1.msra.mxu0 %v2642
        %2738 = vmatprep.subr.mxu0 %v2645
        %2739 = vmatpush1.msra.mxu0 %v2644
        %2740 = vmatprep.subr.mxu0 %v2647
        %2741 = vmatpush1.msra.mxu0 %v2646
        %2742 = vmatprep.subr.mxu0 %v2649
        %2743 = vmatpush1.msra.mxu0 %v2648
        %2744 = vmatprep.subr.mxu0 %v2651
        %2745 = vmatpush1.msra.mxu0 %v2650
        %2746 = vmatprep.subr.mxu0 %v2653
        %2747 = vmatpush1.msra.mxu0 %v2652
        %2748 = vmatprep.subr.mxu0 %v2655
        %2749 = vmatpush1.msra.mxu0 %v2654
        %2750 = vmatprep.subr.mxu0 %v2657
        %2751 = vmatpush1.msra.mxu0 %v2656
        %2752 = vmatprep.subr.mxu0 %v2659
        %2753 = vmatpush1.msra.mxu0 %v2658
        %2754 = vmatprep.subr.mxu0 %v2661
        %2755 = vmatpush1.msra.mxu0 %v2660
        %2756 = vmatprep.subr.mxu0 %v2663
        %2757 = vmatpush1.msra.mxu0 %v2662
        %2758 = vmatprep.subr.mxu0 %v2665
        %2759 = vmatpush1.msra.mxu0 %v2664
        %2760 = vmatprep.subr.mxu0 %v2667
        %2761 = vmatpush1.msra.mxu0 %v2666
        %2762 = vmatprep.subr.mxu0 %v2669
        %2763 = vmatpush1.msra.mxu0 %v2668
        %2764 = vmatprep.subr.mxu0 %v2671
        %2765 = vmatpush1.msra.mxu0 %v2670
        %2766 = vmatprep.subr.mxu0 %v2673
        %2767 = vmatpush1.msra.mxu0 %v2672
        %2768 = vmatprep.mubr.f32.mxu0 %v2683
        %2769 = vmatmul.mubr.f32.gmra.mrb[0].mxu0 %v2680
        %v2770 = vpop.f32.mrb[0].mxu0
        %v2771 = vadd.f32 0.0, %v2770
        %v2772 = vpop.f32.mrb[0].mxu0
        %v2773 = vadd.f32 0.0, %v2772
        %2774 = vmatprep.mubr.f32.mxu0 %v2687
        %2775 = vmatmul.mubr.f32.gmra.mrb[0].mxu0 %v2685
        %v2776 = vpop.f32.mrb[0].mxu0
        %v2777 = vadd.f32 0.0, %v2776
        %v2778 = vpop.f32.mrb[0].mxu0
        %v2779 = vadd.f32 0.0, %v2778
        %2780 = vmatprep.mubr.f32.mxu0 %v2691
        %2781 = vmatmul.mubr.f32.gmra.mrb[0].mxu0 %v2689
        %v2782 = vpop.f32.mrb[0].mxu0
        %v2783 = vadd.f32 0.0, %v2782
        %v2784 = vpop.f32.mrb[0].mxu0
        %v2785 = vadd.f32 0.0, %v2784
        %2786 = vmatprep.mubr.f32.mxu0 %v2695
        %2787 = vmatmul.mubr.f32.gmra.mrb[0].mxu0 %v2693
        %v2788 = vpop.f32.mrb[0].mxu0
        %v2789 = vadd.f32 0.0, %v2788
        %v2790 = vpop.f32.mrb[0].mxu0
        %v2791 = vadd.f32 0.0, %v2790
        %2792 = vdwg.mxu0
        %v2793 = vadd.f32 %v2583, %v2771
        %v2794 = vadd.f32 %v2585, %v2773
        %v2795 = vadd.f32 %v2589, %v2777
        %v2796 = vadd.f32 %v2591, %v2779
        %v2797 = vadd.f32 %v2595, %v2783
        %v2798 = vadd.f32 %v2597, %v2785
        %v2799 = vadd.f32 %v2601, %v2789
        %v2800 = vadd.f32 %v2603, %v2791
        %v2801 = vld [vmem:[#allocation17] sm:$0x3]
        %v2803 = vlaneseq
        %v2804 = vshrl.u32 %v2803, 7
        %v2805 = vsub.s32 0, %v2804
        %v2806 = vrot.slane %v2801, %v2805
        %v2807 = vlaneseq
        %v2808 = vshrl.u32 %v2807, 7
        %v2809 = vsub.s32 1, %v2808
        %v2810 = vrot.slane %v2801, %v2809
        %v2813 = vadd.f32 %v2793, %v2806
        %v2814 = vadd.f32 %v2794, %v2810
        %v2815 = vadd.f32 %v2795, %v2806
        %v2816 = vadd.f32 %v2796, %v2810
        %v2817 = vadd.f32 %v2797, %v2806
        %v2818 = vadd.f32 %v2798, %v2810
        %v2819 = vadd.f32 %v2799, %v2806
        %v2820 = vadd.f32 %v2800, %v2810
        %v2821 = vmax.f32 %v2813, 0.0
        %v2822 = vmax.f32 %v2814, 0.0
        %v2823 = vmax.f32 %v2815, 0.0
        %v2824 = vmax.f32 %v2816, 0.0
        %v2825 = vmax.f32 %v2817, 0.0
        %v2826 = vmax.f32 %v2818, 0.0
        %v2827 = vmax.f32 %v2819, 0.0
        %v2828 = vmax.f32 %v2820, 0.0
        %2829 = vst [vmem:[#allocation6 + $0x1] sm:$0x1] %v2821
        %2830 = vst [vmem:[#allocation6 + $0x2] sm:$0x1] %v2822
        %v2832 = vrot.slane %v2821, 1
        %2834 = vst [vmem:[#allocation6 + $0x3] sm:$0x1] %v2832
        %v2836 = vrot.slane %v2822, 1
        %2838 = vst [vmem:[#allocation6 + $0x4] sm:$0x1] %v2836
        %v2839 = vrot.slane %v2821, 2
        %2841 = vst [vmem:[#allocation6 + $0x5] sm:$0x1] %v2839
        %v2842 = vrot.slane %v2822, 2
        %2844 = vst [vmem:[#allocation6 + $0x6] sm:$0x1] %v2842
        %v2845 = vrot.slane %v2821, 3
        %2847 = vst [vmem:[#allocation6 + $0x7] sm:$0x1] %v2845
        %v2848 = vrot.slane %v2822, 3
        %2850 = vst [vmem:[#allocation6 + $0x10] sm:$0x1] %v2848
        %v2851 = vrot.slane %v2821, 4
        %2853 = vst [vmem:[#allocation6 + $0x11] sm:$0x1] %v2851
        %v2854 = vrot.slane %v2822, 4
        %2856 = vst [vmem:[#allocation6 + $0x12] sm:$0x1] %v2854
        %v2857 = vrot.slane %v2821, 5
        %2859 = vst [vmem:[#allocation6 + $0x13] sm:$0x1] %v2857
        %v2860 = vrot.slane %v2822, 5
        %2862 = vst [vmem:[#allocation6 + $0x14] sm:$0x1] %v2860
        %v2863 = vrot.slane %v2821, 6
        %2865 = vst [vmem:[#allocation6 + $0x15] sm:$0x1] %v2863
        %v2866 = vrot.slane %v2822, 6
        %2868 = vst [vmem:[#allocation6 + $0x16] sm:$0x1] %v2866
        %v2869 = vrot.slane %v2821, 7
        %2871 = vst [vmem:[#allocation6 + $0x17] sm:$0x1] %v2869
        %v2872 = vrot.slane %v2822, 7
        %2874 = vst [vmem:[#allocation6 + $0x20] sm:$0x1] %v2872
        %2875 = vst [vmem:[#allocation6 + $0x21] sm:$0x1] %v2823
        %2876 = vst [vmem:[#allocation6 + $0x22] sm:$0x1] %v2824
        %v2878 = vrot.slane %v2823, 1
        %2880 = vst [vmem:[#allocation6 + $0x23] sm:$0x1] %v2878
        %v2882 = vrot.slane %v2824, 1
        %2884 = vst [vmem:[#allocation6 + $0x24] sm:$0x1] %v2882
        %v2885 = vrot.slane %v2823, 2
        %2887 = vst [vmem:[#allocation6 + $0x25] sm:$0x1] %v2885
        %v2888 = vrot.slane %v2824, 2
        %2890 = vst [vmem:[#allocation6 + $0x26] sm:$0x1] %v2888
        %v2891 = vrot.slane %v2823, 3
        %2893 = vst [vmem:[#allocation6 + $0x27] sm:$0x1] %v2891
        %v2894 = vrot.slane %v2824, 3
        %2896 = vst [vmem:[#allocation6 + $0x30] sm:$0x1] %v2894
        %v2897 = vrot.slane %v2823, 4
        %2899 = vst [vmem:[#allocation6 + $0x31] sm:$0x1] %v2897
        %v2900 = vrot.slane %v2824, 4
        %2902 = vst [vmem:[#allocation6 + $0x32] sm:$0x1] %v2900
        %v2903 = vrot.slane %v2823, 5
        %2905 = vst [vmem:[#allocation6 + $0x33] sm:$0x1] %v2903
        %v2906 = vrot.slane %v2824, 5
        %2908 = vst [vmem:[#allocation6 + $0x34] sm:$0x1] %v2906
        %v2909 = vrot.slane %v2823, 6
        %2911 = vst [vmem:[#allocation6 + $0x35] sm:$0x1] %v2909
        %v2912 = vrot.slane %v2824, 6
        %2914 = vst [vmem:[#allocation6 + $0x36] sm:$0x1] %v2912
        %v2915 = vrot.slane %v2823, 7
        %2917 = vst [vmem:[#allocation6 + $0x37] sm:$0x1] %v2915
        %v2918 = vrot.slane %v2824, 7
        %2920 = vst [vmem:[#allocation6 + $0x40] sm:$0x1] %v2918
        %2921 = vst [vmem:[#allocation6 + $0x41] sm:$0x1] %v2825
        %2922 = vst [vmem:[#allocation6 + $0x42] sm:$0x1] %v2826
        %v2924 = vrot.slane %v2825, 1
        %2926 = vst [vmem:[#allocation6 + $0x43] sm:$0x1] %v2924
        %v2928 = vrot.slane %v2826, 1
        %2930 = vst [vmem:[#allocation6 + $0x44] sm:$0x1] %v2928
        %v2931 = vrot.slane %v2825, 2
        %2933 = vst [vmem:[#allocation6 + $0x45] sm:$0x1] %v2931
        %v2934 = vrot.slane %v2826, 2
        %2936 = vst [vmem:[#allocation6 + $0x46] sm:$0x1] %v2934
        %v2937 = vrot.slane %v2825, 3
        %2939 = vst [vmem:[#allocation6 + $0x47] sm:$0x1] %v2937
        %v2940 = vrot.slane %v2826, 3
        %2942 = vst [vmem:[#allocation6 + $0x50] sm:$0x1] %v2940
        %v2943 = vrot.slane %v2825, 4
        %2945 = vst [vmem:[#allocation6 + $0x51] sm:$0x1] %v2943
        %v2946 = vrot.slane %v2826, 4
        %2948 = vst [vmem:[#allocation6 + $0x52] sm:$0x1] %v2946
        %v2949 = vrot.slane %v2825, 5
        %2951 = vst [vmem:[#allocation6 + $0x53] sm:$0x1] %v2949
        %v2952 = vrot.slane %v2826, 5
        %2954 = vst [vmem:[#allocation6 + $0x54] sm:$0x1] %v2952
        %v2955 = vrot.slane %v2825, 6
        %2957 = vst [vmem:[#allocation6 + $0x55] sm:$0x1] %v2955
        %v2958 = vrot.slane %v2826, 6
        %2960 = vst [vmem:[#allocation6 + $0x56] sm:$0x1] %v2958
        %v2961 = vrot.slane %v2825, 7
        %2963 = vst [vmem:[#allocation6 + $0x57] sm:$0x1] %v2961
        %v2964 = vrot.slane %v2826, 7
        %2966 = vst [vmem:[#allocation6 + $0x60] sm:$0x1] %v2964
        %2967 = vst [vmem:[#allocation6 + $0x61] sm:$0x1] %v2827
        %2968 = vst [vmem:[#allocation6 + $0x62] sm:$0x1] %v2828
        %v2970 = vrot.slane %v2827, 1
        %2972 = vst [vmem:[#allocation6 + $0x63] sm:$0x1] %v2970
        %v2974 = vrot.slane %v2828, 1
        %2976 = vst [vmem:[#allocation6 + $0x64] sm:$0x1] %v2974
        %v2977 = vrot.slane %v2827, 2
        %2979 = vst [vmem:[#allocation6 + $0x65] sm:$0x1] %v2977
        %v2980 = vrot.slane %v2828, 2
        %2982 = vst [vmem:[#allocation6 + $0x66] sm:$0x1] %v2980
        %v2983 = vrot.slane %v2827, 3
        %2985 = vst [vmem:[#allocation6 + $0x67] sm:$0x1] %v2983
        %v2986 = vrot.slane %v2828, 3
        %2988 = vst [vmem:[#allocation6 + $0x70] sm:$0x1] %v2986
        %v2989 = vrot.slane %v2827, 4
        %2991 = vst [vmem:[#allocation6 + $0x71] sm:$0x1] %v2989
        %v2992 = vrot.slane %v2828, 4
        %2994 = vst [vmem:[#allocation6 + $0x72] sm:$0x1] %v2992
        %v2995 = vrot.slane %v2827, 5
        %2997 = vst [vmem:[#allocation6 + $0x73] sm:$0x1] %v2995
        %v2998 = vrot.slane %v2828, 5
        %3000 = vst [vmem:[#allocation6 + $0x74] sm:$0x1] %v2998
        %v3001 = vrot.slane %v2827, 6
        %3003 = vst [vmem:[#allocation6 + $0x75] sm:$0x1] %v3001
        %v3004 = vrot.slane %v2828, 6
        %3006 = vst [vmem:[#allocation6 + $0x76] sm:$0x1] %v3004
        %v3007 = vrot.slane %v2827, 7
        %3009 = vst [vmem:[#allocation6 + $0x77] sm:$0x1] %v3007
        %v3010 = vrot.slane %v2828, 7
        %3012 = vst [vmem:[#allocation6 + $0x80] sm:$0x1] %v3010
        %v3013 = vld [vmem:[#allocation6] sm:$0xff]
        %v3014 = vld [vmem:[#allocation6 + $0x8] sm:$0xff]
        %v3015 = vld [vmem:[#allocation6 + $0x10] sm:$0xff]
        %v3016 = vld [vmem:[#allocation6 + $0x18] sm:$0xff]
        %v3017 = vld [vmem:[#allocation6 + $0x20] sm:$0xff]
        %v3018 = vld [vmem:[#allocation6 + $0x28] sm:$0xff]
        %v3019 = vld [vmem:[#allocation6 + $0x30] sm:$0xff]
        %v3020 = vld [vmem:[#allocation6 + $0x38] sm:$0xff]
        %v3021 = vld [vmem:[#allocation6 + $0x40] sm:$0xff]
        %v3022 = vld [vmem:[#allocation6 + $0x48] sm:$0xff]
        %v3023 = vld [vmem:[#allocation6 + $0x50] sm:$0xff]
        %v3024 = vld [vmem:[#allocation6 + $0x58] sm:$0xff]
        %v3025 = vld [vmem:[#allocation6 + $0x60] sm:$0xff]
        %v3026 = vld [vmem:[#allocation6 + $0x68] sm:$0xff]
        %v3027 = vld [vmem:[#allocation6 + $0x70] sm:$0xff]
        %v3028 = vld [vmem:[#allocation6 + $0x78] sm:$0xff]
        %v3029 = vld [vmem:[#allocation11] sm:$0xff]
        %v3030 = vld [vmem:[#allocation11 + $0x8] sm:$0xff]
        %v3031 = vld [vmem:[#allocation11 + $0x10] sm:$0xff]
        %v3032 = vld [vmem:[#allocation11 + $0x18] sm:$0xff]
        %v3033 = vld [vmem:[#allocation11 + $0x20] sm:$0xff]
        %v3034 = vld [vmem:[#allocation11 + $0x28] sm:$0xff]
        %v3035 = vld [vmem:[#allocation11 + $0x30] sm:$0xff]
        %v3036 = vld [vmem:[#allocation11 + $0x38] sm:$0xff]
        %v3037 = vld [vmem:[#allocation11 + $0x40] sm:$0xff]
        %v3038 = vld [vmem:[#allocation11 + $0x48] sm:$0xff]
        %v3039 = vld [vmem:[#allocation11 + $0x50] sm:$0xff]
        %v3040 = vld [vmem:[#allocation11 + $0x58] sm:$0xff]
        %v3041 = vld [vmem:[#allocation11 + $0x60] sm:$0xff]
        %v3042 = vld [vmem:[#allocation11 + $0x68] sm:$0xff]
        %v3043 = vld [vmem:[#allocation11 + $0x70] sm:$0xff]
        %v3044 = vld [vmem:[#allocation11 + $0x78] sm:$0xff]
        %v3045 = vld [vmem:[#allocation11 + $0x80] sm:$0xff]
        %v3046 = vld [vmem:[#allocation11 + $0x88] sm:$0xff]
        %v3047 = vld [vmem:[#allocation11 + $0x90] sm:$0xff]
        %v3048 = vld [vmem:[#allocation11 + $0x98] sm:$0xff]
        %v3049 = vld [vmem:[#allocation11 + $0xa0] sm:$0xff]
        %v3050 = vld [vmem:[#allocation11 + $0xa8] sm:$0xff]
        %v3051 = vld [vmem:[#allocation11 + $0xb0] sm:$0xff]
        %v3052 = vld [vmem:[#allocation11 + $0xb8] sm:$0xff]
        %v3053 = vld [vmem:[#allocation11 + $0xc0] sm:$0xff]
        %v3054 = vld [vmem:[#allocation11 + $0xc8] sm:$0xff]
        %v3055 = vld [vmem:[#allocation11 + $0xd0] sm:$0xff]
        %v3056 = vld [vmem:[#allocation11 + $0xd8] sm:$0xff]
        %v3057 = vld [vmem:[#allocation11 + $0xe0] sm:$0xff]
        %v3058 = vld [vmem:[#allocation11 + $0xe8] sm:$0xff]
        %v3059 = vld [vmem:[#allocation11 + $0xf0] sm:$0xff]
        %v3060 = vld [vmem:[#allocation11 + $0xf8] sm:$0xff]
        %v3061 = vld [vmem:[#allocation11 + $0x100] sm:$0xff]
        %v3062 = vld [vmem:[#allocation11 + $0x108] sm:$0xff]
        %v3063 = vld [vmem:[#allocation11 + $0x110] sm:$0xff]
        %v3064 = vld [vmem:[#allocation11 + $0x118] sm:$0xff]
        %v3065 = vld [vmem:[#allocation11 + $0x120] sm:$0xff]
        %v3066 = vld [vmem:[#allocation11 + $0x128] sm:$0xff]
        %v3067 = vld [vmem:[#allocation11 + $0x130] sm:$0xff]
        %v3068 = vld [vmem:[#allocation11 + $0x138] sm:$0xff]
        %v3069 = vld [vmem:[#allocation11 + $0x140] sm:$0xff]
        %v3070 = vld [vmem:[#allocation11 + $0x148] sm:$0xff]
        %v3071 = vld [vmem:[#allocation11 + $0x150] sm:$0xff]
        %v3072 = vld [vmem:[#allocation11 + $0x158] sm:$0xff]
        %v3073 = vld [vmem:[#allocation11 + $0x160] sm:$0xff]
        %v3074 = vld [vmem:[#allocation11 + $0x168] sm:$0xff]
        %v3075 = vld [vmem:[#allocation11 + $0x170] sm:$0xff]
        %v3076 = vld [vmem:[#allocation11 + $0x178] sm:$0xff]
        %v3077 = vld [vmem:[#allocation11 + $0x180] sm:$0xff]
        %v3078 = vld [vmem:[#allocation11 + $0x188] sm:$0xff]
        %v3079 = vld [vmem:[#allocation11 + $0x190] sm:$0xff]
        %v3080 = vld [vmem:[#allocation11 + $0x198] sm:$0xff]
        %v3081 = vld [vmem:[#allocation11 + $0x1a0] sm:$0xff]
        %v3082 = vld [vmem:[#allocation11 + $0x1a8] sm:$0xff]
        %v3083 = vld [vmem:[#allocation11 + $0x1b0] sm:$0xff]
        %v3084 = vld [vmem:[#allocation11 + $0x1b8] sm:$0xff]
        %v3085 = vld [vmem:[#allocation11 + $0x1c0] sm:$0xff]
        %v3086 = vld [vmem:[#allocation11 + $0x1c8] sm:$0xff]
        %v3087 = vld [vmem:[#allocation11 + $0x1d0] sm:$0xff]
        %v3088 = vld [vmem:[#allocation11 + $0x1d8] sm:$0xff]
        %v3089 = vld [vmem:[#allocation11 + $0x1e0] sm:$0xff]
        %v3090 = vld [vmem:[#allocation11 + $0x1e8] sm:$0xff]
        %v3091 = vld [vmem:[#allocation11 + $0x1f0] sm:$0xff]
        %v3092 = vld [vmem:[#allocation11 + $0x1f8] sm:$0xff]
        %v3093 = vld [vmem:[#allocation11 + $0x200] sm:$0xff]
        %v3094 = vld [vmem:[#allocation11 + $0x208] sm:$0xff]
        %v3095 = vld [vmem:[#allocation11 + $0x210] sm:$0xff]
        %v3096 = vld [vmem:[#allocation11 + $0x218] sm:$0xff]
        %v3097 = vld [vmem:[#allocation11 + $0x220] sm:$0xff]
        %v3098 = vld [vmem:[#allocation11 + $0x228] sm:$0xff]
        %v3099 = vld [vmem:[#allocation11 + $0x230] sm:$0xff]
        %v3100 = vld [vmem:[#allocation11 + $0x238] sm:$0xff]
        %v3101 = vld [vmem:[#allocation11 + $0x240] sm:$0xff]
        %v3102 = vld [vmem:[#allocation11 + $0x248] sm:$0xff]
        %v3103 = vld [vmem:[#allocation11 + $0x250] sm:$0xff]
        %v3104 = vld [vmem:[#allocation11 + $0x258] sm:$0xff]
        %v3105 = vld [vmem:[#allocation11 + $0x260] sm:$0xff]
        %v3106 = vld [vmem:[#allocation11 + $0x268] sm:$0xff]
        %v3107 = vld [vmem:[#allocation11 + $0x270] sm:$0xff]
        %v3108 = vld [vmem:[#allocation11 + $0x278] sm:$0xff]
        %v3109 = vld [vmem:[#allocation11 + $0x280] sm:$0xff]
        %v3110 = vld [vmem:[#allocation11 + $0x288] sm:$0xff]
        %v3111 = vld [vmem:[#allocation11 + $0x290] sm:$0xff]
        %v3112 = vld [vmem:[#allocation11 + $0x298] sm:$0xff]
        %v3113 = vld [vmem:[#allocation11 + $0x2a0] sm:$0xff]
        %v3114 = vld [vmem:[#allocation11 + $0x2a8] sm:$0xff]
        %v3115 = vld [vmem:[#allocation11 + $0x2b0] sm:$0xff]
        %v3116 = vld [vmem:[#allocation11 + $0x2b8] sm:$0xff]
        %v3117 = vld [vmem:[#allocation11 + $0x2c0] sm:$0xff]
        %v3118 = vld [vmem:[#allocation11 + $0x2c8] sm:$0xff]
        %v3119 = vld [vmem:[#allocation11 + $0x2d0] sm:$0xff]
        %v3120 = vld [vmem:[#allocation11 + $0x2d8] sm:$0xff]
        %v3121 = vld [vmem:[#allocation11 + $0x2e0] sm:$0xff]
        %v3122 = vld [vmem:[#allocation11 + $0x2e8] sm:$0xff]
        %v3123 = vld [vmem:[#allocation11 + $0x2f0] sm:$0xff]
        %v3124 = vld [vmem:[#allocation11 + $0x2f8] sm:$0xff]
        %v3125 = vld [vmem:[#allocation11 + $0x300] sm:$0xff]
        %v3126 = vld [vmem:[#allocation11 + $0x308] sm:$0xff]
        %v3127 = vld [vmem:[#allocation11 + $0x310] sm:$0xff]
        %v3128 = vld [vmem:[#allocation11 + $0x318] sm:$0xff]
        %v3129 = vld [vmem:[#allocation11 + $0x320] sm:$0xff]
        %v3130 = vld [vmem:[#allocation11 + $0x328] sm:$0xff]
        %v3131 = vld [vmem:[#allocation11 + $0x330] sm:$0xff]
        %v3132 = vld [vmem:[#allocation11 + $0x338] sm:$0xff]
        %v3133 = vld [vmem:[#allocation11 + $0x340] sm:$0xff]
        %v3134 = vld [vmem:[#allocation11 + $0x348] sm:$0xff]
        %v3135 = vld [vmem:[#allocation11 + $0x350] sm:$0xff]
        %v3136 = vld [vmem:[#allocation11 + $0x358] sm:$0xff]
        %v3137 = vld [vmem:[#allocation11 + $0x360] sm:$0xff]
        %v3138 = vld [vmem:[#allocation11 + $0x368] sm:$0xff]
        %v3139 = vld [vmem:[#allocation11 + $0x370] sm:$0xff]
        %v3140 = vld [vmem:[#allocation11 + $0x378] sm:$0xff]
        %v3141 = vld [vmem:[#allocation11 + $0x380] sm:$0xff]
        %v3142 = vld [vmem:[#allocation11 + $0x388] sm:$0xff]
        %v3143 = vld [vmem:[#allocation11 + $0x390] sm:$0xff]
        %v3144 = vld [vmem:[#allocation11 + $0x398] sm:$0xff]
        %v3145 = vld [vmem:[#allocation11 + $0x3a0] sm:$0xff]
        %v3146 = vld [vmem:[#allocation11 + $0x3a8] sm:$0xff]
        %v3147 = vld [vmem:[#allocation11 + $0x3b0] sm:$0xff]
        %v3148 = vld [vmem:[#allocation11 + $0x3b8] sm:$0xff]
        %v3149 = vld [vmem:[#allocation11 + $0x3c0] sm:$0xff]
        %v3150 = vld [vmem:[#allocation11 + $0x3c8] sm:$0xff]
        %v3151 = vld [vmem:[#allocation11 + $0x3d0] sm:$0xff]
        %v3152 = vld [vmem:[#allocation11 + $0x3d8] sm:$0xff]
        %v3153 = vld [vmem:[#allocation11 + $0x3e0] sm:$0xff]
        %v3154 = vld [vmem:[#allocation11 + $0x3e8] sm:$0xff]
        %v3155 = vld [vmem:[#allocation11 + $0x3f0] sm:$0xff]
        %v3156 = vld [vmem:[#allocation11 + $0x3f8] sm:$0xff]
        %v3157 = vld [vmem:[#allocation6] sm:$0xfe]
        %v3158 = vld [vmem:[#allocation6 + $0x8] sm:$0xfe]
        %v3159 = vld [vmem:[#allocation6 + $0x80] sm:$0x1]
        %v3160 = vld [vmem:[#allocation6 + $0x88] sm:$0x1]
        %s3161 = scalar_lea.vmem [#allocation11], 1024
        %v3162 = vld [vmem:[%s3161] sm:$0xff]
        %v3163 = vld [vmem:[%s3161 + $0x8] sm:$0xff]
        %v3164 = vld [vmem:[%s3161 + $0x10] sm:$0xff]
        %v3165 = vld [vmem:[%s3161 + $0x18] sm:$0xff]
        %v3166 = vld [vmem:[%s3161 + $0x20] sm:$0xff]
        %v3167 = vld [vmem:[%s3161 + $0x28] sm:$0xff]
        %v3168 = vld [vmem:[%s3161 + $0x30] sm:$0xff]
        %v3169 = vld [vmem:[%s3161 + $0x38] sm:$0xff]
        %v3170 = vld [vmem:[%s3161 + $0x40] sm:$0xff]
        %v3171 = vld [vmem:[%s3161 + $0x48] sm:$0xff]
        %v3172 = vld [vmem:[%s3161 + $0x50] sm:$0xff]
        %v3173 = vld [vmem:[%s3161 + $0x58] sm:$0xff]
        %v3174 = vld [vmem:[%s3161 + $0x60] sm:$0xff]
        %v3175 = vld [vmem:[%s3161 + $0x68] sm:$0xff]
        %v3176 = vld [vmem:[%s3161 + $0x70] sm:$0xff]
        %v3177 = vld [vmem:[%s3161 + $0x78] sm:$0xff]
        %v3178 = vld [vmem:[%s3161 + $0x80] sm:$0xff]
        %v3179 = vld [vmem:[%s3161 + $0x88] sm:$0xff]
        %v3180 = vld [vmem:[%s3161 + $0x90] sm:$0xff]
        %v3181 = vld [vmem:[%s3161 + $0x98] sm:$0xff]
        %v3182 = vld [vmem:[%s3161 + $0xa0] sm:$0xff]
        %v3183 = vld [vmem:[%s3161 + $0xa8] sm:$0xff]
        %v3184 = vld [vmem:[%s3161 + $0xb0] sm:$0xff]
        %v3185 = vld [vmem:[%s3161 + $0xb8] sm:$0xff]
        %v3186 = vld [vmem:[%s3161 + $0xc0] sm:$0xff]
        %v3187 = vld [vmem:[%s3161 + $0xc8] sm:$0xff]
        %v3188 = vld [vmem:[%s3161 + $0xd0] sm:$0xff]
        %v3189 = vld [vmem:[%s3161 + $0xd8] sm:$0xff]
        %v3190 = vld [vmem:[%s3161 + $0xe0] sm:$0xff]
        %v3191 = vld [vmem:[%s3161 + $0xe8] sm:$0xff]
        %v3192 = vld [vmem:[%s3161 + $0xf0] sm:$0xff]
        %v3193 = vld [vmem:[%s3161 + $0xf8] sm:$0xff]
        %v3194 = vld [vmem:[%s3161 + $0x100] sm:$0xff]
        %v3195 = vld [vmem:[%s3161 + $0x108] sm:$0xff]
        %v3196 = vld [vmem:[%s3161 + $0x110] sm:$0xff]
        %v3197 = vld [vmem:[%s3161 + $0x118] sm:$0xff]
        %v3198 = vld [vmem:[%s3161 + $0x120] sm:$0xff]
        %v3199 = vld [vmem:[%s3161 + $0x128] sm:$0xff]
        %v3200 = vld [vmem:[%s3161 + $0x130] sm:$0xff]
        %v3201 = vld [vmem:[%s3161 + $0x138] sm:$0xff]
        %v3202 = vld [vmem:[%s3161 + $0x140] sm:$0xff]
        %v3203 = vld [vmem:[%s3161 + $0x148] sm:$0xff]
        %v3204 = vld [vmem:[%s3161 + $0x150] sm:$0xff]
        %v3205 = vld [vmem:[%s3161 + $0x158] sm:$0xff]
        %v3206 = vld [vmem:[%s3161 + $0x160] sm:$0xff]
        %v3207 = vld [vmem:[%s3161 + $0x168] sm:$0xff]
        %v3208 = vld [vmem:[%s3161 + $0x170] sm:$0xff]
        %v3209 = vld [vmem:[%s3161 + $0x178] sm:$0xff]
        %v3210 = vld [vmem:[%s3161 + $0x180] sm:$0xff]
        %v3211 = vld [vmem:[%s3161 + $0x188] sm:$0xff]
        %v3212 = vld [vmem:[%s3161 + $0x190] sm:$0xff]
        %v3213 = vld [vmem:[%s3161 + $0x198] sm:$0xff]
        %v3214 = vld [vmem:[%s3161 + $0x1a0] sm:$0xff]
        %v3215 = vld [vmem:[%s3161 + $0x1a8] sm:$0xff]
        %v3216 = vld [vmem:[%s3161 + $0x1b0] sm:$0xff]
        %v3217 = vld [vmem:[%s3161 + $0x1b8] sm:$0xff]
        %v3218 = vld [vmem:[%s3161 + $0x1c0] sm:$0xff]
        %v3219 = vld [vmem:[%s3161 + $0x1c8] sm:$0xff]
        %v3220 = vld [vmem:[%s3161 + $0x1d0] sm:$0xff]
        %v3221 = vld [vmem:[%s3161 + $0x1d8] sm:$0xff]
        %v3222 = vld [vmem:[%s3161 + $0x1e0] sm:$0xff]
        %v3223 = vld [vmem:[%s3161 + $0x1e8] sm:$0xff]
        %v3224 = vld [vmem:[%s3161 + $0x1f0] sm:$0xff]
        %v3225 = vld [vmem:[%s3161 + $0x1f8] sm:$0xff]
        %v3226 = vld [vmem:[%s3161 + $0x200] sm:$0xff]
        %v3227 = vld [vmem:[%s3161 + $0x208] sm:$0xff]
        %v3228 = vld [vmem:[%s3161 + $0x210] sm:$0xff]
        %v3229 = vld [vmem:[%s3161 + $0x218] sm:$0xff]
        %v3230 = vld [vmem:[%s3161 + $0x220] sm:$0xff]
        %v3231 = vld [vmem:[%s3161 + $0x228] sm:$0xff]
        %v3232 = vld [vmem:[%s3161 + $0x230] sm:$0xff]
        %v3233 = vld [vmem:[%s3161 + $0x238] sm:$0xff]
        %v3234 = vld [vmem:[%s3161 + $0x240] sm:$0xff]
        %v3235 = vld [vmem:[%s3161 + $0x248] sm:$0xff]
        %v3236 = vld [vmem:[%s3161 + $0x250] sm:$0xff]
        %v3237 = vld [vmem:[%s3161 + $0x258] sm:$0xff]
        %v3238 = vld [vmem:[%s3161 + $0x260] sm:$0xff]
        %v3239 = vld [vmem:[%s3161 + $0x268] sm:$0xff]
        %v3240 = vld [vmem:[%s3161 + $0x270] sm:$0xff]
        %v3241 = vld [vmem:[%s3161 + $0x278] sm:$0xff]
        %v3242 = vld [vmem:[%s3161 + $0x280] sm:$0xff]
        %v3243 = vld [vmem:[%s3161 + $0x288] sm:$0xff]
        %v3244 = vld [vmem:[%s3161 + $0x290] sm:$0xff]
        %v3245 = vld [vmem:[%s3161 + $0x298] sm:$0xff]
        %v3246 = vld [vmem:[%s3161 + $0x2a0] sm:$0xff]
        %v3247 = vld [vmem:[%s3161 + $0x2a8] sm:$0xff]
        %v3248 = vld [vmem:[%s3161 + $0x2b0] sm:$0xff]
        %v3249 = vld [vmem:[%s3161 + $0x2b8] sm:$0xff]
        %v3250 = vld [vmem:[%s3161 + $0x2c0] sm:$0xff]
        %v3251 = vld [vmem:[%s3161 + $0x2c8] sm:$0xff]
        %v3252 = vld [vmem:[%s3161 + $0x2d0] sm:$0xff]
        %v3253 = vld [vmem:[%s3161 + $0x2d8] sm:$0xff]
        %v3254 = vld [vmem:[%s3161 + $0x2e0] sm:$0xff]
        %v3255 = vld [vmem:[%s3161 + $0x2e8] sm:$0xff]
        %v3256 = vld [vmem:[%s3161 + $0x2f0] sm:$0xff]
        %v3257 = vld [vmem:[%s3161 + $0x2f8] sm:$0xff]
        %v3258 = vld [vmem:[%s3161 + $0x300] sm:$0xff]
        %v3259 = vld [vmem:[%s3161 + $0x308] sm:$0xff]
        %v3260 = vld [vmem:[%s3161 + $0x310] sm:$0xff]
        %v3261 = vld [vmem:[%s3161 + $0x318] sm:$0xff]
        %v3262 = vld [vmem:[%s3161 + $0x320] sm:$0xff]
        %v3263 = vld [vmem:[%s3161 + $0x328] sm:$0xff]
        %v3264 = vld [vmem:[%s3161 + $0x330] sm:$0xff]
        %v3265 = vld [vmem:[%s3161 + $0x338] sm:$0xff]
        %v3266 = vld [vmem:[%s3161 + $0x340] sm:$0xff]
        %v3267 = vld [vmem:[%s3161 + $0x348] sm:$0xff]
        %v3268 = vld [vmem:[%s3161 + $0x350] sm:$0xff]
        %v3269 = vld [vmem:[%s3161 + $0x358] sm:$0xff]
        %v3270 = vld [vmem:[%s3161 + $0x360] sm:$0xff]
        %v3271 = vld [vmem:[%s3161 + $0x368] sm:$0xff]
        %v3272 = vld [vmem:[%s3161 + $0x370] sm:$0xff]
        %v3273 = vld [vmem:[%s3161 + $0x378] sm:$0xff]
        %v3274 = vld [vmem:[%s3161 + $0x380] sm:$0xff]
        %v3275 = vld [vmem:[%s3161 + $0x388] sm:$0xff]
        %v3276 = vld [vmem:[%s3161 + $0x390] sm:$0xff]
        %v3277 = vld [vmem:[%s3161 + $0x398] sm:$0xff]
        %v3278 = vld [vmem:[%s3161 + $0x3a0] sm:$0xff]
        %v3279 = vld [vmem:[%s3161 + $0x3a8] sm:$0xff]
        %v3280 = vld [vmem:[%s3161 + $0x3b0] sm:$0xff]
        %v3281 = vld [vmem:[%s3161 + $0x3b8] sm:$0xff]
        %v3282 = vld [vmem:[%s3161 + $0x3c0] sm:$0xff]
        %v3283 = vld [vmem:[%s3161 + $0x3c8] sm:$0xff]
        %v3284 = vld [vmem:[%s3161 + $0x3d0] sm:$0xff]
        %v3285 = vld [vmem:[%s3161 + $0x3d8] sm:$0xff]
        %v3286 = vld [vmem:[%s3161 + $0x3e0] sm:$0xff]
        %v3287 = vld [vmem:[%s3161 + $0x3e8] sm:$0xff]
        %v3288 = vld [vmem:[%s3161 + $0x3f0] sm:$0xff]
        %v3289 = vld [vmem:[%s3161 + $0x3f8] sm:$0xff]
        %v3308 = vrot.slane %v3157, 1
        %v3309 = vrot.slane %v3015, 1
        %v3310 = vsel %vm1291, %v3308, %v3309
        %v3311 = vrot.slane %v3158, 1
        %v3312 = vrot.slane %v3016, 1
        %v3313 = vsel %vm1291, %v3311, %v3312
        %v3314 = vrot.slane %v3017, 1
        %v3315 = vsel %vm1291, %v3309, %v3314
        %v3316 = vrot.slane %v3018, 1
        %v3317 = vsel %vm1291, %v3312, %v3316
        %v3318 = vrot.slane %v3019, 1
        %v3319 = vsel %vm1291, %v3314, %v3318
        %v3320 = vrot.slane %v3020, 1
        %v3321 = vsel %vm1291, %v3316, %v3320
        %v3322 = vrot.slane %v3021, 1
        %v3323 = vsel %vm1291, %v3318, %v3322
        %v3324 = vrot.slane %v3022, 1
        %v3325 = vsel %vm1291, %v3320, %v3324
        %v3326 = vrot.slane %v3023, 1
        %v3327 = vsel %vm1291, %v3322, %v3326
        %v3328 = vrot.slane %v3024, 1
        %v3329 = vsel %vm1291, %v3324, %v3328
        %v3330 = vrot.slane %v3025, 1
        %v3331 = vsel %vm1291, %v3326, %v3330
        %v3332 = vrot.slane %v3026, 1
        %v3333 = vsel %vm1291, %v3328, %v3332
        %v3334 = vrot.slane %v3027, 1
        %v3335 = vsel %vm1291, %v3330, %v3334
        %v3336 = vrot.slane %v3028, 1
        %v3337 = vsel %vm1291, %v3332, %v3336
        %v3338 = vrot.slane %v3159, 1
        %v3339 = vsel %vm1291, %v3334, %v3338
        %v3340 = vrot.slane %v3160, 1
        %v3341 = vsel %vm1291, %v3336, %v3340
        %3358 = vmatprep.subr.mxu0 %v3163
        %3359 = vmatpush1.msra.mxu0 %v3162
        %3360 = vmatprep.subr.mxu0 %v3167
        %3361 = vmatpush1.msra.mxu0 %v3166
        %3362 = vmatprep.subr.mxu0 %v3171
        %3363 = vmatpush1.msra.mxu0 %v3170
        %3364 = vmatprep.subr.mxu0 %v3175
        %3365 = vmatpush1.msra.mxu0 %v3174
        %3366 = vmatprep.subr.mxu0 %v3179
        %3367 = vmatpush1.msra.mxu0 %v3178
        %3368 = vmatprep.subr.mxu0 %v3183
        %3369 = vmatpush1.msra.mxu0 %v3182
        %3370 = vmatprep.subr.mxu0 %v3187
        %3371 = vmatpush1.msra.mxu0 %v3186
        %3372 = vmatprep.subr.mxu0 %v3191
        %3373 = vmatpush1.msra.mxu0 %v3190
        %3374 = vmatprep.subr.mxu0 %v3195
        %3375 = vmatpush1.msra.mxu0 %v3194
        %3376 = vmatprep.subr.mxu0 %v3199
        %3377 = vmatpush1.msra.mxu0 %v3198
        %3378 = vmatprep.subr.mxu0 %v3203
        %3379 = vmatpush1.msra.mxu0 %v3202
        %3380 = vmatprep.subr.mxu0 %v3207
        %3381 = vmatpush1.msra.mxu0 %v3206
        %3382 = vmatprep.subr.mxu0 %v3211
        %3383 = vmatpush1.msra.mxu0 %v3210
        %3384 = vmatprep.subr.mxu0 %v3215
        %3385 = vmatpush1.msra.mxu0 %v3214
        %3386 = vmatprep.subr.mxu0 %v3219
        %3387 = vmatpush1.msra.mxu0 %v3218
        %3388 = vmatprep.subr.mxu0 %v3223
        %3389 = vmatpush1.msra.mxu0 %v3222
        %3390 = vmatprep.subr.mxu0 %v3227
        %3391 = vmatpush1.msra.mxu0 %v3226
        %3392 = vmatprep.subr.mxu0 %v3231
        %3393 = vmatpush1.msra.mxu0 %v3230
        %3394 = vmatprep.subr.mxu0 %v3235
        %3395 = vmatpush1.msra.mxu0 %v3234
        %3396 = vmatprep.subr.mxu0 %v3239
        %3397 = vmatpush1.msra.mxu0 %v3238
        %3398 = vmatprep.subr.mxu0 %v3243
        %3399 = vmatpush1.msra.mxu0 %v3242
        %3400 = vmatprep.subr.mxu0 %v3247
        %3401 = vmatpush1.msra.mxu0 %v3246
        %3402 = vmatprep.subr.mxu0 %v3251
        %3403 = vmatpush1.msra.mxu0 %v3250
        %3404 = vmatprep.subr.mxu0 %v3255
        %3405 = vmatpush1.msra.mxu0 %v3254
        %3406 = vmatprep.subr.mxu0 %v3259
        %3407 = vmatpush1.msra.mxu0 %v3258
        %3408 = vmatprep.subr.mxu0 %v3263
        %3409 = vmatpush1.msra.mxu0 %v3262
        %3410 = vmatprep.subr.mxu0 %v3267
        %3411 = vmatpush1.msra.mxu0 %v3266
        %3412 = vmatprep.subr.mxu0 %v3271
        %3413 = vmatpush1.msra.mxu0 %v3270
        %3414 = vmatprep.subr.mxu0 %v3275
        %3415 = vmatpush1.msra.mxu0 %v3274
        %3416 = vmatprep.subr.mxu0 %v3279
        %3417 = vmatpush1.msra.mxu0 %v3278
        %3418 = vmatprep.subr.mxu0 %v3283
        %3419 = vmatpush1.msra.mxu0 %v3282
        %3420 = vmatprep.subr.mxu0 %v3287
        %3421 = vmatpush1.msra.mxu0 %v3286
        %3422 = vmatprep.mubr.f32.mxu0 %v3313
        %3423 = vmatmul.mubr.f32.gmra.mrb[0].mxu0 %v3310
        %v3424 = vpop.f32.mrb[0].mxu0
        %v3425 = vadd.f32 0.0, %v3424
        %v3426 = vpop.f32.mrb[0].mxu0
        %v3427 = vadd.f32 0.0, %v3426
        %3428 = vmatprep.mubr.f32.mxu0 %v3317
        %3429 = vmatmul.mubr.f32.gmra.mrb[0].mxu0 %v3315
        %v3430 = vpop.f32.mrb[0].mxu0
        %v3431 = vadd.f32 0.0, %v3430
        %v3432 = vpop.f32.mrb[0].mxu0
        %v3433 = vadd.f32 0.0, %v3432
        %3434 = vmatprep.mubr.f32.mxu0 %v3321
        %3435 = vmatmul.mubr.f32.gmra.mrb[0].mxu0 %v3319
        %v3436 = vpop.f32.mrb[0].mxu0
        %v3437 = vadd.f32 0.0, %v3436
        %v3438 = vpop.f32.mrb[0].mxu0
        %v3439 = vadd.f32 0.0, %v3438
        %3440 = vmatprep.mubr.f32.mxu0 %v3325
        %3441 = vmatmul.mubr.f32.gmra.mrb[0].mxu0 %v3323
        %v3442 = vpop.f32.mrb[0].mxu0
        %v3443 = vadd.f32 0.0, %v3442
        %v3444 = vpop.f32.mrb[0].mxu0
        %v3445 = vadd.f32 0.0, %v3444
        %3446 = vmatprep.mubr.f32.mxu0 %v3329
        %3447 = vmatmul.mubr.f32.gmra.mrb[0].mxu0 %v3327
        %v3448 = vpop.f32.mrb[0].mxu0
        %v3449 = vadd.f32 0.0, %v3448
        %v3450 = vpop.f32.mrb[0].mxu0
        %v3451 = vadd.f32 0.0, %v3450
        %3452 = vmatprep.mubr.f32.mxu0 %v3333
        %3453 = vmatmul.mubr.f32.gmra.mrb[0].mxu0 %v3331
        %v3454 = vpop.f32.mrb[0].mxu0
        %v3455 = vadd.f32 0.0, %v3454
        %v3456 = vpop.f32.mrb[0].mxu0
        %v3457 = vadd.f32 0.0, %v3456
        %3458 = vmatprep.mubr.f32.mxu0 %v3337
        %3459 = vmatmul.mubr.f32.gmra.mrb[0].mxu0 %v3335
        %v3460 = vpop.f32.mrb[0].mxu0
        %v3461 = vadd.f32 0.0, %v3460
        %v3462 = vpop.f32.mrb[0].mxu0
        %v3463 = vadd.f32 0.0, %v3462
        %3464 = vmatprep.mubr.f32.mxu0 %v3341
        %3465 = vmatmul.mubr.f32.gmra.mrb[0].mxu0 %v3339
        %v3466 = vpop.f32.mrb[0].mxu0
        %v3467 = vadd.f32 0.0, %v3466
        %v3468 = vpop.f32.mrb[0].mxu0
        %v3469 = vadd.f32 0.0, %v3468
        %3470 = vdwg.mxu0
        %3471 = vmatprep.subr.mxu0 %v3165
        %3472 = vmatpush1.msra.mxu0 %v3164
        %3473 = vmatprep.subr.mxu0 %v3169
        %3474 = vmatpush1.msra.mxu0 %v3168
        %3475 = vmatprep.subr.mxu0 %v3173
        %3476 = vmatpush1.msra.mxu0 %v3172
        %3477 = vmatprep.subr.mxu0 %v3177
        %3478 = vmatpush1.msra.mxu0 %v3176
        %3479 = vmatprep.subr.mxu0 %v3181
        %3480 = vmatpush1.msra.mxu0 %v3180
        %3481 = vmatprep.subr.mxu0 %v3185
        %3482 = vmatpush1.msra.mxu0 %v3184
        %3483 = vmatprep.subr.mxu0 %v3189
        %3484 = vmatpush1.msra.mxu0 %v3188
        %3485 = vmatprep.subr.mxu0 %v3193
        %3486 = vmatpush1.msra.mxu0 %v3192
        %3487 = vmatprep.subr.mxu0 %v3197
        %3488 = vmatpush1.msra.mxu0 %v3196
        %3489 = vmatprep.subr.mxu0 %v3201
        %3490 = vmatpush1.msra.mxu0 %v3200
        %3491 = vmatprep.subr.mxu0 %v3205
        %3492 = vmatpush1.msra.mxu0 %v3204
        %3493 = vmatprep.subr.mxu0 %v3209
        %3494 = vmatpush1.msra.mxu0 %v3208
        %3495 = vmatprep.subr.mxu0 %v3213
        %3496 = vmatpush1.msra.mxu0 %v3212
        %3497 = vmatprep.subr.mxu0 %v3217
        %3498 = vmatpush1.msra.mxu0 %v3216
        %3499 = vmatprep.subr.mxu0 %v3221
        %3500 = vmatpush1.msra.mxu0 %v3220
        %3501 = vmatprep.subr.mxu0 %v3225
        %3502 = vmatpush1.msra.mxu0 %v3224
        %3503 = vmatprep.subr.mxu0 %v3229
        %3504 = vmatpush1.msra.mxu0 %v3228
        %3505 = vmatprep.subr.mxu0 %v3233
        %3506 = vmatpush1.msra.mxu0 %v3232
        %3507 = vmatprep.subr.mxu0 %v3237
        %3508 = vmatpush1.msra.mxu0 %v3236
        %3509 = vmatprep.subr.mxu0 %v3241
        %3510 = vmatpush1.msra.mxu0 %v3240
        %3511 = vmatprep.subr.mxu0 %v3245
        %3512 = vmatpush1.msra.mxu0 %v3244
        %3513 = vmatprep.subr.mxu0 %v3249
        %3514 = vmatpush1.msra.mxu0 %v3248
        %3515 = vmatprep.subr.mxu0 %v3253
        %3516 = vmatpush1.msra.mxu0 %v3252
        %3517 = vmatprep.subr.mxu0 %v3257
        %3518 = vmatpush1.msra.mxu0 %v3256
        %3519 = vmatprep.subr.mxu0 %v3261
        %3520 = vmatpush1.msra.mxu0 %v3260
        %3521 = vmatprep.subr.mxu0 %v3265
        %3522 = vmatpush1.msra.mxu0 %v3264
        %3523 = vmatprep.subr.mxu0 %v3269
        %3524 = vmatpush1.msra.mxu0 %v3268
        %3525 = vmatprep.subr.mxu0 %v3273
        %3526 = vmatpush1.msra.mxu0 %v3272
        %3527 = vmatprep.subr.mxu0 %v3277
        %3528 = vmatpush1.msra.mxu0 %v3276
        %3529 = vmatprep.subr.mxu0 %v3281
        %3530 = vmatpush1.msra.mxu0 %v3280
        %3531 = vmatprep.subr.mxu0 %v3285
        %3532 = vmatpush1.msra.mxu0 %v3284
        %3533 = vmatprep.subr.mxu0 %v3289
        %3534 = vmatpush1.msra.mxu0 %v3288
        %3535 = vmatprep.mubr.f32.mxu0 %v3313
        %3536 = vmatmul.mubr.f32.gmra.mrb[0].mxu0 %v3310
        %v3537 = vpop.f32.mrb[0].mxu0
        %v3538 = vadd.f32 0.0, %v3537
        %v3539 = vpop.f32.mrb[0].mxu0
        %v3540 = vadd.f32 0.0, %v3539
        %3541 = vmatprep.mubr.f32.mxu0 %v3317
        %3542 = vmatmul.mubr.f32.gmra.mrb[0].mxu0 %v3315
        %v3543 = vpop.f32.mrb[0].mxu0
        %v3544 = vadd.f32 0.0, %v3543
        %v3545 = vpop.f32.mrb[0].mxu0
        %v3546 = vadd.f32 0.0, %v3545
        %3547 = vmatprep.mubr.f32.mxu0 %v3321
        %3548 = vmatmul.mubr.f32.gmra.mrb[0].mxu0 %v3319
        %v3549 = vpop.f32.mrb[0].mxu0
        %v3550 = vadd.f32 0.0, %v3549
        %v3551 = vpop.f32.mrb[0].mxu0
        %v3552 = vadd.f32 0.0, %v3551
        %3553 = vmatprep.mubr.f32.mxu0 %v3325
        %3554 = vmatmul.mubr.f32.gmra.mrb[0].mxu0 %v3323
        %v3555 = vpop.f32.mrb[0].mxu0
        %v3556 = vadd.f32 0.0, %v3555
        %v3557 = vpop.f32.mrb[0].mxu0
        %v3558 = vadd.f32 0.0, %v3557
        %3559 = vmatprep.mubr.f32.mxu0 %v3329
        %3560 = vmatmul.mubr.f32.gmra.mrb[0].mxu0 %v3327
        %v3561 = vpop.f32.mrb[0].mxu0
        %v3562 = vadd.f32 0.0, %v3561
        %v3563 = vpop.f32.mrb[0].mxu0
        %v3564 = vadd.f32 0.0, %v3563
        %3565 = vmatprep.mubr.f32.mxu0 %v3333
        %3566 = vmatmul.mubr.f32.gmra.mrb[0].mxu0 %v3331
        %v3567 = vpop.f32.mrb[0].mxu0
        %v3568 = vadd.f32 0.0, %v3567
        %v3569 = vpop.f32.mrb[0].mxu0
        %v3570 = vadd.f32 0.0, %v3569
        %3571 = vmatprep.mubr.f32.mxu0 %v3337
        %3572 = vmatmul.mubr.f32.gmra.mrb[0].mxu0 %v3335
        %v3573 = vpop.f32.mrb[0].mxu0
        %v3574 = vadd.f32 0.0, %v3573
        %v3575 = vpop.f32.mrb[0].mxu0
        %v3576 = vadd.f32 0.0, %v3575
        %3577 = vmatprep.mubr.f32.mxu0 %v3341
        %3578 = vmatmul.mubr.f32.gmra.mrb[0].mxu0 %v3339
        %v3579 = vpop.f32.mrb[0].mxu0
        %v3580 = vadd.f32 0.0, %v3579
        %v3581 = vpop.f32.mrb[0].mxu0
        %v3582 = vadd.f32 0.0, %v3581
        %3583 = vdwg.mxu0
        %3584 = vmatprep.subr.mxu0 %v3030
        %3585 = vmatpush1.msra.mxu0 %v3029
        %3586 = vmatprep.subr.mxu0 %v3034
        %3587 = vmatpush1.msra.mxu0 %v3033
        %3588 = vmatprep.subr.mxu0 %v3038
        %3589 = vmatpush1.msra.mxu0 %v3037
        %3590 = vmatprep.subr.mxu0 %v3042
        %3591 = vmatpush1.msra.mxu0 %v3041
        %3592 = vmatprep.subr.mxu0 %v3046
        %3593 = vmatpush1.msra.mxu0 %v3045
        %3594 = vmatprep.subr.mxu0 %v3050
        %3595 = vmatpush1.msra.mxu0 %v3049
        %3596 = vmatprep.subr.mxu0 %v3054
        %3597 = vmatpush1.msra.mxu0 %v3053
        %3598 = vmatprep.subr.mxu0 %v3058
        %3599 = vmatpush1.msra.mxu0 %v3057
        %3600 = vmatprep.subr.mxu0 %v3062
        %3601 = vmatpush1.msra.mxu0 %v3061
        %3602 = vmatprep.subr.mxu0 %v3066
        %3603 = vmatpush1.msra.mxu0 %v3065
        %3604 = vmatprep.subr.mxu0 %v3070
        %3605 = vmatpush1.msra.mxu0 %v3069
        %3606 = vmatprep.subr.mxu0 %v3074
        %3607 = vmatpush1.msra.mxu0 %v3073
        %3608 = vmatprep.subr.mxu0 %v3078
        %3609 = vmatpush1.msra.mxu0 %v3077
        %3610 = vmatprep.subr.mxu0 %v3082
        %3611 = vmatpush1.msra.mxu0 %v3081
        %3612 = vmatprep.subr.mxu0 %v3086
        %3613 = vmatpush1.msra.mxu0 %v3085
        %3614 = vmatprep.subr.mxu0 %v3090
        %3615 = vmatpush1.msra.mxu0 %v3089
        %3616 = vmatprep.subr.mxu0 %v3094
        %3617 = vmatpush1.msra.mxu0 %v3093
        %3618 = vmatprep.subr.mxu0 %v3098
        %3619 = vmatpush1.msra.mxu0 %v3097
        %3620 = vmatprep.subr.mxu0 %v3102
        %3621 = vmatpush1.msra.mxu0 %v3101
        %3622 = vmatprep.subr.mxu0 %v3106
        %3623 = vmatpush1.msra.mxu0 %v3105
        %3624 = vmatprep.subr.mxu0 %v3110
        %3625 = vmatpush1.msra.mxu0 %v3109
        %3626 = vmatprep.subr.mxu0 %v3114
        %3627 = vmatpush1.msra.mxu0 %v3113
        %3628 = vmatprep.subr.mxu0 %v3118
        %3629 = vmatpush1.msra.mxu0 %v3117
        %3630 = vmatprep.subr.mxu0 %v3122
        %3631 = vmatpush1.msra.mxu0 %v3121
        %3632 = vmatprep.subr.mxu0 %v3126
        %3633 = vmatpush1.msra.mxu0 %v3125
        %3634 = vmatprep.subr.mxu0 %v3130
        %3635 = vmatpush1.msra.mxu0 %v3129
        %3636 = vmatprep.subr.mxu0 %v3134
        %3637 = vmatpush1.msra.mxu0 %v3133
        %3638 = vmatprep.subr.mxu0 %v3138
        %3639 = vmatpush1.msra.mxu0 %v3137
        %3640 = vmatprep.subr.mxu0 %v3142
        %3641 = vmatpush1.msra.mxu0 %v3141
        %3642 = vmatprep.subr.mxu0 %v3146
        %3643 = vmatpush1.msra.mxu0 %v3145
        %3644 = vmatprep.subr.mxu0 %v3150
        %3645 = vmatpush1.msra.mxu0 %v3149
        %3646 = vmatprep.subr.mxu0 %v3154
        %3647 = vmatpush1.msra.mxu0 %v3153
        %3648 = vmatprep.mubr.f32.mxu0 %v3014
        %3649 = vmatmul.mubr.f32.gmra.mrb[0].mxu0 %v3013
        %v3650 = vpop.f32.mrb[0].mxu0
        %v3651 = vadd.f32 %v3425, %v3650
        %v3652 = vpop.f32.mrb[0].mxu0
        %v3653 = vadd.f32 %v3427, %v3652
        %3654 = vmatprep.mubr.f32.mxu0 %v3016
        %3655 = vmatmul.mubr.f32.gmra.mrb[0].mxu0 %v3015
        %v3656 = vpop.f32.mrb[0].mxu0
        %v3657 = vadd.f32 %v3431, %v3656
        %v3658 = vpop.f32.mrb[0].mxu0
        %v3659 = vadd.f32 %v3433, %v3658
        %3660 = vmatprep.mubr.f32.mxu0 %v3018
        %3661 = vmatmul.mubr.f32.gmra.mrb[0].mxu0 %v3017
        %v3662 = vpop.f32.mrb[0].mxu0
        %v3663 = vadd.f32 %v3437, %v3662
        %v3664 = vpop.f32.mrb[0].mxu0
        %v3665 = vadd.f32 %v3439, %v3664
        %3666 = vmatprep.mubr.f32.mxu0 %v3020
        %3667 = vmatmul.mubr.f32.gmra.mrb[0].mxu0 %v3019
        %v3668 = vpop.f32.mrb[0].mxu0
        %v3669 = vadd.f32 %v3443, %v3668
        %v3670 = vpop.f32.mrb[0].mxu0
        %v3671 = vadd.f32 %v3445, %v3670
        %3672 = vmatprep.mubr.f32.mxu0 %v3022
        %3673 = vmatmul.mubr.f32.gmra.mrb[0].mxu0 %v3021
        %v3674 = vpop.f32.mrb[0].mxu0
        %v3675 = vadd.f32 %v3449, %v3674
        %v3676 = vpop.f32.mrb[0].mxu0
        %v3677 = vadd.f32 %v3451, %v3676
        %3678 = vmatprep.mubr.f32.mxu0 %v3024
        %3679 = vmatmul.mubr.f32.gmra.mrb[0].mxu0 %v3023
        %v3680 = vpop.f32.mrb[0].mxu0
        %v3681 = vadd.f32 %v3455, %v3680
        %v3682 = vpop.f32.mrb[0].mxu0
        %v3683 = vadd.f32 %v3457, %v3682
        %3684 = vmatprep.mubr.f32.mxu0 %v3026
        %3685 = vmatmul.mubr.f32.gmra.mrb[0].mxu0 %v3025
        %v3686 = vpop.f32.mrb[0].mxu0
        %v3687 = vadd.f32 %v3461, %v3686
        %v3688 = vpop.f32.mrb[0].mxu0
        %v3689 = vadd.f32 %v3463, %v3688
        %3690 = vmatprep.mubr.f32.mxu0 %v3028
        %3691 = vmatmul.mubr.f32.gmra.mrb[0].mxu0 %v3027
        %v3692 = vpop.f32.mrb[0].mxu0
        %v3693 = vadd.f32 %v3467, %v3692
        %v3694 = vpop.f32.mrb[0].mxu0
        %v3695 = vadd.f32 %v3469, %v3694
        %3696 = vdwg.mxu0
        %3697 = vmatprep.subr.mxu0 %v3032
        %3698 = vmatpush1.msra.mxu0 %v3031
        %3699 = vmatprep.subr.mxu0 %v3036
        %3700 = vmatpush1.msra.mxu0 %v3035
        %3701 = vmatprep.subr.mxu0 %v3040
        %3702 = vmatpush1.msra.mxu0 %v3039
        %3703 = vmatprep.subr.mxu0 %v3044
        %3704 = vmatpush1.msra.mxu0 %v3043
        %3705 = vmatprep.subr.mxu0 %v3048
        %3706 = vmatpush1.msra.mxu0 %v3047
        %3707 = vmatprep.subr.mxu0 %v3052
        %3708 = vmatpush1.msra.mxu0 %v3051
        %3709 = vmatprep.subr.mxu0 %v3056
        %3710 = vmatpush1.msra.mxu0 %v3055
        %3711 = vmatprep.subr.mxu0 %v3060
        %3712 = vmatpush1.msra.mxu0 %v3059
        %3713 = vmatprep.subr.mxu0 %v3064
        %3714 = vmatpush1.msra.mxu0 %v3063
        %3715 = vmatprep.subr.mxu0 %v3068
        %3716 = vmatpush1.msra.mxu0 %v3067
        %3717 = vmatprep.subr.mxu0 %v3072
        %3718 = vmatpush1.msra.mxu0 %v3071
        %3719 = vmatprep.subr.mxu0 %v3076
        %3720 = vmatpush1.msra.mxu0 %v3075
        %3721 = vmatprep.subr.mxu0 %v3080
        %3722 = vmatpush1.msra.mxu0 %v3079
        %3723 = vmatprep.subr.mxu0 %v3084
        %3724 = vmatpush1.msra.mxu0 %v3083
        %3725 = vmatprep.subr.mxu0 %v3088
        %3726 = vmatpush1.msra.mxu0 %v3087
        %3727 = vmatprep.subr.mxu0 %v3092
        %3728 = vmatpush1.msra.mxu0 %v3091
        %3729 = vmatprep.subr.mxu0 %v3096
        %3730 = vmatpush1.msra.mxu0 %v3095
        %3731 = vmatprep.subr.mxu0 %v3100
        %3732 = vmatpush1.msra.mxu0 %v3099
        %3733 = vmatprep.subr.mxu0 %v3104
        %3734 = vmatpush1.msra.mxu0 %v3103
        %3735 = vmatprep.subr.mxu0 %v3108
        %3736 = vmatpush1.msra.mxu0 %v3107
        %3737 = vmatprep.subr.mxu0 %v3112
        %3738 = vmatpush1.msra.mxu0 %v3111
        %3739 = vmatprep.subr.mxu0 %v3116
        %3740 = vmatpush1.msra.mxu0 %v3115
        %3741 = vmatprep.subr.mxu0 %v3120
        %3742 = vmatpush1.msra.mxu0 %v3119
        %3743 = vmatprep.subr.mxu0 %v3124
        %3744 = vmatpush1.msra.mxu0 %v3123
        %3745 = vmatprep.subr.mxu0 %v3128
        %3746 = vmatpush1.msra.mxu0 %v3127
        %3747 = vmatprep.subr.mxu0 %v3132
        %3748 = vmatpush1.msra.mxu0 %v3131
        %3749 = vmatprep.subr.mxu0 %v3136
        %3750 = vmatpush1.msra.mxu0 %v3135
        %3751 = vmatprep.subr.mxu0 %v3140
        %3752 = vmatpush1.msra.mxu0 %v3139
        %3753 = vmatprep.subr.mxu0 %v3144
        %3754 = vmatpush1.msra.mxu0 %v3143
        %3755 = vmatprep.subr.mxu0 %v3148
        %3756 = vmatpush1.msra.mxu0 %v3147
        %3757 = vmatprep.subr.mxu0 %v3152
        %3758 = vmatpush1.msra.mxu0 %v3151
        %3759 = vmatprep.subr.mxu0 %v3156
        %3760 = vmatpush1.msra.mxu0 %v3155
        %3761 = vmatprep.mubr.f32.mxu0 %v3014
        %3762 = vmatmul.mubr.f32.gmra.mrb[0].mxu0 %v3013
        %v3763 = vpop.f32.mrb[0].mxu0
        %v3764 = vadd.f32 %v3538, %v3763
        %v3765 = vpop.f32.mrb[0].mxu0
        %v3766 = vadd.f32 %v3540, %v3765
        %3767 = vmatprep.mubr.f32.mxu0 %v3016
        %3768 = vmatmul.mubr.f32.gmra.mrb[0].mxu0 %v3015
        %v3769 = vpop.f32.mrb[0].mxu0
        %v3770 = vadd.f32 %v3544, %v3769
        %v3771 = vpop.f32.mrb[0].mxu0
        %v3772 = vadd.f32 %v3546, %v3771
        %3773 = vmatprep.mubr.f32.mxu0 %v3018
        %3774 = vmatmul.mubr.f32.gmra.mrb[0].mxu0 %v3017
        %v3775 = vpop.f32.mrb[0].mxu0
        %v3776 = vadd.f32 %v3550, %v3775
        %v3777 = vpop.f32.mrb[0].mxu0
        %v3778 = vadd.f32 %v3552, %v3777
        %3779 = vmatprep.mubr.f32.mxu0 %v3020
        %3780 = vmatmul.mubr.f32.gmra.mrb[0].mxu0 %v3019
        %v3781 = vpop.f32.mrb[0].mxu0
        %v3782 = vadd.f32 %v3556, %v3781
        %v3783 = vpop.f32.mrb[0].mxu0
        %v3784 = vadd.f32 %v3558, %v3783
        %3785 = vmatprep.mubr.f32.mxu0 %v3022
        %3786 = vmatmul.mubr.f32.gmra.mrb[0].mxu0 %v3021
        %v3787 = vpop.f32.mrb[0].mxu0
        %v3788 = vadd.f32 %v3562, %v3787
        %v3789 = vpop.f32.mrb[0].mxu0
        %v3790 = vadd.f32 %v3564, %v3789
        %3791 = vmatprep.mubr.f32.mxu0 %v3024
        %3792 = vmatmul.mubr.f32.gmra.mrb[0].mxu0 %v3023
        %v3793 = vpop.f32.mrb[0].mxu0
        %v3794 = vadd.f32 %v3568, %v3793
        %v3795 = vpop.f32.mrb[0].mxu0
        %v3796 = vadd.f32 %v3570, %v3795
        %3797 = vmatprep.mubr.f32.mxu0 %v3026
        %3798 = vmatmul.mubr.f32.gmra.mrb[0].mxu0 %v3025
        %v3799 = vpop.f32.mrb[0].mxu0
        %v3800 = vadd.f32 %v3574, %v3799
        %v3801 = vpop.f32.mrb[0].mxu0
        %v3802 = vadd.f32 %v3576, %v3801
        %3803 = vmatprep.mubr.f32.mxu0 %v3028
        %3804 = vmatmul.mubr.f32.gmra.mrb[0].mxu0 %v3027
        %v3805 = vpop.f32.mrb[0].mxu0
        %v3806 = vadd.f32 %v3580, %v3805
        %v3807 = vpop.f32.mrb[0].mxu0
        %v3808 = vadd.f32 %v3582, %v3807
        %3809 = vdwg.mxu0
        %v3810 = vld [vmem:[#allocation6] sm:$0xfc]
        %v3811 = vld [vmem:[#allocation6 + $0x8] sm:$0xfc]
        %v3812 = vld [vmem:[#allocation6 + $0x80] sm:$0x3]
        %v3813 = vld [vmem:[#allocation6 + $0x88] sm:$0x3]
        %s3814 = scalar_lea.vmem [#allocation11], 2048
        %v3815 = vld [vmem:[%s3814] sm:$0xff]
        %v3816 = vld [vmem:[%s3814 + $0x8] sm:$0xff]
        %v3817 = vld [vmem:[%s3814 + $0x10] sm:$0xff]
        %v3818 = vld [vmem:[%s3814 + $0x18] sm:$0xff]
        %v3819 = vld [vmem:[%s3814 + $0x20] sm:$0xff]
        %v3820 = vld [vmem:[%s3814 + $0x28] sm:$0xff]
        %v3821 = vld [vmem:[%s3814 + $0x30] sm:$0xff]
        %v3822 = vld [vmem:[%s3814 + $0x38] sm:$0xff]
        %v3823 = vld [vmem:[%s3814 + $0x40] sm:$0xff]
        %v3824 = vld [vmem:[%s3814 + $0x48] sm:$0xff]
        %v3825 = vld [vmem:[%s3814 + $0x50] sm:$0xff]
        %v3826 = vld [vmem:[%s3814 + $0x58] sm:$0xff]
        %v3827 = vld [vmem:[%s3814 + $0x60] sm:$0xff]
        %v3828 = vld [vmem:[%s3814 + $0x68] sm:$0xff]
        %v3829 = vld [vmem:[%s3814 + $0x70] sm:$0xff]
        %v3830 = vld [vmem:[%s3814 + $0x78] sm:$0xff]
        %v3831 = vld [vmem:[%s3814 + $0x80] sm:$0xff]
        %v3832 = vld [vmem:[%s3814 + $0x88] sm:$0xff]
        %v3833 = vld [vmem:[%s3814 + $0x90] sm:$0xff]
        %v3834 = vld [vmem:[%s3814 + $0x98] sm:$0xff]
        %v3835 = vld [vmem:[%s3814 + $0xa0] sm:$0xff]
        %v3836 = vld [vmem:[%s3814 + $0xa8] sm:$0xff]
        %v3837 = vld [vmem:[%s3814 + $0xb0] sm:$0xff]
        %v3838 = vld [vmem:[%s3814 + $0xb8] sm:$0xff]
        %v3839 = vld [vmem:[%s3814 + $0xc0] sm:$0xff]
        %v3840 = vld [vmem:[%s3814 + $0xc8] sm:$0xff]
        %v3841 = vld [vmem:[%s3814 + $0xd0] sm:$0xff]
        %v3842 = vld [vmem:[%s3814 + $0xd8] sm:$0xff]
        %v3843 = vld [vmem:[%s3814 + $0xe0] sm:$0xff]
        %v3844 = vld [vmem:[%s3814 + $0xe8] sm:$0xff]
        %v3845 = vld [vmem:[%s3814 + $0xf0] sm:$0xff]
        %v3846 = vld [vmem:[%s3814 + $0xf8] sm:$0xff]
        %v3847 = vld [vmem:[%s3814 + $0x100] sm:$0xff]
        %v3848 = vld [vmem:[%s3814 + $0x108] sm:$0xff]
        %v3849 = vld [vmem:[%s3814 + $0x110] sm:$0xff]
        %v3850 = vld [vmem:[%s3814 + $0x118] sm:$0xff]
        %v3851 = vld [vmem:[%s3814 + $0x120] sm:$0xff]
        %v3852 = vld [vmem:[%s3814 + $0x128] sm:$0xff]
        %v3853 = vld [vmem:[%s3814 + $0x130] sm:$0xff]
        %v3854 = vld [vmem:[%s3814 + $0x138] sm:$0xff]
        %v3855 = vld [vmem:[%s3814 + $0x140] sm:$0xff]
        %v3856 = vld [vmem:[%s3814 + $0x148] sm:$0xff]
        %v3857 = vld [vmem:[%s3814 + $0x150] sm:$0xff]
        %v3858 = vld [vmem:[%s3814 + $0x158] sm:$0xff]
        %v3859 = vld [vmem:[%s3814 + $0x160] sm:$0xff]
        %v3860 = vld [vmem:[%s3814 + $0x168] sm:$0xff]
        %v3861 = vld [vmem:[%s3814 + $0x170] sm:$0xff]
        %v3862 = vld [vmem:[%s3814 + $0x178] sm:$0xff]
        %v3863 = vld [vmem:[%s3814 + $0x180] sm:$0xff]
        %v3864 = vld [vmem:[%s3814 + $0x188] sm:$0xff]
        %v3865 = vld [vmem:[%s3814 + $0x190] sm:$0xff]
        %v3866 = vld [vmem:[%s3814 + $0x198] sm:$0xff]
        %v3867 = vld [vmem:[%s3814 + $0x1a0] sm:$0xff]
        %v3868 = vld [vmem:[%s3814 + $0x1a8] sm:$0xff]
        %v3869 = vld [vmem:[%s3814 + $0x1b0] sm:$0xff]
        %v3870 = vld [vmem:[%s3814 + $0x1b8] sm:$0xff]
        %v3871 = vld [vmem:[%s3814 + $0x1c0] sm:$0xff]
        %v3872 = vld [vmem:[%s3814 + $0x1c8] sm:$0xff]
        %v3873 = vld [vmem:[%s3814 + $0x1d0] sm:$0xff]
        %v3874 = vld [vmem:[%s3814 + $0x1d8] sm:$0xff]
        %v3875 = vld [vmem:[%s3814 + $0x1e0] sm:$0xff]
        %v3876 = vld [vmem:[%s3814 + $0x1e8] sm:$0xff]
        %v3877 = vld [vmem:[%s3814 + $0x1f0] sm:$0xff]
        %v3878 = vld [vmem:[%s3814 + $0x1f8] sm:$0xff]
        %v3879 = vld [vmem:[%s3814 + $0x200] sm:$0xff]
        %v3880 = vld [vmem:[%s3814 + $0x208] sm:$0xff]
        %v3881 = vld [vmem:[%s3814 + $0x210] sm:$0xff]
        %v3882 = vld [vmem:[%s3814 + $0x218] sm:$0xff]
        %v3883 = vld [vmem:[%s3814 + $0x220] sm:$0xff]
        %v3884 = vld [vmem:[%s3814 + $0x228] sm:$0xff]
        %v3885 = vld [vmem:[%s3814 + $0x230] sm:$0xff]
        %v3886 = vld [vmem:[%s3814 + $0x238] sm:$0xff]
        %v3887 = vld [vmem:[%s3814 + $0x240] sm:$0xff]
        %v3888 = vld [vmem:[%s3814 + $0x248] sm:$0xff]
        %v3889 = vld [vmem:[%s3814 + $0x250] sm:$0xff]
        %v3890 = vld [vmem:[%s3814 + $0x258] sm:$0xff]
        %v3891 = vld [vmem:[%s3814 + $0x260] sm:$0xff]
        %v3892 = vld [vmem:[%s3814 + $0x268] sm:$0xff]
        %v3893 = vld [vmem:[%s3814 + $0x270] sm:$0xff]
        %v3894 = vld [vmem:[%s3814 + $0x278] sm:$0xff]
        %v3895 = vld [vmem:[%s3814 + $0x280] sm:$0xff]
        %v3896 = vld [vmem:[%s3814 + $0x288] sm:$0xff]
        %v3897 = vld [vmem:[%s3814 + $0x290] sm:$0xff]
        %v3898 = vld [vmem:[%s3814 + $0x298] sm:$0xff]
        %v3899 = vld [vmem:[%s3814 + $0x2a0] sm:$0xff]
        %v3900 = vld [vmem:[%s3814 + $0x2a8] sm:$0xff]
        %v3901 = vld [vmem:[%s3814 + $0x2b0] sm:$0xff]
        %v3902 = vld [vmem:[%s3814 + $0x2b8] sm:$0xff]
        %v3903 = vld [vmem:[%s3814 + $0x2c0] sm:$0xff]
        %v3904 = vld [vmem:[%s3814 + $0x2c8] sm:$0xff]
        %v3905 = vld [vmem:[%s3814 + $0x2d0] sm:$0xff]
        %v3906 = vld [vmem:[%s3814 + $0x2d8] sm:$0xff]
        %v3907 = vld [vmem:[%s3814 + $0x2e0] sm:$0xff]
        %v3908 = vld [vmem:[%s3814 + $0x2e8] sm:$0xff]
        %v3909 = vld [vmem:[%s3814 + $0x2f0] sm:$0xff]
        %v3910 = vld [vmem:[%s3814 + $0x2f8] sm:$0xff]
        %v3911 = vld [vmem:[%s3814 + $0x300] sm:$0xff]
        %v3912 = vld [vmem:[%s3814 + $0x308] sm:$0xff]
        %v3913 = vld [vmem:[%s3814 + $0x310] sm:$0xff]
        %v3914 = vld [vmem:[%s3814 + $0x318] sm:$0xff]
        %v3915 = vld [vmem:[%s3814 + $0x320] sm:$0xff]
        %v3916 = vld [vmem:[%s3814 + $0x328] sm:$0xff]
        %v3917 = vld [vmem:[%s3814 + $0x330] sm:$0xff]
        %v3918 = vld [vmem:[%s3814 + $0x338] sm:$0xff]
        %v3919 = vld [vmem:[%s3814 + $0x340] sm:$0xff]
        %v3920 = vld [vmem:[%s3814 + $0x348] sm:$0xff]
        %v3921 = vld [vmem:[%s3814 + $0x350] sm:$0xff]
        %v3922 = vld [vmem:[%s3814 + $0x358] sm:$0xff]
        %v3923 = vld [vmem:[%s3814 + $0x360] sm:$0xff]
        %v3924 = vld [vmem:[%s3814 + $0x368] sm:$0xff]
        %v3925 = vld [vmem:[%s3814 + $0x370] sm:$0xff]
        %v3926 = vld [vmem:[%s3814 + $0x378] sm:$0xff]
        %v3927 = vld [vmem:[%s3814 + $0x380] sm:$0xff]
        %v3928 = vld [vmem:[%s3814 + $0x388] sm:$0xff]
        %v3929 = vld [vmem:[%s3814 + $0x390] sm:$0xff]
        %v3930 = vld [vmem:[%s3814 + $0x398] sm:$0xff]
        %v3931 = vld [vmem:[%s3814 + $0x3a0] sm:$0xff]
        %v3932 = vld [vmem:[%s3814 + $0x3a8] sm:$0xff]
        %v3933 = vld [vmem:[%s3814 + $0x3b0] sm:$0xff]
        %v3934 = vld [vmem:[%s3814 + $0x3b8] sm:$0xff]
        %v3935 = vld [vmem:[%s3814 + $0x3c0] sm:$0xff]
        %v3936 = vld [vmem:[%s3814 + $0x3c8] sm:$0xff]
        %v3937 = vld [vmem:[%s3814 + $0x3d0] sm:$0xff]
        %v3938 = vld [vmem:[%s3814 + $0x3d8] sm:$0xff]
        %v3939 = vld [vmem:[%s3814 + $0x3e0] sm:$0xff]
        %v3940 = vld [vmem:[%s3814 + $0x3e8] sm:$0xff]
        %v3941 = vld [vmem:[%s3814 + $0x3f0] sm:$0xff]
        %v3942 = vld [vmem:[%s3814 + $0x3f8] sm:$0xff]
        %v3947 = vrot.slane %v3810, 2
        %v3948 = vrot.slane %v3015, 2
        %v3949 = vsel %vm1515, %v3947, %v3948
        %v3950 = vrot.slane %v3811, 2
        %v3951 = vrot.slane %v3016, 2
        %v3952 = vsel %vm1515, %v3950, %v3951
        %v3953 = vrot.slane %v3017, 2
        %v3954 = vsel %vm1515, %v3948, %v3953
        %v3955 = vrot.slane %v3018, 2
        %v3956 = vsel %vm1515, %v3951, %v3955
        %v3957 = vrot.slane %v3019, 2
        %v3958 = vsel %vm1515, %v3953, %v3957
        %v3959 = vrot.slane %v3020, 2
        %v3960 = vsel %vm1515, %v3955, %v3959
        %v3961 = vrot.slane %v3021, 2
        %v3962 = vsel %vm1515, %v3957, %v3961
        %v3963 = vrot.slane %v3022, 2
        %v3964 = vsel %vm1515, %v3959, %v3963
        %v3965 = vrot.slane %v3023, 2
        %v3966 = vsel %vm1515, %v3961, %v3965
        %v3967 = vrot.slane %v3024, 2
        %v3968 = vsel %vm1515, %v3963, %v3967
        %v3969 = vrot.slane %v3025, 2
        %v3970 = vsel %vm1515, %v3965, %v3969
        %v3971 = vrot.slane %v3026, 2
        %v3972 = vsel %vm1515, %v3967, %v3971
        %v3973 = vrot.slane %v3027, 2
        %v3974 = vsel %vm1515, %v3969, %v3973
        %v3975 = vrot.slane %v3028, 2
        %v3976 = vsel %vm1515, %v3971, %v3975
        %v3977 = vrot.slane %v3812, 2
        %v3978 = vsel %vm1515, %v3973, %v3977
        %v3979 = vrot.slane %v3813, 2
        %v3980 = vsel %vm1515, %v3975, %v3979
        %3997 = vmatprep.subr.mxu0 %v3816
        %3998 = vmatpush1.msra.mxu0 %v3815
        %3999 = vmatprep.subr.mxu0 %v3820
        %4000 = vmatpush1.msra.mxu0 %v3819
        %4001 = vmatprep.subr.mxu0 %v3824
        %4002 = vmatpush1.msra.mxu0 %v3823
        %4003 = vmatprep.subr.mxu0 %v3828
        %4004 = vmatpush1.msra.mxu0 %v3827
        %4005 = vmatprep.subr.mxu0 %v3832
        %4006 = vmatpush1.msra.mxu0 %v3831
        %4007 = vmatprep.subr.mxu0 %v3836
        %4008 = vmatpush1.msra.mxu0 %v3835
        %4009 = vmatprep.subr.mxu0 %v3840
        %4010 = vmatpush1.msra.mxu0 %v3839
        %4011 = vmatprep.subr.mxu0 %v3844
        %4012 = vmatpush1.msra.mxu0 %v3843
        %4013 = vmatprep.subr.mxu0 %v3848
        %4014 = vmatpush1.msra.mxu0 %v3847
        %4015 = vmatprep.subr.mxu0 %v3852
        %4016 = vmatpush1.msra.mxu0 %v3851
        %4017 = vmatprep.subr.mxu0 %v3856
        %4018 = vmatpush1.msra.mxu0 %v3855
        %4019 = vmatprep.subr.mxu0 %v3860
        %4020 = vmatpush1.msra.mxu0 %v3859
        %4021 = vmatprep.subr.mxu0 %v3864
        %4022 = vmatpush1.msra.mxu0 %v3863
        %4023 = vmatprep.subr.mxu0 %v3868
        %4024 = vmatpush1.msra.mxu0 %v3867
        %4025 = vmatprep.subr.mxu0 %v3872
        %4026 = vmatpush1.msra.mxu0 %v3871
        %4027 = vmatprep.subr.mxu0 %v3876
        %4028 = vmatpush1.msra.mxu0 %v3875
        %4029 = vmatprep.subr.mxu0 %v3880
        %4030 = vmatpush1.msra.mxu0 %v3879
        %4031 = vmatprep.subr.mxu0 %v3884
        %4032 = vmatpush1.msra.mxu0 %v3883
        %4033 = vmatprep.subr.mxu0 %v3888
        %4034 = vmatpush1.msra.mxu0 %v3887
        %4035 = vmatprep.subr.mxu0 %v3892
        %4036 = vmatpush1.msra.mxu0 %v3891
        %4037 = vmatprep.subr.mxu0 %v3896
        %4038 = vmatpush1.msra.mxu0 %v3895
        %4039 = vmatprep.subr.mxu0 %v3900
        %4040 = vmatpush1.msra.mxu0 %v3899
        %4041 = vmatprep.subr.mxu0 %v3904
        %4042 = vmatpush1.msra.mxu0 %v3903
        %4043 = vmatprep.subr.mxu0 %v3908
        %4044 = vmatpush1.msra.mxu0 %v3907
        %4045 = vmatprep.subr.mxu0 %v3912
        %4046 = vmatpush1.msra.mxu0 %v3911
        %4047 = vmatprep.subr.mxu0 %v3916
        %4048 = vmatpush1.msra.mxu0 %v3915
        %4049 = vmatprep.subr.mxu0 %v3920
        %4050 = vmatpush1.msra.mxu0 %v3919
        %4051 = vmatprep.subr.mxu0 %v3924
        %4052 = vmatpush1.msra.mxu0 %v3923
        %4053 = vmatprep.subr.mxu0 %v3928
        %4054 = vmatpush1.msra.mxu0 %v3927
        %4055 = vmatprep.subr.mxu0 %v3932
        %4056 = vmatpush1.msra.mxu0 %v3931
        %4057 = vmatprep.subr.mxu0 %v3936
        %4058 = vmatpush1.msra.mxu0 %v3935
        %4059 = vmatprep.subr.mxu0 %v3940
        %4060 = vmatpush1.msra.mxu0 %v3939
        %4061 = vmatprep.mubr.f32.mxu0 %v3952
        %4062 = vmatmul.mubr.f32.gmra.mrb[0].mxu0 %v3949
        %v4063 = vpop.f32.mrb[0].mxu0
        %v4064 = vadd.f32 0.0, %v4063
        %v4065 = vpop.f32.mrb[0].mxu0
        %v4066 = vadd.f32 0.0, %v4065
        %4067 = vmatprep.mubr.f32.mxu0 %v3956
        %4068 = vmatmul.mubr.f32.gmra.mrb[0].mxu0 %v3954
        %v4069 = vpop.f32.mrb[0].mxu0
        %v4070 = vadd.f32 0.0, %v4069
        %v4071 = vpop.f32.mrb[0].mxu0
        %v4072 = vadd.f32 0.0, %v4071
        %4073 = vmatprep.mubr.f32.mxu0 %v3960
        %4074 = vmatmul.mubr.f32.gmra.mrb[0].mxu0 %v3958
        %v4075 = vpop.f32.mrb[0].mxu0
        %v4076 = vadd.f32 0.0, %v4075
        %v4077 = vpop.f32.mrb[0].mxu0
        %v4078 = vadd.f32 0.0, %v4077
        %4079 = vmatprep.mubr.f32.mxu0 %v3964
        %4080 = vmatmul.mubr.f32.gmra.mrb[0].mxu0 %v3962
        %v4081 = vpop.f32.mrb[0].mxu0
        %v4082 = vadd.f32 0.0, %v4081
        %v4083 = vpop.f32.mrb[0].mxu0
        %v4084 = vadd.f32 0.0, %v4083
        %4085 = vmatprep.mubr.f32.mxu0 %v3968
        %4086 = vmatmul.mubr.f32.gmra.mrb[0].mxu0 %v3966
        %v4087 = vpop.f32.mrb[0].mxu0
        %v4088 = vadd.f32 0.0, %v4087
        %v4089 = vpop.f32.mrb[0].mxu0
        %v4090 = vadd.f32 0.0, %v4089
        %4091 = vmatprep.mubr.f32.mxu0 %v3972
        %4092 = vmatmul.mubr.f32.gmra.mrb[0].mxu0 %v3970
        %v4093 = vpop.f32.mrb[0].mxu0
        %v4094 = vadd.f32 0.0, %v4093
        %v4095 = vpop.f32.mrb[0].mxu0
        %v4096 = vadd.f32 0.0, %v4095
        %4097 = vmatprep.mubr.f32.mxu0 %v3976
        %4098 = vmatmul.mubr.f32.gmra.mrb[0].mxu0 %v3974
        %v4099 = vpop.f32.mrb[0].mxu0
        %v4100 = vadd.f32 0.0, %v4099
        %v4101 = vpop.f32.mrb[0].mxu0
        %v4102 = vadd.f32 0.0, %v4101
        %4103 = vmatprep.mubr.f32.mxu0 %v3980
        %4104 = vmatmul.mubr.f32.gmra.mrb[0].mxu0 %v3978
        %v4105 = vpop.f32.mrb[0].mxu0
        %v4106 = vadd.f32 0.0, %v4105
        %v4107 = vpop.f32.mrb[0].mxu0
        %v4108 = vadd.f32 0.0, %v4107
        %4109 = vdwg.mxu0
        %4110 = vmatprep.subr.mxu0 %v3818
        %4111 = vmatpush1.msra.mxu0 %v3817
        %4112 = vmatprep.subr.mxu0 %v3822
        %4113 = vmatpush1.msra.mxu0 %v3821
        %4114 = vmatprep.subr.mxu0 %v3826
        %4115 = vmatpush1.msra.mxu0 %v3825
        %4116 = vmatprep.subr.mxu0 %v3830
        %4117 = vmatpush1.msra.mxu0 %v3829
        %4118 = vmatprep.subr.mxu0 %v3834
        %4119 = vmatpush1.msra.mxu0 %v3833
        %4120 = vmatprep.subr.mxu0 %v3838
        %4121 = vmatpush1.msra.mxu0 %v3837
        %4122 = vmatprep.subr.mxu0 %v3842
        %4123 = vmatpush1.msra.mxu0 %v3841
        %4124 = vmatprep.subr.mxu0 %v3846
        %4125 = vmatpush1.msra.mxu0 %v3845
        %4126 = vmatprep.subr.mxu0 %v3850
        %4127 = vmatpush1.msra.mxu0 %v3849
        %4128 = vmatprep.subr.mxu0 %v3854
        %4129 = vmatpush1.msra.mxu0 %v3853
        %4130 = vmatprep.subr.mxu0 %v3858
        %4131 = vmatpush1.msra.mxu0 %v3857
        %4132 = vmatprep.subr.mxu0 %v3862
        %4133 = vmatpush1.msra.mxu0 %v3861
        %4134 = vmatprep.subr.mxu0 %v3866
        %4135 = vmatpush1.msra.mxu0 %v3865
        %4136 = vmatprep.subr.mxu0 %v3870
        %4137 = vmatpush1.msra.mxu0 %v3869
        %4138 = vmatprep.subr.mxu0 %v3874
        %4139 = vmatpush1.msra.mxu0 %v3873
        %4140 = vmatprep.subr.mxu0 %v3878
        %4141 = vmatpush1.msra.mxu0 %v3877
        %4142 = vmatprep.subr.mxu0 %v3882
        %4143 = vmatpush1.msra.mxu0 %v3881
        %4144 = vmatprep.subr.mxu0 %v3886
        %4145 = vmatpush1.msra.mxu0 %v3885
        %4146 = vmatprep.subr.mxu0 %v3890
        %4147 = vmatpush1.msra.mxu0 %v3889
        %4148 = vmatprep.subr.mxu0 %v3894
        %4149 = vmatpush1.msra.mxu0 %v3893
        %4150 = vmatprep.subr.mxu0 %v3898
        %4151 = vmatpush1.msra.mxu0 %v3897
        %4152 = vmatprep.subr.mxu0 %v3902
        %4153 = vmatpush1.msra.mxu0 %v3901
        %4154 = vmatprep.subr.mxu0 %v3906
        %4155 = vmatpush1.msra.mxu0 %v3905
        %4156 = vmatprep.subr.mxu0 %v3910
        %4157 = vmatpush1.msra.mxu0 %v3909
        %4158 = vmatprep.subr.mxu0 %v3914
        %4159 = vmatpush1.msra.mxu0 %v3913
        %4160 = vmatprep.subr.mxu0 %v3918
        %4161 = vmatpush1.msra.mxu0 %v3917
        %4162 = vmatprep.subr.mxu0 %v3922
        %4163 = vmatpush1.msra.mxu0 %v3921
        %4164 = vmatprep.subr.mxu0 %v3926
        %4165 = vmatpush1.msra.mxu0 %v3925
        %4166 = vmatprep.subr.mxu0 %v3930
        %4167 = vmatpush1.msra.mxu0 %v3929
        %4168 = vmatprep.subr.mxu0 %v3934
        %4169 = vmatpush1.msra.mxu0 %v3933
        %4170 = vmatprep.subr.mxu0 %v3938
        %4171 = vmatpush1.msra.mxu0 %v3937
        %4172 = vmatprep.subr.mxu0 %v3942
        %4173 = vmatpush1.msra.mxu0 %v3941
        %4174 = vmatprep.mubr.f32.mxu0 %v3952
        %4175 = vmatmul.mubr.f32.gmra.mrb[0].mxu0 %v3949
        %v4176 = vpop.f32.mrb[0].mxu0
        %v4177 = vadd.f32 0.0, %v4176
        %v4178 = vpop.f32.mrb[0].mxu0
        %v4179 = vadd.f32 0.0, %v4178
        %4180 = vmatprep.mubr.f32.mxu0 %v3956
        %4181 = vmatmul.mubr.f32.gmra.mrb[0].mxu0 %v3954
        %v4182 = vpop.f32.mrb[0].mxu0
        %v4183 = vadd.f32 0.0, %v4182
        %v4184 = vpop.f32.mrb[0].mxu0
        %v4185 = vadd.f32 0.0, %v4184
        %4186 = vmatprep.mubr.f32.mxu0 %v3960
        %4187 = vmatmul.mubr.f32.gmra.mrb[0].mxu0 %v3958
        %v4188 = vpop.f32.mrb[0].mxu0
        %v4189 = vadd.f32 0.0, %v4188
        %v4190 = vpop.f32.mrb[0].mxu0
        %v4191 = vadd.f32 0.0, %v4190
        %4192 = vmatprep.mubr.f32.mxu0 %v3964
        %4193 = vmatmul.mubr.f32.gmra.mrb[0].mxu0 %v3962
        %v4194 = vpop.f32.mrb[0].mxu0
        %v4195 = vadd.f32 0.0, %v4194
        %v4196 = vpop.f32.mrb[0].mxu0
        %v4197 = vadd.f32 0.0, %v4196
        %4198 = vmatprep.mubr.f32.mxu0 %v3968
        %4199 = vmatmul.mubr.f32.gmra.mrb[0].mxu0 %v3966
        %v4200 = vpop.f32.mrb[0].mxu0
        %v4201 = vadd.f32 0.0, %v4200
        %v4202 = vpop.f32.mrb[0].mxu0
        %v4203 = vadd.f32 0.0, %v4202
        %4204 = vmatprep.mubr.f32.mxu0 %v3972
        %4205 = vmatmul.mubr.f32.gmra.mrb[0].mxu0 %v3970
        %v4206 = vpop.f32.mrb[0].mxu0
        %v4207 = vadd.f32 0.0, %v4206
        %v4208 = vpop.f32.mrb[0].mxu0
        %v4209 = vadd.f32 0.0, %v4208
        %4210 = vmatprep.mubr.f32.mxu0 %v3976
        %4211 = vmatmul.mubr.f32.gmra.mrb[0].mxu0 %v3974
        %v4212 = vpop.f32.mrb[0].mxu0
        %v4213 = vadd.f32 0.0, %v4212
        %v4214 = vpop.f32.mrb[0].mxu0
        %v4215 = vadd.f32 0.0, %v4214
        %4216 = vmatprep.mubr.f32.mxu0 %v3980
        %4217 = vmatmul.mubr.f32.gmra.mrb[0].mxu0 %v3978
        %v4218 = vpop.f32.mrb[0].mxu0
        %v4219 = vadd.f32 0.0, %v4218
        %v4220 = vpop.f32.mrb[0].mxu0
        %v4221 = vadd.f32 0.0, %v4220
        %4222 = vdwg.mxu0
        %v4223 = vadd.f32 %v3651, %v4064
        %v4224 = vadd.f32 %v3653, %v4066
        %v4225 = vadd.f32 %v3764, %v4177
        %v4226 = vadd.f32 %v3766, %v4179
        %v4227 = vadd.f32 %v3657, %v4070
        %v4228 = vadd.f32 %v3659, %v4072
        %v4229 = vadd.f32 %v3770, %v4183
        %v4230 = vadd.f32 %v3772, %v4185
        %v4231 = vadd.f32 %v3663, %v4076
        %v4232 = vadd.f32 %v3665, %v4078
        %v4233 = vadd.f32 %v3776, %v4189
        %v4234 = vadd.f32 %v3778, %v4191
        %v4235 = vadd.f32 %v3669, %v4082
        %v4236 = vadd.f32 %v3671, %v4084
        %v4237 = vadd.f32 %v3782, %v4195
        %v4238 = vadd.f32 %v3784, %v4197
        %v4239 = vadd.f32 %v3675, %v4088
        %v4240 = vadd.f32 %v3677, %v4090
        %v4241 = vadd.f32 %v3788, %v4201
        %v4242 = vadd.f32 %v3790, %v4203
        %v4243 = vadd.f32 %v3681, %v4094
        %v4244 = vadd.f32 %v3683, %v4096
        %v4245 = vadd.f32 %v3794, %v4207
        %v4246 = vadd.f32 %v3796, %v4209
        %v4247 = vadd.f32 %v3687, %v4100
        %v4248 = vadd.f32 %v3689, %v4102
        %v4249 = vadd.f32 %v3800, %v4213
        %v4250 = vadd.f32 %v3802, %v4215
        %v4251 = vadd.f32 %v3693, %v4106
        %v4252 = vadd.f32 %v3695, %v4108
        %v4253 = vadd.f32 %v3806, %v4219
        %v4254 = vadd.f32 %v3808, %v4221
        %v4255 = vld [vmem:[#allocation18] sm:$0xf]
        %v4257 = vlaneseq
        %v4258 = vshrl.u32 %v4257, 7
        %v4259 = vsub.s32 0, %v4258
        %v4260 = vrot.slane %v4255, %v4259
        %v4261 = vlaneseq
        %v4262 = vshrl.u32 %v4261, 7
        %v4263 = vsub.s32 1, %v4262
        %v4264 = vrot.slane %v4255, %v4263
        %v4265 = vlaneseq
        %v4266 = vshrl.u32 %v4265, 7
        %v4267 = vsub.s32 2, %v4266
        %v4268 = vrot.slane %v4255, %v4267
        %v4269 = vlaneseq
        %v4270 = vshrl.u32 %v4269, 7
        %v4271 = vsub.s32 3, %v4270
        %v4272 = vrot.slane %v4255, %v4271
        %v4277 = vadd.f32 %v4223, %v4260
        %v4278 = vadd.f32 %v4224, %v4264
        %v4279 = vadd.f32 %v4225, %v4268
        %v4280 = vadd.f32 %v4226, %v4272
        %v4281 = vadd.f32 %v4227, %v4260
        %v4282 = vadd.f32 %v4228, %v4264
        %v4283 = vadd.f32 %v4229, %v4268
        %v4284 = vadd.f32 %v4230, %v4272
        %v4285 = vadd.f32 %v4231, %v4260
        %v4286 = vadd.f32 %v4232, %v4264
        %v4287 = vadd.f32 %v4233, %v4268
        %v4288 = vadd.f32 %v4234, %v4272
        %v4289 = vadd.f32 %v4235, %v4260
        %v4290 = vadd.f32 %v4236, %v4264
        %v4291 = vadd.f32 %v4237, %v4268
        %v4292 = vadd.f32 %v4238, %v4272
        %v4293 = vadd.f32 %v4239, %v4260
        %v4294 = vadd.f32 %v4240, %v4264
        %v4295 = vadd.f32 %v4241, %v4268
        %v4296 = vadd.f32 %v4242, %v4272
        %v4297 = vadd.f32 %v4243, %v4260
        %v4298 = vadd.f32 %v4244, %v4264
        %v4299 = vadd.f32 %v4245, %v4268
        %v4300 = vadd.f32 %v4246, %v4272
        %v4301 = vadd.f32 %v4247, %v4260
        %v4302 = vadd.f32 %v4248, %v4264
        %v4303 = vadd.f32 %v4249, %v4268
        %v4304 = vadd.f32 %v4250, %v4272
        %v4305 = vadd.f32 %v4251, %v4260
        %v4306 = vadd.f32 %v4252, %v4264
        %v4307 = vadd.f32 %v4253, %v4268
        %v4308 = vadd.f32 %v4254, %v4272
        %v4309 = vxor.u32 %v4277, 2147483648
        %v4310 = vxor.u32 %v4278, 2147483648
        %v4311 = vxor.u32 %v4279, 2147483648
        %v4312 = vxor.u32 %v4280, 2147483648
        %v4313 = vxor.u32 %v4281, 2147483648
        %v4314 = vxor.u32 %v4282, 2147483648
        %v4315 = vxor.u32 %v4283, 2147483648
        %v4316 = vxor.u32 %v4284, 2147483648
        %v4317 = vxor.u32 %v4285, 2147483648
        %v4318 = vxor.u32 %v4286, 2147483648
        %v4319 = vxor.u32 %v4287, 2147483648
        %v4320 = vxor.u32 %v4288, 2147483648
        %v4321 = vxor.u32 %v4289, 2147483648
        %v4322 = vxor.u32 %v4290, 2147483648
        %v4323 = vxor.u32 %v4291, 2147483648
        %v4324 = vxor.u32 %v4292, 2147483648
        %v4325 = vxor.u32 %v4293, 2147483648
        %v4326 = vxor.u32 %v4294, 2147483648
        %v4327 = vxor.u32 %v4295, 2147483648
        %v4328 = vxor.u32 %v4296, 2147483648
        %v4329 = vxor.u32 %v4297, 2147483648
        %v4330 = vxor.u32 %v4298, 2147483648
        %v4331 = vxor.u32 %v4299, 2147483648
        %v4332 = vxor.u32 %v4300, 2147483648
        %v4333 = vxor.u32 %v4301, 2147483648
        %v4334 = vxor.u32 %v4302, 2147483648
        %v4335 = vxor.u32 %v4303, 2147483648
        %v4336 = vxor.u32 %v4304, 2147483648
        %v4337 = vxor.u32 %v4305, 2147483648
        %v4338 = vxor.u32 %v4306, 2147483648
        %v4339 = vxor.u32 %v4307, 2147483648
        %v4340 = vxor.u32 %v4308, 2147483648
        %v4341 = vmul.f32 %v4309, 1.442695
        %v4342 = vpow.pop %v4341
        %v4343 = vmul.f32 %v4310, 1.442695
        %v4344 = vpow.pop %v4343
        %v4345 = vmul.f32 %v4311, 1.442695
        %v4346 = vpow.pop %v4345
        %v4347 = vmul.f32 %v4312, 1.442695
        %v4348 = vpow.pop %v4347
        %v4349 = vmul.f32 %v4313, 1.442695
        %v4350 = vpow.pop %v4349
        %v4351 = vmul.f32 %v4314, 1.442695
        %v4352 = vpow.pop %v4351
        %v4353 = vmul.f32 %v4315, 1.442695
        %v4354 = vpow.pop %v4353
        %v4355 = vmul.f32 %v4316, 1.442695
        %v4356 = vpow.pop %v4355
        %v4357 = vmul.f32 %v4317, 1.442695
        %v4358 = vpow.pop %v4357
        %v4359 = vmul.f32 %v4318, 1.442695
        %v4360 = vpow.pop %v4359
        %v4361 = vmul.f32 %v4319, 1.442695
        %v4362 = vpow.pop %v4361
        %v4363 = vmul.f32 %v4320, 1.442695
        %v4364 = vpow.pop %v4363
        %v4365 = vmul.f32 %v4321, 1.442695
        %v4366 = vpow.pop %v4365
        %v4367 = vmul.f32 %v4322, 1.442695
        %v4368 = vpow.pop %v4367
        %v4369 = vmul.f32 %v4323, 1.442695
        %v4370 = vpow.pop %v4369
        %v4371 = vmul.f32 %v4324, 1.442695
        %v4372 = vpow.pop %v4371
        %v4373 = vmul.f32 %v4325, 1.442695
        %v4374 = vpow.pop %v4373
        %v4375 = vmul.f32 %v4326, 1.442695
        %v4376 = vpow.pop %v4375
        %v4377 = vmul.f32 %v4327, 1.442695
        %v4378 = vpow.pop %v4377
        %v4379 = vmul.f32 %v4328, 1.442695
        %v4380 = vpow.pop %v4379
        %v4381 = vmul.f32 %v4329, 1.442695
        %v4382 = vpow.pop %v4381
        %v4383 = vmul.f32 %v4330, 1.442695
        %v4384 = vpow.pop %v4383
        %v4385 = vmul.f32 %v4331, 1.442695
        %v4386 = vpow.pop %v4385
        %v4387 = vmul.f32 %v4332, 1.442695
        %v4388 = vpow.pop %v4387
        %v4389 = vmul.f32 %v4333, 1.442695
        %v4390 = vpow.pop %v4389
        %v4391 = vmul.f32 %v4334, 1.442695
        %v4392 = vpow.pop %v4391
        %v4393 = vmul.f32 %v4335, 1.442695
        %v4394 = vpow.pop %v4393
        %v4395 = vmul.f32 %v4336, 1.442695
        %v4396 = vpow.pop %v4395
        %v4397 = vmul.f32 %v4337, 1.442695
        %v4398 = vpow.pop %v4397
        %v4399 = vmul.f32 %v4338, 1.442695
        %v4400 = vpow.pop %v4399
        %v4401 = vmul.f32 %v4339, 1.442695
        %v4402 = vpow.pop %v4401
        %v4403 = vmul.f32 %v4340, 1.442695
        %v4404 = vpow.pop %v4403
        %v4405 = vadd.f32 %v4342, 1.0
        %v4406 = vadd.f32 %v4344, 1.0
        %v4407 = vadd.f32 %v4346, 1.0
        %v4408 = vadd.f32 %v4348, 1.0
        %v4409 = vadd.f32 %v4350, 1.0
        %v4410 = vadd.f32 %v4352, 1.0
        %v4411 = vadd.f32 %v4354, 1.0
        %v4412 = vadd.f32 %v4356, 1.0
        %v4413 = vadd.f32 %v4358, 1.0
        %v4414 = vadd.f32 %v4360, 1.0
        %v4415 = vadd.f32 %v4362, 1.0
        %v4416 = vadd.f32 %v4364, 1.0
        %v4417 = vadd.f32 %v4366, 1.0
        %v4418 = vadd.f32 %v4368, 1.0
        %v4419 = vadd.f32 %v4370, 1.0
        %v4420 = vadd.f32 %v4372, 1.0
        %v4421 = vadd.f32 %v4374, 1.0
        %v4422 = vadd.f32 %v4376, 1.0
        %v4423 = vadd.f32 %v4378, 1.0
        %v4424 = vadd.f32 %v4380, 1.0
        %v4425 = vadd.f32 %v4382, 1.0
        %v4426 = vadd.f32 %v4384, 1.0
        %v4427 = vadd.f32 %v4386, 1.0
        %v4428 = vadd.f32 %v4388, 1.0
        %v4429 = vadd.f32 %v4390, 1.0
        %v4430 = vadd.f32 %v4392, 1.0
        %v4431 = vadd.f32 %v4394, 1.0
        %v4432 = vadd.f32 %v4396, 1.0
        %v4433 = vadd.f32 %v4398, 1.0
        %v4434 = vadd.f32 %v4400, 1.0
        %v4435 = vadd.f32 %v4402, 1.0
        %v4436 = vadd.f32 %v4404, 1.0
        %v4437 = vrcp.pop %v4405
        %v4438 = vmul.f32 1.0, %v4437
        %v4439 = vrcp.pop %v4406
        %v4440 = vmul.f32 1.0, %v4439
        %v4441 = vrcp.pop %v4407
        %v4442 = vmul.f32 1.0, %v4441
        %v4443 = vrcp.pop %v4408
        %v4444 = vmul.f32 1.0, %v4443
        %v4445 = vrcp.pop %v4409
        %v4446 = vmul.f32 1.0, %v4445
        %v4447 = vrcp.pop %v4410
        %v4448 = vmul.f32 1.0, %v4447
        %v4449 = vrcp.pop %v4411
        %v4450 = vmul.f32 1.0, %v4449
        %v4451 = vrcp.pop %v4412
        %v4452 = vmul.f32 1.0, %v4451
        %v4453 = vrcp.pop %v4413
        %v4454 = vmul.f32 1.0, %v4453
        %v4455 = vrcp.pop %v4414
        %v4456 = vmul.f32 1.0, %v4455
        %v4457 = vrcp.pop %v4415
        %v4458 = vmul.f32 1.0, %v4457
        %v4459 = vrcp.pop %v4416
        %v4460 = vmul.f32 1.0, %v4459
        %v4461 = vrcp.pop %v4417
        %v4462 = vmul.f32 1.0, %v4461
        %v4463 = vrcp.pop %v4418
        %v4464 = vmul.f32 1.0, %v4463
        %v4465 = vrcp.pop %v4419
        %v4466 = vmul.f32 1.0, %v4465
        %v4467 = vrcp.pop %v4420
        %v4468 = vmul.f32 1.0, %v4467
        %v4469 = vrcp.pop %v4421
        %v4470 = vmul.f32 1.0, %v4469
        %v4471 = vrcp.pop %v4422
        %v4472 = vmul.f32 1.0, %v4471
        %v4473 = vrcp.pop %v4423
        %v4474 = vmul.f32 1.0, %v4473
        %v4475 = vrcp.pop %v4424
        %v4476 = vmul.f32 1.0, %v4475
        %v4477 = vrcp.pop %v4425
        %v4478 = vmul.f32 1.0, %v4477
        %v4479 = vrcp.pop %v4426
        %v4480 = vmul.f32 1.0, %v4479
        %v4481 = vrcp.pop %v4427
        %v4482 = vmul.f32 1.0, %v4481
        %v4483 = vrcp.pop %v4428
        %v4484 = vmul.f32 1.0, %v4483
        %v4485 = vrcp.pop %v4429
        %v4486 = vmul.f32 1.0, %v4485
        %v4487 = vrcp.pop %v4430
        %v4488 = vmul.f32 1.0, %v4487
        %v4489 = vrcp.pop %v4431
        %v4490 = vmul.f32 1.0, %v4489
        %v4491 = vrcp.pop %v4432
        %v4492 = vmul.f32 1.0, %v4491
        %v4493 = vrcp.pop %v4433
        %v4494 = vmul.f32 1.0, %v4493
        %v4495 = vrcp.pop %v4434
        %v4496 = vmul.f32 1.0, %v4495
        %v4497 = vrcp.pop %v4435
        %v4498 = vmul.f32 1.0, %v4497
        %v4499 = vrcp.pop %v4436
        %v4500 = vmul.f32 1.0, %v4499
        %4501 = vst [vmem:[%s675] sm:$0xff] %v4438
        %4502 = vst [vmem:[%s675 + $0x8] sm:$0xff] %v4440
        %4503 = vst [vmem:[%s675 + $0x10] sm:$0xff] %v4442
        %4504 = vst [vmem:[%s675 + $0x18] sm:$0xff] %v4444
        %4505 = vst [vmem:[%s675 + $0x20] sm:$0xff] %v4446
        %4506 = vst [vmem:[%s675 + $0x28] sm:$0xff] %v4448
        %4507 = vst [vmem:[%s675 + $0x30] sm:$0xff] %v4450
        %4508 = vst [vmem:[%s675 + $0x38] sm:$0xff] %v4452
        %4509 = vst [vmem:[%s675 + $0x40] sm:$0xff] %v4454
        %4510 = vst [vmem:[%s675 + $0x48] sm:$0xff] %v4456
        %4511 = vst [vmem:[%s675 + $0x50] sm:$0xff] %v4458
        %4512 = vst [vmem:[%s675 + $0x58] sm:$0xff] %v4460
        %4513 = vst [vmem:[%s675 + $0x60] sm:$0xff] %v4462
        %4514 = vst [vmem:[%s675 + $0x68] sm:$0xff] %v4464
        %4515 = vst [vmem:[%s675 + $0x70] sm:$0xff] %v4466
        %4516 = vst [vmem:[%s675 + $0x78] sm:$0xff] %v4468
        %4517 = vst [vmem:[%s675 + $0x80] sm:$0xff] %v4470
        %4518 = vst [vmem:[%s675 + $0x88] sm:$0xff] %v4472
        %4519 = vst [vmem:[%s675 + $0x90] sm:$0xff] %v4474
        %4520 = vst [vmem:[%s675 + $0x98] sm:$0xff] %v4476
        %4521 = vst [vmem:[%s675 + $0xa0] sm:$0xff] %v4478
        %4522 = vst [vmem:[%s675 + $0xa8] sm:$0xff] %v4480
        %4523 = vst [vmem:[%s675 + $0xb0] sm:$0xff] %v4482
        %4524 = vst [vmem:[%s675 + $0xb8] sm:$0xff] %v4484
        %4525 = vst [vmem:[%s675 + $0xc0] sm:$0xff] %v4486
        %4526 = vst [vmem:[%s675 + $0xc8] sm:$0xff] %v4488
        %4527 = vst [vmem:[%s675 + $0xd0] sm:$0xff] %v4490
        %4528 = vst [vmem:[%s675 + $0xd8] sm:$0xff] %v4492
        %4529 = vst [vmem:[%s675 + $0xe0] sm:$0xff] %v4494
        %4530 = vst [vmem:[%s675 + $0xe8] sm:$0xff] %v4496
        %4531 = vst [vmem:[%s675 + $0xf0] sm:$0xff] %v4498
        %4532 = vst [vmem:[%s675 + $0xf8] sm:$0xff] %v4500
        %p4533 = scmp.lt.s32.totalorder %s31, 1
        %s4534 = scalar_select %p4533, %s31, 1
        %s4535 = smul.addr %s4534, 32
        %s4536 = smul.addr %s4535, 8
        %s4537 = scalar_lea.vmem %s15, %s4536
        // Predicated region
        $region113: #{passive_sep_dec_forward.1} parent=79 // pred_check
          %p4538 = pneg %p389
        $region114: #{passive_sep_dec_forward.1} parent=79 // pred_check_branch
          %4540 = sbr.rel (%p4538) target = $region116
        $region115: #{passive_sep_dec_forward.1} parent=79 // pred_region
          _
        $region116: #{passive_sep_dec_forward.1} parent=79 // pred_fallthru
          _
      $region80: #{passive_sep_dec_forward.1} parent=5 // pred_fallthru
        _
      %p4541 = scmp.le.s32.totalorder 2, %s26
      // Predicated region
      $region117: #{passive_sep_dec_forward.1} parent=5 // pred_check
        %p4542 = pneg %p4541
      $region118: #{passive_sep_dec_forward.1} parent=5 // pred_check_branch
        %4544 = sbr.rel (%p4542) target = $region120
      $region119: #{passive_sep_dec_forward.1} parent=5 // pred_region
        %s4545 = ssub.s32 %s26, 2
        // Predicated region
        $region121: #{passive_sep_dec_forward.1} parent=119 // pred_check
          %p4546 = pneg %p395
        $region122: #{passive_sep_dec_forward.1} parent=119 // pred_check_branch
          %4548 = sbr.rel (%p4546) target = $region124
        $region123: #{passive_sep_dec_forward.1} parent=119 // pred_region
          %p4549 = scmp.lt.s32.totalorder %s32, 1
          %s4550 = scalar_select %p4549, %s32, 1
          %s4551 = smul.addr %s4550, 32
          %s4552 = smul.addr %s4551, 8
          %s4553 = scalar_lea.vmem %s15, %s4552
        $region124: #{passive_sep_dec_forward.1} parent=119 // pred_fallthru
          _
      $region120: #{passive_sep_dec_forward.1} parent=5 // pred_fallthru
        _
    $region6: #{passive_sep_dec_forward.1} parent=1 // loop_footer
      %s30 = sadd.s32 1, %s26
    $region7: #{passive_sep_dec_forward.1} parent=1 // loop_footer_branch
      %25 = sbr.rel target = $region3
    $region8: #{passive_sep_dec_forward.1} parent=1 // loop_exit
      _
    %4554 = vsyncpa [#allocation8], 1
    %s4555 = scalar_lea.sflag [#allocation8], 1
    %4556 = vsyncpa %s4555, 1
    %4557 = vsyncpa [#allocation10], 1
    %4558 = vsyncpa [#allocation13], 1
    %4559 = vsyncpa [#allocation16], 1
    %4560 = vsyncpa [#allocation19], 1

</llo_original>
